<compile_context>
chip_gen: v7x
topology: tpu7x:2x2x1
jax: 0.10.0
libtpu: 0.0.40
codegen_flags: <defaults>
</compile_context>

<pallas_src>
import functools

import jax
import jax.numpy as jnp
from jax.experimental import pallas as pl
from jax.experimental.pallas import tpu as pltpu

_LANE = 128


def _round_up(v, m):
    return ((v + m - 1) // m) * m


def _vmem_limit_bytes():
    """Generation-aware scoped-VMEM limit (~96 MiB v5e/v6e, ~48 MiB v7x)."""
    try:
        cap = int(pltpu.get_tpu_info().vmem_capacity_bytes)
        return max(32 * 1024 * 1024, min(cap * 3 // 4, 96 * 1024 * 1024))
    except Exception:  # unknown generation -> conservative (fits v7x)
        return 48 * 1024 * 1024


def _compiler_params():
    return pltpu.CompilerParams(
        dimension_semantics=("parallel",),
        vmem_limit_bytes=_vmem_limit_bytes(),
    )


# ----------------------------------------------------------------------------
# Fused whole-decoder kernel (one batch element per grid step)
# ----------------------------------------------------------------------------
def _decoder_kernel(*args, T, h0, ce_p, w_p, dilations, down_t, depth):
    """Whole decoder for one batch element; activation stays in VMEM throughout.

    The activation is kept in polyphase form: after `s` upsamples it is
    P = 2**s phases of length T, stored side-by-side as (T, P*W) columns in two
    halo'd VMEM scratch buffers (A = raw, B = relu'd).  For a k=3 conv with
    dilation d on the P-phase signal, flat sample n = t*P + p and tap n+delta
    lives at phase (p+delta) % P with a *static* time shift (p+delta)//P, so
    every operand is a plain window load from the scratch (zero halo rows
    supply the padding) feeding an accumulating MXU matmul.
    """
    o_ref, a_scr, b_scr = args[-3], args[-2], args[-1]
    it = iter(args[:-3])
    x_ref = next(it)
    f32 = jnp.float32
    dt = a_scr.dtype

    # Zero once: halo rows must stay zero; middle rows are overwritten below.
    a_scr[...] = jnp.zeros_like(a_scr)
    b_scr[...] = jnp.zeros_like(b_scr)

    def win(src, shift, col0, ncols):
        # (T, ncols) time-window at a static shift, read straight from the
        # halo'd scratch -> no (T, 3C) concatenated operand is materialized.
        return src[h0 + shift:h0 + shift + T, col0:col0 + ncols]

    def put(dst, col0, val):
        dst[h0:h0 + T, col0:col0 + val.shape[1]] = val

    def conv3(src, taps, bias, P, d, C):
        """k=3 conv (dilation d) over the P-phase signal in `src` (f32 out)."""
        outs = []
        for p in range(P):
            acc = None
            for w_tap, delta in zip(taps, (-d, 0, d)):
                a = p + delta
                q, k = a % P, a // P
                v = jnp.dot(win(src, k, q * C, C), w_tap,
                            preferred_element_type=f32)
                acc = v if acc is None else acc + v
            outs.append(acc + bias)
        return outs

    # ---- head: Conv1d(C_emb -> W, k3, p1) -> ReLU ---------------------------
    w_h, b_h = next(it), next(it)
    put(a_scr, 0, x_ref[0])
    y = conv3(a_scr, (w_h[0], w_h[1], w_h[2]), b_h[...], 1, 1, ce_p)[0]
    y = jnp.maximum(y, 0.0).astype(dt)
    put(a_scr, 0, y)                       # raw (already >= 0, so ...)
    put(b_scr, 0, y)                       # ... the relu'd copy is identical

    P = 1
    for s in range(down_t):
        # -- Resnet1D: depth x (relu -> conv3(dil) -> relu -> conv1 -> + x) ---
        for blk in range(depth):
            d = dilations[blk]
            w1, b1, w2, b2 = next(it), next(it), next(it), next(it)
            taps = (w1[0], w1[1], w1[2])
            b1v, w2v, b2v = b1[...], w2[...], b2[...]
            hs = conv3(b_scr, taps, b1v, P, d, w_p)         # reads relu(x)
            ys = []
            for p in range(P):
                h = jnp.maximum(hs[p], 0.0).astype(dt)
                yp = jnp.dot(h, w2v, preferred_element_type=f32) + b2v
                yp = yp + win(a_scr, 0, p * w_p, w_p).astype(f32)  # + residual
                ys.append(yp)
            for p, yp in enumerate(ys):                     # all reads done
                put(a_scr, p * w_p, yp.astype(dt))
                put(b_scr, p * w_p, jnp.maximum(yp, 0.0).astype(dt))

        # -- Upsample(x2, nearest) + Conv1d(k3, p1), polyphase-fused ----------
        wu, bu = next(it), next(it)        # wu: (2, 2, W, W) pre-combined taps
        wu00, wu01, wu10, wu11 = wu[0, 0], wu[0, 1], wu[1, 0], wu[1, 1]
        buv = bu[...]
        ys = []
        for r in range(2 * P):
            rho, par = r // 2, r % 2
            terms = ((rho - 1, wu00), (rho, wu01)) if par == 0 else \
                    ((rho, wu10), (rho + 1, wu11))
            acc = None
            for q2, w in terms:
                q, k = q2 % P, q2 // P
                v = jnp.dot(win(a_scr, k, q * w_p, w_p), w,
                            preferred_element_type=f32)
                acc = v if acc is None else acc + v
            ys.append(acc + buv)
        P *= 2
        last = (s == down_t - 1)
        for r, yp in enumerate(ys):
            put(a_scr, r * w_p, yp.astype(dt))
            if not last:                                    # tail reads raw A
                put(b_scr, r * w_p, jnp.maximum(yp, 0.0).astype(dt))

    # ---- tail: Conv1d(W,W,k3) -> ReLU -> Conv1d(W,C_in,k3) ------------------
    wt1, bt1, wt2, bt2 = next(it), next(it), next(it), next(it)
    hs = conv3(a_scr, (wt1[0], wt1[1], wt1[2]), bt1[...], P, 1, w_p)
    for p in range(P):
        put(b_scr, p * w_p, jnp.maximum(hs[p], 0.0).astype(dt))
    outs = conv3(b_scr, (wt2[0], wt2[1], wt2[2]), bt2[...], P, 1, w_p)
    for p in range(P):
        o_ref[0, p] = outs[p].astype(o_ref.dtype)


# ----------------------------------------------------------------------------
# pallas_call wrapper
# ----------------------------------------------------------------------------
def _full_spec(arr):
    nd = arr.ndim
    return pl.BlockSpec(arr.shape, lambda i, _nd=nd: (0,) * _nd)


def _decoder_pallas(x_nlc, flat_params, *, down_t, depth, dilations,
                    ce_p, w_p, co_p, act_dtype):
    B, T, _ = x_nlc.shape
    pf = 2 ** down_t
    halo = max([1] + list(dilations))
    h0 = _round_up(halo, 8)                 # sublane-aligned activation rows
    rows = h0 + T + halo
    wcols = max(ce_p, w_p * pf)

    kernel = functools.partial(
        _decoder_kernel, T=T, h0=h0, ce_p=ce_p, w_p=w_p,
        dilations=tuple(int(d) for d in dilations),
        down_t=down_t, depth=depth)

    in_specs = [pl.BlockSpec((1, T, ce_p), lambda i: (i, 0, 0))]
    in_specs += [_full_spec(a) for a in flat_params]

    # TODO(synk): add a halo'd time-tile grid axis (plus multi-batch row blocks)
    # so production width=512 / long sequences fit v7x's 64 MiB VMEM and raise
    # the rows-per-MXU-push; whole-T-per-batch blocks are fine at these shapes.
    return pl.pallas_call(
        kernel,
        out_shape=jax.ShapeDtypeStruct((B, pf, T, co_p), jnp.float32),
        grid=(B,),
        in_specs=in_specs,
        out_specs=pl.BlockSpec((1, pf, T, co_p), lambda i: (i, 0, 0, 0)),
        scratch_shapes=[pltpu.VMEM((rows, wcols), act_dtype),   # A: raw act
                        pltpu.VMEM((rows, wcols), act_dtype)],  # B: relu'd act
        compiler_params=_compiler_params(),
    )(x_nlc, *flat_params)


# ----------------------------------------------------------------------------
# Parameter init (torch-like) and kernel-ready preparation
# ----------------------------------------------------------------------------
def _conv_init(key, cin, cout, k):
    """PyTorch Conv1d-style uniform init; weights tap-major (k, cin, cout)."""
    kw, kb = jax.random.split(key)
    bound = 1.0 / jnp.sqrt(jnp.float32(cin * k))
    w = jax.random.uniform(kw, (k, cin, cout), jnp.float32, -bound, bound)
    b = jax.random.uniform(kb, (cout,), jnp.float32, -bound, bound)
    return w, b


def init_decoder_params(key, *, input_emb_width, output_emb_width, width,
                        down_t, depth):
    n_convs = 1 + down_t * (2 * depth + 1) + 2
    keys = iter(jax.random.split(key, n_convs))
    params = {"in_conv": _conv_init(next(keys), output_emb_width, width, 3)}
    stages = []
    for _ in range(down_t):
        res = []
        for _ in range(depth):
            res.append((_conv_init(next(keys), width, width, 3),   # conv1 k3
                        _conv_init(next(keys), width, width, 1)))  # conv2 k1
        stages.append({"res": res, "up": _conv_init(next(keys), width, width, 3)})
    params["stages"] = stages
    params["tail1"] = _conv_init(next(keys), width, width, 3)
    params["tail2"] = _conv_init(next(keys), width, input_emb_width, 3)
    return params


def prepare_decoder_params(raw, *, input_emb_width, output_emb_width, width,
                           dtype=jnp.float32):
    """Pad channels to lane multiples once; flatten into the kernel arg order."""
    ce_p = _round_up(output_emb_width, _LANE)
    w_p = _round_up(width, _LANE)
    co_p = _round_up(input_emb_width, _LANE)

    def pad_w(w, cin_p, cout_p):
        _, cin, cout = w.shape
        return jnp.pad(w, ((0, 0), (0, cin_p - cin), (0, cout_p - cout)))

    def pad_b(b, cout_p):
        return jnp.pad(b, (0, cout_p - b.shape[0])).reshape(1, cout_p).astype(
            jnp.float32)   # biases stay f32 (added on the f32 accumulator)

    flat = []
    w, b = raw["in_conv"]
    flat += [pad_w(w, ce_p, w_p).astype(dtype), pad_b(b, w_p)]
    for st in raw["stages"]:
        for (w1, b1), (w2, b2) in st["res"]:
            flat += [pad_w(w1, w_p, w_p).astype(dtype), pad_b(b1, w_p),
                     pad_w(w2, w_p, w_p)[0].astype(dtype), pad_b(b2, w_p)]
        wu, bu = st["up"]
        wu = pad_w(wu, w_p, w_p)
        # Polyphase nearest-upsample x2 fused with the k3 conv:
        #   even out: w0 @ x[prev phase] + (w1+w2) @ x[same phase]
        #   odd  out: (w0+w1) @ x[same phase] + w2 @ x[next phase]
        w_comb = jnp.stack([jnp.stack([wu[0], wu[1] + wu[2]]),
                            jnp.stack([wu[0] + wu[1], wu[2]])]).astype(dtype)
        flat += [w_comb, pad_b(bu, w_p)]
    w1, b1 = raw["tail1"]
    w2, b2 = raw["tail2"]
    flat += [pad_w(w1, w_p, w_p).astype(dtype), pad_b(b1, w_p),
             pad_w(w2, w_p, co_p).astype(dtype), pad_b(b2, co_p)]
    return flat


# ----------------------------------------------------------------------------
# Forward pass (public wrapper, PyTorch NCL layout)
# ----------------------------------------------------------------------------
def spatial_mlp_decoder_forward(x_ncl, flat_params, *, down_t, depth,
                                dilation_growth_rate, input_emb_width,
                                output_emb_width, width,
                                act_dtype=jnp.float32):
    """x_ncl: (N, output_emb_width, T) -> (N, input_emb_width, T * 2**down_t)."""
    N, c_emb, T = x_ncl.shape
    ce_p = _round_up(output_emb_width, _LANE)
    w_p = _round_up(width, _LANE)
    co_p = _round_up(input_emb_width, _LANE)
    # Resnet1D with reverse_dilation=True: first block has the largest dilation.
    dilations = [dilation_growth_rate ** i for i in range(depth)][::-1]

    x = jnp.transpose(x_ncl, (0, 2, 1)).astype(act_dtype)        # NCL -> NLC
    if ce_p != c_emb:                                            # lane-dense pad
        x = jnp.pad(x, ((0, 0), (0, 0), (0, ce_p - c_emb)))

    out = _decoder_pallas(x, flat_params, down_t=down_t, depth=depth,
                          dilations=dilations, ce_p=ce_p, w_p=w_p, co_p=co_p,
                          act_dtype=act_dtype)                   # (N,Pf,T,co_p)

    pf = 2 ** down_t
    y = out[:, :, :, :input_emb_width]                           # strip lane pad
    # [n, p, t, c] -> [n, c, t, p] -> (N, C_in, T*Pf): flat time = t*Pf + p, so
    # the phase de-interleave rides along with the NCL transpose we need anyway.
    y = jnp.transpose(y, (0, 3, 2, 1)).reshape(N, input_emb_width, T * pf)
    return y.astype(jnp.float32)


# ----------------------------------------------------------------------------
# Pure-JAX reference (numerical parity with the PyTorch module)
# ----------------------------------------------------------------------------
def _ref_conv1d(x, w, b, dilation=1):
    B, T, _ = x.shape
    k = w.shape[0]
    pad = dilation * (k - 1) // 2
    xp = jnp.pad(x, ((0, 0), (pad, pad), (0, 0)))
    out = jnp.zeros((B, T, w.shape[2]), jnp.float32) + b
    for i in range(k):
        out = out + jnp.einsum("btc,cd->btd",
                               xp[:, i * dilation:i * dilation + T, :], w[i],
                               precision=jax.lax.Precision.HIGHEST)
    return out


def reference_forward(x_ncl, raw, *, depth, dilation_growth_rate):
    x = jnp.transpose(x_ncl, (0, 2, 1))
    w, b = raw["in_conv"]
    x = jax.nn.relu(_ref_conv1d(x, w, b))
    dilations = [dilation_growth_rate ** d for d in range(depth)][::-1]
    for st in raw["stages"]:
        for ((w1, b1), (w2, b2)), d in zip(st["res"], dilations):
            h = _ref_conv1d(jax.nn.relu(x), w1, b1, dilation=d)
            h = _ref_conv1d(jax.nn.relu(h), w2, b2)
            x = x + h
        x = jnp.repeat(x, 2, axis=1)
        wu, bu = st["up"]
        x = _ref_conv1d(x, wu, bu)
    w1, b1 = raw["tail1"]
    w2, b2 = raw["tail2"]
    x = jax.nn.relu(_ref_conv1d(x, w1, b1))
    x = _ref_conv1d(x, w2, b2)
    return jnp.transpose(x, (0, 2, 1))


# ----------------------------------------------------------------------------
# Demo
# ----------------------------------------------------------------------------
if __name__ == "__main__":
    # Small config consistent with the module (defaults scaled down).
    input_emb_width = 3
    output_emb_width = 32
    width = 32
    down_t = 2
    depth = 2
    dilation_growth_rate = 3
    batch, seq = 2, 8

    key = jax.random.PRNGKey(0)
    k_x, k_p = jax.random.split(key)

    # PyTorch layout: (N, output_emb_width, T)
    x = jax.random.normal(k_x, (batch, output_emb_width, seq), jnp.float32)

    raw_params = init_decoder_params(
        k_p, input_emb_width=input_emb_width, output_emb_width=output_emb_width,
        width=width, down_t=down_t, depth=depth)

    common = dict(down_t=down_t, depth=depth,
                  dilation_growth_rate=dilation_growth_rate,
                  input_emb_width=input_emb_width,
                  output_emb_width=output_emb_width, width=width)

    # f32 path: strict parity vs the pure-JAX reference of the PyTorch module.
    flat_f32 = prepare_decoder_params(
        raw_params, input_emb_width=input_emb_width,
        output_emb_width=output_emb_width, width=width, dtype=jnp.float32)
    fwd_f32 = jax.jit(functools.partial(
        spatial_mlp_decoder_forward, act_dtype=jnp.float32, **common))
    out = jax.block_until_ready(fwd_f32(x, flat_f32))

    expected_shape = (batch, input_emb_width, seq * (2 ** down_t))
    assert out.shape == expected_shape, (out.shape, expected_shape)
    assert bool(jnp.all(jnp.isfinite(out)))

    ref = jax.block_until_ready(reference_forward(
        x, raw_params, depth=depth, dilation_growth_rate=dilation_growth_rate))
    max_err = float(jnp.max(jnp.abs(out - ref)))
    assert max_err < 2e-3, f"f32 parity check failed: max abs err {max_err}"

    # bf16 fast path (v6e/v7x): same kernel, half the VMEM/HBM traffic, bf16
    # MXU rate; f32 accumulation/bias.  Checked for shape + finiteness here
    # (bf16 numerics are looser than the 2e-3 f32 tolerance by construction).
    flat_bf16 = prepare_decoder_params(
        raw_params, input_emb_width=input_emb_width,
        output_emb_width=output_emb_width, width=width, dtype=jnp.bfloat16)
    fwd_bf16 = jax.jit(functools.partial(
        spatial_mlp_decoder_forward, act_dtype=jnp.bfloat16, **common))
    out_bf16 = jax.block_until_ready(fwd_bf16(x, flat_bf16))
    assert out_bf16.shape == expected_shape
    assert bool(jnp.all(jnp.isfinite(out_bf16)))

    print("KERNEL_OK")
</pallas_src>

<mosaic_0001>
module attributes {stable_mosaic.version = 11 : i64} {
  func.func @_decoder_kernel(%arg0: i32, %arg1: memref<1x8x128xf32, #tpu.memory_space<vmem>>, %arg2: memref<3x128x128xf32, #tpu.memory_space<vmem>>, %arg3: memref<1x128xf32, #tpu.memory_space<vmem>>, %arg4: memref<3x128x128xf32, #tpu.memory_space<vmem>>, %arg5: memref<1x128xf32, #tpu.memory_space<vmem>>, %arg6: memref<128x128xf32, #tpu.memory_space<vmem>>, %arg7: memref<1x128xf32, #tpu.memory_space<vmem>>, %arg8: memref<3x128x128xf32, #tpu.memory_space<vmem>>, %arg9: memref<1x128xf32, #tpu.memory_space<vmem>>, %arg10: memref<128x128xf32, #tpu.memory_space<vmem>>, %arg11: memref<1x128xf32, #tpu.memory_space<vmem>>, %arg12: memref<2x2x128x128xf32, #tpu.memory_space<vmem>>, %arg13: memref<1x128xf32, #tpu.memory_space<vmem>>, %arg14: memref<3x128x128xf32, #tpu.memory_space<vmem>>, %arg15: memref<1x128xf32, #tpu.memory_space<vmem>>, %arg16: memref<128x128xf32, #tpu.memory_space<vmem>>, %arg17: memref<1x128xf32, #tpu.memory_space<vmem>>, %arg18: memref<3x128x128xf32, #tpu.memory_space<vmem>>, %arg19: memref<1x128xf32, #tpu.memory_space<vmem>>, %arg20: memref<128x128xf32, #tpu.memory_space<vmem>>, %arg21: memref<1x128xf32, #tpu.memory_space<vmem>>, %arg22: memref<2x2x128x128xf32, #tpu.memory_space<vmem>>, %arg23: memref<1x128xf32, #tpu.memory_space<vmem>>, %arg24: memref<3x128x128xf32, #tpu.memory_space<vmem>>, %arg25: memref<1x128xf32, #tpu.memory_space<vmem>>, %arg26: memref<3x128x128xf32, #tpu.memory_space<vmem>>, %arg27: memref<1x128xf32, #tpu.memory_space<vmem>>, %arg28: memref<1x4x8x128xf32, #tpu.memory_space<vmem>>, %arg29: memref<19x512xf32, #tpu.memory_space<vmem>>, %arg30: memref<19x512xf32, #tpu.memory_space<vmem>>) attributes {dimension_semantics = [#tpu.dimension_semantics<parallel>], iteration_bounds = array<i64: 2>, scalar_prefetch = 0 : i64, scratch_operands = 2 : i64, tpu.core_type = #tpu.core_type<tc>, window_params = [{transform_indices = @transform_0, window_bounds = array<i64: 1, 8, 128>}, {pipeline_mode = #tpu.pipeline_mode<synchronous>, transform_indices = @transform_1, window_bounds = array<i64: 3, 128, 128>}, {pipeline_mode = #tpu.pipeline_mode<synchronous>, transform_indices = @transform_2, window_bounds = array<i64: 1, 128>}, {pipeline_mode = #tpu.pipeline_mode<synchronous>, transform_indices = @transform_3, window_bounds = array<i64: 3, 128, 128>}, {pipeline_mode = #tpu.pipeline_mode<synchronous>, transform_indices = @transform_4, window_bounds = array<i64: 1, 128>}, {pipeline_mode = #tpu.pipeline_mode<synchronous>, transform_indices = @transform_5, window_bounds = array<i64: 128, 128>}, {pipeline_mode = #tpu.pipeline_mode<synchronous>, transform_indices = @transform_6, window_bounds = array<i64: 1, 128>}, {pipeline_mode = #tpu.pipeline_mode<synchronous>, transform_indices = @transform_7, window_bounds = array<i64: 3, 128, 128>}, {pipeline_mode = #tpu.pipeline_mode<synchronous>, transform_indices = @transform_8, window_bounds = array<i64: 1, 128>}, {pipeline_mode = #tpu.pipeline_mode<synchronous>, transform_indices = @transform_9, window_bounds = array<i64: 128, 128>}, {pipeline_mode = #tpu.pipeline_mode<synchronous>, transform_indices = @transform_10, window_bounds = array<i64: 1, 128>}, {pipeline_mode = #tpu.pipeline_mode<synchronous>, transform_indices = @transform_11, window_bounds = array<i64: 2, 2, 128, 128>}, {pipeline_mode = #tpu.pipeline_mode<synchronous>, transform_indices = @transform_12, window_bounds = array<i64: 1, 128>}, {pipeline_mode = #tpu.pipeline_mode<synchronous>, transform_indices = @transform_13, window_bounds = array<i64: 3, 128, 128>}, {pipeline_mode = #tpu.pipeline_mode<synchronous>, transform_indices = @transform_14, window_bounds = array<i64: 1, 128>}, {pipeline_mode = #tpu.pipeline_mode<synchronous>, transform_indices = @transform_15, window_bounds = array<i64: 128, 128>}, {pipeline_mode = #tpu.pipeline_mode<synchronous>, transform_indices = @transform_16, window_bounds = array<i64: 1, 128>}, {pipeline_mode = #tpu.pipeline_mode<synchronous>, transform_indices = @transform_17, window_bounds = array<i64: 3, 128, 128>}, {pipeline_mode = #tpu.pipeline_mode<synchronous>, transform_indices = @transform_18, window_bounds = array<i64: 1, 128>}, {pipeline_mode = #tpu.pipeline_mode<synchronous>, transform_indices = @transform_19, window_bounds = array<i64: 128, 128>}, {pipeline_mode = #tpu.pipeline_mode<synchronous>, transform_indices = @transform_20, window_bounds = array<i64: 1, 128>}, {pipeline_mode = #tpu.pipeline_mode<synchronous>, transform_indices = @transform_21, window_bounds = array<i64: 2, 2, 128, 128>}, {pipeline_mode = #tpu.pipeline_mode<synchronous>, transform_indices = @transform_22, window_bounds = array<i64: 1, 128>}, {pipeline_mode = #tpu.pipeline_mode<synchronous>, transform_indices = @transform_23, window_bounds = array<i64: 3, 128, 128>}, {pipeline_mode = #tpu.pipeline_mode<synchronous>, transform_indices = @transform_24, window_bounds = array<i64: 1, 128>}, {pipeline_mode = #tpu.pipeline_mode<synchronous>, transform_indices = @transform_25, window_bounds = array<i64: 3, 128, 128>}, {pipeline_mode = #tpu.pipeline_mode<synchronous>, transform_indices = @transform_26, window_bounds = array<i64: 1, 128>}, {transform_indices = @transform_27, window_bounds = array<i64: 1, 4, 8, 128>}]} {
    %cst = arith.constant 0.000000e+00 : f32
    %0 = vector.broadcast %cst : f32 to vector<19x512xf32>
    %c0 = arith.constant 0 : index
    %c0_0 = arith.constant 0 : index
    %1 = vector.load %arg29[%c0, %c0_0] : memref<19x512xf32, #tpu.memory_space<vmem>>, vector<19x512xf32>
    tpu.vector_store %arg29[%c0, %c0_0], %0 {strides = array<i32>} : memref<19x512xf32, #tpu.memory_space<vmem>>, vector<19x512xf32>,
    %cst_1 = arith.constant 0.000000e+00 : f32
    %2 = vector.broadcast %cst_1 : f32 to vector<19x512xf32>
    %c0_2 = arith.constant 0 : index
    %c0_3 = arith.constant 0 : index
    %3 = vector.load %arg30[%c0_2, %c0_3] : memref<19x512xf32, #tpu.memory_space<vmem>>, vector<19x512xf32>
    tpu.vector_store %arg30[%c0_2, %c0_3], %2 {strides = array<i32>} : memref<19x512xf32, #tpu.memory_space<vmem>>, vector<19x512xf32>,
    %c0_4 = arith.constant 0 : index
    %c0_5 = arith.constant 0 : index
    %c0_6 = arith.constant 0 : index
    %4 = vector.load %arg1[%c0_4, %c0_5, %c0_6] : memref<1x8x128xf32, #tpu.memory_space<vmem>>, vector<1x8x128xf32>
    %5 = vector.shape_cast %4 : vector<1x8x128xf32> to vector<8x128xf32>
    %c8 = arith.constant 8 : index
    %c0_7 = arith.constant 0 : index
    %6 = vector.load %arg29[%c8, %c0_7] : memref<19x512xf32, #tpu.memory_space<vmem>>, vector<8x128xf32>
    tpu.vector_store %arg29[%c8, %c0_7], %5 {strides = array<i32>} : memref<19x512xf32, #tpu.memory_space<vmem>>, vector<8x128xf32>,
    %c0_8 = arith.constant 0 : index
    %c0_9 = arith.constant 0 : index
    %c0_10 = arith.constant 0 : index
    %7 = vector.load %arg2[%c0_8, %c0_9, %c0_10] : memref<3x128x128xf32, #tpu.memory_space<vmem>>, vector<1x128x128xf32>
    %8 = vector.shape_cast %7 : vector<1x128x128xf32> to vector<128x128xf32>
    %c1 = arith.constant 1 : index
    %c0_11 = arith.constant 0 : index
    %c0_12 = arith.constant 0 : index
    %9 = vector.load %arg2[%c1, %c0_11, %c0_12] : memref<3x128x128xf32, #tpu.memory_space<vmem>>, vector<1x128x128xf32>
    %10 = vector.shape_cast %9 : vector<1x128x128xf32> to vector<128x128xf32>
    %c2 = arith.constant 2 : index
    %c0_13 = arith.constant 0 : index
    %c0_14 = arith.constant 0 : index
    %11 = vector.load %arg2[%c2, %c0_13, %c0_14] : memref<3x128x128xf32, #tpu.memory_space<vmem>>, vector<1x128x128xf32>
    %12 = vector.shape_cast %11 : vector<1x128x128xf32> to vector<128x128xf32>
    %c0_15 = arith.constant 0 : index
    %c0_16 = arith.constant 0 : index
    %13 = vector.load %arg3[%c0_15, %c0_16] : memref<1x128xf32, #tpu.memory_space<vmem>>, vector<1x128xf32>
    %c7 = arith.constant 7 : index
    %c0_17 = arith.constant 0 : index
    %14 = vector.load %arg29[%c7, %c0_17] : memref<19x512xf32, #tpu.memory_space<vmem>>, vector<8x128xf32>
    %cst_18 = arith.constant dense<0.000000e+00> : vector<8x128xf32>
    %15 = tpu.matmul %14, %8, %cst_18 {dimension_numbers = #tpu.dot_dimension_numbers<[1], [0], [0], [1], [0, 0, 1, 1], [], []>} : vector<8x128xf32>, vector<128x128xf32>, vector<8x128xf32> -> vector<8x128xf32>
    %c8_19 = arith.constant 8 : index
    %c0_20 = arith.constant 0 : index
    %16 = vector.load %arg29[%c8_19, %c0_20] : memref<19x512xf32, #tpu.memory_space<vmem>>, vector<8x128xf32>
    %cst_21 = arith.constant dense<0.000000e+00> : vector<8x128xf32>
    %17 = tpu.matmul %16, %10, %cst_21 {dimension_numbers = #tpu.dot_dimension_numbers<[1], [0], [0], [1], [0, 0, 1, 1], [], []>} : vector<8x128xf32>, vector<128x128xf32>, vector<8x128xf32> -> vector<8x128xf32>
    %18 = arith.addf %15, %17 : vector<8x128xf32>
    %c9 = arith.constant 9 : index
    %c0_22 = arith.constant 0 : index
    %19 = vector.load %arg29[%c9, %c0_22] : memref<19x512xf32, #tpu.memory_space<vmem>>, vector<8x128xf32>
    %cst_23 = arith.constant dense<0.000000e+00> : vector<8x128xf32>
    %20 = tpu.matmul %19, %12, %cst_23 {dimension_numbers = #tpu.dot_dimension_numbers<[1], [0], [0], [1], [0, 0, 1, 1], [], []>} : vector<8x128xf32>, vector<128x128xf32>, vector<8x128xf32> -> vector<8x128xf32>
    %21 = arith.addf %18, %20 : vector<8x128xf32>
    %22 = vector.broadcast %13 : vector<1x128xf32> to vector<8x128xf32>
    %23 = arith.addf %21, %22 : vector<8x128xf32>
    %cst_24 = arith.constant 0.000000e+00 : f32
    %24 = vector.broadcast %cst_24 : f32 to vector<8x128xf32>
    %25 = arith.maximumf %23, %24 : vector<8x128xf32>
    %c8_25 = arith.constant 8 : index
    %c0_26 = arith.constant 0 : index
    %26 = vector.load %arg29[%c8_25, %c0_26] : memref<19x512xf32, #tpu.memory_space<vmem>>, vector<8x128xf32>
    tpu.vector_store %arg29[%c8_25, %c0_26], %25 {strides = array<i32>} : memref<19x512xf32, #tpu.memory_space<vmem>>, vector<8x128xf32>,
    %c8_27 = arith.constant 8 : index
    %c0_28 = arith.constant 0 : index
    %27 = vector.load %arg30[%c8_27, %c0_28] : memref<19x512xf32, #tpu.memory_space<vmem>>, vector<8x128xf32>
    tpu.vector_store %arg30[%c8_27, %c0_28], %25 {strides = array<i32>} : memref<19x512xf32, #tpu.memory_space<vmem>>, vector<8x128xf32>,
    %c0_29 = arith.constant 0 : index
    %c0_30 = arith.constant 0 : index
    %c0_31 = arith.constant 0 : index
    %28 = vector.load %arg4[%c0_29, %c0_30, %c0_31] : memref<3x128x128xf32, #tpu.memory_space<vmem>>, vector<1x128x128xf32>
    %29 = vector.shape_cast %28 : vector<1x128x128xf32> to vector<128x128xf32>
    %c1_32 = arith.constant 1 : index
    %c0_33 = arith.constant 0 : index
    %c0_34 = arith.constant 0 : index
    %30 = vector.load %arg4[%c1_32, %c0_33, %c0_34] : memref<3x128x128xf32, #tpu.memory_space<vmem>>, vector<1x128x128xf32>
    %31 = vector.shape_cast %30 : vector<1x128x128xf32> to vector<128x128xf32>
    %c2_35 = arith.constant 2 : index
    %c0_36 = arith.constant 0 : index
    %c0_37 = arith.constant 0 : index
    %32 = vector.load %arg4[%c2_35, %c0_36, %c0_37] : memref<3x128x128xf32, #tpu.memory_space<vmem>>, vector<1x128x128xf32>
    %33 = vector.shape_cast %32 : vector<1x128x128xf32> to vector<128x128xf32>
    %c0_38 = arith.constant 0 : index
    %c0_39 = arith.constant 0 : index
    %34 = vector.load %arg5[%c0_38, %c0_39] : memref<1x128xf32, #tpu.memory_space<vmem>>, vector<1x128xf32>
    %c0_40 = arith.constant 0 : index
    %c0_41 = arith.constant 0 : index
    %35 = vector.load %arg6[%c0_40, %c0_41] : memref<128x128xf32, #tpu.memory_space<vmem>>, vector<128x128xf32>
    %c0_42 = arith.constant 0 : index
    %c0_43 = arith.constant 0 : index
    %36 = vector.load %arg7[%c0_42, %c0_43] : memref<1x128xf32, #tpu.memory_space<vmem>>, vector<1x128xf32>
    %c5 = arith.constant 5 : index
    %c0_44 = arith.constant 0 : index
    %37 = vector.load %arg30[%c5, %c0_44] : memref<19x512xf32, #tpu.memory_space<vmem>>, vector<8x128xf32>
    %cst_45 = arith.constant dense<0.000000e+00> : vector<8x128xf32>
    %38 = tpu.matmul %37, %29, %cst_45 {dimension_numbers = #tpu.dot_dimension_numbers<[1], [0], [0], [1], [0, 0, 1, 1], [], []>} : vector<8x128xf32>, vector<128x128xf32>, vector<8x128xf32> -> vector<8x128xf32>
    %c8_46 = arith.constant 8 : index
    %c0_47 = arith.constant 0 : index
    %39 = vector.load %arg30[%c8_46, %c0_47] : memref<19x512xf32, #tpu.memory_space<vmem>>, vector<8x128xf32>
    %cst_48 = arith.constant dense<0.000000e+00> : vector<8x128xf32>
    %40 = tpu.matmul %39, %31, %cst_48 {dimension_numbers = #tpu.dot_dimension_numbers<[1], [0], [0], [1], [0, 0, 1, 1], [], []>} : vector<8x128xf32>, vector<128x128xf32>, vector<8x128xf32> -> vector<8x128xf32>
    %41 = arith.addf %38, %40 : vector<8x128xf32>
    %c11 = arith.constant 11 : index
    %c0_49 = arith.constant 0 : index
    %42 = vector.load %arg30[%c11, %c0_49] : memref<19x512xf32, #tpu.memory_space<vmem>>, vector<8x128xf32>
    %cst_50 = arith.constant dense<0.000000e+00> : vector<8x128xf32>
    %43 = tpu.matmul %42, %33, %cst_50 {dimension_numbers = #tpu.dot_dimension_numbers<[1], [0], [0], [1], [0, 0, 1, 1], [], []>} : vector<8x128xf32>, vector<128x128xf32>, vector<8x128xf32> -> vector<8x128xf32>
    %44 = arith.addf %41, %43 : vector<8x128xf32>
    %45 = vector.broadcast %34 : vector<1x128xf32> to vector<8x128xf32>
    %46 = arith.addf %44, %45 : vector<8x128xf32>
    %cst_51 = arith.constant 0.000000e+00 : f32
    %47 = vector.broadcast %cst_51 : f32 to vector<8x128xf32>
    %48 = arith.maximumf %46, %47 : vector<8x128xf32>
    %cst_52 = arith.constant dense<0.000000e+00> : vector<8x128xf32>
    %49 = tpu.matmul %48, %35, %cst_52 {dimension_numbers = #tpu.dot_dimension_numbers<[1], [0], [0], [1], [0, 0, 1, 1], [], []>} : vector<8x128xf32>, vector<128x128xf32>, vector<8x128xf32> -> vector<8x128xf32>
    %50 = vector.broadcast %36 : vector<1x128xf32> to vector<8x128xf32>
    %51 = arith.addf %49, %50 : vector<8x128xf32>
    %c8_53 = arith.constant 8 : index
    %c0_54 = arith.constant 0 : index
    %52 = vector.load %arg29[%c8_53, %c0_54] : memref<19x512xf32, #tpu.memory_space<vmem>>, vector<8x128xf32>
    %53 = arith.addf %51, %52 : vector<8x128xf32>
    %c8_55 = arith.constant 8 : index
    %c0_56 = arith.constant 0 : index
    %54 = vector.load %arg29[%c8_55, %c0_56] : memref<19x512xf32, #tpu.memory_space<vmem>>, vector<8x128xf32>
    tpu.vector_store %arg29[%c8_55, %c0_56], %53 {strides = array<i32>} : memref<19x512xf32, #tpu.memory_space<vmem>>, vector<8x128xf32>,
    %cst_57 = arith.constant 0.000000e+00 : f32
    %55 = vector.broadcast %cst_57 : f32 to vector<8x128xf32>
    %56 = arith.maximumf %53, %55 : vector<8x128xf32>
    %c8_58 = arith.constant 8 : index
    %c0_59 = arith.constant 0 : index
    %57 = vector.load %arg30[%c8_58, %c0_59] : memref<19x512xf32, #tpu.memory_space<vmem>>, vector<8x128xf32>
    tpu.vector_store %arg30[%c8_58, %c0_59], %56 {strides = array<i32>} : memref<19x512xf32, #tpu.memory_space<vmem>>, vector<8x128xf32>,
    %c0_60 = arith.constant 0 : index
    %c0_61 = arith.constant 0 : index
    %c0_62 = arith.constant 0 : index
    %58 = vector.load %arg8[%c0_60, %c0_61, %c0_62] : memref<3x128x128xf32, #tpu.memory_space<vmem>>, vector<1x128x128xf32>
    %59 = vector.shape_cast %58 : vector<1x128x128xf32> to vector<128x128xf32>
    %c1_63 = arith.constant 1 : index
    %c0_64 = arith.constant 0 : index
    %c0_65 = arith.constant 0 : index
    %60 = vector.load %arg8[%c1_63, %c0_64, %c0_65] : memref<3x128x128xf32, #tpu.memory_space<vmem>>, vector<1x128x128xf32>
    %61 = vector.shape_cast %60 : vector<1x128x128xf32> to vector<128x128xf32>
    %c2_66 = arith.constant 2 : index
    %c0_67 = arith.constant 0 : index
    %c0_68 = arith.constant 0 : index
    %62 = vector.load %arg8[%c2_66, %c0_67, %c0_68] : memref<3x128x128xf32, #tpu.memory_space<vmem>>, vector<1x128x128xf32>
    %63 = vector.shape_cast %62 : vector<1x128x128xf32> to vector<128x128xf32>
    %c0_69 = arith.constant 0 : index
    %c0_70 = arith.constant 0 : index
    %64 = vector.load %arg9[%c0_69, %c0_70] : memref<1x128xf32, #tpu.memory_space<vmem>>, vector<1x128xf32>
    %c0_71 = arith.constant 0 : index
    %c0_72 = arith.constant 0 : index
    %65 = vector.load %arg10[%c0_71, %c0_72] : memref<128x128xf32, #tpu.memory_space<vmem>>, vector<128x128xf32>
    %c0_73 = arith.constant 0 : index
    %c0_74 = arith.constant 0 : index
    %66 = vector.load %arg11[%c0_73, %c0_74] : memref<1x128xf32, #tpu.memory_space<vmem>>, vector<1x128xf32>
    %c7_75 = arith.constant 7 : index
    %c0_76 = arith.constant 0 : index
    %67 = vector.load %arg30[%c7_75, %c0_76] : memref<19x512xf32, #tpu.memory_space<vmem>>, vector<8x128xf32>
    %cst_77 = arith.constant dense<0.000000e+00> : vector<8x128xf32>
    %68 = tpu.matmul %67, %59, %cst_77 {dimension_numbers = #tpu.dot_dimension_numbers<[1], [0], [0], [1], [0, 0, 1, 1], [], []>} : vector<8x128xf32>, vector<128x128xf32>, vector<8x128xf32> -> vector<8x128xf32>
    %c8_78 = arith.constant 8 : index
    %c0_79 = arith.constant 0 : index
    %69 = vector.load %arg30[%c8_78, %c0_79] : memref<19x512xf32, #tpu.memory_space<vmem>>, vector<8x128xf32>
    %cst_80 = arith.constant dense<0.000000e+00> : vector<8x128xf32>
    %70 = tpu.matmul %69, %61, %cst_80 {dimension_numbers = #tpu.dot_dimension_numbers<[1], [0], [0], [1], [0, 0, 1, 1], [], []>} : vector<8x128xf32>, vector<128x128xf32>, vector<8x128xf32> -> vector<8x128xf32>
    %71 = arith.addf %68, %70 : vector<8x128xf32>
    %c9_81 = arith.constant 9 : index
    %c0_82 = arith.constant 0 : index
    %72 = vector.load %arg30[%c9_81, %c0_82] : memref<19x512xf32, #tpu.memory_space<vmem>>, vector<8x128xf32>
    %cst_83 = arith.constant dense<0.000000e+00> : vector<8x128xf32>
    %73 = tpu.matmul %72, %63, %cst_83 {dimension_numbers = #tpu.dot_dimension_numbers<[1], [0], [0], [1], [0, 0, 1, 1], [], []>} : vector<8x128xf32>, vector<128x128xf32>, vector<8x128xf32> -> vector<8x128xf32>
    %74 = arith.addf %71, %73 : vector<8x128xf32>
    %75 = vector.broadcast %64 : vector<1x128xf32> to vector<8x128xf32>
    %76 = arith.addf %74, %75 : vector<8x128xf32>
    %cst_84 = arith.constant 0.000000e+00 : f32
    %77 = vector.broadcast %cst_84 : f32 to vector<8x128xf32>
    %78 = arith.maximumf %76, %77 : vector<8x128xf32>
    %cst_85 = arith.constant dense<0.000000e+00> : vector<8x128xf32>
    %79 = tpu.matmul %78, %65, %cst_85 {dimension_numbers = #tpu.dot_dimension_numbers<[1], [0], [0], [1], [0, 0, 1, 1], [], []>} : vector<8x128xf32>, vector<128x128xf32>, vector<8x128xf32> -> vector<8x128xf32>
    %80 = vector.broadcast %66 : vector<1x128xf32> to vector<8x128xf32>
    %81 = arith.addf %79, %80 : vector<8x128xf32>
    %c8_86 = arith.constant 8 : index
    %c0_87 = arith.constant 0 : index
    %82 = vector.load %arg29[%c8_86, %c0_87] : memref<19x512xf32, #tpu.memory_space<vmem>>, vector<8x128xf32>
    %83 = arith.addf %81, %82 : vector<8x128xf32>
    %c8_88 = arith.constant 8 : index
    %c0_89 = arith.constant 0 : index
    %84 = vector.load %arg29[%c8_88, %c0_89] : memref<19x512xf32, #tpu.memory_space<vmem>>, vector<8x128xf32>
    tpu.vector_store %arg29[%c8_88, %c0_89], %83 {strides = array<i32>} : memref<19x512xf32, #tpu.memory_space<vmem>>, vector<8x128xf32>,
    %cst_90 = arith.constant 0.000000e+00 : f32
    %85 = vector.broadcast %cst_90 : f32 to vector<8x128xf32>
    %86 = arith.maximumf %83, %85 : vector<8x128xf32>
    %c8_91 = arith.constant 8 : index
    %c0_92 = arith.constant 0 : index
    %87 = vector.load %arg30[%c8_91, %c0_92] : memref<19x512xf32, #tpu.memory_space<vmem>>, vector<8x128xf32>
    tpu.vector_store %arg30[%c8_91, %c0_92], %86 {strides = array<i32>} : memref<19x512xf32, #tpu.memory_space<vmem>>, vector<8x128xf32>,
    %c0_93 = arith.constant 0 : index
    %c0_94 = arith.constant 0 : index
    %c0_95 = arith.constant 0 : index
    %c0_96 = arith.constant 0 : index
    %88 = vector.load %arg12[%c0_93, %c0_94, %c0_95, %c0_96] : memref<2x2x128x128xf32, #tpu.memory_space<vmem>>, vector<1x1x128x128xf32>
    %89 = vector.shape_cast %88 : vector<1x1x128x128xf32> to vector<128x128xf32>
    %c0_97 = arith.constant 0 : index
    %c1_98 = arith.constant 1 : index
    %c0_99 = arith.constant 0 : index
    %c0_100 = arith.constant 0 : index
    %90 = vector.load %arg12[%c0_97, %c1_98, %c0_99, %c0_100] : memref<2x2x128x128xf32, #tpu.memory_space<vmem>>, vector<1x1x128x128xf32>
    %91 = vector.shape_cast %90 : vector<1x1x128x128xf32> to vector<128x128xf32>
    %c1_101 = arith.constant 1 : index
    %c0_102 = arith.constant 0 : index
    %c0_103 = arith.constant 0 : index
    %c0_104 = arith.constant 0 : index
    %92 = vector.load %arg12[%c1_101, %c0_102, %c0_103, %c0_104] : memref<2x2x128x128xf32, #tpu.memory_space<vmem>>, vector<1x1x128x128xf32>
    %93 = vector.shape_cast %92 : vector<1x1x128x128xf32> to vector<128x128xf32>
    %c1_105 = arith.constant 1 : index
    %c1_106 = arith.constant 1 : index
    %c0_107 = arith.constant 0 : index
    %c0_108 = arith.constant 0 : index
    %94 = vector.load %arg12[%c1_105, %c1_106, %c0_107, %c0_108] : memref<2x2x128x128xf32, #tpu.memory_space<vmem>>, vector<1x1x128x128xf32>
    %95 = vector.shape_cast %94 : vector<1x1x128x128xf32> to vector<128x128xf32>
    %c0_109 = arith.constant 0 : index
    %c0_110 = arith.constant 0 : index
    %96 = vector.load %arg13[%c0_109, %c0_110] : memref<1x128xf32, #tpu.memory_space<vmem>>, vector<1x128xf32>
    %c7_111 = arith.constant 7 : index
    %c0_112 = arith.constant 0 : index
    %97 = vector.load %arg29[%c7_111, %c0_112] : memref<19x512xf32, #tpu.memory_space<vmem>>, vector<8x128xf32>
    %cst_113 = arith.constant dense<0.000000e+00> : vector<8x128xf32>
    %98 = tpu.matmul %97, %89, %cst_113 {dimension_numbers = #tpu.dot_dimension_numbers<[1], [0], [0], [1], [0, 0, 1, 1], [], []>} : vector<8x128xf32>, vector<128x128xf32>, vector<8x128xf32> -> vector<8x128xf32>
    %c8_114 = arith.constant 8 : index
    %c0_115 = arith.constant 0 : index
    %99 = vector.load %arg29[%c8_114, %c0_115] : memref<19x512xf32, #tpu.memory_space<vmem>>, vector<8x128xf32>
    %cst_116 = arith.constant dense<0.000000e+00> : vector<8x128xf32>
    %100 = tpu.matmul %99, %91, %cst_116 {dimension_numbers = #tpu.dot_dimension_numbers<[1], [0], [0], [1], [0, 0, 1, 1], [], []>} : vector<8x128xf32>, vector<128x128xf32>, vector<8x128xf32> -> vector<8x128xf32>
    %101 = arith.addf %98, %100 : vector<8x128xf32>
    %102 = vector.broadcast %96 : vector<1x128xf32> to vector<8x128xf32>
    %103 = arith.addf %101, %102 : vector<8x128xf32>
    %c8_117 = arith.constant 8 : index
    %c0_118 = arith.constant 0 : index
    %104 = vector.load %arg29[%c8_117, %c0_118] : memref<19x512xf32, #tpu.memory_space<vmem>>, vector<8x128xf32>
    %cst_119 = arith.constant dense<0.000000e+00> : vector<8x128xf32>
    %105 = tpu.matmul %104, %93, %cst_119 {dimension_numbers = #tpu.dot_dimension_numbers<[1], [0], [0], [1], [0, 0, 1, 1], [], []>} : vector<8x128xf32>, vector<128x128xf32>, vector<8x128xf32> -> vector<8x128xf32>
    %c9_120 = arith.constant 9 : index
    %c0_121 = arith.constant 0 : index
    %106 = vector.load %arg29[%c9_120, %c0_121] : memref<19x512xf32, #tpu.memory_space<vmem>>, vector<8x128xf32>
    %cst_122 = arith.constant dense<0.000000e+00> : vector<8x128xf32>
    %107 = tpu.matmul %106, %95, %cst_122 {dimension_numbers = #tpu.dot_dimension_numbers<[1], [0], [0], [1], [0, 0, 1, 1], [], []>} : vector<8x128xf32>, vector<128x128xf32>, vector<8x128xf32> -> vector<8x128xf32>
    %108 = arith.addf %105, %107 : vector<8x128xf32>
    %109 = vector.broadcast %96 : vector<1x128xf32> to vector<8x128xf32>
    %110 = arith.addf %108, %109 : vector<8x128xf32>
    %c8_123 = arith.constant 8 : index
    %c0_124 = arith.constant 0 : index
    %111 = vector.load %arg29[%c8_123, %c0_124] : memref<19x512xf32, #tpu.memory_space<vmem>>, vector<8x128xf32>
    tpu.vector_store %arg29[%c8_123, %c0_124], %103 {strides = array<i32>} : memref<19x512xf32, #tpu.memory_space<vmem>>, vector<8x128xf32>,
    %cst_125 = arith.constant 0.000000e+00 : f32
    %112 = vector.broadcast %cst_125 : f32 to vector<8x128xf32>
    %113 = arith.maximumf %103, %112 : vector<8x128xf32>
    %c8_126 = arith.constant 8 : index
    %c0_127 = arith.constant 0 : index
    %114 = vector.load %arg30[%c8_126, %c0_127] : memref<19x512xf32, #tpu.memory_space<vmem>>, vector<8x128xf32>
    tpu.vector_store %arg30[%c8_126, %c0_127], %113 {strides = array<i32>} : memref<19x512xf32, #tpu.memory_space<vmem>>, vector<8x128xf32>,
    %c8_128 = arith.constant 8 : index
    %c128 = arith.constant 128 : index
    %115 = vector.load %arg29[%c8_128, %c128] : memref<19x512xf32, #tpu.memory_space<vmem>>, vector<8x128xf32>
    tpu.vector_store %arg29[%c8_128, %c128], %110 {strides = array<i32>} : memref<19x512xf32, #tpu.memory_space<vmem>>, vector<8x128xf32>,
    %cst_129 = arith.constant 0.000000e+00 : f32
    %116 = vector.broadcast %cst_129 : f32 to vector<8x128xf32>
    %117 = arith.maximumf %110, %116 : vector<8x128xf32>
    %c8_130 = arith.constant 8 : index
    %c128_131 = arith.constant 128 : index
    %118 = vector.load %arg30[%c8_130, %c128_131] : memref<19x512xf32, #tpu.memory_space<vmem>>, vector<8x128xf32>
    tpu.vector_store %arg30[%c8_130, %c128_131], %117 {strides = array<i32>} : memref<19x512xf32, #tpu.memory_space<vmem>>, vector<8x128xf32>,
    %c0_132 = arith.constant 0 : index
    %c0_133 = arith.constant 0 : index
    %c0_134 = arith.constant 0 : index
    %119 = vector.load %arg14[%c0_132, %c0_133, %c0_134] : memref<3x128x128xf32, #tpu.memory_space<vmem>>, vector<1x128x128xf32>
    %120 = vector.shape_cast %119 : vector<1x128x128xf32> to vector<128x128xf32>
    %c1_135 = arith.constant 1 : index
    %c0_136 = arith.constant 0 : index
    %c0_137 = arith.constant 0 : index
    %121 = vector.load %arg14[%c1_135, %c0_136, %c0_137] : memref<3x128x128xf32, #tpu.memory_space<vmem>>, vector<1x128x128xf32>
    %122 = vector.shape_cast %121 : vector<1x128x128xf32> to vector<128x128xf32>
    %c2_138 = arith.constant 2 : index
    %c0_139 = arith.constant 0 : index
    %c0_140 = arith.constant 0 : index
    %123 = vector.load %arg14[%c2_138, %c0_139, %c0_140] : memref<3x128x128xf32, #tpu.memory_space<vmem>>, vector<1x128x128xf32>
    %124 = vector.shape_cast %123 : vector<1x128x128xf32> to vector<128x128xf32>
    %c0_141 = arith.constant 0 : index
    %c0_142 = arith.constant 0 : index
    %125 = vector.load %arg15[%c0_141, %c0_142] : memref<1x128xf32, #tpu.memory_space<vmem>>, vector<1x128xf32>
    %c0_143 = arith.constant 0 : index
    %c0_144 = arith.constant 0 : index
    %126 = vector.load %arg16[%c0_143, %c0_144] : memref<128x128xf32, #tpu.memory_space<vmem>>, vector<128x128xf32>
    %c0_145 = arith.constant 0 : index
    %c0_146 = arith.constant 0 : index
    %127 = vector.load %arg17[%c0_145, %c0_146] : memref<1x128xf32, #tpu.memory_space<vmem>>, vector<1x128xf32>
    %c6 = arith.constant 6 : index
    %c128_147 = arith.constant 128 : index
    %128 = vector.load %arg30[%c6, %c128_147] : memref<19x512xf32, #tpu.memory_space<vmem>>, vector<8x128xf32>
    %cst_148 = arith.constant dense<0.000000e+00> : vector<8x128xf32>
    %129 = tpu.matmul %128, %120, %cst_148 {dimension_numbers = #tpu.dot_dimension_numbers<[1], [0], [0], [1], [0, 0, 1, 1], [], []>} : vector<8x128xf32>, vector<128x128xf32>, vector<8x128xf32> -> vector<8x128xf32>
    %c8_149 = arith.constant 8 : index
    %c0_150 = arith.constant 0 : index
    %130 = vector.load %arg30[%c8_149, %c0_150] : memref<19x512xf32, #tpu.memory_space<vmem>>, vector<8x128xf32>
    %cst_151 = arith.constant dense<0.000000e+00> : vector<8x128xf32>
    %131 = tpu.matmul %130, %122, %cst_151 {dimension_numbers = #tpu.dot_dimension_numbers<[1], [0], [0], [1], [0, 0, 1, 1], [], []>} : vector<8x128xf32>, vector<128x128xf32>, vector<8x128xf32> -> vector<8x128xf32>
    %132 = arith.addf %129, %131 : vector<8x128xf32>
    %c9_152 = arith.constant 9 : index
    %c128_153 = arith.constant 128 : index
    %133 = vector.load %arg30[%c9_152, %c128_153] : memref<19x512xf32, #tpu.memory_space<vmem>>, vector<8x128xf32>
    %cst_154 = arith.constant dense<0.000000e+00> : vector<8x128xf32>
    %134 = tpu.matmul %133, %124, %cst_154 {dimension_numbers = #tpu.dot_dimension_numbers<[1], [0], [0], [1], [0, 0, 1, 1], [], []>} : vector<8x128xf32>, vector<128x128xf32>, vector<8x128xf32> -> vector<8x128xf32>
    %135 = arith.addf %132, %134 : vector<8x128xf32>
    %136 = vector.broadcast %125 : vector<1x128xf32> to vector<8x128xf32>
    %137 = arith.addf %135, %136 : vector<8x128xf32>
    %c7_155 = arith.constant 7 : index
    %c0_156 = arith.constant 0 : index
    %138 = vector.load %arg30[%c7_155, %c0_156] : memref<19x512xf32, #tpu.memory_space<vmem>>, vector<8x128xf32>
    %cst_157 = arith.constant dense<0.000000e+00> : vector<8x128xf32>
    %139 = tpu.matmul %138, %120, %cst_157 {dimension_numbers = #tpu.dot_dimension_numbers<[1], [0], [0], [1], [0, 0, 1, 1], [], []>} : vector<8x128xf32>, vector<128x128xf32>, vector<8x128xf32> -> vector<8x128xf32>
    %c8_158 = arith.constant 8 : index
    %c128_159 = arith.constant 128 : index
    %140 = vector.load %arg30[%c8_158, %c128_159] : memref<19x512xf32, #tpu.memory_space<vmem>>, vector<8x128xf32>
    %cst_160 = arith.constant dense<0.000000e+00> : vector<8x128xf32>
    %141 = tpu.matmul %140, %122, %cst_160 {dimension_numbers = #tpu.dot_dimension_numbers<[1], [0], [0], [1], [0, 0, 1, 1], [], []>} : vector<8x128xf32>, vector<128x128xf32>, vector<8x128xf32> -> vector<8x128xf32>
    %142 = arith.addf %139, %141 : vector<8x128xf32>
    %c10 = arith.constant 10 : index
    %c0_161 = arith.constant 0 : index
    %143 = vector.load %arg30[%c10, %c0_161] : memref<19x512xf32, #tpu.memory_space<vmem>>, vector<8x128xf32>
    %cst_162 = arith.constant dense<0.000000e+00> : vector<8x128xf32>
    %144 = tpu.matmul %143, %124, %cst_162 {dimension_numbers = #tpu.dot_dimension_numbers<[1], [0], [0], [1], [0, 0, 1, 1], [], []>} : vector<8x128xf32>, vector<128x128xf32>, vector<8x128xf32> -> vector<8x128xf32>
    %145 = arith.addf %142, %144 : vector<8x128xf32>
    %146 = vector.broadcast %125 : vector<1x128xf32> to vector<8x128xf32>
    %147 = arith.addf %145, %146 : vector<8x128xf32>
    %cst_163 = arith.constant 0.000000e+00 : f32
    %148 = vector.broadcast %cst_163 : f32 to vector<8x128xf32>
    %149 = arith.maximumf %137, %148 : vector<8x128xf32>
    %cst_164 = arith.constant dense<0.000000e+00> : vector<8x128xf32>
    %150 = tpu.matmul %149, %126, %cst_164 {dimension_numbers = #tpu.dot_dimension_numbers<[1], [0], [0], [1], [0, 0, 1, 1], [], []>} : vector<8x128xf32>, vector<128x128xf32>, vector<8x128xf32> -> vector<8x128xf32>
    %151 = vector.broadcast %127 : vector<1x128xf32> to vector<8x128xf32>
    %152 = arith.addf %150, %151 : vector<8x128xf32>
    %c8_165 = arith.constant 8 : index
    %c0_166 = arith.constant 0 : index
    %153 = vector.load %arg29[%c8_165, %c0_166] : memref<19x512xf32, #tpu.memory_space<vmem>>, vector<8x128xf32>
    %154 = arith.addf %152, %153 : vector<8x128xf32>
    %cst_167 = arith.constant 0.000000e+00 : f32
    %155 = vector.broadcast %cst_167 : f32 to vector<8x128xf32>
    %156 = arith.maximumf %147, %155 : vector<8x128xf32>
    %cst_168 = arith.constant dense<0.000000e+00> : vector<8x128xf32>
    %157 = tpu.matmul %156, %126, %cst_168 {dimension_numbers = #tpu.dot_dimension_numbers<[1], [0], [0], [1], [0, 0, 1, 1], [], []>} : vector<8x128xf32>, vector<128x128xf32>, vector<8x128xf32> -> vector<8x128xf32>
    %158 = vector.broadcast %127 : vector<1x128xf32> to vector<8x128xf32>
    %159 = arith.addf %157, %158 : vector<8x128xf32>
    %c8_169 = arith.constant 8 : index
    %c128_170 = arith.constant 128 : index
    %160 = vector.load %arg29[%c8_169, %c128_170] : memref<19x512xf32, #tpu.memory_space<vmem>>, vector<8x128xf32>
    %161 = arith.addf %159, %160 : vector<8x128xf32>
    %c8_171 = arith.constant 8 : index
    %c0_172 = arith.constant 0 : index
    %162 = vector.load %arg29[%c8_171, %c0_172] : memref<19x512xf32, #tpu.memory_space<vmem>>, vector<8x128xf32>
    tpu.vector_store %arg29[%c8_171, %c0_172], %154 {strides = array<i32>} : memref<19x512xf32, #tpu.memory_space<vmem>>, vector<8x128xf32>,
    %cst_173 = arith.constant 0.000000e+00 : f32
    %163 = vector.broadcast %cst_173 : f32 to vector<8x128xf32>
    %164 = arith.maximumf %154, %163 : vector<8x128xf32>
    %c8_174 = arith.constant 8 : index
    %c0_175 = arith.constant 0 : index
    %165 = vector.load %arg30[%c8_174, %c0_175] : memref<19x512xf32, #tpu.memory_space<vmem>>, vector<8x128xf32>
    tpu.vector_store %arg30[%c8_174, %c0_175], %164 {strides = array<i32>} : memref<19x512xf32, #tpu.memory_space<vmem>>, vector<8x128xf32>,
    %c8_176 = arith.constant 8 : index
    %c128_177 = arith.constant 128 : index
    %166 = vector.load %arg29[%c8_176, %c128_177] : memref<19x512xf32, #tpu.memory_space<vmem>>, vector<8x128xf32>
    tpu.vector_store %arg29[%c8_176, %c128_177], %161 {strides = array<i32>} : memref<19x512xf32, #tpu.memory_space<vmem>>, vector<8x128xf32>,
    %cst_178 = arith.constant 0.000000e+00 : f32
    %167 = vector.broadcast %cst_178 : f32 to vector<8x128xf32>
    %168 = arith.maximumf %161, %167 : vector<8x128xf32>
    %c8_179 = arith.constant 8 : index
    %c128_180 = arith.constant 128 : index
    %169 = vector.load %arg30[%c8_179, %c128_180] : memref<19x512xf32, #tpu.memory_space<vmem>>, vector<8x128xf32>
    tpu.vector_store %arg30[%c8_179, %c128_180], %168 {strides = array<i32>} : memref<19x512xf32, #tpu.memory_space<vmem>>, vector<8x128xf32>,
    %c0_181 = arith.constant 0 : index
    %c0_182 = arith.constant 0 : index
    %c0_183 = arith.constant 0 : index
    %170 = vector.load %arg18[%c0_181, %c0_182, %c0_183] : memref<3x128x128xf32, #tpu.memory_space<vmem>>, vector<1x128x128xf32>
    %171 = vector.shape_cast %170 : vector<1x128x128xf32> to vector<128x128xf32>
    %c1_184 = arith.constant 1 : index
    %c0_185 = arith.constant 0 : index
    %c0_186 = arith.constant 0 : index
    %172 = vector.load %arg18[%c1_184, %c0_185, %c0_186] : memref<3x128x128xf32, #tpu.memory_space<vmem>>, vector<1x128x128xf32>
    %173 = vector.shape_cast %172 : vector<1x128x128xf32> to vector<128x128xf32>
    %c2_187 = arith.constant 2 : index
    %c0_188 = arith.constant 0 : index
    %c0_189 = arith.constant 0 : index
    %174 = vector.load %arg18[%c2_187, %c0_188, %c0_189] : memref<3x128x128xf32, #tpu.memory_space<vmem>>, vector<1x128x128xf32>
    %175 = vector.shape_cast %174 : vector<1x128x128xf32> to vector<128x128xf32>
    %c0_190 = arith.constant 0 : index
    %c0_191 = arith.constant 0 : index
    %176 = vector.load %arg19[%c0_190, %c0_191] : memref<1x128xf32, #tpu.memory_space<vmem>>, vector<1x128xf32>
    %c0_192 = arith.constant 0 : index
    %c0_193 = arith.constant 0 : index
    %177 = vector.load %arg20[%c0_192, %c0_193] : memref<128x128xf32, #tpu.memory_space<vmem>>, vector<128x128xf32>
    %c0_194 = arith.constant 0 : index
    %c0_195 = arith.constant 0 : index
    %178 = vector.load %arg21[%c0_194, %c0_195] : memref<1x128xf32, #tpu.memory_space<vmem>>, vector<1x128xf32>
    %c7_196 = arith.constant 7 : index
    %c128_197 = arith.constant 128 : index
    %179 = vector.load %arg30[%c7_196, %c128_197] : memref<19x512xf32, #tpu.memory_space<vmem>>, vector<8x128xf32>
    %cst_198 = arith.constant dense<0.000000e+00> : vector<8x128xf32>
    %180 = tpu.matmul %179, %171, %cst_198 {dimension_numbers = #tpu.dot_dimension_numbers<[1], [0], [0], [1], [0, 0, 1, 1], [], []>} : vector<8x128xf32>, vector<128x128xf32>, vector<8x128xf32> -> vector<8x128xf32>
    %c8_199 = arith.constant 8 : index
    %c0_200 = arith.constant 0 : index
    %181 = vector.load %arg30[%c8_199, %c0_200] : memref<19x512xf32, #tpu.memory_space<vmem>>, vector<8x128xf32>
    %cst_201 = arith.constant dense<0.000000e+00> : vector<8x128xf32>
    %182 = tpu.matmul %181, %173, %cst_201 {dimension_numbers = #tpu.dot_dimension_numbers<[1], [0], [0], [1], [0, 0, 1, 1], [], []>} : vector<8x128xf32>, vector<128x128xf32>, vector<8x128xf32> -> vector<8x128xf32>
    %183 = arith.addf %180, %182 : vector<8x128xf32>
    %c8_202 = arith.constant 8 : index
    %c128_203 = arith.constant 128 : index
    %184 = vector.load %arg30[%c8_202, %c128_203] : memref<19x512xf32, #tpu.memory_space<vmem>>, vector<8x128xf32>
    %cst_204 = arith.constant dense<0.000000e+00> : vector<8x128xf32>
    %185 = tpu.matmul %184, %175, %cst_204 {dimension_numbers = #tpu.dot_dimension_numbers<[1], [0], [0], [1], [0, 0, 1, 1], [], []>} : vector<8x128xf32>, vector<128x128xf32>, vector<8x128xf32> -> vector<8x128xf32>
    %186 = arith.addf %183, %185 : vector<8x128xf32>
    %187 = vector.broadcast %176 : vector<1x128xf32> to vector<8x128xf32>
    %188 = arith.addf %186, %187 : vector<8x128xf32>
    %c8_205 = arith.constant 8 : index
    %c0_206 = arith.constant 0 : index
    %189 = vector.load %arg30[%c8_205, %c0_206] : memref<19x512xf32, #tpu.memory_space<vmem>>, vector<8x128xf32>
    %cst_207 = arith.constant dense<0.000000e+00> : vector<8x128xf32>
    %190 = tpu.matmul %189, %171, %cst_207 {dimension_numbers = #tpu.dot_dimension_numbers<[1], [0], [0], [1], [0, 0, 1, 1], [], []>} : vector<8x128xf32>, vector<128x128xf32>, vector<8x128xf32> -> vector<8x128xf32>
    %c8_208 = arith.constant 8 : index
    %c128_209 = arith.constant 128 : index
    %191 = vector.load %arg30[%c8_208, %c128_209] : memref<19x512xf32, #tpu.memory_space<vmem>>, vector<8x128xf32>
    %cst_210 = arith.constant dense<0.000000e+00> : vector<8x128xf32>
    %192 = tpu.matmul %191, %173, %cst_210 {dimension_numbers = #tpu.dot_dimension_numbers<[1], [0], [0], [1], [0, 0, 1, 1], [], []>} : vector<8x128xf32>, vector<128x128xf32>, vector<8x128xf32> -> vector<8x128xf32>
    %193 = arith.addf %190, %192 : vector<8x128xf32>
    %c9_211 = arith.constant 9 : index
    %c0_212 = arith.constant 0 : index
    %194 = vector.load %arg30[%c9_211, %c0_212] : memref<19x512xf32, #tpu.memory_space<vmem>>, vector<8x128xf32>
    %cst_213 = arith.constant dense<0.000000e+00> : vector<8x128xf32>
    %195 = tpu.matmul %194, %175, %cst_213 {dimension_numbers = #tpu.dot_dimension_numbers<[1], [0], [0], [1], [0, 0, 1, 1], [], []>} : vector<8x128xf32>, vector<128x128xf32>, vector<8x128xf32> -> vector<8x128xf32>
    %196 = arith.addf %193, %195 : vector<8x128xf32>
    %197 = vector.broadcast %176 : vector<1x128xf32> to vector<8x128xf32>
    %198 = arith.addf %196, %197 : vector<8x128xf32>
    %cst_214 = arith.constant 0.000000e+00 : f32
    %199 = vector.broadcast %cst_214 : f32 to vector<8x128xf32>
    %200 = arith.maximumf %188, %199 : vector<8x128xf32>
    %cst_215 = arith.constant dense<0.000000e+00> : vector<8x128xf32>
    %201 = tpu.matmul %200, %177, %cst_215 {dimension_numbers = #tpu.dot_dimension_numbers<[1], [0], [0], [1], [0, 0, 1, 1], [], []>} : vector<8x128xf32>, vector<128x128xf32>, vector<8x128xf32> -> vector<8x128xf32>
    %202 = vector.broadcast %178 : vector<1x128xf32> to vector<8x128xf32>
    %203 = arith.addf %201, %202 : vector<8x128xf32>
    %c8_216 = arith.constant 8 : index
    %c0_217 = arith.constant 0 : index
    %204 = vector.load %arg29[%c8_216, %c0_217] : memref<19x512xf32, #tpu.memory_space<vmem>>, vector<8x128xf32>
    %205 = arith.addf %203, %204 : vector<8x128xf32>
    %cst_218 = arith.constant 0.000000e+00 : f32
    %206 = vector.broadcast %cst_218 : f32 to vector<8x128xf32>
    %207 = arith.maximumf %198, %206 : vector<8x128xf32>
    %cst_219 = arith.constant dense<0.000000e+00> : vector<8x128xf32>
    %208 = tpu.matmul %207, %177, %cst_219 {dimension_numbers = #tpu.dot_dimension_numbers<[1], [0], [0], [1], [0, 0, 1, 1], [], []>} : vector<8x128xf32>, vector<128x128xf32>, vector<8x128xf32> -> vector<8x128xf32>
    %209 = vector.broadcast %178 : vector<1x128xf32> to vector<8x128xf32>
    %210 = arith.addf %208, %209 : vector<8x128xf32>
    %c8_220 = arith.constant 8 : index
    %c128_221 = arith.constant 128 : index
    %211 = vector.load %arg29[%c8_220, %c128_221] : memref<19x512xf32, #tpu.memory_space<vmem>>, vector<8x128xf32>
    %212 = arith.addf %210, %211 : vector<8x128xf32>
    %c8_222 = arith.constant 8 : index
    %c0_223 = arith.constant 0 : index
    %213 = vector.load %arg29[%c8_222, %c0_223] : memref<19x512xf32, #tpu.memory_space<vmem>>, vector<8x128xf32>
    tpu.vector_store %arg29[%c8_222, %c0_223], %205 {strides = array<i32>} : memref<19x512xf32, #tpu.memory_space<vmem>>, vector<8x128xf32>,
    %cst_224 = arith.constant 0.000000e+00 : f32
    %214 = vector.broadcast %cst_224 : f32 to vector<8x128xf32>
    %215 = arith.maximumf %205, %214 : vector<8x128xf32>
    %c8_225 = arith.constant 8 : index
    %c0_226 = arith.constant 0 : index
    %216 = vector.load %arg30[%c8_225, %c0_226] : memref<19x512xf32, #tpu.memory_space<vmem>>, vector<8x128xf32>
    tpu.vector_store %arg30[%c8_225, %c0_226], %215 {strides = array<i32>} : memref<19x512xf32, #tpu.memory_space<vmem>>, vector<8x128xf32>,
    %c8_227 = arith.constant 8 : index
    %c128_228 = arith.constant 128 : index
    %217 = vector.load %arg29[%c8_227, %c128_228] : memref<19x512xf32, #tpu.memory_space<vmem>>, vector<8x128xf32>
    tpu.vector_store %arg29[%c8_227, %c128_228], %212 {strides = array<i32>} : memref<19x512xf32, #tpu.memory_space<vmem>>, vector<8x128xf32>,
    %cst_229 = arith.constant 0.000000e+00 : f32
    %218 = vector.broadcast %cst_229 : f32 to vector<8x128xf32>
    %219 = arith.maximumf %212, %218 : vector<8x128xf32>
    %c8_230 = arith.constant 8 : index
    %c128_231 = arith.constant 128 : index
    %220 = vector.load %arg30[%c8_230, %c128_231] : memref<19x512xf32, #tpu.memory_space<vmem>>, vector<8x128xf32>
    tpu.vector_store %arg30[%c8_230, %c128_231], %219 {strides = array<i32>} : memref<19x512xf32, #tpu.memory_space<vmem>>, vector<8x128xf32>,
    %c0_232 = arith.constant 0 : index
    %c0_233 = arith.constant 0 : index
    %c0_234 = arith.constant 0 : index
    %c0_235 = arith.constant 0 : index
    %221 = vector.load %arg22[%c0_232, %c0_233, %c0_234, %c0_235] : memref<2x2x128x128xf32, #tpu.memory_space<vmem>>, vector<1x1x128x128xf32>
    %222 = vector.shape_cast %221 : vector<1x1x128x128xf32> to vector<128x128xf32>
    %c0_236 = arith.constant 0 : index
    %c1_237 = arith.constant 1 : index
    %c0_238 = arith.constant 0 : index
    %c0_239 = arith.constant 0 : index
    %223 = vector.load %arg22[%c0_236, %c1_237, %c0_238, %c0_239] : memref<2x2x128x128xf32, #tpu.memory_space<vmem>>, vector<1x1x128x128xf32>
    %224 = vector.shape_cast %223 : vector<1x1x128x128xf32> to vector<128x128xf32>
    %c1_240 = arith.constant 1 : index
    %c0_241 = arith.constant 0 : index
    %c0_242 = arith.constant 0 : index
    %c0_243 = arith.constant 0 : index
    %225 = vector.load %arg22[%c1_240, %c0_241, %c0_242, %c0_243] : memref<2x2x128x128xf32, #tpu.memory_space<vmem>>, vector<1x1x128x128xf32>
    %226 = vector.shape_cast %225 : vector<1x1x128x128xf32> to vector<128x128xf32>
    %c1_244 = arith.constant 1 : index
    %c1_245 = arith.constant 1 : index
    %c0_246 = arith.constant 0 : index
    %c0_247 = arith.constant 0 : index
    %227 = vector.load %arg22[%c1_244, %c1_245, %c0_246, %c0_247] : memref<2x2x128x128xf32, #tpu.memory_space<vmem>>, vector<1x1x128x128xf32>
    %228 = vector.shape_cast %227 : vector<1x1x128x128xf32> to vector<128x128xf32>
    %c0_248 = arith.constant 0 : index
    %c0_249 = arith.constant 0 : index
    %229 = vector.load %arg23[%c0_248, %c0_249] : memref<1x128xf32, #tpu.memory_space<vmem>>, vector<1x128xf32>
    %c7_250 = arith.constant 7 : index
    %c128_251 = arith.constant 128 : index
    %230 = vector.load %arg29[%c7_250, %c128_251] : memref<19x512xf32, #tpu.memory_space<vmem>>, vector<8x128xf32>
    %cst_252 = arith.constant dense<0.000000e+00> : vector<8x128xf32>
    %231 = tpu.matmul %230, %222, %cst_252 {dimension_numbers = #tpu.dot_dimension_numbers<[1], [0], [0], [1], [0, 0, 1, 1], [], []>} : vector<8x128xf32>, vector<128x128xf32>, vector<8x128xf32> -> vector<8x128xf32>
    %c8_253 = arith.constant 8 : index
    %c0_254 = arith.constant 0 : index
    %232 = vector.load %arg29[%c8_253, %c0_254] : memref<19x512xf32, #tpu.memory_space<vmem>>, vector<8x128xf32>
    %cst_255 = arith.constant dense<0.000000e+00> : vector<8x128xf32>
    %233 = tpu.matmul %232, %224, %cst_255 {dimension_numbers = #tpu.dot_dimension_numbers<[1], [0], [0], [1], [0, 0, 1, 1], [], []>} : vector<8x128xf32>, vector<128x128xf32>, vector<8x128xf32> -> vector<8x128xf32>
    %234 = arith.addf %231, %233 : vector<8x128xf32>
    %235 = vector.broadcast %229 : vector<1x128xf32> to vector<8x128xf32>
    %236 = arith.addf %234, %235 : vector<8x128xf32>
    %c8_256 = arith.constant 8 : index
    %c0_257 = arith.constant 0 : index
    %237 = vector.load %arg29[%c8_256, %c0_257] : memref<19x512xf32, #tpu.memory_space<vmem>>, vector<8x128xf32>
    %cst_258 = arith.constant dense<0.000000e+00> : vector<8x128xf32>
    %238 = tpu.matmul %237, %226, %cst_258 {dimension_numbers = #tpu.dot_dimension_numbers<[1], [0], [0], [1], [0, 0, 1, 1], [], []>} : vector<8x128xf32>, vector<128x128xf32>, vector<8x128xf32> -> vector<8x128xf32>
    %c8_259 = arith.constant 8 : index
    %c128_260 = arith.constant 128 : index
    %239 = vector.load %arg29[%c8_259, %c128_260] : memref<19x512xf32, #tpu.memory_space<vmem>>, vector<8x128xf32>
    %cst_261 = arith.constant dense<0.000000e+00> : vector<8x128xf32>
    %240 = tpu.matmul %239, %228, %cst_261 {dimension_numbers = #tpu.dot_dimension_numbers<[1], [0], [0], [1], [0, 0, 1, 1], [], []>} : vector<8x128xf32>, vector<128x128xf32>, vector<8x128xf32> -> vector<8x128xf32>
    %241 = arith.addf %238, %240 : vector<8x128xf32>
    %242 = vector.broadcast %229 : vector<1x128xf32> to vector<8x128xf32>
    %243 = arith.addf %241, %242 : vector<8x128xf32>
    %c8_262 = arith.constant 8 : index
    %c0_263 = arith.constant 0 : index
    %244 = vector.load %arg29[%c8_262, %c0_263] : memref<19x512xf32, #tpu.memory_space<vmem>>, vector<8x128xf32>
    %cst_264 = arith.constant dense<0.000000e+00> : vector<8x128xf32>
    %245 = tpu.matmul %244, %222, %cst_264 {dimension_numbers = #tpu.dot_dimension_numbers<[1], [0], [0], [1], [0, 0, 1, 1], [], []>} : vector<8x128xf32>, vector<128x128xf32>, vector<8x128xf32> -> vector<8x128xf32>
    %c8_265 = arith.constant 8 : index
    %c128_266 = arith.constant 128 : index
    %246 = vector.load %arg29[%c8_265, %c128_266] : memref<19x512xf32, #tpu.memory_space<vmem>>, vector<8x128xf32>
    %cst_267 = arith.constant dense<0.000000e+00> : vector<8x128xf32>
    %247 = tpu.matmul %246, %224, %cst_267 {dimension_numbers = #tpu.dot_dimension_numbers<[1], [0], [0], [1], [0, 0, 1, 1], [], []>} : vector<8x128xf32>, vector<128x128xf32>, vector<8x128xf32> -> vector<8x128xf32>
    %248 = arith.addf %245, %247 : vector<8x128xf32>
    %249 = vector.broadcast %229 : vector<1x128xf32> to vector<8x128xf32>
    %250 = arith.addf %248, %249 : vector<8x128xf32>
    %c8_268 = arith.constant 8 : index
    %c128_269 = arith.constant 128 : index
    %251 = vector.load %arg29[%c8_268, %c128_269] : memref<19x512xf32, #tpu.memory_space<vmem>>, vector<8x128xf32>
    %cst_270 = arith.constant dense<0.000000e+00> : vector<8x128xf32>
    %252 = tpu.matmul %251, %226, %cst_270 {dimension_numbers = #tpu.dot_dimension_numbers<[1], [0], [0], [1], [0, 0, 1, 1], [], []>} : vector<8x128xf32>, vector<128x128xf32>, vector<8x128xf32> -> vector<8x128xf32>
    %c9_271 = arith.constant 9 : index
    %c0_272 = arith.constant 0 : index
    %253 = vector.load %arg29[%c9_271, %c0_272] : memref<19x512xf32, #tpu.memory_space<vmem>>, vector<8x128xf32>
    %cst_273 = arith.constant dense<0.000000e+00> : vector<8x128xf32>
    %254 = tpu.matmul %253, %228, %cst_273 {dimension_numbers = #tpu.dot_dimension_numbers<[1], [0], [0], [1], [0, 0, 1, 1], [], []>} : vector<8x128xf32>, vector<128x128xf32>, vector<8x128xf32> -> vector<8x128xf32>
    %255 = arith.addf %252, %254 : vector<8x128xf32>
    %256 = vector.broadcast %229 : vector<1x128xf32> to vector<8x128xf32>
    %257 = arith.addf %255, %256 : vector<8x128xf32>
    %c8_274 = arith.constant 8 : index
    %c0_275 = arith.constant 0 : index
    %258 = vector.load %arg29[%c8_274, %c0_275] : memref<19x512xf32, #tpu.memory_space<vmem>>, vector<8x128xf32>
    tpu.vector_store %arg29[%c8_274, %c0_275], %236 {strides = array<i32>} : memref<19x512xf32, #tpu.memory_space<vmem>>, vector<8x128xf32>,
    %c8_276 = arith.constant 8 : index
    %c128_277 = arith.constant 128 : index
    %259 = vector.load %arg29[%c8_276, %c128_277] : memref<19x512xf32, #tpu.memory_space<vmem>>, vector<8x128xf32>
    tpu.vector_store %arg29[%c8_276, %c128_277], %243 {strides = array<i32>} : memref<19x512xf32, #tpu.memory_space<vmem>>, vector<8x128xf32>,
    %c8_278 = arith.constant 8 : index
    %c256 = arith.constant 256 : index
    %260 = vector.load %arg29[%c8_278, %c256] : memref<19x512xf32, #tpu.memory_space<vmem>>, vector<8x128xf32>
    tpu.vector_store %arg29[%c8_278, %c256], %250 {strides = array<i32>} : memref<19x512xf32, #tpu.memory_space<vmem>>, vector<8x128xf32>,
    %c8_279 = arith.constant 8 : index
    %c384 = arith.constant 384 : index
    %261 = vector.load %arg29[%c8_279, %c384] : memref<19x512xf32, #tpu.memory_space<vmem>>, vector<8x128xf32>
    tpu.vector_store %arg29[%c8_279, %c384], %257 {strides = array<i32>} : memref<19x512xf32, #tpu.memory_space<vmem>>, vector<8x128xf32>,
    %c0_280 = arith.constant 0 : index
    %c0_281 = arith.constant 0 : index
    %c0_282 = arith.constant 0 : index
    %262 = vector.load %arg24[%c0_280, %c0_281, %c0_282] : memref<3x128x128xf32, #tpu.memory_space<vmem>>, vector<1x128x128xf32>
    %263 = vector.shape_cast %262 : vector<1x128x128xf32> to vector<128x128xf32>
    %c1_283 = arith.constant 1 : index
    %c0_284 = arith.constant 0 : index
    %c0_285 = arith.constant 0 : index
    %264 = vector.load %arg24[%c1_283, %c0_284, %c0_285] : memref<3x128x128xf32, #tpu.memory_space<vmem>>, vector<1x128x128xf32>
    %265 = vector.shape_cast %264 : vector<1x128x128xf32> to vector<128x128xf32>
    %c2_286 = arith.constant 2 : index
    %c0_287 = arith.constant 0 : index
    %c0_288 = arith.constant 0 : index
    %266 = vector.load %arg24[%c2_286, %c0_287, %c0_288] : memref<3x128x128xf32, #tpu.memory_space<vmem>>, vector<1x128x128xf32>
    %267 = vector.shape_cast %266 : vector<1x128x128xf32> to vector<128x128xf32>
    %c0_289 = arith.constant 0 : index
    %c0_290 = arith.constant 0 : index
    %268 = vector.load %arg25[%c0_289, %c0_290] : memref<1x128xf32, #tpu.memory_space<vmem>>, vector<1x128xf32>
    %c7_291 = arith.constant 7 : index
    %c384_292 = arith.constant 384 : index
    %269 = vector.load %arg29[%c7_291, %c384_292] : memref<19x512xf32, #tpu.memory_space<vmem>>, vector<8x128xf32>
    %cst_293 = arith.constant dense<0.000000e+00> : vector<8x128xf32>
    %270 = tpu.matmul %269, %263, %cst_293 {dimension_numbers = #tpu.dot_dimension_numbers<[1], [0], [0], [1], [0, 0, 1, 1], [], []>} : vector<8x128xf32>, vector<128x128xf32>, vector<8x128xf32> -> vector<8x128xf32>
    %c8_294 = arith.constant 8 : index
    %c0_295 = arith.constant 0 : index
    %271 = vector.load %arg29[%c8_294, %c0_295] : memref<19x512xf32, #tpu.memory_space<vmem>>, vector<8x128xf32>
    %cst_296 = arith.constant dense<0.000000e+00> : vector<8x128xf32>
    %272 = tpu.matmul %271, %265, %cst_296 {dimension_numbers = #tpu.dot_dimension_numbers<[1], [0], [0], [1], [0, 0, 1, 1], [], []>} : vector<8x128xf32>, vector<128x128xf32>, vector<8x128xf32> -> vector<8x128xf32>
    %273 = arith.addf %270, %272 : vector<8x128xf32>
    %c8_297 = arith.constant 8 : index
    %c128_298 = arith.constant 128 : index
    %274 = vector.load %arg29[%c8_297, %c128_298] : memref<19x512xf32, #tpu.memory_space<vmem>>, vector<8x128xf32>
    %cst_299 = arith.constant dense<0.000000e+00> : vector<8x128xf32>
    %275 = tpu.matmul %274, %267, %cst_299 {dimension_numbers = #tpu.dot_dimension_numbers<[1], [0], [0], [1], [0, 0, 1, 1], [], []>} : vector<8x128xf32>, vector<128x128xf32>, vector<8x128xf32> -> vector<8x128xf32>
    %276 = arith.addf %273, %275 : vector<8x128xf32>
    %277 = vector.broadcast %268 : vector<1x128xf32> to vector<8x128xf32>
    %278 = arith.addf %276, %277 : vector<8x128xf32>
    %c8_300 = arith.constant 8 : index
    %c0_301 = arith.constant 0 : index
    %279 = vector.load %arg29[%c8_300, %c0_301] : memref<19x512xf32, #tpu.memory_space<vmem>>, vector<8x128xf32>
    %cst_302 = arith.constant dense<0.000000e+00> : vector<8x128xf32>
    %280 = tpu.matmul %279, %263, %cst_302 {dimension_numbers = #tpu.dot_dimension_numbers<[1], [0], [0], [1], [0, 0, 1, 1], [], []>} : vector<8x128xf32>, vector<128x128xf32>, vector<8x128xf32> -> vector<8x128xf32>
    %c8_303 = arith.constant 8 : index
    %c128_304 = arith.constant 128 : index
    %281 = vector.load %arg29[%c8_303, %c128_304] : memref<19x512xf32, #tpu.memory_space<vmem>>, vector<8x128xf32>
    %cst_305 = arith.constant dense<0.000000e+00> : vector<8x128xf32>
    %282 = tpu.matmul %281, %265, %cst_305 {dimension_numbers = #tpu.dot_dimension_numbers<[1], [0], [0], [1], [0, 0, 1, 1], [], []>} : vector<8x128xf32>, vector<128x128xf32>, vector<8x128xf32> -> vector<8x128xf32>
    %283 = arith.addf %280, %282 : vector<8x128xf32>
    %c8_306 = arith.constant 8 : index
    %c256_307 = arith.constant 256 : index
    %284 = vector.load %arg29[%c8_306, %c256_307] : memref<19x512xf32, #tpu.memory_space<vmem>>, vector<8x128xf32>
    %cst_308 = arith.constant dense<0.000000e+00> : vector<8x128xf32>
    %285 = tpu.matmul %284, %267, %cst_308 {dimension_numbers = #tpu.dot_dimension_numbers<[1], [0], [0], [1], [0, 0, 1, 1], [], []>} : vector<8x128xf32>, vector<128x128xf32>, vector<8x128xf32> -> vector<8x128xf32>
    %286 = arith.addf %283, %285 : vector<8x128xf32>
    %287 = vector.broadcast %268 : vector<1x128xf32> to vector<8x128xf32>
    %288 = arith.addf %286, %287 : vector<8x128xf32>
    %c8_309 = arith.constant 8 : index
    %c128_310 = arith.constant 128 : index
    %289 = vector.load %arg29[%c8_309, %c128_310] : memref<19x512xf32, #tpu.memory_space<vmem>>, vector<8x128xf32>
    %cst_311 = arith.constant dense<0.000000e+00> : vector<8x128xf32>
    %290 = tpu.matmul %289, %263, %cst_311 {dimension_numbers = #tpu.dot_dimension_numbers<[1], [0], [0], [1], [0, 0, 1, 1], [], []>} : vector<8x128xf32>, vector<128x128xf32>, vector<8x128xf32> -> vector<8x128xf32>
    %c8_312 = arith.constant 8 : index
    %c256_313 = arith.constant 256 : index
    %291 = vector.load %arg29[%c8_312, %c256_313] : memref<19x512xf32, #tpu.memory_space<vmem>>, vector<8x128xf32>
    %cst_314 = arith.constant dense<0.000000e+00> : vector<8x128xf32>
    %292 = tpu.matmul %291, %265, %cst_314 {dimension_numbers = #tpu.dot_dimension_numbers<[1], [0], [0], [1], [0, 0, 1, 1], [], []>} : vector<8x128xf32>, vector<128x128xf32>, vector<8x128xf32> -> vector<8x128xf32>
    %293 = arith.addf %290, %292 : vector<8x128xf32>
    %c8_315 = arith.constant 8 : index
    %c384_316 = arith.constant 384 : index
    %294 = vector.load %arg29[%c8_315, %c384_316] : memref<19x512xf32, #tpu.memory_space<vmem>>, vector<8x128xf32>
    %cst_317 = arith.constant dense<0.000000e+00> : vector<8x128xf32>
    %295 = tpu.matmul %294, %267, %cst_317 {dimension_numbers = #tpu.dot_dimension_numbers<[1], [0], [0], [1], [0, 0, 1, 1], [], []>} : vector<8x128xf32>, vector<128x128xf32>, vector<8x128xf32> -> vector<8x128xf32>
    %296 = arith.addf %293, %295 : vector<8x128xf32>
    %297 = vector.broadcast %268 : vector<1x128xf32> to vector<8x128xf32>
    %298 = arith.addf %296, %297 : vector<8x128xf32>
    %c8_318 = arith.constant 8 : index
    %c256_319 = arith.constant 256 : index
    %299 = vector.load %arg29[%c8_318, %c256_319] : memref<19x512xf32, #tpu.memory_space<vmem>>, vector<8x128xf32>
    %cst_320 = arith.constant dense<0.000000e+00> : vector<8x128xf32>
    %300 = tpu.matmul %299, %263, %cst_320 {dimension_numbers = #tpu.dot_dimension_numbers<[1], [0], [0], [1], [0, 0, 1, 1], [], []>} : vector<8x128xf32>, vector<128x128xf32>, vector<8x128xf32> -> vector<8x128xf32>
    %c8_321 = arith.constant 8 : index
    %c384_322 = arith.constant 384 : index
    %301 = vector.load %arg29[%c8_321, %c384_322] : memref<19x512xf32, #tpu.memory_space<vmem>>, vector<8x128xf32>
    %cst_323 = arith.constant dense<0.000000e+00> : vector<8x128xf32>
    %302 = tpu.matmul %301, %265, %cst_323 {dimension_numbers = #tpu.dot_dimension_numbers<[1], [0], [0], [1], [0, 0, 1, 1], [], []>} : vector<8x128xf32>, vector<128x128xf32>, vector<8x128xf32> -> vector<8x128xf32>
    %303 = arith.addf %300, %302 : vector<8x128xf32>
    %c9_324 = arith.constant 9 : index
    %c0_325 = arith.constant 0 : index
    %304 = vector.load %arg29[%c9_324, %c0_325] : memref<19x512xf32, #tpu.memory_space<vmem>>, vector<8x128xf32>
    %cst_326 = arith.constant dense<0.000000e+00> : vector<8x128xf32>
    %305 = tpu.matmul %304, %267, %cst_326 {dimension_numbers = #tpu.dot_dimension_numbers<[1], [0], [0], [1], [0, 0, 1, 1], [], []>} : vector<8x128xf32>, vector<128x128xf32>, vector<8x128xf32> -> vector<8x128xf32>
    %306 = arith.addf %303, %305 : vector<8x128xf32>
    %307 = vector.broadcast %268 : vector<1x128xf32> to vector<8x128xf32>
    %308 = arith.addf %306, %307 : vector<8x128xf32>
    %cst_327 = arith.constant 0.000000e+00 : f32
    %309 = vector.broadcast %cst_327 : f32 to vector<8x128xf32>
    %310 = arith.maximumf %278, %309 : vector<8x128xf32>
    %c8_328 = arith.constant 8 : index
    %c0_329 = arith.constant 0 : index
    %311 = vector.load %arg30[%c8_328, %c0_329] : memref<19x512xf32, #tpu.memory_space<vmem>>, vector<8x128xf32>
    tpu.vector_store %arg30[%c8_328, %c0_329], %310 {strides = array<i32>} : memref<19x512xf32, #tpu.memory_space<vmem>>, vector<8x128xf32>,
    %cst_330 = arith.constant 0.000000e+00 : f32
    %312 = vector.broadcast %cst_330 : f32 to vector<8x128xf32>
    %313 = arith.maximumf %288, %312 : vector<8x128xf32>
    %c8_331 = arith.constant 8 : index
    %c128_332 = arith.constant 128 : index
    %314 = vector.load %arg30[%c8_331, %c128_332] : memref<19x512xf32, #tpu.memory_space<vmem>>, vector<8x128xf32>
    tpu.vector_store %arg30[%c8_331, %c128_332], %313 {strides = array<i32>} : memref<19x512xf32, #tpu.memory_space<vmem>>, vector<8x128xf32>,
    %cst_333 = arith.constant 0.000000e+00 : f32
    %315 = vector.broadcast %cst_333 : f32 to vector<8x128xf32>
    %316 = arith.maximumf %298, %315 : vector<8x128xf32>
    %c8_334 = arith.constant 8 : index
    %c256_335 = arith.constant 256 : index
    %317 = vector.load %arg30[%c8_334, %c256_335] : memref<19x512xf32, #tpu.memory_space<vmem>>, vector<8x128xf32>
    tpu.vector_store %arg30[%c8_334, %c256_335], %316 {strides = array<i32>} : memref<19x512xf32, #tpu.memory_space<vmem>>, vector<8x128xf32>,
    %cst_336 = arith.constant 0.000000e+00 : f32
    %318 = vector.broadcast %cst_336 : f32 to vector<8x128xf32>
    %319 = arith.maximumf %308, %318 : vector<8x128xf32>
    %c8_337 = arith.constant 8 : index
    %c384_338 = arith.constant 384 : index
    %320 = vector.load %arg30[%c8_337, %c384_338] : memref<19x512xf32, #tpu.memory_space<vmem>>, vector<8x128xf32>
    tpu.vector_store %arg30[%c8_337, %c384_338], %319 {strides = array<i32>} : memref<19x512xf32, #tpu.memory_space<vmem>>, vector<8x128xf32>,
    %c0_339 = arith.constant 0 : index
    %c0_340 = arith.constant 0 : index
    %c0_341 = arith.constant 0 : index
    %321 = vector.load %arg26[%c0_339, %c0_340, %c0_341] : memref<3x128x128xf32, #tpu.memory_space<vmem>>, vector<1x128x128xf32>
    %322 = vector.shape_cast %321 : vector<1x128x128xf32> to vector<128x128xf32>
    %c1_342 = arith.constant 1 : index
    %c0_343 = arith.constant 0 : index
    %c0_344 = arith.constant 0 : index
    %323 = vector.load %arg26[%c1_342, %c0_343, %c0_344] : memref<3x128x128xf32, #tpu.memory_space<vmem>>, vector<1x128x128xf32>
    %324 = vector.shape_cast %323 : vector<1x128x128xf32> to vector<128x128xf32>
    %c2_345 = arith.constant 2 : index
    %c0_346 = arith.constant 0 : index
    %c0_347 = arith.constant 0 : index
    %325 = vector.load %arg26[%c2_345, %c0_346, %c0_347] : memref<3x128x128xf32, #tpu.memory_space<vmem>>, vector<1x128x128xf32>
    %326 = vector.shape_cast %325 : vector<1x128x128xf32> to vector<128x128xf32>
    %c0_348 = arith.constant 0 : index
    %c0_349 = arith.constant 0 : index
    %327 = vector.load %arg27[%c0_348, %c0_349] : memref<1x128xf32, #tpu.memory_space<vmem>>, vector<1x128xf32>
    %c7_350 = arith.constant 7 : index
    %c384_351 = arith.constant 384 : index
    %328 = vector.load %arg30[%c7_350, %c384_351] : memref<19x512xf32, #tpu.memory_space<vmem>>, vector<8x128xf32>
    %cst_352 = arith.constant dense<0.000000e+00> : vector<8x128xf32>
    %329 = tpu.matmul %328, %322, %cst_352 {dimension_numbers = #tpu.dot_dimension_numbers<[1], [0], [0], [1], [0, 0, 1, 1], [], []>} : vector<8x128xf32>, vector<128x128xf32>, vector<8x128xf32> -> vector<8x128xf32>
    %c8_353 = arith.constant 8 : index
    %c0_354 = arith.constant 0 : index
    %330 = vector.load %arg30[%c8_353, %c0_354] : memref<19x512xf32, #tpu.memory_space<vmem>>, vector<8x128xf32>
    %cst_355 = arith.constant dense<0.000000e+00> : vector<8x128xf32>
    %331 = tpu.matmul %330, %324, %cst_355 {dimension_numbers = #tpu.dot_dimension_numbers<[1], [0], [0], [1], [0, 0, 1, 1], [], []>} : vector<8x128xf32>, vector<128x128xf32>, vector<8x128xf32> -> vector<8x128xf32>
    %332 = arith.addf %329, %331 : vector<8x128xf32>
    %c8_356 = arith.constant 8 : index
    %c128_357 = arith.constant 128 : index
    %333 = vector.load %arg30[%c8_356, %c128_357] : memref<19x512xf32, #tpu.memory_space<vmem>>, vector<8x128xf32>
    %cst_358 = arith.constant dense<0.000000e+00> : vector<8x128xf32>
    %334 = tpu.matmul %333, %326, %cst_358 {dimension_numbers = #tpu.dot_dimension_numbers<[1], [0], [0], [1], [0, 0, 1, 1], [], []>} : vector<8x128xf32>, vector<128x128xf32>, vector<8x128xf32> -> vector<8x128xf32>
    %335 = arith.addf %332, %334 : vector<8x128xf32>
    %336 = vector.broadcast %327 : vector<1x128xf32> to vector<8x128xf32>
    %337 = arith.addf %335, %336 : vector<8x128xf32>
    %c8_359 = arith.constant 8 : index
    %c0_360 = arith.constant 0 : index
    %338 = vector.load %arg30[%c8_359, %c0_360] : memref<19x512xf32, #tpu.memory_space<vmem>>, vector<8x128xf32>
    %cst_361 = arith.constant dense<0.000000e+00> : vector<8x128xf32>
    %339 = tpu.matmul %338, %322, %cst_361 {dimension_numbers = #tpu.dot_dimension_numbers<[1], [0], [0], [1], [0, 0, 1, 1], [], []>} : vector<8x128xf32>, vector<128x128xf32>, vector<8x128xf32> -> vector<8x128xf32>
    %c8_362 = arith.constant 8 : index
    %c128_363 = arith.constant 128 : index
    %340 = vector.load %arg30[%c8_362, %c128_363] : memref<19x512xf32, #tpu.memory_space<vmem>>, vector<8x128xf32>
    %cst_364 = arith.constant dense<0.000000e+00> : vector<8x128xf32>
    %341 = tpu.matmul %340, %324, %cst_364 {dimension_numbers = #tpu.dot_dimension_numbers<[1], [0], [0], [1], [0, 0, 1, 1], [], []>} : vector<8x128xf32>, vector<128x128xf32>, vector<8x128xf32> -> vector<8x128xf32>
    %342 = arith.addf %339, %341 : vector<8x128xf32>
    %c8_365 = arith.constant 8 : index
    %c256_366 = arith.constant 256 : index
    %343 = vector.load %arg30[%c8_365, %c256_366] : memref<19x512xf32, #tpu.memory_space<vmem>>, vector<8x128xf32>
    %cst_367 = arith.constant dense<0.000000e+00> : vector<8x128xf32>
    %344 = tpu.matmul %343, %326, %cst_367 {dimension_numbers = #tpu.dot_dimension_numbers<[1], [0], [0], [1], [0, 0, 1, 1], [], []>} : vector<8x128xf32>, vector<128x128xf32>, vector<8x128xf32> -> vector<8x128xf32>
    %345 = arith.addf %342, %344 : vector<8x128xf32>
    %346 = vector.broadcast %327 : vector<1x128xf32> to vector<8x128xf32>
    %347 = arith.addf %345, %346 : vector<8x128xf32>
    %c8_368 = arith.constant 8 : index
    %c128_369 = arith.constant 128 : index
    %348 = vector.load %arg30[%c8_368, %c128_369] : memref<19x512xf32, #tpu.memory_space<vmem>>, vector<8x128xf32>
    %cst_370 = arith.constant dense<0.000000e+00> : vector<8x128xf32>
    %349 = tpu.matmul %348, %322, %cst_370 {dimension_numbers = #tpu.dot_dimension_numbers<[1], [0], [0], [1], [0, 0, 1, 1], [], []>} : vector<8x128xf32>, vector<128x128xf32>, vector<8x128xf32> -> vector<8x128xf32>
    %c8_371 = arith.constant 8 : index
    %c256_372 = arith.constant 256 : index
    %350 = vector.load %arg30[%c8_371, %c256_372] : memref<19x512xf32, #tpu.memory_space<vmem>>, vector<8x128xf32>
    %cst_373 = arith.constant dense<0.000000e+00> : vector<8x128xf32>
    %351 = tpu.matmul %350, %324, %cst_373 {dimension_numbers = #tpu.dot_dimension_numbers<[1], [0], [0], [1], [0, 0, 1, 1], [], []>} : vector<8x128xf32>, vector<128x128xf32>, vector<8x128xf32> -> vector<8x128xf32>
    %352 = arith.addf %349, %351 : vector<8x128xf32>
    %c8_374 = arith.constant 8 : index
    %c384_375 = arith.constant 384 : index
    %353 = vector.load %arg30[%c8_374, %c384_375] : memref<19x512xf32, #tpu.memory_space<vmem>>, vector<8x128xf32>
    %cst_376 = arith.constant dense<0.000000e+00> : vector<8x128xf32>
    %354 = tpu.matmul %353, %326, %cst_376 {dimension_numbers = #tpu.dot_dimension_numbers<[1], [0], [0], [1], [0, 0, 1, 1], [], []>} : vector<8x128xf32>, vector<128x128xf32>, vector<8x128xf32> -> vector<8x128xf32>
    %355 = arith.addf %352, %354 : vector<8x128xf32>
    %356 = vector.broadcast %327 : vector<1x128xf32> to vector<8x128xf32>
    %357 = arith.addf %355, %356 : vector<8x128xf32>
    %c8_377 = arith.constant 8 : index
    %c256_378 = arith.constant 256 : index
    %358 = vector.load %arg30[%c8_377, %c256_378] : memref<19x512xf32, #tpu.memory_space<vmem>>, vector<8x128xf32>
    %cst_379 = arith.constant dense<0.000000e+00> : vector<8x128xf32>
    %359 = tpu.matmul %358, %322, %cst_379 {dimension_numbers = #tpu.dot_dimension_numbers<[1], [0], [0], [1], [0, 0, 1, 1], [], []>} : vector<8x128xf32>, vector<128x128xf32>, vector<8x128xf32> -> vector<8x128xf32>
    %c8_380 = arith.constant 8 : index
    %c384_381 = arith.constant 384 : index
    %360 = vector.load %arg30[%c8_380, %c384_381] : memref<19x512xf32, #tpu.memory_space<vmem>>, vector<8x128xf32>
    %cst_382 = arith.constant dense<0.000000e+00> : vector<8x128xf32>
    %361 = tpu.matmul %360, %324, %cst_382 {dimension_numbers = #tpu.dot_dimension_numbers<[1], [0], [0], [1], [0, 0, 1, 1], [], []>} : vector<8x128xf32>, vector<128x128xf32>, vector<8x128xf32> -> vector<8x128xf32>
    %362 = arith.addf %359, %361 : vector<8x128xf32>
    %c9_383 = arith.constant 9 : index
    %c0_384 = arith.constant 0 : index
    %363 = vector.load %arg30[%c9_383, %c0_384] : memref<19x512xf32, #tpu.memory_space<vmem>>, vector<8x128xf32>
    %cst_385 = arith.constant dense<0.000000e+00> : vector<8x128xf32>
    %364 = tpu.matmul %363, %326, %cst_385 {dimension_numbers = #tpu.dot_dimension_numbers<[1], [0], [0], [1], [0, 0, 1, 1], [], []>} : vector<8x128xf32>, vector<128x128xf32>, vector<8x128xf32> -> vector<8x128xf32>
    %365 = arith.addf %362, %364 : vector<8x128xf32>
    %366 = vector.broadcast %327 : vector<1x128xf32> to vector<8x128xf32>
    %367 = arith.addf %365, %366 : vector<8x128xf32>
    %c0_386 = arith.constant 0 : index
    %c0_387 = arith.constant 0 : index
    %c0_388 = arith.constant 0 : index
    %c0_389 = arith.constant 0 : index
    %368 = vector.load %arg28[%c0_386, %c0_387, %c0_388, %c0_389] : memref<1x4x8x128xf32, #tpu.memory_space<vmem>>, vector<1x1x8x128xf32>
    %369 = vector.shape_cast %368 : vector<1x1x8x128xf32> to vector<8x128xf32>
    %370 = vector.shape_cast %337 : vector<8x128xf32> to vector<1x1x8x128xf32>
    tpu.vector_store %arg28[%c0_386, %c0_387, %c0_388, %c0_389], %370 {strides = array<i32>} : memref<1x4x8x128xf32, #tpu.memory_space<vmem>>, vector<1x1x8x128xf32>,
    %c0_390 = arith.constant 0 : index
    %c1_391 = arith.constant 1 : index
    %c0_392 = arith.constant 0 : index
    %c0_393 = arith.constant 0 : index
    %371 = vector.load %arg28[%c0_390, %c1_391, %c0_392, %c0_393] : memref<1x4x8x128xf32, #tpu.memory_space<vmem>>, vector<1x1x8x128xf32>
    %372 = vector.shape_cast %371 : vector<1x1x8x128xf32> to vector<8x128xf32>
    %373 = vector.shape_cast %347 : vector<8x128xf32> to vector<1x1x8x128xf32>
    tpu.vector_store %arg28[%c0_390, %c1_391, %c0_392, %c0_393], %373 {strides = array<i32>} : memref<1x4x8x128xf32, #tpu.memory_space<vmem>>, vector<1x1x8x128xf32>,
    %c0_394 = arith.constant 0 : index
    %c2_395 = arith.constant 2 : index
    %c0_396 = arith.constant 0 : index
    %c0_397 = arith.constant 0 : index
    %374 = vector.load %arg28[%c0_394, %c2_395, %c0_396, %c0_397] : memref<1x4x8x128xf32, #tpu.memory_space<vmem>>, vector<1x1x8x128xf32>
    %375 = vector.shape_cast %374 : vector<1x1x8x128xf32> to vector<8x128xf32>
    %376 = vector.shape_cast %357 : vector<8x128xf32> to vector<1x1x8x128xf32>
    tpu.vector_store %arg28[%c0_394, %c2_395, %c0_396, %c0_397], %376 {strides = array<i32>} : memref<1x4x8x128xf32, #tpu.memory_space<vmem>>, vector<1x1x8x128xf32>,
    %c0_398 = arith.constant 0 : index
    %c3 = arith.constant 3 : index
    %c0_399 = arith.constant 0 : index
    %c0_400 = arith.constant 0 : index
    %377 = vector.load %arg28[%c0_398, %c3, %c0_399, %c0_400] : memref<1x4x8x128xf32, #tpu.memory_space<vmem>>, vector<1x1x8x128xf32>
    %378 = vector.shape_cast %377 : vector<1x1x8x128xf32> to vector<8x128xf32>
    %379 = vector.shape_cast %367 : vector<8x128xf32> to vector<1x1x8x128xf32>
    tpu.vector_store %arg28[%c0_398, %c3, %c0_399, %c0_400], %379 {strides = array<i32>} : memref<1x4x8x128xf32, #tpu.memory_space<vmem>>, vector<1x1x8x128xf32>,
    return
  }
  func.func @transform_0(%arg0: i32) -> (i32, i32, i32) {
    %c0_i32 = arith.constant 0 : i32
    %c0_i32_0 = arith.constant 0 : i32
    %c0_i32_1 = arith.constant 0 : i32
    return %arg0, %c0_i32, %c0_i32_0 : i32, i32, i32
  }
  func.func @transform_1(%arg0: i32) -> (i32, i32, i32) {
    %c0_i32 = arith.constant 0 : i32
    %c0_i32_0 = arith.constant 0 : i32
    %c0_i32_1 = arith.constant 0 : i32
    %c0_i32_2 = arith.constant 0 : i32
    return %c0_i32, %c0_i32_0, %c0_i32_1 : i32, i32, i32
  }
  func.func @transform_2(%arg0: i32) -> (i32, i32) {
    %c0_i32 = arith.constant 0 : i32
    %c0_i32_0 = arith.constant 0 : i32
    %c0_i32_1 = arith.constant 0 : i32
    return %c0_i32, %c0_i32_0 : i32, i32
  }
  func.func @transform_3(%arg0: i32) -> (i32, i32, i32) {
    %c0_i32 = arith.constant 0 : i32
    %c0_i32_0 = arith.constant 0 : i32
    %c0_i32_1 = arith.constant 0 : i32
    %c0_i32_2 = arith.constant 0 : i32
    return %c0_i32, %c0_i32_0, %c0_i32_1 : i32, i32, i32
  }
  func.func @transform_4(%arg0: i32) -> (i32, i32) {
    %c0_i32 = arith.constant 0 : i32
    %c0_i32_0 = arith.constant 0 : i32
    %c0_i32_1 = arith.constant 0 : i32
    return %c0_i32, %c0_i32_0 : i32, i32
  }
  func.func @transform_5(%arg0: i32) -> (i32, i32) {
    %c0_i32 = arith.constant 0 : i32
    %c0_i32_0 = arith.constant 0 : i32
    %c0_i32_1 = arith.constant 0 : i32
    return %c0_i32, %c0_i32_0 : i32, i32
  }
  func.func @transform_6(%arg0: i32) -> (i32, i32) {
    %c0_i32 = arith.constant 0 : i32
    %c0_i32_0 = arith.constant 0 : i32
    %c0_i32_1 = arith.constant 0 : i32
    return %c0_i32, %c0_i32_0 : i32, i32
  }
  func.func @transform_7(%arg0: i32) -> (i32, i32, i32) {
    %c0_i32 = arith.constant 0 : i32
    %c0_i32_0 = arith.constant 0 : i32
    %c0_i32_1 = arith.constant 0 : i32
    %c0_i32_2 = arith.constant 0 : i32
    return %c0_i32, %c0_i32_0, %c0_i32_1 : i32, i32, i32
  }
  func.func @transform_8(%arg0: i32) -> (i32, i32) {
    %c0_i32 = arith.constant 0 : i32
    %c0_i32_0 = arith.constant 0 : i32
    %c0_i32_1 = arith.constant 0 : i32
    return %c0_i32, %c0_i32_0 : i32, i32
  }
  func.func @transform_9(%arg0: i32) -> (i32, i32) {
    %c0_i32 = arith.constant 0 : i32
    %c0_i32_0 = arith.constant 0 : i32
    %c0_i32_1 = arith.constant 0 : i32
    return %c0_i32, %c0_i32_0 : i32, i32
  }
  func.func @transform_10(%arg0: i32) -> (i32, i32) {
    %c0_i32 = arith.constant 0 : i32
    %c0_i32_0 = arith.constant 0 : i32
    %c0_i32_1 = arith.constant 0 : i32
    return %c0_i32, %c0_i32_0 : i32, i32
  }
  func.func @transform_11(%arg0: i32) -> (i32, i32, i32, i32) {
    %c0_i32 = arith.constant 0 : i32
    %c0_i32_0 = arith.constant 0 : i32
    %c0_i32_1 = arith.constant 0 : i32
    %c0_i32_2 = arith.constant 0 : i32
    %c0_i32_3 = arith.constant 0 : i32
    return %c0_i32, %c0_i32_0, %c0_i32_1, %c0_i32_2 : i32, i32, i32, i32
  }
  func.func @transform_12(%arg0: i32) -> (i32, i32) {
    %c0_i32 = arith.constant 0 : i32
    %c0_i32_0 = arith.constant 0 : i32
    %c0_i32_1 = arith.constant 0 : i32
    return %c0_i32, %c0_i32_0 : i32, i32
  }
  func.func @transform_13(%arg0: i32) -> (i32, i32, i32) {
    %c0_i32 = arith.constant 0 : i32
    %c0_i32_0 = arith.constant 0 : i32
    %c0_i32_1 = arith.constant 0 : i32
    %c0_i32_2 = arith.constant 0 : i32
    return %c0_i32, %c0_i32_0, %c0_i32_1 : i32, i32, i32
  }
  func.func @transform_14(%arg0: i32) -> (i32, i32) {
    %c0_i32 = arith.constant 0 : i32
    %c0_i32_0 = arith.constant 0 : i32
    %c0_i32_1 = arith.constant 0 : i32
    return %c0_i32, %c0_i32_0 : i32, i32
  }
  func.func @transform_15(%arg0: i32) -> (i32, i32) {
    %c0_i32 = arith.constant 0 : i32
    %c0_i32_0 = arith.constant 0 : i32
    %c0_i32_1 = arith.constant 0 : i32
    return %c0_i32, %c0_i32_0 : i32, i32
  }
  func.func @transform_16(%arg0: i32) -> (i32, i32) {
    %c0_i32 = arith.constant 0 : i32
    %c0_i32_0 = arith.constant 0 : i32
    %c0_i32_1 = arith.constant 0 : i32
    return %c0_i32, %c0_i32_0 : i32, i32
  }
  func.func @transform_17(%arg0: i32) -> (i32, i32, i32) {
    %c0_i32 = arith.constant 0 : i32
    %c0_i32_0 = arith.constant 0 : i32
    %c0_i32_1 = arith.constant 0 : i32
    %c0_i32_2 = arith.constant 0 : i32
    return %c0_i32, %c0_i32_0, %c0_i32_1 : i32, i32, i32
  }
  func.func @transform_18(%arg0: i32) -> (i32, i32) {
    %c0_i32 = arith.constant 0 : i32
    %c0_i32_0 = arith.constant 0 : i32
    %c0_i32_1 = arith.constant 0 : i32
    return %c0_i32, %c0_i32_0 : i32, i32
  }
  func.func @transform_19(%arg0: i32) -> (i32, i32) {
    %c0_i32 = arith.constant 0 : i32
    %c0_i32_0 = arith.constant 0 : i32
    %c0_i32_1 = arith.constant 0 : i32
    return %c0_i32, %c0_i32_0 : i32, i32
  }
  func.func @transform_20(%arg0: i32) -> (i32, i32) {
    %c0_i32 = arith.constant 0 : i32
    %c0_i32_0 = arith.constant 0 : i32
    %c0_i32_1 = arith.constant 0 : i32
    return %c0_i32, %c0_i32_0 : i32, i32
  }
  func.func @transform_21(%arg0: i32) -> (i32, i32, i32, i32) {
    %c0_i32 = arith.constant 0 : i32
    %c0_i32_0 = arith.constant 0 : i32
    %c0_i32_1 = arith.constant 0 : i32
    %c0_i32_2 = arith.constant 0 : i32
    %c0_i32_3 = arith.constant 0 : i32
    return %c0_i32, %c0_i32_0, %c0_i32_1, %c0_i32_2 : i32, i32, i32, i32
  }
  func.func @transform_22(%arg0: i32) -> (i32, i32) {
    %c0_i32 = arith.constant 0 : i32
    %c0_i32_0 = arith.constant 0 : i32
    %c0_i32_1 = arith.constant 0 : i32
    return %c0_i32, %c0_i32_0 : i32, i32
  }
  func.func @transform_23(%arg0: i32) -> (i32, i32, i32) {
    %c0_i32 = arith.constant 0 : i32
    %c0_i32_0 = arith.constant 0 : i32
    %c0_i32_1 = arith.constant 0 : i32
    %c0_i32_2 = arith.constant 0 : i32
    return %c0_i32, %c0_i32_0, %c0_i32_1 : i32, i32, i32
  }
  func.func @transform_24(%arg0: i32) -> (i32, i32) {
    %c0_i32 = arith.constant 0 : i32
    %c0_i32_0 = arith.constant 0 : i32
    %c0_i32_1 = arith.constant 0 : i32
    return %c0_i32, %c0_i32_0 : i32, i32
  }
  func.func @transform_25(%arg0: i32) -> (i32, i32, i32) {
    %c0_i32 = arith.constant 0 : i32
    %c0_i32_0 = arith.constant 0 : i32
    %c0_i32_1 = arith.constant 0 : i32
    %c0_i32_2 = arith.constant 0 : i32
    return %c0_i32, %c0_i32_0, %c0_i32_1 : i32, i32, i32
  }
  func.func @transform_26(%arg0: i32) -> (i32, i32) {
    %c0_i32 = arith.constant 0 : i32
    %c0_i32_0 = arith.constant 0 : i32
    %c0_i32_1 = arith.constant 0 : i32
    return %c0_i32, %c0_i32_0 : i32, i32
  }
  func.func @transform_27(%arg0: i32) -> (i32, i32, i32, i32) {
    %c0_i32 = arith.constant 0 : i32
    %c0_i32_0 = arith.constant 0 : i32
    %c0_i32_1 = arith.constant 0 : i32
    %c0_i32_2 = arith.constant 0 : i32
    return %arg0, %c0_i32, %c0_i32_0, %c0_i32_1 : i32, i32, i32, i32
  }
}

</mosaic_0001>

<llo_original>
// kernel: spatial_mlp_decoder_forward.1
$region0: #{spatial_mlp_decoder_forward.1}
  #allocation0 [shape = 'u32[]', space=smem, size = 0x4, offset = 0x4, fixed_abs, tag = 'smem constant byte address 0x4 - core index']
  #allocation1 [shape = 'u32[144,128]{1,0:T(1,128)}', space=vmem, size = 0x12000, scoped, tag = 'internal scratch']
  #allocation2 [shape = 'f32[19,512]{1,0:T(8,128)}', space=vmem, size = 0xc000, scoped, tag = 'scratch operand']
  #allocation3 [shape = 'f32[19,512]{1,0:T(8,128)}', space=vmem, size = 0xc000, scoped, tag = 'scratch operand']
  %s0 = inlined_call_operand.vmem [shape: f32[2,8,128], index: 0, kind: input, shape index: {}]
  %s1 = inlined_call_operand.hbm [shape: f32[3,128,128], index: 1, kind: input, shape index: {}]
  %s2 = inlined_call_operand.vmem [shape: f32[1,128], index: 2, kind: input, shape index: {}]
  %s3 = inlined_call_operand.hbm [shape: f32[3,128,128], index: 3, kind: input, shape index: {}]
  %s4 = inlined_call_operand.vmem [shape: f32[1,128], index: 4, kind: input, shape index: {}]
  %s5 = inlined_call_operand.hbm [shape: f32[128,128], index: 5, kind: input, shape index: {}]
  %s6 = inlined_call_operand.vmem [shape: f32[1,128], index: 6, kind: input, shape index: {}]
  %s7 = inlined_call_operand.hbm [shape: f32[3,128,128], index: 7, kind: input, shape index: {}]
  %s8 = inlined_call_operand.vmem [shape: f32[1,128], index: 8, kind: input, shape index: {}]
  %s9 = inlined_call_operand.hbm [shape: f32[128,128], index: 9, kind: input, shape index: {}]
  %s10 = inlined_call_operand.vmem [shape: f32[1,128], index: 10, kind: input, shape index: {}]
  %s11 = inlined_call_operand.hbm [shape: f32[2,2,128,128], index: 11, kind: input, shape index: {}]
  %s12 = inlined_call_operand.vmem [shape: f32[1,128], index: 12, kind: input, shape index: {}]
  %s13 = inlined_call_operand.hbm [shape: f32[3,128,128], index: 13, kind: input, shape index: {}]
  %s14 = inlined_call_operand.vmem [shape: f32[1,128], index: 14, kind: input, shape index: {}]
  %s15 = inlined_call_operand.hbm [shape: f32[128,128], index: 15, kind: input, shape index: {}]
  %s16 = inlined_call_operand.vmem [shape: f32[1,128], index: 16, kind: input, shape index: {}]
  %s17 = inlined_call_operand.hbm [shape: f32[3,128,128], index: 17, kind: input, shape index: {}]
  %s18 = inlined_call_operand.vmem [shape: f32[1,128], index: 18, kind: input, shape index: {}]
  %s19 = inlined_call_operand.hbm [shape: f32[128,128], index: 19, kind: input, shape index: {}]
  %s20 = inlined_call_operand.vmem [shape: f32[1,128], index: 20, kind: input, shape index: {}]
  %s21 = inlined_call_operand.hbm [shape: f32[2,2,128,128], index: 21, kind: input, shape index: {}]
  %s22 = inlined_call_operand.vmem [shape: f32[1,128], index: 22, kind: input, shape index: {}]
  %s23 = inlined_call_operand.hbm [shape: f32[3,128,128], index: 23, kind: input, shape index: {}]
  %s24 = inlined_call_operand.vmem [shape: f32[1,128], index: 24, kind: input, shape index: {}]
  %s25 = inlined_call_operand.hbm [shape: f32[3,128,128], index: 25, kind: input, shape index: {}]
  %s26 = inlined_call_operand.vmem [shape: f32[1,128], index: 26, kind: input, shape index: {}]
  %s27 = inlined_call_operand.vmem [shape: f32[2,4,8,128], index: 27, kind: output, shape index: {}]
  %s28 = sld [smem:[#allocation0]]
  $region193: #{spatial_mlp_decoder_forward.1} parent=0
    _
  %s30 = ssub.s32 1, %s28
  %s31 = scalar_select 0, %s30, %s28
  $region1: #{spatial_mlp_decoder_forward.1} parent=0
    #allocation4 [shape = 'u8[196608]{0}', space=vmem, size = 0x30000, scoped, tag = 'input window, operand 1, single buffered']
    #allocation5 [shape = 's32[2]{0}', space=sflag, size = 0x8, scoped, tag = 'scoped memory for spatial_mlp_decoder_forward.1']
    #allocation6 [shape = 'u8[196608]{0}', space=vmem, size = 0x30000, scoped, tag = 'input window, operand 3, single buffered']
    #allocation7 [shape = 's32[1]{0}', space=sflag, size = 0x4, scoped, tag = 'scoped memory for spatial_mlp_decoder_forward.1']
    #allocation8 [shape = 'u8[65536]{0}', space=vmem, size = 0x10000, scoped, tag = 'input window, operand 5, single buffered']
    #allocation9 [shape = 'u8[196608]{0}', space=vmem, size = 0x30000, scoped, tag = 'input window, operand 7, single buffered']
    #allocation10 [shape = 's32[1]{0}', space=sflag, size = 0x4, scoped, tag = 'scoped memory for spatial_mlp_decoder_forward.1']
    #allocation11 [shape = 'u8[65536]{0}', space=vmem, size = 0x10000, scoped, tag = 'input window, operand 9, single buffered']
    #allocation12 [shape = 'u8[262144]{0}', space=vmem, size = 0x40000, scoped, tag = 'input window, operand 11, single buffered']
    #allocation13 [shape = 's32[1]{0}', space=sflag, size = 0x4, scoped, tag = 'scoped memory for spatial_mlp_decoder_forward.1']
    #allocation14 [shape = 'u8[196608]{0}', space=vmem, size = 0x30000, scoped, tag = 'input window, operand 13, single buffered']
    #allocation15 [shape = 'u8[65536]{0}', space=vmem, size = 0x10000, scoped, tag = 'input window, operand 15, single buffered']
    #allocation16 [shape = 's32[1]{0}', space=sflag, size = 0x4, scoped, tag = 'scoped memory for spatial_mlp_decoder_forward.1']
    #allocation17 [shape = 'u8[196608]{0}', space=vmem, size = 0x30000, scoped, tag = 'input window, operand 17, single buffered']
    #allocation18 [shape = 'u8[65536]{0}', space=vmem, size = 0x10000, scoped, tag = 'input window, operand 19, single buffered']
    #allocation19 [shape = 's32[1]{0}', space=sflag, size = 0x4, scoped, tag = 'scoped memory for spatial_mlp_decoder_forward.1']
    #allocation20 [shape = 'u8[262144]{0}', space=vmem, size = 0x40000, scoped, tag = 'input window, operand 21, single buffered']
    #allocation21 [shape = 'u8[196608]{0}', space=vmem, size = 0x30000, scoped, tag = 'input window, operand 23, single buffered']
    #allocation22 [shape = 's32[1]{0}', space=sflag, size = 0x4, scoped, tag = 'scoped memory for spatial_mlp_decoder_forward.1']
    #allocation23 [shape = 'u8[196608]{0}', space=vmem, size = 0x30000, scoped, tag = 'input window, operand 25, single buffered']
    %32 = vsyncpa [#allocation5], 0
    %33 = vsyncpa [#allocation7], 0
    %34 = vsyncpa [#allocation10], 0
    %35 = vsyncpa [#allocation13], 0
    %36 = vsyncpa [#allocation16], 0
    %37 = vsyncpa [#allocation19], 0
    %38 = vsyncpa [#allocation22], 0
    loop: start=0, step=1, limit=4
    $region2: #{spatial_mlp_decoder_forward.1} parent=1 // loop_pre_header
      _
    $region3: #{spatial_mlp_decoder_forward.1} parent=1 // loop_header
      %s40 = sphi 0, %s44
      %p41 = scmp.ge.s32.totalorder %s40, 4
      %s50 = sphi 0, %s52
      %s53 = sphi 0, %s50
      %s54 = sphi 0, %s53
      %s70 = sphi 0, %s54
      %s74 = sphi 0, %s74
      %s76 = sphi 0, %s74
      %s77 = sphi 0, %s76
      %s91 = sphi 0, %s77
      %s95 = sphi 0, %s95
      %s97 = sphi 0, %s95
      %s98 = sphi 0, %s97
      %s112 = sphi 0, %s98
      %s116 = sphi 0, %s116
      %s118 = sphi 0, %s116
      %s119 = sphi 0, %s118
      %s133 = sphi 0, %s119
      %s137 = sphi 0, %s137
      %s139 = sphi 0, %s137
      %s140 = sphi 0, %s139
      %s154 = sphi 0, %s140
      %s158 = sphi 0, %s158
      %s160 = sphi 0, %s158
      %s161 = sphi 0, %s160
      %s175 = sphi 0, %s161
      %s179 = sphi 0, %s179
      %s181 = sphi 0, %s179
      %s182 = sphi 0, %s181
      %s196 = sphi 0, %s182
      %s200 = sphi 0, %s200
      %s202 = sphi 0, %s200
      %s203 = sphi 0, %s202
      %s217 = sphi 0, %s203
      %s221 = sphi 0, %s221
      %s223 = sphi 0, %s221
      %s224 = sphi 0, %s223
      %s238 = sphi 0, %s224
      %s242 = sphi 0, %s242
      %s244 = sphi 0, %s242
      %s245 = sphi 0, %s244
      %s259 = sphi 0, %s245
      %s263 = sphi 0, %s263
      %s265 = sphi 0, %s263
      %s266 = sphi 0, %s265
      %s280 = sphi 0, %s266
      %s284 = sphi 0, %s284
      %s286 = sphi 0, %s284
      %s287 = sphi 0, %s286
      %s301 = sphi 0, %s287
      %s305 = sphi 0, %s305
      %s307 = sphi 0, %s305
      %s308 = sphi 0, %s307
      %s322 = sphi 0, %s308
      %s326 = sphi 0, %s326
      %s328 = sphi 0, %s326
      %s329 = sphi 0, %s328
      %s343 = sphi 0, %s329
      %s347 = sphi 0, %s347
      %s349 = sphi 0, %s347
      %s350 = sphi 0, %s349
      %s364 = sphi 0, %s350
      %s368 = sphi 0, %s368
      %s370 = sphi 0, %s368
      %s371 = sphi 0, %s370
      %s385 = sphi 0, %s371
      %s389 = sphi 0, %s389
      %s391 = sphi 0, %s389
      %s392 = sphi 0, %s391
      %s406 = sphi 0, %s392
      %s410 = sphi 0, %s410
      %s412 = sphi 0, %s410
      %s413 = sphi 0, %s412
      %s427 = sphi 0, %s413
      %s431 = sphi 0, %s431
      %s433 = sphi 0, %s431
      %s434 = sphi 0, %s433
      %s448 = sphi 0, %s434
      %s452 = sphi 0, %s452
      %s454 = sphi 0, %s452
      %s455 = sphi 0, %s454
      %s469 = sphi 0, %s455
      %s473 = sphi 0, %s473
      %s475 = sphi 0, %s473
      %s476 = sphi 0, %s475
      %s490 = sphi 0, %s476
      %s494 = sphi 0, %s494
      %s496 = sphi 0, %s494
      %s497 = sphi 0, %s496
      %s511 = sphi 0, %s497
      %s515 = sphi 0, %s515
      %s517 = sphi 0, %s515
      %s518 = sphi 0, %s517
      %s532 = sphi 0, %s518
      %s536 = sphi 0, %s536
      %s538 = sphi 0, %s536
      %s539 = sphi 0, %s538
      %s553 = sphi 0, %s539
      %s557 = sphi 0, %s557
      %s559 = sphi 0, %s557
      %s560 = sphi 0, %s559
      %s574 = sphi 0, %s560
      %s578 = sphi 0, %s578
      %s580 = sphi 0, %s578
      %s581 = sphi 0, %s580
      %s595 = sphi 0, %s581
      %s599 = sphi 0, %s599
      %s601 = sphi 0, %s599
      %s602 = sphi 0, %s601
      %s616 = sphi 0, %s602
      %s622 = sphi 0, %s624
      %s625 = sphi 0, %s622
      %s626 = sphi 0, %s625
      %s642 = sphi 0, %s626
    $region4: #{spatial_mlp_decoder_forward.1} parent=1 // loop_header_branch
      %43 = sbr.rel (%p41) target = $region8
    $region5: #{spatial_mlp_decoder_forward.1} parent=1 // loop_body
      %s45 = ssub.s32 %s40, 1
      %s46 = ssub.s32 %s40, 2
      %s47 = sadd.s32 %s40, 1
      %s48 = ssub.s32 %s40, %s47
      %p49 = scmp.eq.s32.totalorder %s48, 0
      %s51 = sadd.s32 %s50, 1
      %s52 = scalar_select %p49, %s50, %s51
      %p55 = pneg %p49
      %p56 = scmp.eq.s32.totalorder %s40, 1
      %p57 = por %p55, %p56
      %p58 = scmp.ne.s32.totalorder %s50, %s53
      %p59 = scmp.eq.s32.totalorder %s40, 0
      %p60 = por %p58, %p59
      %p61 = scmp.ne.s32.totalorder %s50, %s53
      %p62 = scmp.eq.s32.totalorder %s45, 1
      %p63 = por %p61, %p62
      %p64 = scmp.ne.s32.totalorder %s53, %s54
      %p65 = scmp.eq.s32.totalorder %s45, 0
      %p66 = por %p64, %p65
      %p67 = scmp.ne.s32.totalorder %s53, %s54
      %p68 = scmp.eq.s32.totalorder %s46, 1
      %p69 = por %p67, %p68
      %p71 = scmp.ne.s32.totalorder %s54, %s70
      %p72 = scmp.eq.s32.totalorder %s46, 0
      %p73 = por %p71, %p72
      %s75 = sadd.s32 %s74, 1
      %p78 = scmp.eq.s32.totalorder %s40, 1
      %p79 = scmp.ne.s32.totalorder %s74, %s76
      %p80 = scmp.eq.s32.totalorder %s40, 0
      %p81 = por %p79, %p80
      %p82 = scmp.ne.s32.totalorder %s74, %s76
      %p83 = scmp.eq.s32.totalorder %s45, 1
      %p84 = por %p82, %p83
      %p85 = scmp.ne.s32.totalorder %s76, %s77
      %p86 = scmp.eq.s32.totalorder %s45, 0
      %p87 = por %p85, %p86
      %p88 = scmp.ne.s32.totalorder %s76, %s77
      %p89 = scmp.eq.s32.totalorder %s46, 1
      %p90 = por %p88, %p89
      %p92 = scmp.ne.s32.totalorder %s77, %s91
      %p93 = scmp.eq.s32.totalorder %s46, 0
      %p94 = por %p92, %p93
      %s96 = sadd.s32 %s95, 1
      %p99 = scmp.eq.s32.totalorder %s40, 1
      %p100 = scmp.ne.s32.totalorder %s95, %s97
      %p101 = scmp.eq.s32.totalorder %s40, 0
      %p102 = por %p100, %p101
      %p103 = scmp.ne.s32.totalorder %s95, %s97
      %p104 = scmp.eq.s32.totalorder %s45, 1
      %p105 = por %p103, %p104
      %p106 = scmp.ne.s32.totalorder %s97, %s98
      %p107 = scmp.eq.s32.totalorder %s45, 0
      %p108 = por %p106, %p107
      %p109 = scmp.ne.s32.totalorder %s97, %s98
      %p110 = scmp.eq.s32.totalorder %s46, 1
      %p111 = por %p109, %p110
      %p113 = scmp.ne.s32.totalorder %s98, %s112
      %p114 = scmp.eq.s32.totalorder %s46, 0
      %p115 = por %p113, %p114
      %s117 = sadd.s32 %s116, 1
      %p120 = scmp.eq.s32.totalorder %s40, 1
      %p121 = scmp.ne.s32.totalorder %s116, %s118
      %p122 = scmp.eq.s32.totalorder %s40, 0
      %p123 = por %p121, %p122
      %p124 = scmp.ne.s32.totalorder %s116, %s118
      %p125 = scmp.eq.s32.totalorder %s45, 1
      %p126 = por %p124, %p125
      %p127 = scmp.ne.s32.totalorder %s118, %s119
      %p128 = scmp.eq.s32.totalorder %s45, 0
      %p129 = por %p127, %p128
      %p130 = scmp.ne.s32.totalorder %s118, %s119
      %p131 = scmp.eq.s32.totalorder %s46, 1
      %p132 = por %p130, %p131
      %p134 = scmp.ne.s32.totalorder %s119, %s133
      %p135 = scmp.eq.s32.totalorder %s46, 0
      %p136 = por %p134, %p135
      %s138 = sadd.s32 %s137, 1
      %p141 = scmp.eq.s32.totalorder %s40, 1
      %p142 = scmp.ne.s32.totalorder %s137, %s139
      %p143 = scmp.eq.s32.totalorder %s40, 0
      %p144 = por %p142, %p143
      %p145 = scmp.ne.s32.totalorder %s137, %s139
      %p146 = scmp.eq.s32.totalorder %s45, 1
      %p147 = por %p145, %p146
      %p148 = scmp.ne.s32.totalorder %s139, %s140
      %p149 = scmp.eq.s32.totalorder %s45, 0
      %p150 = por %p148, %p149
      %p151 = scmp.ne.s32.totalorder %s139, %s140
      %p152 = scmp.eq.s32.totalorder %s46, 1
      %p153 = por %p151, %p152
      %p155 = scmp.ne.s32.totalorder %s140, %s154
      %p156 = scmp.eq.s32.totalorder %s46, 0
      %p157 = por %p155, %p156
      %s159 = sadd.s32 %s158, 1
      %p162 = scmp.eq.s32.totalorder %s40, 1
      %p163 = scmp.ne.s32.totalorder %s158, %s160
      %p164 = scmp.eq.s32.totalorder %s40, 0
      %p165 = por %p163, %p164
      %p166 = scmp.ne.s32.totalorder %s158, %s160
      %p167 = scmp.eq.s32.totalorder %s45, 1
      %p168 = por %p166, %p167
      %p169 = scmp.ne.s32.totalorder %s160, %s161
      %p170 = scmp.eq.s32.totalorder %s45, 0
      %p171 = por %p169, %p170
      %p172 = scmp.ne.s32.totalorder %s160, %s161
      %p173 = scmp.eq.s32.totalorder %s46, 1
      %p174 = por %p172, %p173
      %p176 = scmp.ne.s32.totalorder %s161, %s175
      %p177 = scmp.eq.s32.totalorder %s46, 0
      %p178 = por %p176, %p177
      %s180 = sadd.s32 %s179, 1
      %p183 = scmp.eq.s32.totalorder %s40, 1
      %p184 = scmp.ne.s32.totalorder %s179, %s181
      %p185 = scmp.eq.s32.totalorder %s40, 0
      %p186 = por %p184, %p185
      %p187 = scmp.ne.s32.totalorder %s179, %s181
      %p188 = scmp.eq.s32.totalorder %s45, 1
      %p189 = por %p187, %p188
      %p190 = scmp.ne.s32.totalorder %s181, %s182
      %p191 = scmp.eq.s32.totalorder %s45, 0
      %p192 = por %p190, %p191
      %p193 = scmp.ne.s32.totalorder %s181, %s182
      %p194 = scmp.eq.s32.totalorder %s46, 1
      %p195 = por %p193, %p194
      %p197 = scmp.ne.s32.totalorder %s182, %s196
      %p198 = scmp.eq.s32.totalorder %s46, 0
      %p199 = por %p197, %p198
      %s201 = sadd.s32 %s200, 1
      %p204 = scmp.eq.s32.totalorder %s40, 1
      %p205 = scmp.ne.s32.totalorder %s200, %s202
      %p206 = scmp.eq.s32.totalorder %s40, 0
      %p207 = por %p205, %p206
      %p208 = scmp.ne.s32.totalorder %s200, %s202
      %p209 = scmp.eq.s32.totalorder %s45, 1
      %p210 = por %p208, %p209
      %p211 = scmp.ne.s32.totalorder %s202, %s203
      %p212 = scmp.eq.s32.totalorder %s45, 0
      %p213 = por %p211, %p212
      %p214 = scmp.ne.s32.totalorder %s202, %s203
      %p215 = scmp.eq.s32.totalorder %s46, 1
      %p216 = por %p214, %p215
      %p218 = scmp.ne.s32.totalorder %s203, %s217
      %p219 = scmp.eq.s32.totalorder %s46, 0
      %p220 = por %p218, %p219
      %s222 = sadd.s32 %s221, 1
      %p225 = scmp.eq.s32.totalorder %s40, 1
      %p226 = scmp.ne.s32.totalorder %s221, %s223
      %p227 = scmp.eq.s32.totalorder %s40, 0
      %p228 = por %p226, %p227
      %p229 = scmp.ne.s32.totalorder %s221, %s223
      %p230 = scmp.eq.s32.totalorder %s45, 1
      %p231 = por %p229, %p230
      %p232 = scmp.ne.s32.totalorder %s223, %s224
      %p233 = scmp.eq.s32.totalorder %s45, 0
      %p234 = por %p232, %p233
      %p235 = scmp.ne.s32.totalorder %s223, %s224
      %p236 = scmp.eq.s32.totalorder %s46, 1
      %p237 = por %p235, %p236
      %p239 = scmp.ne.s32.totalorder %s224, %s238
      %p240 = scmp.eq.s32.totalorder %s46, 0
      %p241 = por %p239, %p240
      %s243 = sadd.s32 %s242, 1
      %p246 = scmp.eq.s32.totalorder %s40, 1
      %p247 = scmp.ne.s32.totalorder %s242, %s244
      %p248 = scmp.eq.s32.totalorder %s40, 0
      %p249 = por %p247, %p248
      %p250 = scmp.ne.s32.totalorder %s242, %s244
      %p251 = scmp.eq.s32.totalorder %s45, 1
      %p252 = por %p250, %p251
      %p253 = scmp.ne.s32.totalorder %s244, %s245
      %p254 = scmp.eq.s32.totalorder %s45, 0
      %p255 = por %p253, %p254
      %p256 = scmp.ne.s32.totalorder %s244, %s245
      %p257 = scmp.eq.s32.totalorder %s46, 1
      %p258 = por %p256, %p257
      %p260 = scmp.ne.s32.totalorder %s245, %s259
      %p261 = scmp.eq.s32.totalorder %s46, 0
      %p262 = por %p260, %p261
      %s264 = sadd.s32 %s263, 1
      %p267 = scmp.eq.s32.totalorder %s40, 1
      %p268 = scmp.ne.s32.totalorder %s263, %s265
      %p269 = scmp.eq.s32.totalorder %s40, 0
      %p270 = por %p268, %p269
      %p271 = scmp.ne.s32.totalorder %s263, %s265
      %p272 = scmp.eq.s32.totalorder %s45, 1
      %p273 = por %p271, %p272
      %p274 = scmp.ne.s32.totalorder %s265, %s266
      %p275 = scmp.eq.s32.totalorder %s45, 0
      %p276 = por %p274, %p275
      %p277 = scmp.ne.s32.totalorder %s265, %s266
      %p278 = scmp.eq.s32.totalorder %s46, 1
      %p279 = por %p277, %p278
      %p281 = scmp.ne.s32.totalorder %s266, %s280
      %p282 = scmp.eq.s32.totalorder %s46, 0
      %p283 = por %p281, %p282
      %s285 = sadd.s32 %s284, 1
      %p288 = scmp.eq.s32.totalorder %s40, 1
      %p289 = scmp.ne.s32.totalorder %s284, %s286
      %p290 = scmp.eq.s32.totalorder %s40, 0
      %p291 = por %p289, %p290
      %p292 = scmp.ne.s32.totalorder %s284, %s286
      %p293 = scmp.eq.s32.totalorder %s45, 1
      %p294 = por %p292, %p293
      %p295 = scmp.ne.s32.totalorder %s286, %s287
      %p296 = scmp.eq.s32.totalorder %s45, 0
      %p297 = por %p295, %p296
      %p298 = scmp.ne.s32.totalorder %s286, %s287
      %p299 = scmp.eq.s32.totalorder %s46, 1
      %p300 = por %p298, %p299
      %p302 = scmp.ne.s32.totalorder %s287, %s301
      %p303 = scmp.eq.s32.totalorder %s46, 0
      %p304 = por %p302, %p303
      %s306 = sadd.s32 %s305, 1
      %p309 = scmp.eq.s32.totalorder %s40, 1
      %p310 = scmp.ne.s32.totalorder %s305, %s307
      %p311 = scmp.eq.s32.totalorder %s40, 0
      %p312 = por %p310, %p311
      %p313 = scmp.ne.s32.totalorder %s305, %s307
      %p314 = scmp.eq.s32.totalorder %s45, 1
      %p315 = por %p313, %p314
      %p316 = scmp.ne.s32.totalorder %s307, %s308
      %p317 = scmp.eq.s32.totalorder %s45, 0
      %p318 = por %p316, %p317
      %p319 = scmp.ne.s32.totalorder %s307, %s308
      %p320 = scmp.eq.s32.totalorder %s46, 1
      %p321 = por %p319, %p320
      %p323 = scmp.ne.s32.totalorder %s308, %s322
      %p324 = scmp.eq.s32.totalorder %s46, 0
      %p325 = por %p323, %p324
      %s327 = sadd.s32 %s326, 1
      %p330 = scmp.eq.s32.totalorder %s40, 1
      %p331 = scmp.ne.s32.totalorder %s326, %s328
      %p332 = scmp.eq.s32.totalorder %s40, 0
      %p333 = por %p331, %p332
      %p334 = scmp.ne.s32.totalorder %s326, %s328
      %p335 = scmp.eq.s32.totalorder %s45, 1
      %p336 = por %p334, %p335
      %p337 = scmp.ne.s32.totalorder %s328, %s329
      %p338 = scmp.eq.s32.totalorder %s45, 0
      %p339 = por %p337, %p338
      %p340 = scmp.ne.s32.totalorder %s328, %s329
      %p341 = scmp.eq.s32.totalorder %s46, 1
      %p342 = por %p340, %p341
      %p344 = scmp.ne.s32.totalorder %s329, %s343
      %p345 = scmp.eq.s32.totalorder %s46, 0
      %p346 = por %p344, %p345
      %s348 = sadd.s32 %s347, 1
      %p351 = scmp.eq.s32.totalorder %s40, 1
      %p352 = scmp.ne.s32.totalorder %s347, %s349
      %p353 = scmp.eq.s32.totalorder %s40, 0
      %p354 = por %p352, %p353
      %p355 = scmp.ne.s32.totalorder %s347, %s349
      %p356 = scmp.eq.s32.totalorder %s45, 1
      %p357 = por %p355, %p356
      %p358 = scmp.ne.s32.totalorder %s349, %s350
      %p359 = scmp.eq.s32.totalorder %s45, 0
      %p360 = por %p358, %p359
      %p361 = scmp.ne.s32.totalorder %s349, %s350
      %p362 = scmp.eq.s32.totalorder %s46, 1
      %p363 = por %p361, %p362
      %p365 = scmp.ne.s32.totalorder %s350, %s364
      %p366 = scmp.eq.s32.totalorder %s46, 0
      %p367 = por %p365, %p366
      %s369 = sadd.s32 %s368, 1
      %p372 = scmp.eq.s32.totalorder %s40, 1
      %p373 = scmp.ne.s32.totalorder %s368, %s370
      %p374 = scmp.eq.s32.totalorder %s40, 0
      %p375 = por %p373, %p374
      %p376 = scmp.ne.s32.totalorder %s368, %s370
      %p377 = scmp.eq.s32.totalorder %s45, 1
      %p378 = por %p376, %p377
      %p379 = scmp.ne.s32.totalorder %s370, %s371
      %p380 = scmp.eq.s32.totalorder %s45, 0
      %p381 = por %p379, %p380
      %p382 = scmp.ne.s32.totalorder %s370, %s371
      %p383 = scmp.eq.s32.totalorder %s46, 1
      %p384 = por %p382, %p383
      %p386 = scmp.ne.s32.totalorder %s371, %s385
      %p387 = scmp.eq.s32.totalorder %s46, 0
      %p388 = por %p386, %p387
      %s390 = sadd.s32 %s389, 1
      %p393 = scmp.eq.s32.totalorder %s40, 1
      %p394 = scmp.ne.s32.totalorder %s389, %s391
      %p395 = scmp.eq.s32.totalorder %s40, 0
      %p396 = por %p394, %p395
      %p397 = scmp.ne.s32.totalorder %s389, %s391
      %p398 = scmp.eq.s32.totalorder %s45, 1
      %p399 = por %p397, %p398
      %p400 = scmp.ne.s32.totalorder %s391, %s392
      %p401 = scmp.eq.s32.totalorder %s45, 0
      %p402 = por %p400, %p401
      %p403 = scmp.ne.s32.totalorder %s391, %s392
      %p404 = scmp.eq.s32.totalorder %s46, 1
      %p405 = por %p403, %p404
      %p407 = scmp.ne.s32.totalorder %s392, %s406
      %p408 = scmp.eq.s32.totalorder %s46, 0
      %p409 = por %p407, %p408
      %s411 = sadd.s32 %s410, 1
      %p414 = scmp.eq.s32.totalorder %s40, 1
      %p415 = scmp.ne.s32.totalorder %s410, %s412
      %p416 = scmp.eq.s32.totalorder %s40, 0
      %p417 = por %p415, %p416
      %p418 = scmp.ne.s32.totalorder %s410, %s412
      %p419 = scmp.eq.s32.totalorder %s45, 1
      %p420 = por %p418, %p419
      %p421 = scmp.ne.s32.totalorder %s412, %s413
      %p422 = scmp.eq.s32.totalorder %s45, 0
      %p423 = por %p421, %p422
      %p424 = scmp.ne.s32.totalorder %s412, %s413
      %p425 = scmp.eq.s32.totalorder %s46, 1
      %p426 = por %p424, %p425
      %p428 = scmp.ne.s32.totalorder %s413, %s427
      %p429 = scmp.eq.s32.totalorder %s46, 0
      %p430 = por %p428, %p429
      %s432 = sadd.s32 %s431, 1
      %p435 = scmp.eq.s32.totalorder %s40, 1
      %p436 = scmp.ne.s32.totalorder %s431, %s433
      %p437 = scmp.eq.s32.totalorder %s40, 0
      %p438 = por %p436, %p437
      %p439 = scmp.ne.s32.totalorder %s431, %s433
      %p440 = scmp.eq.s32.totalorder %s45, 1
      %p441 = por %p439, %p440
      %p442 = scmp.ne.s32.totalorder %s433, %s434
      %p443 = scmp.eq.s32.totalorder %s45, 0
      %p444 = por %p442, %p443
      %p445 = scmp.ne.s32.totalorder %s433, %s434
      %p446 = scmp.eq.s32.totalorder %s46, 1
      %p447 = por %p445, %p446
      %p449 = scmp.ne.s32.totalorder %s434, %s448
      %p450 = scmp.eq.s32.totalorder %s46, 0
      %p451 = por %p449, %p450
      %s453 = sadd.s32 %s452, 1
      %p456 = scmp.eq.s32.totalorder %s40, 1
      %p457 = scmp.ne.s32.totalorder %s452, %s454
      %p458 = scmp.eq.s32.totalorder %s40, 0
      %p459 = por %p457, %p458
      %p460 = scmp.ne.s32.totalorder %s452, %s454
      %p461 = scmp.eq.s32.totalorder %s45, 1
      %p462 = por %p460, %p461
      %p463 = scmp.ne.s32.totalorder %s454, %s455
      %p464 = scmp.eq.s32.totalorder %s45, 0
      %p465 = por %p463, %p464
      %p466 = scmp.ne.s32.totalorder %s454, %s455
      %p467 = scmp.eq.s32.totalorder %s46, 1
      %p468 = por %p466, %p467
      %p470 = scmp.ne.s32.totalorder %s455, %s469
      %p471 = scmp.eq.s32.totalorder %s46, 0
      %p472 = por %p470, %p471
      %s474 = sadd.s32 %s473, 1
      %p477 = scmp.eq.s32.totalorder %s40, 1
      %p478 = scmp.ne.s32.totalorder %s473, %s475
      %p479 = scmp.eq.s32.totalorder %s40, 0
      %p480 = por %p478, %p479
      %p481 = scmp.ne.s32.totalorder %s473, %s475
      %p482 = scmp.eq.s32.totalorder %s45, 1
      %p483 = por %p481, %p482
      %p484 = scmp.ne.s32.totalorder %s475, %s476
      %p485 = scmp.eq.s32.totalorder %s45, 0
      %p486 = por %p484, %p485
      %p487 = scmp.ne.s32.totalorder %s475, %s476
      %p488 = scmp.eq.s32.totalorder %s46, 1
      %p489 = por %p487, %p488
      %p491 = scmp.ne.s32.totalorder %s476, %s490
      %p492 = scmp.eq.s32.totalorder %s46, 0
      %p493 = por %p491, %p492
      %s495 = sadd.s32 %s494, 1
      %p498 = scmp.eq.s32.totalorder %s40, 1
      %p499 = scmp.ne.s32.totalorder %s494, %s496
      %p500 = scmp.eq.s32.totalorder %s40, 0
      %p501 = por %p499, %p500
      %p502 = scmp.ne.s32.totalorder %s494, %s496
      %p503 = scmp.eq.s32.totalorder %s45, 1
      %p504 = por %p502, %p503
      %p505 = scmp.ne.s32.totalorder %s496, %s497
      %p506 = scmp.eq.s32.totalorder %s45, 0
      %p507 = por %p505, %p506
      %p508 = scmp.ne.s32.totalorder %s496, %s497
      %p509 = scmp.eq.s32.totalorder %s46, 1
      %p510 = por %p508, %p509
      %p512 = scmp.ne.s32.totalorder %s497, %s511
      %p513 = scmp.eq.s32.totalorder %s46, 0
      %p514 = por %p512, %p513
      %s516 = sadd.s32 %s515, 1
      %p519 = scmp.eq.s32.totalorder %s40, 1
      %p520 = scmp.ne.s32.totalorder %s515, %s517
      %p521 = scmp.eq.s32.totalorder %s40, 0
      %p522 = por %p520, %p521
      %p523 = scmp.ne.s32.totalorder %s515, %s517
      %p524 = scmp.eq.s32.totalorder %s45, 1
      %p525 = por %p523, %p524
      %p526 = scmp.ne.s32.totalorder %s517, %s518
      %p527 = scmp.eq.s32.totalorder %s45, 0
      %p528 = por %p526, %p527
      %p529 = scmp.ne.s32.totalorder %s517, %s518
      %p530 = scmp.eq.s32.totalorder %s46, 1
      %p531 = por %p529, %p530
      %p533 = scmp.ne.s32.totalorder %s518, %s532
      %p534 = scmp.eq.s32.totalorder %s46, 0
      %p535 = por %p533, %p534
      %s537 = sadd.s32 %s536, 1
      %p540 = scmp.eq.s32.totalorder %s40, 1
      %p541 = scmp.ne.s32.totalorder %s536, %s538
      %p542 = scmp.eq.s32.totalorder %s40, 0
      %p543 = por %p541, %p542
      %p544 = scmp.ne.s32.totalorder %s536, %s538
      %p545 = scmp.eq.s32.totalorder %s45, 1
      %p546 = por %p544, %p545
      %p547 = scmp.ne.s32.totalorder %s538, %s539
      %p548 = scmp.eq.s32.totalorder %s45, 0
      %p549 = por %p547, %p548
      %p550 = scmp.ne.s32.totalorder %s538, %s539
      %p551 = scmp.eq.s32.totalorder %s46, 1
      %p552 = por %p550, %p551
      %p554 = scmp.ne.s32.totalorder %s539, %s553
      %p555 = scmp.eq.s32.totalorder %s46, 0
      %p556 = por %p554, %p555
      %s558 = sadd.s32 %s557, 1
      %p561 = scmp.eq.s32.totalorder %s40, 1
      %p562 = scmp.ne.s32.totalorder %s557, %s559
      %p563 = scmp.eq.s32.totalorder %s40, 0
      %p564 = por %p562, %p563
      %p565 = scmp.ne.s32.totalorder %s557, %s559
      %p566 = scmp.eq.s32.totalorder %s45, 1
      %p567 = por %p565, %p566
      %p568 = scmp.ne.s32.totalorder %s559, %s560
      %p569 = scmp.eq.s32.totalorder %s45, 0
      %p570 = por %p568, %p569
      %p571 = scmp.ne.s32.totalorder %s559, %s560
      %p572 = scmp.eq.s32.totalorder %s46, 1
      %p573 = por %p571, %p572
      %p575 = scmp.ne.s32.totalorder %s560, %s574
      %p576 = scmp.eq.s32.totalorder %s46, 0
      %p577 = por %p575, %p576
      %s579 = sadd.s32 %s578, 1
      %p582 = scmp.eq.s32.totalorder %s40, 1
      %p583 = scmp.ne.s32.totalorder %s578, %s580
      %p584 = scmp.eq.s32.totalorder %s40, 0
      %p585 = por %p583, %p584
      %p586 = scmp.ne.s32.totalorder %s578, %s580
      %p587 = scmp.eq.s32.totalorder %s45, 1
      %p588 = por %p586, %p587
      %p589 = scmp.ne.s32.totalorder %s580, %s581
      %p590 = scmp.eq.s32.totalorder %s45, 0
      %p591 = por %p589, %p590
      %p592 = scmp.ne.s32.totalorder %s580, %s581
      %p593 = scmp.eq.s32.totalorder %s46, 1
      %p594 = por %p592, %p593
      %p596 = scmp.ne.s32.totalorder %s581, %s595
      %p597 = scmp.eq.s32.totalorder %s46, 0
      %p598 = por %p596, %p597
      %s600 = sadd.s32 %s599, 1
      %p603 = scmp.eq.s32.totalorder %s40, 1
      %p604 = scmp.ne.s32.totalorder %s599, %s601
      %p605 = scmp.eq.s32.totalorder %s40, 0
      %p606 = por %p604, %p605
      %p607 = scmp.ne.s32.totalorder %s599, %s601
      %p608 = scmp.eq.s32.totalorder %s45, 1
      %p609 = por %p607, %p608
      %p610 = scmp.ne.s32.totalorder %s601, %s602
      %p611 = scmp.eq.s32.totalorder %s45, 0
      %p612 = por %p610, %p611
      %p613 = scmp.ne.s32.totalorder %s601, %s602
      %p614 = scmp.eq.s32.totalorder %s46, 1
      %p615 = por %p613, %p614
      %p617 = scmp.ne.s32.totalorder %s602, %s616
      %p618 = scmp.eq.s32.totalorder %s46, 0
      %p619 = por %p617, %p618
      %s620 = ssub.s32 %s40, %s47
      %p621 = scmp.eq.s32.totalorder %s620, 0
      %s623 = sadd.s32 %s622, 1
      %s624 = scalar_select %p621, %s622, %s623
      %p627 = pneg %p621
      %p628 = scmp.eq.s32.totalorder %s40, 1
      %p629 = por %p627, %p628
      %p630 = scmp.ne.s32.totalorder %s622, %s625
      %p631 = scmp.eq.s32.totalorder %s40, 0
      %p632 = por %p630, %p631
      %p633 = scmp.ne.s32.totalorder %s622, %s625
      %p634 = scmp.eq.s32.totalorder %s45, 1
      %p635 = por %p633, %p634
      %p636 = scmp.ne.s32.totalorder %s625, %s626
      %p637 = scmp.eq.s32.totalorder %s45, 0
      %p638 = por %p636, %p637
      %p639 = scmp.ne.s32.totalorder %s625, %s626
      %p640 = scmp.eq.s32.totalorder %s46, 1
      %p641 = por %p639, %p640
      %p643 = scmp.ne.s32.totalorder %s626, %s642
      %p644 = scmp.eq.s32.totalorder %s46, 0
      %p645 = por %p643, %p644
      %p646 = scmp.le.s32.totalorder 1, %s40
      %p647 = scmp.lt.s32.totalorder %s40, 3
      %p648 = pnand %p646, %p647
      %p649 = pneg %p648
      // Predicated region
      $region9: #{spatial_mlp_decoder_forward.1} parent=5 // pred_check
        _
      $region10: #{spatial_mlp_decoder_forward.1} parent=5 // pred_check_branch
        %651 = sbr.rel (%p648) target = $region12
      $region11: #{spatial_mlp_decoder_forward.1} parent=5 // pred_region
        %s652 = ssub.s32 %s40, 1
        // Predicated region
        $region13: #{spatial_mlp_decoder_forward.1} parent=11 // pred_check
          %p653 = pneg %p87
        $region14: #{spatial_mlp_decoder_forward.1} parent=11 // pred_check_branch
          %655 = sbr.rel (%p653) target = $region16
        $region15: #{spatial_mlp_decoder_forward.1} parent=11 // pred_region
          %s657 = ssub.s32 6144, 6144
          %658 = vsyncadd [#allocation5], %s657
          %s659 = sshll.u32 [#allocation4], 4
          %s660 = int_to_ptr.vmem [resolvable:$true] %s659
          %665 = dma.hbm_to_vmem [thread:$0]  %s1, 6144, %s660, [#allocation5], 128, 128, 8
        $region16: #{spatial_mlp_decoder_forward.1} parent=11 // pred_fallthru
          _
        // Predicated region
        $region17: #{spatial_mlp_decoder_forward.1} parent=11 // pred_check
          %p666 = pneg %p108
        $region18: #{spatial_mlp_decoder_forward.1} parent=11 // pred_check_branch
          %668 = sbr.rel (%p666) target = $region20
        $region19: #{spatial_mlp_decoder_forward.1} parent=11 // pred_region
          _
        $region20: #{spatial_mlp_decoder_forward.1} parent=11 // pred_fallthru
          _
        // Predicated region
        $region21: #{spatial_mlp_decoder_forward.1} parent=11 // pred_check
          %p669 = pneg %p129
        $region22: #{spatial_mlp_decoder_forward.1} parent=11 // pred_check_branch
          %671 = sbr.rel (%p669) target = $region24
        $region23: #{spatial_mlp_decoder_forward.1} parent=11 // pred_region
          %s673 = ssub.s32 6144, 6144
          %674 = vsyncadd [#allocation7], %s673
          %s675 = sshll.u32 [#allocation6], 4
          %s676 = int_to_ptr.vmem [resolvable:$true] %s675
          %681 = dma.hbm_to_vmem [thread:$0]  %s3, 6144, %s676, [#allocation7], 128, 128, 8
        $region24: #{spatial_mlp_decoder_forward.1} parent=11 // pred_fallthru
          _
        // Predicated region
        $region25: #{spatial_mlp_decoder_forward.1} parent=11 // pred_check
          %p682 = pneg %p150
        $region26: #{spatial_mlp_decoder_forward.1} parent=11 // pred_check_branch
          %684 = sbr.rel (%p682) target = $region28
        $region27: #{spatial_mlp_decoder_forward.1} parent=11 // pred_region
          _
        $region28: #{spatial_mlp_decoder_forward.1} parent=11 // pred_fallthru
          _
        // Predicated region
        $region29: #{spatial_mlp_decoder_forward.1} parent=11 // pred_check
          %p685 = pneg %p171
        $region30: #{spatial_mlp_decoder_forward.1} parent=11 // pred_check_branch
          %687 = sbr.rel (%p685) target = $region32
        $region31: #{spatial_mlp_decoder_forward.1} parent=11 // pred_region
          %s689 = ssub.s32 2048, 2048
          %690 = vsyncadd [#allocation7], %s689
          %s691 = sshll.u32 [#allocation8], 4
          %s692 = int_to_ptr.vmem [resolvable:$true] %s691
          %697 = dma.hbm_to_vmem [thread:$0]  %s5, 2048, %s692, [#allocation7], 128, 128, 8
        $region32: #{spatial_mlp_decoder_forward.1} parent=11 // pred_fallthru
          _
        // Predicated region
        $region33: #{spatial_mlp_decoder_forward.1} parent=11 // pred_check
          %p698 = pneg %p192
        $region34: #{spatial_mlp_decoder_forward.1} parent=11 // pred_check_branch
          %700 = sbr.rel (%p698) target = $region36
        $region35: #{spatial_mlp_decoder_forward.1} parent=11 // pred_region
          _
        $region36: #{spatial_mlp_decoder_forward.1} parent=11 // pred_fallthru
          _
        // Predicated region
        $region37: #{spatial_mlp_decoder_forward.1} parent=11 // pred_check
          %p701 = pneg %p213
        $region38: #{spatial_mlp_decoder_forward.1} parent=11 // pred_check_branch
          %703 = sbr.rel (%p701) target = $region40
        $region39: #{spatial_mlp_decoder_forward.1} parent=11 // pred_region
          %s705 = ssub.s32 6144, 6144
          %706 = vsyncadd [#allocation10], %s705
          %s707 = sshll.u32 [#allocation9], 4
          %s708 = int_to_ptr.vmem [resolvable:$true] %s707
          %713 = dma.hbm_to_vmem [thread:$0]  %s7, 6144, %s708, [#allocation10], 128, 128, 8
        $region40: #{spatial_mlp_decoder_forward.1} parent=11 // pred_fallthru
          _
        // Predicated region
        $region41: #{spatial_mlp_decoder_forward.1} parent=11 // pred_check
          %p714 = pneg %p234
        $region42: #{spatial_mlp_decoder_forward.1} parent=11 // pred_check_branch
          %716 = sbr.rel (%p714) target = $region44
        $region43: #{spatial_mlp_decoder_forward.1} parent=11 // pred_region
          _
        $region44: #{spatial_mlp_decoder_forward.1} parent=11 // pred_fallthru
          _
        // Predicated region
        $region45: #{spatial_mlp_decoder_forward.1} parent=11 // pred_check
          %p717 = pneg %p255
        $region46: #{spatial_mlp_decoder_forward.1} parent=11 // pred_check_branch
          %719 = sbr.rel (%p717) target = $region48
        $region47: #{spatial_mlp_decoder_forward.1} parent=11 // pred_region
          %s721 = ssub.s32 2048, 2048
          %722 = vsyncadd [#allocation10], %s721
          %s723 = sshll.u32 [#allocation11], 4
          %s724 = int_to_ptr.vmem [resolvable:$true] %s723
          %729 = dma.hbm_to_vmem [thread:$0]  %s9, 2048, %s724, [#allocation10], 128, 128, 8
        $region48: #{spatial_mlp_decoder_forward.1} parent=11 // pred_fallthru
          _
        // Predicated region
        $region49: #{spatial_mlp_decoder_forward.1} parent=11 // pred_check
          %p730 = pneg %p276
        $region50: #{spatial_mlp_decoder_forward.1} parent=11 // pred_check_branch
          %732 = sbr.rel (%p730) target = $region52
        $region51: #{spatial_mlp_decoder_forward.1} parent=11 // pred_region
          _
        $region52: #{spatial_mlp_decoder_forward.1} parent=11 // pred_fallthru
          _
        // Predicated region
        $region53: #{spatial_mlp_decoder_forward.1} parent=11 // pred_check
          %p733 = pneg %p297
        $region54: #{spatial_mlp_decoder_forward.1} parent=11 // pred_check_branch
          %735 = sbr.rel (%p733) target = $region56
        $region55: #{spatial_mlp_decoder_forward.1} parent=11 // pred_region
          %s737 = ssub.s32 8192, 8192
          %738 = vsyncadd [#allocation13], %s737
          %s739 = sshll.u32 [#allocation12], 4
          %s740 = int_to_ptr.vmem [resolvable:$true] %s739
          %745 = dma.hbm_to_vmem [thread:$0]  %s11, 8192, %s740, [#allocation13], 128, 128, 8
        $region56: #{spatial_mlp_decoder_forward.1} parent=11 // pred_fallthru
          _
        // Predicated region
        $region57: #{spatial_mlp_decoder_forward.1} parent=11 // pred_check
          %p746 = pneg %p318
        $region58: #{spatial_mlp_decoder_forward.1} parent=11 // pred_check_branch
          %748 = sbr.rel (%p746) target = $region60
        $region59: #{spatial_mlp_decoder_forward.1} parent=11 // pred_region
          _
        $region60: #{spatial_mlp_decoder_forward.1} parent=11 // pred_fallthru
          _
        // Predicated region
        $region61: #{spatial_mlp_decoder_forward.1} parent=11 // pred_check
          %p749 = pneg %p339
        $region62: #{spatial_mlp_decoder_forward.1} parent=11 // pred_check_branch
          %751 = sbr.rel (%p749) target = $region64
        $region63: #{spatial_mlp_decoder_forward.1} parent=11 // pred_region
          %s753 = ssub.s32 6144, 6144
          %754 = vsyncadd [#allocation13], %s753
          %s755 = sshll.u32 [#allocation14], 4
          %s756 = int_to_ptr.vmem [resolvable:$true] %s755
          %761 = dma.hbm_to_vmem [thread:$0]  %s13, 6144, %s756, [#allocation13], 128, 128, 8
        $region64: #{spatial_mlp_decoder_forward.1} parent=11 // pred_fallthru
          _
        // Predicated region
        $region65: #{spatial_mlp_decoder_forward.1} parent=11 // pred_check
          %p762 = pneg %p360
        $region66: #{spatial_mlp_decoder_forward.1} parent=11 // pred_check_branch
          %764 = sbr.rel (%p762) target = $region68
        $region67: #{spatial_mlp_decoder_forward.1} parent=11 // pred_region
          _
        $region68: #{spatial_mlp_decoder_forward.1} parent=11 // pred_fallthru
          _
        // Predicated region
        $region69: #{spatial_mlp_decoder_forward.1} parent=11 // pred_check
          %p765 = pneg %p381
        $region70: #{spatial_mlp_decoder_forward.1} parent=11 // pred_check_branch
          %767 = sbr.rel (%p765) target = $region72
        $region71: #{spatial_mlp_decoder_forward.1} parent=11 // pred_region
          %s769 = ssub.s32 2048, 2048
          %770 = vsyncadd [#allocation16], %s769
          %s771 = sshll.u32 [#allocation15], 4
          %s772 = int_to_ptr.vmem [resolvable:$true] %s771
          %777 = dma.hbm_to_vmem [thread:$0]  %s15, 2048, %s772, [#allocation16], 128, 128, 8
        $region72: #{spatial_mlp_decoder_forward.1} parent=11 // pred_fallthru
          _
        // Predicated region
        $region73: #{spatial_mlp_decoder_forward.1} parent=11 // pred_check
          %p778 = pneg %p402
        $region74: #{spatial_mlp_decoder_forward.1} parent=11 // pred_check_branch
          %780 = sbr.rel (%p778) target = $region76
        $region75: #{spatial_mlp_decoder_forward.1} parent=11 // pred_region
          _
        $region76: #{spatial_mlp_decoder_forward.1} parent=11 // pred_fallthru
          _
        // Predicated region
        $region77: #{spatial_mlp_decoder_forward.1} parent=11 // pred_check
          %p781 = pneg %p423
        $region78: #{spatial_mlp_decoder_forward.1} parent=11 // pred_check_branch
          %783 = sbr.rel (%p781) target = $region80
        $region79: #{spatial_mlp_decoder_forward.1} parent=11 // pred_region
          %s785 = ssub.s32 6144, 6144
          %786 = vsyncadd [#allocation16], %s785
          %s787 = sshll.u32 [#allocation17], 4
          %s788 = int_to_ptr.vmem [resolvable:$true] %s787
          %793 = dma.hbm_to_vmem [thread:$0]  %s17, 6144, %s788, [#allocation16], 128, 128, 8
        $region80: #{spatial_mlp_decoder_forward.1} parent=11 // pred_fallthru
          _
        // Predicated region
        $region81: #{spatial_mlp_decoder_forward.1} parent=11 // pred_check
          %p794 = pneg %p444
        $region82: #{spatial_mlp_decoder_forward.1} parent=11 // pred_check_branch
          %796 = sbr.rel (%p794) target = $region84
        $region83: #{spatial_mlp_decoder_forward.1} parent=11 // pred_region
          _
        $region84: #{spatial_mlp_decoder_forward.1} parent=11 // pred_fallthru
          _
        // Predicated region
        $region85: #{spatial_mlp_decoder_forward.1} parent=11 // pred_check
          %p797 = pneg %p465
        $region86: #{spatial_mlp_decoder_forward.1} parent=11 // pred_check_branch
          %799 = sbr.rel (%p797) target = $region88
        $region87: #{spatial_mlp_decoder_forward.1} parent=11 // pred_region
          %s801 = ssub.s32 2048, 2048
          %802 = vsyncadd [#allocation19], %s801
          %s803 = sshll.u32 [#allocation18], 4
          %s804 = int_to_ptr.vmem [resolvable:$true] %s803
          %809 = dma.hbm_to_vmem [thread:$0]  %s19, 2048, %s804, [#allocation19], 128, 128, 8
        $region88: #{spatial_mlp_decoder_forward.1} parent=11 // pred_fallthru
          _
        // Predicated region
        $region89: #{spatial_mlp_decoder_forward.1} parent=11 // pred_check
          %p810 = pneg %p486
        $region90: #{spatial_mlp_decoder_forward.1} parent=11 // pred_check_branch
          %812 = sbr.rel (%p810) target = $region92
        $region91: #{spatial_mlp_decoder_forward.1} parent=11 // pred_region
          _
        $region92: #{spatial_mlp_decoder_forward.1} parent=11 // pred_fallthru
          _
        // Predicated region
        $region93: #{spatial_mlp_decoder_forward.1} parent=11 // pred_check
          %p813 = pneg %p507
        $region94: #{spatial_mlp_decoder_forward.1} parent=11 // pred_check_branch
          %815 = sbr.rel (%p813) target = $region96
        $region95: #{spatial_mlp_decoder_forward.1} parent=11 // pred_region
          %s817 = ssub.s32 8192, 8192
          %818 = vsyncadd [#allocation19], %s817
          %s819 = sshll.u32 [#allocation20], 4
          %s820 = int_to_ptr.vmem [resolvable:$true] %s819
          %825 = dma.hbm_to_vmem [thread:$0]  %s21, 8192, %s820, [#allocation19], 128, 128, 8
        $region96: #{spatial_mlp_decoder_forward.1} parent=11 // pred_fallthru
          _
        // Predicated region
        $region97: #{spatial_mlp_decoder_forward.1} parent=11 // pred_check
          %p826 = pneg %p528
        $region98: #{spatial_mlp_decoder_forward.1} parent=11 // pred_check_branch
          %828 = sbr.rel (%p826) target = $region100
        $region99: #{spatial_mlp_decoder_forward.1} parent=11 // pred_region
          _
        $region100: #{spatial_mlp_decoder_forward.1} parent=11 // pred_fallthru
          _
        // Predicated region
        $region101: #{spatial_mlp_decoder_forward.1} parent=11 // pred_check
          %p829 = pneg %p549
        $region102: #{spatial_mlp_decoder_forward.1} parent=11 // pred_check_branch
          %831 = sbr.rel (%p829) target = $region104
        $region103: #{spatial_mlp_decoder_forward.1} parent=11 // pred_region
          %s833 = ssub.s32 6144, 6144
          %834 = vsyncadd [#allocation22], %s833
          %s835 = sshll.u32 [#allocation21], 4
          %s836 = int_to_ptr.vmem [resolvable:$true] %s835
          %841 = dma.hbm_to_vmem [thread:$0]  %s23, 6144, %s836, [#allocation22], 128, 128, 8
        $region104: #{spatial_mlp_decoder_forward.1} parent=11 // pred_fallthru
          _
        // Predicated region
        $region105: #{spatial_mlp_decoder_forward.1} parent=11 // pred_check
          %p842 = pneg %p570
        $region106: #{spatial_mlp_decoder_forward.1} parent=11 // pred_check_branch
          %844 = sbr.rel (%p842) target = $region108
        $region107: #{spatial_mlp_decoder_forward.1} parent=11 // pred_region
          _
        $region108: #{spatial_mlp_decoder_forward.1} parent=11 // pred_fallthru
          _
        // Predicated region
        $region109: #{spatial_mlp_decoder_forward.1} parent=11 // pred_check
          %p845 = pneg %p591
        $region110: #{spatial_mlp_decoder_forward.1} parent=11 // pred_check_branch
          %847 = sbr.rel (%p845) target = $region112
        $region111: #{spatial_mlp_decoder_forward.1} parent=11 // pred_region
          %s849 = ssub.s32 6144, 6144
          %850 = vsyncadd [#allocation22], %s849
          %s851 = sshll.u32 [#allocation23], 4
          %s852 = int_to_ptr.vmem [resolvable:$true] %s851
          %857 = dma.hbm_to_vmem [thread:$0]  %s25, 6144, %s852, [#allocation22], 128, 128, 8
        $region112: #{spatial_mlp_decoder_forward.1} parent=11 // pred_fallthru
          _
        // Predicated region
        $region113: #{spatial_mlp_decoder_forward.1} parent=11 // pred_check
          %p858 = pneg %p612
        $region114: #{spatial_mlp_decoder_forward.1} parent=11 // pred_check_branch
          %860 = sbr.rel (%p858) target = $region116
        $region115: #{spatial_mlp_decoder_forward.1} parent=11 // pred_region
          _
        $region116: #{spatial_mlp_decoder_forward.1} parent=11 // pred_fallthru
          _
      $region12: #{spatial_mlp_decoder_forward.1} parent=5 // pred_fallthru
        _
      %p861 = scmp.lt.s32.totalorder %s40, 2
      // Predicated region
      $region117: #{spatial_mlp_decoder_forward.1} parent=5 // pred_check
        %p862 = pneg %p861
      $region118: #{spatial_mlp_decoder_forward.1} parent=5 // pred_check_branch
        %864 = sbr.rel (%p862) target = $region120
      $region119: #{spatial_mlp_decoder_forward.1} parent=5 // pred_region
        // Predicated region
        $region121: #{spatial_mlp_decoder_forward.1} parent=119 // pred_check
          %p865 = pneg %p60
        $region122: #{spatial_mlp_decoder_forward.1} parent=119 // pred_check_branch
          %867 = sbr.rel (%p865) target = $region124
        $region123: #{spatial_mlp_decoder_forward.1} parent=119 // pred_region
          %p868 = scmp.lt.s32.totalorder %s40, 1
          %s869 = scalar_select %p868, %s40, 1
          %s870 = smul.addr %s869, 8
          %s871 = scalar_lea.vmem %s0, %s870
        $region124: #{spatial_mlp_decoder_forward.1} parent=119 // pred_fallthru
          _
      $region120: #{spatial_mlp_decoder_forward.1} parent=5 // pred_fallthru
        _
      %p872 = scmp.le.s32.totalorder 1, %s40
      %p873 = scmp.lt.s32.totalorder %s40, 3
      %p874 = pnand %p872, %p873
      %p875 = pneg %p874
      // Predicated region
      $region125: #{spatial_mlp_decoder_forward.1} parent=5 // pred_check
        _
      $region126: #{spatial_mlp_decoder_forward.1} parent=5 // pred_check_branch
        %877 = sbr.rel (%p874) target = $region128
      $region127: #{spatial_mlp_decoder_forward.1} parent=5 // pred_region
        %s878 = ssub.s32 %s40, 1
        // Predicated region
        $region129: #{spatial_mlp_decoder_forward.1} parent=127 // pred_check
          %p879 = pneg %p87
        $region130: #{spatial_mlp_decoder_forward.1} parent=127 // pred_check_branch
          %881 = sbr.rel (%p879) target = $region132
        $region131: #{spatial_mlp_decoder_forward.1} parent=127 // pred_region
          %882 = dma.done [#allocation5], 6144
        $region132: #{spatial_mlp_decoder_forward.1} parent=127 // pred_fallthru
          _
        // Predicated region
        $region133: #{spatial_mlp_decoder_forward.1} parent=127 // pred_check
          %p883 = pneg %p129
        $region134: #{spatial_mlp_decoder_forward.1} parent=127 // pred_check_branch
          %885 = sbr.rel (%p883) target = $region136
        $region135: #{spatial_mlp_decoder_forward.1} parent=127 // pred_region
          %886 = dma.done [#allocation7], 6144
        $region136: #{spatial_mlp_decoder_forward.1} parent=127 // pred_fallthru
          _
        // Predicated region
        $region137: #{spatial_mlp_decoder_forward.1} parent=127 // pred_check
          %p887 = pneg %p171
        $region138: #{spatial_mlp_decoder_forward.1} parent=127 // pred_check_branch
          %889 = sbr.rel (%p887) target = $region140
        $region139: #{spatial_mlp_decoder_forward.1} parent=127 // pred_region
          %890 = dma.done [#allocation7], 2048
        $region140: #{spatial_mlp_decoder_forward.1} parent=127 // pred_fallthru
          _
        // Predicated region
        $region141: #{spatial_mlp_decoder_forward.1} parent=127 // pred_check
          %p891 = pneg %p213
        $region142: #{spatial_mlp_decoder_forward.1} parent=127 // pred_check_branch
          %893 = sbr.rel (%p891) target = $region144
        $region143: #{spatial_mlp_decoder_forward.1} parent=127 // pred_region
          %894 = dma.done [#allocation10], 6144
        $region144: #{spatial_mlp_decoder_forward.1} parent=127 // pred_fallthru
          _
        // Predicated region
        $region145: #{spatial_mlp_decoder_forward.1} parent=127 // pred_check
          %p895 = pneg %p255
        $region146: #{spatial_mlp_decoder_forward.1} parent=127 // pred_check_branch
          %897 = sbr.rel (%p895) target = $region148
        $region147: #{spatial_mlp_decoder_forward.1} parent=127 // pred_region
          %898 = dma.done [#allocation10], 2048
        $region148: #{spatial_mlp_decoder_forward.1} parent=127 // pred_fallthru
          _
        // Predicated region
        $region149: #{spatial_mlp_decoder_forward.1} parent=127 // pred_check
          %p899 = pneg %p297
        $region150: #{spatial_mlp_decoder_forward.1} parent=127 // pred_check_branch
          %901 = sbr.rel (%p899) target = $region152
        $region151: #{spatial_mlp_decoder_forward.1} parent=127 // pred_region
          %902 = dma.done [#allocation13], 8192
        $region152: #{spatial_mlp_decoder_forward.1} parent=127 // pred_fallthru
          _
        // Predicated region
        $region153: #{spatial_mlp_decoder_forward.1} parent=127 // pred_check
          %p903 = pneg %p339
        $region154: #{spatial_mlp_decoder_forward.1} parent=127 // pred_check_branch
          %905 = sbr.rel (%p903) target = $region156
        $region155: #{spatial_mlp_decoder_forward.1} parent=127 // pred_region
          %906 = dma.done [#allocation13], 6144
        $region156: #{spatial_mlp_decoder_forward.1} parent=127 // pred_fallthru
          _
        // Predicated region
        $region157: #{spatial_mlp_decoder_forward.1} parent=127 // pred_check
          %p907 = pneg %p381
        $region158: #{spatial_mlp_decoder_forward.1} parent=127 // pred_check_branch
          %909 = sbr.rel (%p907) target = $region160
        $region159: #{spatial_mlp_decoder_forward.1} parent=127 // pred_region
          %910 = dma.done [#allocation16], 2048
        $region160: #{spatial_mlp_decoder_forward.1} parent=127 // pred_fallthru
          _
        // Predicated region
        $region161: #{spatial_mlp_decoder_forward.1} parent=127 // pred_check
          %p911 = pneg %p423
        $region162: #{spatial_mlp_decoder_forward.1} parent=127 // pred_check_branch
          %913 = sbr.rel (%p911) target = $region164
        $region163: #{spatial_mlp_decoder_forward.1} parent=127 // pred_region
          %914 = dma.done [#allocation16], 6144
        $region164: #{spatial_mlp_decoder_forward.1} parent=127 // pred_fallthru
          _
        // Predicated region
        $region165: #{spatial_mlp_decoder_forward.1} parent=127 // pred_check
          %p915 = pneg %p465
        $region166: #{spatial_mlp_decoder_forward.1} parent=127 // pred_check_branch
          %917 = sbr.rel (%p915) target = $region168
        $region167: #{spatial_mlp_decoder_forward.1} parent=127 // pred_region
          %918 = dma.done [#allocation19], 2048
        $region168: #{spatial_mlp_decoder_forward.1} parent=127 // pred_fallthru
          _
        // Predicated region
        $region169: #{spatial_mlp_decoder_forward.1} parent=127 // pred_check
          %p919 = pneg %p507
        $region170: #{spatial_mlp_decoder_forward.1} parent=127 // pred_check_branch
          %921 = sbr.rel (%p919) target = $region172
        $region171: #{spatial_mlp_decoder_forward.1} parent=127 // pred_region
          %922 = dma.done [#allocation19], 8192
        $region172: #{spatial_mlp_decoder_forward.1} parent=127 // pred_fallthru
          _
        // Predicated region
        $region173: #{spatial_mlp_decoder_forward.1} parent=127 // pred_check
          %p923 = pneg %p549
        $region174: #{spatial_mlp_decoder_forward.1} parent=127 // pred_check_branch
          %925 = sbr.rel (%p923) target = $region176
        $region175: #{spatial_mlp_decoder_forward.1} parent=127 // pred_region
          %926 = dma.done [#allocation22], 6144
        $region176: #{spatial_mlp_decoder_forward.1} parent=127 // pred_fallthru
          _
        // Predicated region
        $region177: #{spatial_mlp_decoder_forward.1} parent=127 // pred_check
          %p927 = pneg %p591
        $region178: #{spatial_mlp_decoder_forward.1} parent=127 // pred_check_branch
          %929 = sbr.rel (%p927) target = $region180
        $region179: #{spatial_mlp_decoder_forward.1} parent=127 // pred_region
          %930 = dma.done [#allocation22], 6144
        $region180: #{spatial_mlp_decoder_forward.1} parent=127 // pred_fallthru
          _
        %p931 = scmp.lt.s32.totalorder %s45, 1
        %s932 = scalar_select %p931, %s45, 1
        %s933 = smul.addr %s932, 8
        %s934 = scalar_lea.vmem %s0, %s933
        %p935 = pneg %p66
        %p936 = pneg %p63
        %p937 = pneg %p87
        %p938 = pneg %p84
        %p939 = pneg %p108
        %p940 = pneg %p105
        %p941 = pneg %p129
        %p942 = pneg %p126
        %p943 = pneg %p150
        %p944 = pneg %p147
        %p945 = pneg %p171
        %p946 = pneg %p168
        %p947 = pneg %p192
        %p948 = pneg %p189
        %p949 = pneg %p213
        %p950 = pneg %p210
        %p951 = pneg %p234
        %p952 = pneg %p231
        %p953 = pneg %p255
        %p954 = pneg %p252
        %p955 = pneg %p276
        %p956 = pneg %p273
        %p957 = pneg %p297
        %p958 = pneg %p294
        %p959 = pneg %p318
        %p960 = pneg %p315
        %p961 = pneg %p339
        %p962 = pneg %p336
        %p963 = pneg %p360
        %p964 = pneg %p357
        %p965 = pneg %p381
        %p966 = pneg %p378
        %p967 = pneg %p402
        %p968 = pneg %p399
        %p969 = pneg %p423
        %p970 = pneg %p420
        %p971 = pneg %p444
        %p972 = pneg %p441
        %p973 = pneg %p465
        %p974 = pneg %p462
        %p975 = pneg %p486
        %p976 = pneg %p483
        %p977 = pneg %p507
        %p978 = pneg %p504
        %p979 = pneg %p528
        %p980 = pneg %p525
        %p981 = pneg %p549
        %p982 = pneg %p546
        %p983 = pneg %p570
        %p984 = pneg %p567
        %p985 = pneg %p591
        %p986 = pneg %p588
        %p987 = pneg %p612
        %p988 = pneg %p609
        %p989 = pneg %p638
        %p990 = pneg %p635
        %p991 = scmp.lt.s32.totalorder %s45, 1
        %s992 = scalar_select %p991, %s45, 1
        %s993 = smul.addr %s992, 4
        %s994 = smul.addr %s993, 8
        %s995 = scalar_lea.vmem %s27, %s994
        %p996 = scmp.lt.s32.totalorder %s45, 1
        %s997 = scalar_select %p996, %s45, 1
        %s998 = smul.addr %s997, 8
        %s999 = scalar_lea.vmem %s0, %s998
        %p1000 = scmp.lt.s32.totalorder %s45, 1
        %s1001 = scalar_select %p1000, %s45, 1
        %s1002 = smul.addr %s1001, 4
        %s1003 = smul.addr %s1002, 8
        %s1004 = scalar_lea.vmem %s27, %s1003
        %1005 = vst [vmem:[#allocation2] sm:$0xff] 0.0
        %1006 = vst [vmem:[#allocation2 + $0x8] sm:$0xff] 0.0
        %1007 = vst [vmem:[#allocation2 + $0x10] sm:$0xff] 0.0
        %1008 = vst [vmem:[#allocation2 + $0x18] sm:$0xff] 0.0
        %1009 = vst [vmem:[#allocation2 + $0x20] sm:$0xff] 0.0
        %1010 = vst [vmem:[#allocation2 + $0x28] sm:$0xff] 0.0
        %1011 = vst [vmem:[#allocation2 + $0x30] sm:$0xff] 0.0
        %1012 = vst [vmem:[#allocation2 + $0x38] sm:$0xff] 0.0
        %1013 = vst [vmem:[#allocation2 + $0x40] sm:$0x7] 0.0
        %1014 = vst [vmem:[#allocation2 + $0x48] sm:$0x7] 0.0
        %1015 = vst [vmem:[#allocation2 + $0x50] sm:$0x7] 0.0
        %1016 = vst [vmem:[#allocation2 + $0x58] sm:$0x7] 0.0
        %1017 = vst [vmem:[#allocation3] sm:$0xff] 0.0
        %1018 = vst [vmem:[#allocation3 + $0x8] sm:$0xff] 0.0
        %1019 = vst [vmem:[#allocation3 + $0x10] sm:$0xff] 0.0
        %1020 = vst [vmem:[#allocation3 + $0x18] sm:$0xff] 0.0
        %1021 = vst [vmem:[#allocation3 + $0x20] sm:$0xff] 0.0
        %1022 = vst [vmem:[#allocation3 + $0x28] sm:$0xff] 0.0
        %1023 = vst [vmem:[#allocation3 + $0x30] sm:$0xff] 0.0
        %1024 = vst [vmem:[#allocation3 + $0x38] sm:$0xff] 0.0
        %1025 = vst [vmem:[#allocation3 + $0x40] sm:$0x7] 0.0
        %1026 = vst [vmem:[#allocation3 + $0x48] sm:$0x7] 0.0
        %1027 = vst [vmem:[#allocation3 + $0x50] sm:$0x7] 0.0
        %1028 = vst [vmem:[#allocation3 + $0x58] sm:$0x7] 0.0
        %v1029 = vld [vmem:[%s999] sm:$0xff]
        %1030 = vst [vmem:[#allocation2 + $0x20] sm:$0xff] %v1029
        %v1031 = vld [vmem:[#allocation4] sm:$0xff]
        %v1032 = vld [vmem:[#allocation4 + $0x8] sm:$0xff]
        %v1033 = vld [vmem:[#allocation4 + $0x10] sm:$0xff]
        %v1034 = vld [vmem:[#allocation4 + $0x18] sm:$0xff]
        %v1035 = vld [vmem:[#allocation4 + $0x20] sm:$0xff]
        %v1036 = vld [vmem:[#allocation4 + $0x28] sm:$0xff]
        %v1037 = vld [vmem:[#allocation4 + $0x30] sm:$0xff]
        %v1038 = vld [vmem:[#allocation4 + $0x38] sm:$0xff]
        %v1039 = vld [vmem:[#allocation4 + $0x40] sm:$0xff]
        %v1040 = vld [vmem:[#allocation4 + $0x48] sm:$0xff]
        %v1041 = vld [vmem:[#allocation4 + $0x50] sm:$0xff]
        %v1042 = vld [vmem:[#allocation4 + $0x58] sm:$0xff]
        %v1043 = vld [vmem:[#allocation4 + $0x60] sm:$0xff]
        %v1044 = vld [vmem:[#allocation4 + $0x68] sm:$0xff]
        %v1045 = vld [vmem:[#allocation4 + $0x70] sm:$0xff]
        %v1046 = vld [vmem:[#allocation4 + $0x78] sm:$0xff]
        %s1047 = scalar_lea.vmem [#allocation4], 128
        %v1048 = vld [vmem:[%s1047] sm:$0xff]
        %v1049 = vld [vmem:[%s1047 + $0x8] sm:$0xff]
        %v1050 = vld [vmem:[%s1047 + $0x10] sm:$0xff]
        %v1051 = vld [vmem:[%s1047 + $0x18] sm:$0xff]
        %v1052 = vld [vmem:[%s1047 + $0x20] sm:$0xff]
        %v1053 = vld [vmem:[%s1047 + $0x28] sm:$0xff]
        %v1054 = vld [vmem:[%s1047 + $0x30] sm:$0xff]
        %v1055 = vld [vmem:[%s1047 + $0x38] sm:$0xff]
        %v1056 = vld [vmem:[%s1047 + $0x40] sm:$0xff]
        %v1057 = vld [vmem:[%s1047 + $0x48] sm:$0xff]
        %v1058 = vld [vmem:[%s1047 + $0x50] sm:$0xff]
        %v1059 = vld [vmem:[%s1047 + $0x58] sm:$0xff]
        %v1060 = vld [vmem:[%s1047 + $0x60] sm:$0xff]
        %v1061 = vld [vmem:[%s1047 + $0x68] sm:$0xff]
        %v1062 = vld [vmem:[%s1047 + $0x70] sm:$0xff]
        %v1063 = vld [vmem:[%s1047 + $0x78] sm:$0xff]
        %s1064 = scalar_lea.vmem [#allocation4], 256
        %v1065 = vld [vmem:[%s1064] sm:$0xff]
        %v1066 = vld [vmem:[%s1064 + $0x8] sm:$0xff]
        %v1067 = vld [vmem:[%s1064 + $0x10] sm:$0xff]
        %v1068 = vld [vmem:[%s1064 + $0x18] sm:$0xff]
        %v1069 = vld [vmem:[%s1064 + $0x20] sm:$0xff]
        %v1070 = vld [vmem:[%s1064 + $0x28] sm:$0xff]
        %v1071 = vld [vmem:[%s1064 + $0x30] sm:$0xff]
        %v1072 = vld [vmem:[%s1064 + $0x38] sm:$0xff]
        %v1073 = vld [vmem:[%s1064 + $0x40] sm:$0xff]
        %v1074 = vld [vmem:[%s1064 + $0x48] sm:$0xff]
        %v1075 = vld [vmem:[%s1064 + $0x50] sm:$0xff]
        %v1076 = vld [vmem:[%s1064 + $0x58] sm:$0xff]
        %v1077 = vld [vmem:[%s1064 + $0x60] sm:$0xff]
        %v1078 = vld [vmem:[%s1064 + $0x68] sm:$0xff]
        %v1079 = vld [vmem:[%s1064 + $0x70] sm:$0xff]
        %v1080 = vld [vmem:[%s1064 + $0x78] sm:$0xff]
        %v1081 = vld [vmem:[%s2] sm:$0x1]
        %v1082 = vld [vmem:[#allocation2] sm:$0x80]
        %v1083 = vld [vmem:[#allocation2 + $0x20] sm:$0x7f]
        %v1084 = vld [vmem:[#allocation2 + $0x20] sm:$0xff]
        %1085 = vmatprep.subr.mxu0 0.0
        %1086 = vmatpush1.msra.mxu0 %v1048
        %1087 = vmatprep.subr.mxu0 0.0
        %1088 = vmatpush1.msra.mxu0 %v1049
        %1089 = vmatprep.subr.mxu0 0.0
        %1090 = vmatpush1.msra.mxu0 %v1050
        %1091 = vmatprep.subr.mxu0 0.0
        %1092 = vmatpush1.msra.mxu0 %v1051
        %1093 = vmatprep.subr.mxu0 0.0
        %1094 = vmatpush1.msra.mxu0 %v1052
        %1095 = vmatprep.subr.mxu0 0.0
        %1096 = vmatpush1.msra.mxu0 %v1053
        %1097 = vmatprep.subr.mxu0 0.0
        %1098 = vmatpush1.msra.mxu0 %v1054
        %1099 = vmatprep.subr.mxu0 0.0
        %1100 = vmatpush1.msra.mxu0 %v1055
        %1101 = vmatprep.subr.mxu0 0.0
        %1102 = vmatpush1.msra.mxu0 %v1056
        %1103 = vmatprep.subr.mxu0 0.0
        %1104 = vmatpush1.msra.mxu0 %v1057
        %1105 = vmatprep.subr.mxu0 0.0
        %1106 = vmatpush1.msra.mxu0 %v1058
        %1107 = vmatprep.subr.mxu0 0.0
        %1108 = vmatpush1.msra.mxu0 %v1059
        %1109 = vmatprep.subr.mxu0 0.0
        %1110 = vmatpush1.msra.mxu0 %v1060
        %1111 = vmatprep.subr.mxu0 0.0
        %1112 = vmatpush1.msra.mxu0 %v1061
        %1113 = vmatprep.subr.mxu0 0.0
        %1114 = vmatpush1.msra.mxu0 %v1062
        %1115 = vmatprep.subr.mxu0 0.0
        %1116 = vmatpush1.msra.mxu0 %v1063
        %1117 = vmatprep.subr.mxu0 0.0
        %1118 = vmatpush1.msra.mxu0 0.0
        %1119 = vmatprep.subr.mxu0 0.0
        %1120 = vmatpush1.msra.mxu0 0.0
        %1121 = vmatprep.subr.mxu0 0.0
        %1122 = vmatpush1.msra.mxu0 0.0
        %1123 = vmatprep.subr.mxu0 0.0
        %1124 = vmatpush1.msra.mxu0 0.0
        %1125 = vmatprep.subr.mxu0 0.0
        %1126 = vmatpush1.msra.mxu0 0.0
        %1127 = vmatprep.subr.mxu0 0.0
        %1128 = vmatpush1.msra.mxu0 0.0
        %1129 = vmatprep.subr.mxu0 0.0
        %1130 = vmatpush1.msra.mxu0 0.0
        %1131 = vmatprep.subr.mxu0 0.0
        %1132 = vmatpush1.msra.mxu0 0.0
        %1133 = vmatprep.subr.mxu0 0.0
        %1134 = vmatpush1.msra.mxu0 0.0
        %1135 = vmatprep.subr.mxu0 0.0
        %1136 = vmatpush1.msra.mxu0 0.0
        %1137 = vmatprep.subr.mxu0 0.0
        %1138 = vmatpush1.msra.mxu0 0.0
        %1139 = vmatprep.subr.mxu0 0.0
        %1140 = vmatpush1.msra.mxu0 0.0
        %1141 = vmatprep.subr.mxu0 0.0
        %1142 = vmatpush1.msra.mxu0 0.0
        %1143 = vmatprep.subr.mxu0 0.0
        %1144 = vmatpush1.msra.mxu0 0.0
        %1145 = vmatprep.subr.mxu0 0.0
        %1146 = vmatpush1.msra.mxu0 0.0
        %1147 = vmatprep.subr.mxu0 0.0
        %1148 = vmatpush1.msra.mxu0 0.0
        %1149 = vmatprep.mubr.f32.mxu0 0.0
        %1150 = vmatmul.mubr.f32.gmra.mrb[0].mxu0 %v1084
        %v1151 = vpop.f32.mrb[0].mxu0
        %v1152 = vadd.f32 0.0, %v1151
        %v1153 = vpop.f32.mrb[0].mxu0
        %1154 = vdwg.mxu0
        %vm1157 = vcmask 1040384
        %v1158 = vrot.slane %v1082, 7
        %v1159 = vrot.slane %v1083, 7
        %v1160 = vsel %vm1157, %v1158, %v1159
        %1162 = vmatprep.subr.mxu0 0.0
        %1163 = vmatpush1.msra.mxu0 %v1031
        %1164 = vmatprep.subr.mxu0 0.0
        %1165 = vmatpush1.msra.mxu0 %v1032
        %1166 = vmatprep.subr.mxu0 0.0
        %1167 = vmatpush1.msra.mxu0 %v1033
        %1168 = vmatprep.subr.mxu0 0.0
        %1169 = vmatpush1.msra.mxu0 %v1034
        %1170 = vmatprep.subr.mxu0 0.0
        %1171 = vmatpush1.msra.mxu0 %v1035
        %1172 = vmatprep.subr.mxu0 0.0
        %1173 = vmatpush1.msra.mxu0 %v1036
        %1174 = vmatprep.subr.mxu0 0.0
        %1175 = vmatpush1.msra.mxu0 %v1037
        %1176 = vmatprep.subr.mxu0 0.0
        %1177 = vmatpush1.msra.mxu0 %v1038
        %1178 = vmatprep.subr.mxu0 0.0
        %1179 = vmatpush1.msra.mxu0 %v1039
        %1180 = vmatprep.subr.mxu0 0.0
        %1181 = vmatpush1.msra.mxu0 %v1040
        %1182 = vmatprep.subr.mxu0 0.0
        %1183 = vmatpush1.msra.mxu0 %v1041
        %1184 = vmatprep.subr.mxu0 0.0
        %1185 = vmatpush1.msra.mxu0 %v1042
        %1186 = vmatprep.subr.mxu0 0.0
        %1187 = vmatpush1.msra.mxu0 %v1043
        %1188 = vmatprep.subr.mxu0 0.0
        %1189 = vmatpush1.msra.mxu0 %v1044
        %1190 = vmatprep.subr.mxu0 0.0
        %1191 = vmatpush1.msra.mxu0 %v1045
        %1192 = vmatprep.subr.mxu0 0.0
        %1193 = vmatpush1.msra.mxu0 %v1046
        %1194 = vmatprep.subr.mxu0 0.0
        %1195 = vmatpush1.msra.mxu0 0.0
        %1196 = vmatprep.subr.mxu0 0.0
        %1197 = vmatpush1.msra.mxu0 0.0
        %1198 = vmatprep.subr.mxu0 0.0
        %1199 = vmatpush1.msra.mxu0 0.0
        %1200 = vmatprep.subr.mxu0 0.0
        %1201 = vmatpush1.msra.mxu0 0.0
        %1202 = vmatprep.subr.mxu0 0.0
        %1203 = vmatpush1.msra.mxu0 0.0
        %1204 = vmatprep.subr.mxu0 0.0
        %1205 = vmatpush1.msra.mxu0 0.0
        %1206 = vmatprep.subr.mxu0 0.0
        %1207 = vmatpush1.msra.mxu0 0.0
        %1208 = vmatprep.subr.mxu0 0.0
        %1209 = vmatpush1.msra.mxu0 0.0
        %1210 = vmatprep.subr.mxu0 0.0
        %1211 = vmatpush1.msra.mxu0 0.0
        %1212 = vmatprep.subr.mxu0 0.0
        %1213 = vmatpush1.msra.mxu0 0.0
        %1214 = vmatprep.subr.mxu0 0.0
        %1215 = vmatpush1.msra.mxu0 0.0
        %1216 = vmatprep.subr.mxu0 0.0
        %1217 = vmatpush1.msra.mxu0 0.0
        %1218 = vmatprep.subr.mxu0 0.0
        %1219 = vmatpush1.msra.mxu0 0.0
        %1220 = vmatprep.subr.mxu0 0.0
        %1221 = vmatpush1.msra.mxu0 0.0
        %1222 = vmatprep.subr.mxu0 0.0
        %1223 = vmatpush1.msra.mxu0 0.0
        %1224 = vmatprep.subr.mxu0 0.0
        %1225 = vmatpush1.msra.mxu0 0.0
        %1226 = vmatprep.mubr.f32.mxu0 0.0
        %1227 = vmatmul.mubr.f32.gmra.mrb[0].mxu0 %v1160
        %v1228 = vpop.f32.mrb[0].mxu0
        %v1229 = vadd.f32 %v1152, %v1228
        %v1230 = vpop.f32.mrb[0].mxu0
        %1231 = vdwg.mxu0
        %v1232 = vld [vmem:[#allocation2 + $0x20] sm:$0xfe]
        %v1233 = vld [vmem:[#allocation2 + $0x40] sm:$0x1]
        %vm1236 = vcmask 1046528
        %v1237 = vrot.slane %v1232, 1
        %v1238 = vrot.slane %v1233, 1
        %v1239 = vsel %vm1236, %v1237, %v1238
        %1241 = vmatprep.subr.mxu0 0.0
        %1242 = vmatpush1.msra.mxu0 %v1065
        %1243 = vmatprep.subr.mxu0 0.0
        %1244 = vmatpush1.msra.mxu0 %v1066
        %1245 = vmatprep.subr.mxu0 0.0
        %1246 = vmatpush1.msra.mxu0 %v1067
        %1247 = vmatprep.subr.mxu0 0.0
        %1248 = vmatpush1.msra.mxu0 %v1068
        %1249 = vmatprep.subr.mxu0 0.0
        %1250 = vmatpush1.msra.mxu0 %v1069
        %1251 = vmatprep.subr.mxu0 0.0
        %1252 = vmatpush1.msra.mxu0 %v1070
        %1253 = vmatprep.subr.mxu0 0.0
        %1254 = vmatpush1.msra.mxu0 %v1071
        %1255 = vmatprep.subr.mxu0 0.0
        %1256 = vmatpush1.msra.mxu0 %v1072
        %1257 = vmatprep.subr.mxu0 0.0
        %1258 = vmatpush1.msra.mxu0 %v1073
        %1259 = vmatprep.subr.mxu0 0.0
        %1260 = vmatpush1.msra.mxu0 %v1074
        %1261 = vmatprep.subr.mxu0 0.0
        %1262 = vmatpush1.msra.mxu0 %v1075
        %1263 = vmatprep.subr.mxu0 0.0
        %1264 = vmatpush1.msra.mxu0 %v1076
        %1265 = vmatprep.subr.mxu0 0.0
        %1266 = vmatpush1.msra.mxu0 %v1077
        %1267 = vmatprep.subr.mxu0 0.0
        %1268 = vmatpush1.msra.mxu0 %v1078
        %1269 = vmatprep.subr.mxu0 0.0
        %1270 = vmatpush1.msra.mxu0 %v1079
        %1271 = vmatprep.subr.mxu0 0.0
        %1272 = vmatpush1.msra.mxu0 %v1080
        %1273 = vmatprep.subr.mxu0 0.0
        %1274 = vmatpush1.msra.mxu0 0.0
        %1275 = vmatprep.subr.mxu0 0.0
        %1276 = vmatpush1.msra.mxu0 0.0
        %1277 = vmatprep.subr.mxu0 0.0
        %1278 = vmatpush1.msra.mxu0 0.0
        %1279 = vmatprep.subr.mxu0 0.0
        %1280 = vmatpush1.msra.mxu0 0.0
        %1281 = vmatprep.subr.mxu0 0.0
        %1282 = vmatpush1.msra.mxu0 0.0
        %1283 = vmatprep.subr.mxu0 0.0
        %1284 = vmatpush1.msra.mxu0 0.0
        %1285 = vmatprep.subr.mxu0 0.0
        %1286 = vmatpush1.msra.mxu0 0.0
        %1287 = vmatprep.subr.mxu0 0.0
        %1288 = vmatpush1.msra.mxu0 0.0
        %1289 = vmatprep.subr.mxu0 0.0
        %1290 = vmatpush1.msra.mxu0 0.0
        %1291 = vmatprep.subr.mxu0 0.0
        %1292 = vmatpush1.msra.mxu0 0.0
        %1293 = vmatprep.subr.mxu0 0.0
        %1294 = vmatpush1.msra.mxu0 0.0
        %1295 = vmatprep.subr.mxu0 0.0
        %1296 = vmatpush1.msra.mxu0 0.0
        %1297 = vmatprep.subr.mxu0 0.0
        %1298 = vmatpush1.msra.mxu0 0.0
        %1299 = vmatprep.subr.mxu0 0.0
        %1300 = vmatpush1.msra.mxu0 0.0
        %1301 = vmatprep.subr.mxu0 0.0
        %1302 = vmatpush1.msra.mxu0 0.0
        %1303 = vmatprep.subr.mxu0 0.0
        %1304 = vmatpush1.msra.mxu0 0.0
        %1305 = vmatprep.mubr.f32.mxu0 0.0
        %1306 = vmatmul.mubr.f32.gmra.mrb[0].mxu0 %v1239
        %v1307 = vpop.f32.mrb[0].mxu0
        %v1308 = vadd.f32 0.0, %v1307
        %v1309 = vpop.f32.mrb[0].mxu0
        %1310 = vdwg.mxu0
        %v1311 = vadd.f32 %v1229, %v1308
        %v1313 = vlaneseq
        %v1314 = vshrl.u32 %v1313, 7
        %v1315 = vsub.s32 0, %v1314
        %v1316 = vrot.slane %v1081, %v1315
        %v1318 = vadd.f32 %v1311, %v1316
        %v1319 = vmax.f32 %v1318, 0.0
        %1320 = vst [vmem:[#allocation2 + $0x20] sm:$0xff] %v1319
        %1321 = vst [vmem:[#allocation3 + $0x20] sm:$0xff] %v1319
        %v1322 = vld [vmem:[#allocation6] sm:$0xff]
        %v1323 = vld [vmem:[#allocation6 + $0x8] sm:$0xff]
        %v1324 = vld [vmem:[#allocation6 + $0x10] sm:$0xff]
        %v1325 = vld [vmem:[#allocation6 + $0x18] sm:$0xff]
        %v1326 = vld [vmem:[#allocation6 + $0x20] sm:$0xff]
        %v1327 = vld [vmem:[#allocation6 + $0x28] sm:$0xff]
        %v1328 = vld [vmem:[#allocation6 + $0x30] sm:$0xff]
        %v1329 = vld [vmem:[#allocation6 + $0x38] sm:$0xff]
        %v1330 = vld [vmem:[#allocation6 + $0x40] sm:$0xff]
        %v1331 = vld [vmem:[#allocation6 + $0x48] sm:$0xff]
        %v1332 = vld [vmem:[#allocation6 + $0x50] sm:$0xff]
        %v1333 = vld [vmem:[#allocation6 + $0x58] sm:$0xff]
        %v1334 = vld [vmem:[#allocation6 + $0x60] sm:$0xff]
        %v1335 = vld [vmem:[#allocation6 + $0x68] sm:$0xff]
        %v1336 = vld [vmem:[#allocation6 + $0x70] sm:$0xff]
        %v1337 = vld [vmem:[#allocation6 + $0x78] sm:$0xff]
        %s1338 = scalar_lea.vmem [#allocation6], 128
        %v1339 = vld [vmem:[%s1338] sm:$0xff]
        %v1340 = vld [vmem:[%s1338 + $0x8] sm:$0xff]
        %v1341 = vld [vmem:[%s1338 + $0x10] sm:$0xff]
        %v1342 = vld [vmem:[%s1338 + $0x18] sm:$0xff]
        %v1343 = vld [vmem:[%s1338 + $0x20] sm:$0xff]
        %v1344 = vld [vmem:[%s1338 + $0x28] sm:$0xff]
        %v1345 = vld [vmem:[%s1338 + $0x30] sm:$0xff]
        %v1346 = vld [vmem:[%s1338 + $0x38] sm:$0xff]
        %v1347 = vld [vmem:[%s1338 + $0x40] sm:$0xff]
        %v1348 = vld [vmem:[%s1338 + $0x48] sm:$0xff]
        %v1349 = vld [vmem:[%s1338 + $0x50] sm:$0xff]
        %v1350 = vld [vmem:[%s1338 + $0x58] sm:$0xff]
        %v1351 = vld [vmem:[%s1338 + $0x60] sm:$0xff]
        %v1352 = vld [vmem:[%s1338 + $0x68] sm:$0xff]
        %v1353 = vld [vmem:[%s1338 + $0x70] sm:$0xff]
        %v1354 = vld [vmem:[%s1338 + $0x78] sm:$0xff]
        %s1355 = scalar_lea.vmem [#allocation6], 256
        %v1356 = vld [vmem:[%s1355] sm:$0xff]
        %v1357 = vld [vmem:[%s1355 + $0x8] sm:$0xff]
        %v1358 = vld [vmem:[%s1355 + $0x10] sm:$0xff]
        %v1359 = vld [vmem:[%s1355 + $0x18] sm:$0xff]
        %v1360 = vld [vmem:[%s1355 + $0x20] sm:$0xff]
        %v1361 = vld [vmem:[%s1355 + $0x28] sm:$0xff]
        %v1362 = vld [vmem:[%s1355 + $0x30] sm:$0xff]
        %v1363 = vld [vmem:[%s1355 + $0x38] sm:$0xff]
        %v1364 = vld [vmem:[%s1355 + $0x40] sm:$0xff]
        %v1365 = vld [vmem:[%s1355 + $0x48] sm:$0xff]
        %v1366 = vld [vmem:[%s1355 + $0x50] sm:$0xff]
        %v1367 = vld [vmem:[%s1355 + $0x58] sm:$0xff]
        %v1368 = vld [vmem:[%s1355 + $0x60] sm:$0xff]
        %v1369 = vld [vmem:[%s1355 + $0x68] sm:$0xff]
        %v1370 = vld [vmem:[%s1355 + $0x70] sm:$0xff]
        %v1371 = vld [vmem:[%s1355 + $0x78] sm:$0xff]
        %v1372 = vld [vmem:[%s4] sm:$0x1]
        %v1373 = vld [vmem:[#allocation8] sm:$0xff]
        %v1374 = vld [vmem:[#allocation8 + $0x8] sm:$0xff]
        %v1375 = vld [vmem:[#allocation8 + $0x10] sm:$0xff]
        %v1376 = vld [vmem:[#allocation8 + $0x18] sm:$0xff]
        %v1377 = vld [vmem:[#allocation8 + $0x20] sm:$0xff]
        %v1378 = vld [vmem:[#allocation8 + $0x28] sm:$0xff]
        %v1379 = vld [vmem:[#allocation8 + $0x30] sm:$0xff]
        %v1380 = vld [vmem:[#allocation8 + $0x38] sm:$0xff]
        %v1381 = vld [vmem:[#allocation8 + $0x40] sm:$0xff]
        %v1382 = vld [vmem:[#allocation8 + $0x48] sm:$0xff]
        %v1383 = vld [vmem:[#allocation8 + $0x50] sm:$0xff]
        %v1384 = vld [vmem:[#allocation8 + $0x58] sm:$0xff]
        %v1385 = vld [vmem:[#allocation8 + $0x60] sm:$0xff]
        %v1386 = vld [vmem:[#allocation8 + $0x68] sm:$0xff]
        %v1387 = vld [vmem:[#allocation8 + $0x70] sm:$0xff]
        %v1388 = vld [vmem:[#allocation8 + $0x78] sm:$0xff]
        %v1389 = vld [vmem:[%s6] sm:$0x1]
        %v1390 = vld [vmem:[#allocation3] sm:$0xe0]
        %v1391 = vld [vmem:[#allocation3 + $0x20] sm:$0x1f]
        %v1392 = vld [vmem:[#allocation3 + $0x20] sm:$0xff]
        %1393 = vmatprep.subr.mxu0 0.0
        %1394 = vmatpush1.msra.mxu0 %v1339
        %1395 = vmatprep.subr.mxu0 0.0
        %1396 = vmatpush1.msra.mxu0 %v1340
        %1397 = vmatprep.subr.mxu0 0.0
        %1398 = vmatpush1.msra.mxu0 %v1341
        %1399 = vmatprep.subr.mxu0 0.0
        %1400 = vmatpush1.msra.mxu0 %v1342
        %1401 = vmatprep.subr.mxu0 0.0
        %1402 = vmatpush1.msra.mxu0 %v1343
        %1403 = vmatprep.subr.mxu0 0.0
        %1404 = vmatpush1.msra.mxu0 %v1344
        %1405 = vmatprep.subr.mxu0 0.0
        %1406 = vmatpush1.msra.mxu0 %v1345
        %1407 = vmatprep.subr.mxu0 0.0
        %1408 = vmatpush1.msra.mxu0 %v1346
        %1409 = vmatprep.subr.mxu0 0.0
        %1410 = vmatpush1.msra.mxu0 %v1347
        %1411 = vmatprep.subr.mxu0 0.0
        %1412 = vmatpush1.msra.mxu0 %v1348
        %1413 = vmatprep.subr.mxu0 0.0
        %1414 = vmatpush1.msra.mxu0 %v1349
        %1415 = vmatprep.subr.mxu0 0.0
        %1416 = vmatpush1.msra.mxu0 %v1350
        %1417 = vmatprep.subr.mxu0 0.0
        %1418 = vmatpush1.msra.mxu0 %v1351
        %1419 = vmatprep.subr.mxu0 0.0
        %1420 = vmatpush1.msra.mxu0 %v1352
        %1421 = vmatprep.subr.mxu0 0.0
        %1422 = vmatpush1.msra.mxu0 %v1353
        %1423 = vmatprep.subr.mxu0 0.0
        %1424 = vmatpush1.msra.mxu0 %v1354
        %1425 = vmatprep.subr.mxu0 0.0
        %1426 = vmatpush1.msra.mxu0 0.0
        %1427 = vmatprep.subr.mxu0 0.0
        %1428 = vmatpush1.msra.mxu0 0.0
        %1429 = vmatprep.subr.mxu0 0.0
        %1430 = vmatpush1.msra.mxu0 0.0
        %1431 = vmatprep.subr.mxu0 0.0
        %1432 = vmatpush1.msra.mxu0 0.0
        %1433 = vmatprep.subr.mxu0 0.0
        %1434 = vmatpush1.msra.mxu0 0.0
        %1435 = vmatprep.subr.mxu0 0.0
        %1436 = vmatpush1.msra.mxu0 0.0
        %1437 = vmatprep.subr.mxu0 0.0
        %1438 = vmatpush1.msra.mxu0 0.0
        %1439 = vmatprep.subr.mxu0 0.0
        %1440 = vmatpush1.msra.mxu0 0.0
        %1441 = vmatprep.subr.mxu0 0.0
        %1442 = vmatpush1.msra.mxu0 0.0
        %1443 = vmatprep.subr.mxu0 0.0
        %1444 = vmatpush1.msra.mxu0 0.0
        %1445 = vmatprep.subr.mxu0 0.0
        %1446 = vmatpush1.msra.mxu0 0.0
        %1447 = vmatprep.subr.mxu0 0.0
        %1448 = vmatpush1.msra.mxu0 0.0
        %1449 = vmatprep.subr.mxu0 0.0
        %1450 = vmatpush1.msra.mxu0 0.0
        %1451 = vmatprep.subr.mxu0 0.0
        %1452 = vmatpush1.msra.mxu0 0.0
        %1453 = vmatprep.subr.mxu0 0.0
        %1454 = vmatpush1.msra.mxu0 0.0
        %1455 = vmatprep.subr.mxu0 0.0
        %1456 = vmatpush1.msra.mxu0 0.0
        %1457 = vmatprep.mubr.f32.mxu0 0.0
        %1458 = vmatmul.mubr.f32.gmra.mrb[0].mxu0 %v1392
        %v1459 = vpop.f32.mrb[0].mxu0
        %v1460 = vadd.f32 0.0, %v1459
        %v1461 = vpop.f32.mrb[0].mxu0
        %1462 = vdwg.mxu0
        %vm1465 = vcmask 1042432
        %v1466 = vrot.slane %v1390, 5
        %v1467 = vrot.slane %v1391, 5
        %v1468 = vsel %vm1465, %v1466, %v1467
        %1470 = vmatprep.subr.mxu0 0.0
        %1471 = vmatpush1.msra.mxu0 %v1322
        %1472 = vmatprep.subr.mxu0 0.0
        %1473 = vmatpush1.msra.mxu0 %v1323
        %1474 = vmatprep.subr.mxu0 0.0
        %1475 = vmatpush1.msra.mxu0 %v1324
        %1476 = vmatprep.subr.mxu0 0.0
        %1477 = vmatpush1.msra.mxu0 %v1325
        %1478 = vmatprep.subr.mxu0 0.0
        %1479 = vmatpush1.msra.mxu0 %v1326
        %1480 = vmatprep.subr.mxu0 0.0
        %1481 = vmatpush1.msra.mxu0 %v1327
        %1482 = vmatprep.subr.mxu0 0.0
        %1483 = vmatpush1.msra.mxu0 %v1328
        %1484 = vmatprep.subr.mxu0 0.0
        %1485 = vmatpush1.msra.mxu0 %v1329
        %1486 = vmatprep.subr.mxu0 0.0
        %1487 = vmatpush1.msra.mxu0 %v1330
        %1488 = vmatprep.subr.mxu0 0.0
        %1489 = vmatpush1.msra.mxu0 %v1331
        %1490 = vmatprep.subr.mxu0 0.0
        %1491 = vmatpush1.msra.mxu0 %v1332
        %1492 = vmatprep.subr.mxu0 0.0
        %1493 = vmatpush1.msra.mxu0 %v1333
        %1494 = vmatprep.subr.mxu0 0.0
        %1495 = vmatpush1.msra.mxu0 %v1334
        %1496 = vmatprep.subr.mxu0 0.0
        %1497 = vmatpush1.msra.mxu0 %v1335
        %1498 = vmatprep.subr.mxu0 0.0
        %1499 = vmatpush1.msra.mxu0 %v1336
        %1500 = vmatprep.subr.mxu0 0.0
        %1501 = vmatpush1.msra.mxu0 %v1337
        %1502 = vmatprep.subr.mxu0 0.0
        %1503 = vmatpush1.msra.mxu0 0.0
        %1504 = vmatprep.subr.mxu0 0.0
        %1505 = vmatpush1.msra.mxu0 0.0
        %1506 = vmatprep.subr.mxu0 0.0
        %1507 = vmatpush1.msra.mxu0 0.0
        %1508 = vmatprep.subr.mxu0 0.0
        %1509 = vmatpush1.msra.mxu0 0.0
        %1510 = vmatprep.subr.mxu0 0.0
        %1511 = vmatpush1.msra.mxu0 0.0
        %1512 = vmatprep.subr.mxu0 0.0
        %1513 = vmatpush1.msra.mxu0 0.0
        %1514 = vmatprep.subr.mxu0 0.0
        %1515 = vmatpush1.msra.mxu0 0.0
        %1516 = vmatprep.subr.mxu0 0.0
        %1517 = vmatpush1.msra.mxu0 0.0
        %1518 = vmatprep.subr.mxu0 0.0
        %1519 = vmatpush1.msra.mxu0 0.0
        %1520 = vmatprep.subr.mxu0 0.0
        %1521 = vmatpush1.msra.mxu0 0.0
        %1522 = vmatprep.subr.mxu0 0.0
        %1523 = vmatpush1.msra.mxu0 0.0
        %1524 = vmatprep.subr.mxu0 0.0
        %1525 = vmatpush1.msra.mxu0 0.0
        %1526 = vmatprep.subr.mxu0 0.0
        %1527 = vmatpush1.msra.mxu0 0.0
        %1528 = vmatprep.subr.mxu0 0.0
        %1529 = vmatpush1.msra.mxu0 0.0
        %1530 = vmatprep.subr.mxu0 0.0
        %1531 = vmatpush1.msra.mxu0 0.0
        %1532 = vmatprep.subr.mxu0 0.0
        %1533 = vmatpush1.msra.mxu0 0.0
        %1534 = vmatprep.mubr.f32.mxu0 0.0
        %1535 = vmatmul.mubr.f32.gmra.mrb[0].mxu0 %v1468
        %v1536 = vpop.f32.mrb[0].mxu0
        %v1537 = vadd.f32 %v1460, %v1536
        %v1538 = vpop.f32.mrb[0].mxu0
        %1539 = vdwg.mxu0
        %v1540 = vld [vmem:[#allocation3 + $0x20] sm:$0xf8]
        %v1541 = vld [vmem:[#allocation3 + $0x40] sm:$0x7]
        %vm1544 = vcmask 1044480
        %v1545 = vrot.slane %v1540, 3
        %v1546 = vrot.slane %v1541, 3
        %v1547 = vsel %vm1544, %v1545, %v1546
        %1549 = vmatprep.subr.mxu0 0.0
        %1550 = vmatpush1.msra.mxu0 %v1356
        %1551 = vmatprep.subr.mxu0 0.0
        %1552 = vmatpush1.msra.mxu0 %v1357
        %1553 = vmatprep.subr.mxu0 0.0
        %1554 = vmatpush1.msra.mxu0 %v1358
        %1555 = vmatprep.subr.mxu0 0.0
        %1556 = vmatpush1.msra.mxu0 %v1359
        %1557 = vmatprep.subr.mxu0 0.0
        %1558 = vmatpush1.msra.mxu0 %v1360
        %1559 = vmatprep.subr.mxu0 0.0
        %1560 = vmatpush1.msra.mxu0 %v1361
        %1561 = vmatprep.subr.mxu0 0.0
        %1562 = vmatpush1.msra.mxu0 %v1362
        %1563 = vmatprep.subr.mxu0 0.0
        %1564 = vmatpush1.msra.mxu0 %v1363
        %1565 = vmatprep.subr.mxu0 0.0
        %1566 = vmatpush1.msra.mxu0 %v1364
        %1567 = vmatprep.subr.mxu0 0.0
        %1568 = vmatpush1.msra.mxu0 %v1365
        %1569 = vmatprep.subr.mxu0 0.0
        %1570 = vmatpush1.msra.mxu0 %v1366
        %1571 = vmatprep.subr.mxu0 0.0
        %1572 = vmatpush1.msra.mxu0 %v1367
        %1573 = vmatprep.subr.mxu0 0.0
        %1574 = vmatpush1.msra.mxu0 %v1368
        %1575 = vmatprep.subr.mxu0 0.0
        %1576 = vmatpush1.msra.mxu0 %v1369
        %1577 = vmatprep.subr.mxu0 0.0
        %1578 = vmatpush1.msra.mxu0 %v1370
        %1579 = vmatprep.subr.mxu0 0.0
        %1580 = vmatpush1.msra.mxu0 %v1371
        %1581 = vmatprep.subr.mxu0 0.0
        %1582 = vmatpush1.msra.mxu0 0.0
        %1583 = vmatprep.subr.mxu0 0.0
        %1584 = vmatpush1.msra.mxu0 0.0
        %1585 = vmatprep.subr.mxu0 0.0
        %1586 = vmatpush1.msra.mxu0 0.0
        %1587 = vmatprep.subr.mxu0 0.0
        %1588 = vmatpush1.msra.mxu0 0.0
        %1589 = vmatprep.subr.mxu0 0.0
        %1590 = vmatpush1.msra.mxu0 0.0
        %1591 = vmatprep.subr.mxu0 0.0
        %1592 = vmatpush1.msra.mxu0 0.0
        %1593 = vmatprep.subr.mxu0 0.0
        %1594 = vmatpush1.msra.mxu0 0.0
        %1595 = vmatprep.subr.mxu0 0.0
        %1596 = vmatpush1.msra.mxu0 0.0
        %1597 = vmatprep.subr.mxu0 0.0
        %1598 = vmatpush1.msra.mxu0 0.0
        %1599 = vmatprep.subr.mxu0 0.0
        %1600 = vmatpush1.msra.mxu0 0.0
        %1601 = vmatprep.subr.mxu0 0.0
        %1602 = vmatpush1.msra.mxu0 0.0
        %1603 = vmatprep.subr.mxu0 0.0
        %1604 = vmatpush1.msra.mxu0 0.0
        %1605 = vmatprep.subr.mxu0 0.0
        %1606 = vmatpush1.msra.mxu0 0.0
        %1607 = vmatprep.subr.mxu0 0.0
        %1608 = vmatpush1.msra.mxu0 0.0
        %1609 = vmatprep.subr.mxu0 0.0
        %1610 = vmatpush1.msra.mxu0 0.0
        %1611 = vmatprep.subr.mxu0 0.0
        %1612 = vmatpush1.msra.mxu0 0.0
        %1613 = vmatprep.mubr.f32.mxu0 0.0
        %1614 = vmatmul.mubr.f32.gmra.mrb[0].mxu0 %v1547
        %v1615 = vpop.f32.mrb[0].mxu0
        %v1616 = vadd.f32 0.0, %v1615
        %v1617 = vpop.f32.mrb[0].mxu0
        %1618 = vdwg.mxu0
        %v1619 = vadd.f32 %v1537, %v1616
        %v1621 = vlaneseq
        %v1622 = vshrl.u32 %v1621, 7
        %v1623 = vsub.s32 0, %v1622
        %v1624 = vrot.slane %v1372, %v1623
        %v1626 = vadd.f32 %v1619, %v1624
        %v1627 = vmax.f32 %v1626, 0.0
        %v1629 = vlaneseq
        %v1630 = vshrl.u32 %v1629, 7
        %v1631 = vsub.s32 0, %v1630
        %v1632 = vrot.slane %v1389, %v1631
        %1634 = vmatprep.subr.mxu0 0.0
        %1635 = vmatpush1.msra.mxu0 %v1373
        %1636 = vmatprep.subr.mxu0 0.0
        %1637 = vmatpush1.msra.mxu0 %v1374
        %1638 = vmatprep.subr.mxu0 0.0
        %1639 = vmatpush1.msra.mxu0 %v1375
        %1640 = vmatprep.subr.mxu0 0.0
        %1641 = vmatpush1.msra.mxu0 %v1376
        %1642 = vmatprep.subr.mxu0 0.0
        %1643 = vmatpush1.msra.mxu0 %v1377
        %1644 = vmatprep.subr.mxu0 0.0
        %1645 = vmatpush1.msra.mxu0 %v1378
        %1646 = vmatprep.subr.mxu0 0.0
        %1647 = vmatpush1.msra.mxu0 %v1379
        %1648 = vmatprep.subr.mxu0 0.0
        %1649 = vmatpush1.msra.mxu0 %v1380
        %1650 = vmatprep.subr.mxu0 0.0
        %1651 = vmatpush1.msra.mxu0 %v1381
        %1652 = vmatprep.subr.mxu0 0.0
        %1653 = vmatpush1.msra.mxu0 %v1382
        %1654 = vmatprep.subr.mxu0 0.0
        %1655 = vmatpush1.msra.mxu0 %v1383
        %1656 = vmatprep.subr.mxu0 0.0
        %1657 = vmatpush1.msra.mxu0 %v1384
        %1658 = vmatprep.subr.mxu0 0.0
        %1659 = vmatpush1.msra.mxu0 %v1385
        %1660 = vmatprep.subr.mxu0 0.0
        %1661 = vmatpush1.msra.mxu0 %v1386
        %1662 = vmatprep.subr.mxu0 0.0
        %1663 = vmatpush1.msra.mxu0 %v1387
        %1664 = vmatprep.subr.mxu0 0.0
        %1665 = vmatpush1.msra.mxu0 %v1388
        %1666 = vmatprep.subr.mxu0 0.0
        %1667 = vmatpush1.msra.mxu0 0.0
        %1668 = vmatprep.subr.mxu0 0.0
        %1669 = vmatpush1.msra.mxu0 0.0
        %1670 = vmatprep.subr.mxu0 0.0
        %1671 = vmatpush1.msra.mxu0 0.0
        %1672 = vmatprep.subr.mxu0 0.0
        %1673 = vmatpush1.msra.mxu0 0.0
        %1674 = vmatprep.subr.mxu0 0.0
        %1675 = vmatpush1.msra.mxu0 0.0
        %1676 = vmatprep.subr.mxu0 0.0
        %1677 = vmatpush1.msra.mxu0 0.0
        %1678 = vmatprep.subr.mxu0 0.0
        %1679 = vmatpush1.msra.mxu0 0.0
        %1680 = vmatprep.subr.mxu0 0.0
        %1681 = vmatpush1.msra.mxu0 0.0
        %1682 = vmatprep.subr.mxu0 0.0
        %1683 = vmatpush1.msra.mxu0 0.0
        %1684 = vmatprep.subr.mxu0 0.0
        %1685 = vmatpush1.msra.mxu0 0.0
        %1686 = vmatprep.subr.mxu0 0.0
        %1687 = vmatpush1.msra.mxu0 0.0
        %1688 = vmatprep.subr.mxu0 0.0
        %1689 = vmatpush1.msra.mxu0 0.0
        %1690 = vmatprep.subr.mxu0 0.0
        %1691 = vmatpush1.msra.mxu0 0.0
        %1692 = vmatprep.subr.mxu0 0.0
        %1693 = vmatpush1.msra.mxu0 0.0
        %1694 = vmatprep.subr.mxu0 0.0
        %1695 = vmatpush1.msra.mxu0 0.0
        %1696 = vmatprep.subr.mxu0 0.0
        %1697 = vmatpush1.msra.mxu0 0.0
        %1698 = vmatprep.mubr.f32.mxu0 0.0
        %1699 = vmatmul.mubr.f32.gmra.mrb[0].mxu0 %v1627
        %v1700 = vpop.f32.mrb[0].mxu0
        %v1701 = vadd.f32 %v1632, %v1700
        %v1702 = vpop.f32.mrb[0].mxu0
        %1703 = vdwg.mxu0
        %v1704 = vld [vmem:[#allocation2 + $0x20] sm:$0xff]
        %v1705 = vadd.f32 %v1701, %v1704
        %1706 = vst [vmem:[#allocation2 + $0x20] sm:$0xff] %v1705
        %v1707 = vmax.f32 %v1705, 0.0
        %1708 = vst [vmem:[#allocation3 + $0x20] sm:$0xff] %v1707
        %v1709 = vld [vmem:[#allocation9] sm:$0xff]
        %v1710 = vld [vmem:[#allocation9 + $0x8] sm:$0xff]
        %v1711 = vld [vmem:[#allocation9 + $0x10] sm:$0xff]
        %v1712 = vld [vmem:[#allocation9 + $0x18] sm:$0xff]
        %v1713 = vld [vmem:[#allocation9 + $0x20] sm:$0xff]
        %v1714 = vld [vmem:[#allocation9 + $0x28] sm:$0xff]
        %v1715 = vld [vmem:[#allocation9 + $0x30] sm:$0xff]
        %v1716 = vld [vmem:[#allocation9 + $0x38] sm:$0xff]
        %v1717 = vld [vmem:[#allocation9 + $0x40] sm:$0xff]
        %v1718 = vld [vmem:[#allocation9 + $0x48] sm:$0xff]
        %v1719 = vld [vmem:[#allocation9 + $0x50] sm:$0xff]
        %v1720 = vld [vmem:[#allocation9 + $0x58] sm:$0xff]
        %v1721 = vld [vmem:[#allocation9 + $0x60] sm:$0xff]
        %v1722 = vld [vmem:[#allocation9 + $0x68] sm:$0xff]
        %v1723 = vld [vmem:[#allocation9 + $0x70] sm:$0xff]
        %v1724 = vld [vmem:[#allocation9 + $0x78] sm:$0xff]
        %s1725 = scalar_lea.vmem [#allocation9], 128
        %v1726 = vld [vmem:[%s1725] sm:$0xff]
        %v1727 = vld [vmem:[%s1725 + $0x8] sm:$0xff]
        %v1728 = vld [vmem:[%s1725 + $0x10] sm:$0xff]
        %v1729 = vld [vmem:[%s1725 + $0x18] sm:$0xff]
        %v1730 = vld [vmem:[%s1725 + $0x20] sm:$0xff]
        %v1731 = vld [vmem:[%s1725 + $0x28] sm:$0xff]
        %v1732 = vld [vmem:[%s1725 + $0x30] sm:$0xff]
        %v1733 = vld [vmem:[%s1725 + $0x38] sm:$0xff]
        %v1734 = vld [vmem:[%s1725 + $0x40] sm:$0xff]
        %v1735 = vld [vmem:[%s1725 + $0x48] sm:$0xff]
        %v1736 = vld [vmem:[%s1725 + $0x50] sm:$0xff]
        %v1737 = vld [vmem:[%s1725 + $0x58] sm:$0xff]
        %v1738 = vld [vmem:[%s1725 + $0x60] sm:$0xff]
        %v1739 = vld [vmem:[%s1725 + $0x68] sm:$0xff]
        %v1740 = vld [vmem:[%s1725 + $0x70] sm:$0xff]
        %v1741 = vld [vmem:[%s1725 + $0x78] sm:$0xff]
        %s1742 = scalar_lea.vmem [#allocation9], 256
        %v1743 = vld [vmem:[%s1742] sm:$0xff]
        %v1744 = vld [vmem:[%s1742 + $0x8] sm:$0xff]
        %v1745 = vld [vmem:[%s1742 + $0x10] sm:$0xff]
        %v1746 = vld [vmem:[%s1742 + $0x18] sm:$0xff]
        %v1747 = vld [vmem:[%s1742 + $0x20] sm:$0xff]
        %v1748 = vld [vmem:[%s1742 + $0x28] sm:$0xff]
        %v1749 = vld [vmem:[%s1742 + $0x30] sm:$0xff]
        %v1750 = vld [vmem:[%s1742 + $0x38] sm:$0xff]
        %v1751 = vld [vmem:[%s1742 + $0x40] sm:$0xff]
        %v1752 = vld [vmem:[%s1742 + $0x48] sm:$0xff]
        %v1753 = vld [vmem:[%s1742 + $0x50] sm:$0xff]
        %v1754 = vld [vmem:[%s1742 + $0x58] sm:$0xff]
        %v1755 = vld [vmem:[%s1742 + $0x60] sm:$0xff]
        %v1756 = vld [vmem:[%s1742 + $0x68] sm:$0xff]
        %v1757 = vld [vmem:[%s1742 + $0x70] sm:$0xff]
        %v1758 = vld [vmem:[%s1742 + $0x78] sm:$0xff]
        %v1759 = vld [vmem:[%s8] sm:$0x1]
        %v1760 = vld [vmem:[#allocation11] sm:$0xff]
        %v1761 = vld [vmem:[#allocation11 + $0x8] sm:$0xff]
        %v1762 = vld [vmem:[#allocation11 + $0x10] sm:$0xff]
        %v1763 = vld [vmem:[#allocation11 + $0x18] sm:$0xff]
        %v1764 = vld [vmem:[#allocation11 + $0x20] sm:$0xff]
        %v1765 = vld [vmem:[#allocation11 + $0x28] sm:$0xff]
        %v1766 = vld [vmem:[#allocation11 + $0x30] sm:$0xff]
        %v1767 = vld [vmem:[#allocation11 + $0x38] sm:$0xff]
        %v1768 = vld [vmem:[#allocation11 + $0x40] sm:$0xff]
        %v1769 = vld [vmem:[#allocation11 + $0x48] sm:$0xff]
        %v1770 = vld [vmem:[#allocation11 + $0x50] sm:$0xff]
        %v1771 = vld [vmem:[#allocation11 + $0x58] sm:$0xff]
        %v1772 = vld [vmem:[#allocation11 + $0x60] sm:$0xff]
        %v1773 = vld [vmem:[#allocation11 + $0x68] sm:$0xff]
        %v1774 = vld [vmem:[#allocation11 + $0x70] sm:$0xff]
        %v1775 = vld [vmem:[#allocation11 + $0x78] sm:$0xff]
        %v1776 = vld [vmem:[%s10] sm:$0x1]
        %v1777 = vld [vmem:[#allocation3] sm:$0x80]
        %v1778 = vld [vmem:[#allocation3 + $0x20] sm:$0x7f]
        %v1779 = vld [vmem:[#allocation3 + $0x20] sm:$0xff]
        %1780 = vmatprep.subr.mxu0 0.0
        %1781 = vmatpush1.msra.mxu0 %v1726
        %1782 = vmatprep.subr.mxu0 0.0
        %1783 = vmatpush1.msra.mxu0 %v1727
        %1784 = vmatprep.subr.mxu0 0.0
        %1785 = vmatpush1.msra.mxu0 %v1728
        %1786 = vmatprep.subr.mxu0 0.0
        %1787 = vmatpush1.msra.mxu0 %v1729
        %1788 = vmatprep.subr.mxu0 0.0
        %1789 = vmatpush1.msra.mxu0 %v1730
        %1790 = vmatprep.subr.mxu0 0.0
        %1791 = vmatpush1.msra.mxu0 %v1731
        %1792 = vmatprep.subr.mxu0 0.0
        %1793 = vmatpush1.msra.mxu0 %v1732
        %1794 = vmatprep.subr.mxu0 0.0
        %1795 = vmatpush1.msra.mxu0 %v1733
        %1796 = vmatprep.subr.mxu0 0.0
        %1797 = vmatpush1.msra.mxu0 %v1734
        %1798 = vmatprep.subr.mxu0 0.0
        %1799 = vmatpush1.msra.mxu0 %v1735
        %1800 = vmatprep.subr.mxu0 0.0
        %1801 = vmatpush1.msra.mxu0 %v1736
        %1802 = vmatprep.subr.mxu0 0.0
        %1803 = vmatpush1.msra.mxu0 %v1737
        %1804 = vmatprep.subr.mxu0 0.0
        %1805 = vmatpush1.msra.mxu0 %v1738
        %1806 = vmatprep.subr.mxu0 0.0
        %1807 = vmatpush1.msra.mxu0 %v1739
        %1808 = vmatprep.subr.mxu0 0.0
        %1809 = vmatpush1.msra.mxu0 %v1740
        %1810 = vmatprep.subr.mxu0 0.0
        %1811 = vmatpush1.msra.mxu0 %v1741
        %1812 = vmatprep.subr.mxu0 0.0
        %1813 = vmatpush1.msra.mxu0 0.0
        %1814 = vmatprep.subr.mxu0 0.0
        %1815 = vmatpush1.msra.mxu0 0.0
        %1816 = vmatprep.subr.mxu0 0.0
        %1817 = vmatpush1.msra.mxu0 0.0
        %1818 = vmatprep.subr.mxu0 0.0
        %1819 = vmatpush1.msra.mxu0 0.0
        %1820 = vmatprep.subr.mxu0 0.0
        %1821 = vmatpush1.msra.mxu0 0.0
        %1822 = vmatprep.subr.mxu0 0.0
        %1823 = vmatpush1.msra.mxu0 0.0
        %1824 = vmatprep.subr.mxu0 0.0
        %1825 = vmatpush1.msra.mxu0 0.0
        %1826 = vmatprep.subr.mxu0 0.0
        %1827 = vmatpush1.msra.mxu0 0.0
        %1828 = vmatprep.subr.mxu0 0.0
        %1829 = vmatpush1.msra.mxu0 0.0
        %1830 = vmatprep.subr.mxu0 0.0
        %1831 = vmatpush1.msra.mxu0 0.0
        %1832 = vmatprep.subr.mxu0 0.0
        %1833 = vmatpush1.msra.mxu0 0.0
        %1834 = vmatprep.subr.mxu0 0.0
        %1835 = vmatpush1.msra.mxu0 0.0
        %1836 = vmatprep.subr.mxu0 0.0
        %1837 = vmatpush1.msra.mxu0 0.0
        %1838 = vmatprep.subr.mxu0 0.0
        %1839 = vmatpush1.msra.mxu0 0.0
        %1840 = vmatprep.subr.mxu0 0.0
        %1841 = vmatpush1.msra.mxu0 0.0
        %1842 = vmatprep.subr.mxu0 0.0
        %1843 = vmatpush1.msra.mxu0 0.0
        %1844 = vmatprep.mubr.f32.mxu0 0.0
        %1845 = vmatmul.mubr.f32.gmra.mrb[0].mxu0 %v1779
        %v1846 = vpop.f32.mrb[0].mxu0
        %v1847 = vadd.f32 0.0, %v1846
        %v1848 = vpop.f32.mrb[0].mxu0
        %1849 = vdwg.mxu0
        %v1852 = vrot.slane %v1777, 7
        %v1853 = vrot.slane %v1778, 7
        %v1854 = vsel %vm1157, %v1852, %v1853
        %1856 = vmatprep.subr.mxu0 0.0
        %1857 = vmatpush1.msra.mxu0 %v1709
        %1858 = vmatprep.subr.mxu0 0.0
        %1859 = vmatpush1.msra.mxu0 %v1710
        %1860 = vmatprep.subr.mxu0 0.0
        %1861 = vmatpush1.msra.mxu0 %v1711
        %1862 = vmatprep.subr.mxu0 0.0
        %1863 = vmatpush1.msra.mxu0 %v1712
        %1864 = vmatprep.subr.mxu0 0.0
        %1865 = vmatpush1.msra.mxu0 %v1713
        %1866 = vmatprep.subr.mxu0 0.0
        %1867 = vmatpush1.msra.mxu0 %v1714
        %1868 = vmatprep.subr.mxu0 0.0
        %1869 = vmatpush1.msra.mxu0 %v1715
        %1870 = vmatprep.subr.mxu0 0.0
        %1871 = vmatpush1.msra.mxu0 %v1716
        %1872 = vmatprep.subr.mxu0 0.0
        %1873 = vmatpush1.msra.mxu0 %v1717
        %1874 = vmatprep.subr.mxu0 0.0
        %1875 = vmatpush1.msra.mxu0 %v1718
        %1876 = vmatprep.subr.mxu0 0.0
        %1877 = vmatpush1.msra.mxu0 %v1719
        %1878 = vmatprep.subr.mxu0 0.0
        %1879 = vmatpush1.msra.mxu0 %v1720
        %1880 = vmatprep.subr.mxu0 0.0
        %1881 = vmatpush1.msra.mxu0 %v1721
        %1882 = vmatprep.subr.mxu0 0.0
        %1883 = vmatpush1.msra.mxu0 %v1722
        %1884 = vmatprep.subr.mxu0 0.0
        %1885 = vmatpush1.msra.mxu0 %v1723
        %1886 = vmatprep.subr.mxu0 0.0
        %1887 = vmatpush1.msra.mxu0 %v1724
        %1888 = vmatprep.subr.mxu0 0.0
        %1889 = vmatpush1.msra.mxu0 0.0
        %1890 = vmatprep.subr.mxu0 0.0
        %1891 = vmatpush1.msra.mxu0 0.0
        %1892 = vmatprep.subr.mxu0 0.0
        %1893 = vmatpush1.msra.mxu0 0.0
        %1894 = vmatprep.subr.mxu0 0.0
        %1895 = vmatpush1.msra.mxu0 0.0
        %1896 = vmatprep.subr.mxu0 0.0
        %1897 = vmatpush1.msra.mxu0 0.0
        %1898 = vmatprep.subr.mxu0 0.0
        %1899 = vmatpush1.msra.mxu0 0.0
        %1900 = vmatprep.subr.mxu0 0.0
        %1901 = vmatpush1.msra.mxu0 0.0
        %1902 = vmatprep.subr.mxu0 0.0
        %1903 = vmatpush1.msra.mxu0 0.0
        %1904 = vmatprep.subr.mxu0 0.0
        %1905 = vmatpush1.msra.mxu0 0.0
        %1906 = vmatprep.subr.mxu0 0.0
        %1907 = vmatpush1.msra.mxu0 0.0
        %1908 = vmatprep.subr.mxu0 0.0
        %1909 = vmatpush1.msra.mxu0 0.0
        %1910 = vmatprep.subr.mxu0 0.0
        %1911 = vmatpush1.msra.mxu0 0.0
        %1912 = vmatprep.subr.mxu0 0.0
        %1913 = vmatpush1.msra.mxu0 0.0
        %1914 = vmatprep.subr.mxu0 0.0
        %1915 = vmatpush1.msra.mxu0 0.0
        %1916 = vmatprep.subr.mxu0 0.0
        %1917 = vmatpush1.msra.mxu0 0.0
        %1918 = vmatprep.subr.mxu0 0.0
        %1919 = vmatpush1.msra.mxu0 0.0
        %1920 = vmatprep.mubr.f32.mxu0 0.0
        %1921 = vmatmul.mubr.f32.gmra.mrb[0].mxu0 %v1854
        %v1922 = vpop.f32.mrb[0].mxu0
        %v1923 = vadd.f32 %v1847, %v1922
        %v1924 = vpop.f32.mrb[0].mxu0
        %1925 = vdwg.mxu0
        %v1926 = vld [vmem:[#allocation3 + $0x20] sm:$0xfe]
        %v1927 = vld [vmem:[#allocation3 + $0x40] sm:$0x1]
        %v1930 = vrot.slane %v1926, 1
        %v1931 = vrot.slane %v1927, 1
        %v1932 = vsel %vm1236, %v1930, %v1931
        %1934 = vmatprep.subr.mxu0 0.0
        %1935 = vmatpush1.msra.mxu0 %v1743
        %1936 = vmatprep.subr.mxu0 0.0
        %1937 = vmatpush1.msra.mxu0 %v1744
        %1938 = vmatprep.subr.mxu0 0.0
        %1939 = vmatpush1.msra.mxu0 %v1745
        %1940 = vmatprep.subr.mxu0 0.0
        %1941 = vmatpush1.msra.mxu0 %v1746
        %1942 = vmatprep.subr.mxu0 0.0
        %1943 = vmatpush1.msra.mxu0 %v1747
        %1944 = vmatprep.subr.mxu0 0.0
        %1945 = vmatpush1.msra.mxu0 %v1748
        %1946 = vmatprep.subr.mxu0 0.0
        %1947 = vmatpush1.msra.mxu0 %v1749
        %1948 = vmatprep.subr.mxu0 0.0
        %1949 = vmatpush1.msra.mxu0 %v1750
        %1950 = vmatprep.subr.mxu0 0.0
        %1951 = vmatpush1.msra.mxu0 %v1751
        %1952 = vmatprep.subr.mxu0 0.0
        %1953 = vmatpush1.msra.mxu0 %v1752
        %1954 = vmatprep.subr.mxu0 0.0
        %1955 = vmatpush1.msra.mxu0 %v1753
        %1956 = vmatprep.subr.mxu0 0.0
        %1957 = vmatpush1.msra.mxu0 %v1754
        %1958 = vmatprep.subr.mxu0 0.0
        %1959 = vmatpush1.msra.mxu0 %v1755
        %1960 = vmatprep.subr.mxu0 0.0
        %1961 = vmatpush1.msra.mxu0 %v1756
        %1962 = vmatprep.subr.mxu0 0.0
        %1963 = vmatpush1.msra.mxu0 %v1757
        %1964 = vmatprep.subr.mxu0 0.0
        %1965 = vmatpush1.msra.mxu0 %v1758
        %1966 = vmatprep.subr.mxu0 0.0
        %1967 = vmatpush1.msra.mxu0 0.0
        %1968 = vmatprep.subr.mxu0 0.0
        %1969 = vmatpush1.msra.mxu0 0.0
        %1970 = vmatprep.subr.mxu0 0.0
        %1971 = vmatpush1.msra.mxu0 0.0
        %1972 = vmatprep.subr.mxu0 0.0
        %1973 = vmatpush1.msra.mxu0 0.0
        %1974 = vmatprep.subr.mxu0 0.0
        %1975 = vmatpush1.msra.mxu0 0.0
        %1976 = vmatprep.subr.mxu0 0.0
        %1977 = vmatpush1.msra.mxu0 0.0
        %1978 = vmatprep.subr.mxu0 0.0
        %1979 = vmatpush1.msra.mxu0 0.0
        %1980 = vmatprep.subr.mxu0 0.0
        %1981 = vmatpush1.msra.mxu0 0.0
        %1982 = vmatprep.subr.mxu0 0.0
        %1983 = vmatpush1.msra.mxu0 0.0
        %1984 = vmatprep.subr.mxu0 0.0
        %1985 = vmatpush1.msra.mxu0 0.0
        %1986 = vmatprep.subr.mxu0 0.0
        %1987 = vmatpush1.msra.mxu0 0.0
        %1988 = vmatprep.subr.mxu0 0.0
        %1989 = vmatpush1.msra.mxu0 0.0
        %1990 = vmatprep.subr.mxu0 0.0
        %1991 = vmatpush1.msra.mxu0 0.0
        %1992 = vmatprep.subr.mxu0 0.0
        %1993 = vmatpush1.msra.mxu0 0.0
        %1994 = vmatprep.subr.mxu0 0.0
        %1995 = vmatpush1.msra.mxu0 0.0
        %1996 = vmatprep.subr.mxu0 0.0
        %1997 = vmatpush1.msra.mxu0 0.0
        %1998 = vmatprep.mubr.f32.mxu0 0.0
        %1999 = vmatmul.mubr.f32.gmra.mrb[0].mxu0 %v1932
        %v2000 = vpop.f32.mrb[0].mxu0
        %v2001 = vadd.f32 0.0, %v2000
        %v2002 = vpop.f32.mrb[0].mxu0
        %2003 = vdwg.mxu0
        %v2004 = vadd.f32 %v1923, %v2001
        %v2006 = vlaneseq
        %v2007 = vshrl.u32 %v2006, 7
        %v2008 = vsub.s32 0, %v2007
        %v2009 = vrot.slane %v1759, %v2008
        %v2011 = vadd.f32 %v2004, %v2009
        %v2012 = vmax.f32 %v2011, 0.0
        %v2014 = vlaneseq
        %v2015 = vshrl.u32 %v2014, 7
        %v2016 = vsub.s32 0, %v2015
        %v2017 = vrot.slane %v1776, %v2016
        %2019 = vmatprep.subr.mxu0 0.0
        %2020 = vmatpush1.msra.mxu0 %v1760
        %2021 = vmatprep.subr.mxu0 0.0
        %2022 = vmatpush1.msra.mxu0 %v1761
        %2023 = vmatprep.subr.mxu0 0.0
        %2024 = vmatpush1.msra.mxu0 %v1762
        %2025 = vmatprep.subr.mxu0 0.0
        %2026 = vmatpush1.msra.mxu0 %v1763
        %2027 = vmatprep.subr.mxu0 0.0
        %2028 = vmatpush1.msra.mxu0 %v1764
        %2029 = vmatprep.subr.mxu0 0.0
        %2030 = vmatpush1.msra.mxu0 %v1765
        %2031 = vmatprep.subr.mxu0 0.0
        %2032 = vmatpush1.msra.mxu0 %v1766
        %2033 = vmatprep.subr.mxu0 0.0
        %2034 = vmatpush1.msra.mxu0 %v1767
        %2035 = vmatprep.subr.mxu0 0.0
        %2036 = vmatpush1.msra.mxu0 %v1768
        %2037 = vmatprep.subr.mxu0 0.0
        %2038 = vmatpush1.msra.mxu0 %v1769
        %2039 = vmatprep.subr.mxu0 0.0
        %2040 = vmatpush1.msra.mxu0 %v1770
        %2041 = vmatprep.subr.mxu0 0.0
        %2042 = vmatpush1.msra.mxu0 %v1771
        %2043 = vmatprep.subr.mxu0 0.0
        %2044 = vmatpush1.msra.mxu0 %v1772
        %2045 = vmatprep.subr.mxu0 0.0
        %2046 = vmatpush1.msra.mxu0 %v1773
        %2047 = vmatprep.subr.mxu0 0.0
        %2048 = vmatpush1.msra.mxu0 %v1774
        %2049 = vmatprep.subr.mxu0 0.0
        %2050 = vmatpush1.msra.mxu0 %v1775
        %2051 = vmatprep.subr.mxu0 0.0
        %2052 = vmatpush1.msra.mxu0 0.0
        %2053 = vmatprep.subr.mxu0 0.0
        %2054 = vmatpush1.msra.mxu0 0.0
        %2055 = vmatprep.subr.mxu0 0.0
        %2056 = vmatpush1.msra.mxu0 0.0
        %2057 = vmatprep.subr.mxu0 0.0
        %2058 = vmatpush1.msra.mxu0 0.0
        %2059 = vmatprep.subr.mxu0 0.0
        %2060 = vmatpush1.msra.mxu0 0.0
        %2061 = vmatprep.subr.mxu0 0.0
        %2062 = vmatpush1.msra.mxu0 0.0
        %2063 = vmatprep.subr.mxu0 0.0
        %2064 = vmatpush1.msra.mxu0 0.0
        %2065 = vmatprep.subr.mxu0 0.0
        %2066 = vmatpush1.msra.mxu0 0.0
        %2067 = vmatprep.subr.mxu0 0.0
        %2068 = vmatpush1.msra.mxu0 0.0
        %2069 = vmatprep.subr.mxu0 0.0
        %2070 = vmatpush1.msra.mxu0 0.0
        %2071 = vmatprep.subr.mxu0 0.0
        %2072 = vmatpush1.msra.mxu0 0.0
        %2073 = vmatprep.subr.mxu0 0.0
        %2074 = vmatpush1.msra.mxu0 0.0
        %2075 = vmatprep.subr.mxu0 0.0
        %2076 = vmatpush1.msra.mxu0 0.0
        %2077 = vmatprep.subr.mxu0 0.0
        %2078 = vmatpush1.msra.mxu0 0.0
        %2079 = vmatprep.subr.mxu0 0.0
        %2080 = vmatpush1.msra.mxu0 0.0
        %2081 = vmatprep.subr.mxu0 0.0
        %2082 = vmatpush1.msra.mxu0 0.0
        %2083 = vmatprep.mubr.f32.mxu0 0.0
        %2084 = vmatmul.mubr.f32.gmra.mrb[0].mxu0 %v2012
        %v2085 = vpop.f32.mrb[0].mxu0
        %v2086 = vadd.f32 %v2017, %v2085
        %v2087 = vpop.f32.mrb[0].mxu0
        %2088 = vdwg.mxu0
        %v2089 = vld [vmem:[#allocation2 + $0x20] sm:$0xff]
        %v2090 = vadd.f32 %v2086, %v2089
        %2091 = vst [vmem:[#allocation2 + $0x20] sm:$0xff] %v2090
        %v2092 = vmax.f32 %v2090, 0.0
        %2093 = vst [vmem:[#allocation3 + $0x20] sm:$0xff] %v2092
        %v2094 = vld [vmem:[#allocation12] sm:$0xff]
        %v2095 = vld [vmem:[#allocation12 + $0x8] sm:$0xff]
        %v2096 = vld [vmem:[#allocation12 + $0x10] sm:$0xff]
        %v2097 = vld [vmem:[#allocation12 + $0x18] sm:$0xff]
        %v2098 = vld [vmem:[#allocation12 + $0x20] sm:$0xff]
        %v2099 = vld [vmem:[#allocation12 + $0x28] sm:$0xff]
        %v2100 = vld [vmem:[#allocation12 + $0x30] sm:$0xff]
        %v2101 = vld [vmem:[#allocation12 + $0x38] sm:$0xff]
        %v2102 = vld [vmem:[#allocation12 + $0x40] sm:$0xff]
        %v2103 = vld [vmem:[#allocation12 + $0x48] sm:$0xff]
        %v2104 = vld [vmem:[#allocation12 + $0x50] sm:$0xff]
        %v2105 = vld [vmem:[#allocation12 + $0x58] sm:$0xff]
        %v2106 = vld [vmem:[#allocation12 + $0x60] sm:$0xff]
        %v2107 = vld [vmem:[#allocation12 + $0x68] sm:$0xff]
        %v2108 = vld [vmem:[#allocation12 + $0x70] sm:$0xff]
        %v2109 = vld [vmem:[#allocation12 + $0x78] sm:$0xff]
        %s2110 = scalar_lea.vmem [#allocation12], 128
        %v2111 = vld [vmem:[%s2110] sm:$0xff]
        %v2112 = vld [vmem:[%s2110 + $0x8] sm:$0xff]
        %v2113 = vld [vmem:[%s2110 + $0x10] sm:$0xff]
        %v2114 = vld [vmem:[%s2110 + $0x18] sm:$0xff]
        %v2115 = vld [vmem:[%s2110 + $0x20] sm:$0xff]
        %v2116 = vld [vmem:[%s2110 + $0x28] sm:$0xff]
        %v2117 = vld [vmem:[%s2110 + $0x30] sm:$0xff]
        %v2118 = vld [vmem:[%s2110 + $0x38] sm:$0xff]
        %v2119 = vld [vmem:[%s2110 + $0x40] sm:$0xff]
        %v2120 = vld [vmem:[%s2110 + $0x48] sm:$0xff]
        %v2121 = vld [vmem:[%s2110 + $0x50] sm:$0xff]
        %v2122 = vld [vmem:[%s2110 + $0x58] sm:$0xff]
        %v2123 = vld [vmem:[%s2110 + $0x60] sm:$0xff]
        %v2124 = vld [vmem:[%s2110 + $0x68] sm:$0xff]
        %v2125 = vld [vmem:[%s2110 + $0x70] sm:$0xff]
        %v2126 = vld [vmem:[%s2110 + $0x78] sm:$0xff]
        %s2127 = scalar_lea.vmem [#allocation12], 256
        %v2128 = vld [vmem:[%s2127] sm:$0xff]
        %v2129 = vld [vmem:[%s2127 + $0x8] sm:$0xff]
        %v2130 = vld [vmem:[%s2127 + $0x10] sm:$0xff]
        %v2131 = vld [vmem:[%s2127 + $0x18] sm:$0xff]
        %v2132 = vld [vmem:[%s2127 + $0x20] sm:$0xff]
        %v2133 = vld [vmem:[%s2127 + $0x28] sm:$0xff]
        %v2134 = vld [vmem:[%s2127 + $0x30] sm:$0xff]
        %v2135 = vld [vmem:[%s2127 + $0x38] sm:$0xff]
        %v2136 = vld [vmem:[%s2127 + $0x40] sm:$0xff]
        %v2137 = vld [vmem:[%s2127 + $0x48] sm:$0xff]
        %v2138 = vld [vmem:[%s2127 + $0x50] sm:$0xff]
        %v2139 = vld [vmem:[%s2127 + $0x58] sm:$0xff]
        %v2140 = vld [vmem:[%s2127 + $0x60] sm:$0xff]
        %v2141 = vld [vmem:[%s2127 + $0x68] sm:$0xff]
        %v2142 = vld [vmem:[%s2127 + $0x70] sm:$0xff]
        %v2143 = vld [vmem:[%s2127 + $0x78] sm:$0xff]
        %s2144 = scalar_lea.vmem [#allocation12], 384
        %v2145 = vld [vmem:[%s2144] sm:$0xff]
        %v2146 = vld [vmem:[%s2144 + $0x8] sm:$0xff]
        %v2147 = vld [vmem:[%s2144 + $0x10] sm:$0xff]
        %v2148 = vld [vmem:[%s2144 + $0x18] sm:$0xff]
        %v2149 = vld [vmem:[%s2144 + $0x20] sm:$0xff]
        %v2150 = vld [vmem:[%s2144 + $0x28] sm:$0xff]
        %v2151 = vld [vmem:[%s2144 + $0x30] sm:$0xff]
        %v2152 = vld [vmem:[%s2144 + $0x38] sm:$0xff]
        %v2153 = vld [vmem:[%s2144 + $0x40] sm:$0xff]
        %v2154 = vld [vmem:[%s2144 + $0x48] sm:$0xff]
        %v2155 = vld [vmem:[%s2144 + $0x50] sm:$0xff]
        %v2156 = vld [vmem:[%s2144 + $0x58] sm:$0xff]
        %v2157 = vld [vmem:[%s2144 + $0x60] sm:$0xff]
        %v2158 = vld [vmem:[%s2144 + $0x68] sm:$0xff]
        %v2159 = vld [vmem:[%s2144 + $0x70] sm:$0xff]
        %v2160 = vld [vmem:[%s2144 + $0x78] sm:$0xff]
        %v2161 = vld [vmem:[%s12] sm:$0x1]
        %v2162 = vld [vmem:[#allocation2] sm:$0x80]
        %v2163 = vld [vmem:[#allocation2 + $0x20] sm:$0x7f]
        %v2164 = vld [vmem:[#allocation2 + $0x20] sm:$0xff]
        %2165 = vmatprep.subr.mxu0 0.0
        %2166 = vmatpush1.msra.mxu0 %v2111
        %2167 = vmatprep.subr.mxu0 0.0
        %2168 = vmatpush1.msra.mxu0 %v2112
        %2169 = vmatprep.subr.mxu0 0.0
        %2170 = vmatpush1.msra.mxu0 %v2113
        %2171 = vmatprep.subr.mxu0 0.0
        %2172 = vmatpush1.msra.mxu0 %v2114
        %2173 = vmatprep.subr.mxu0 0.0
        %2174 = vmatpush1.msra.mxu0 %v2115
        %2175 = vmatprep.subr.mxu0 0.0
        %2176 = vmatpush1.msra.mxu0 %v2116
        %2177 = vmatprep.subr.mxu0 0.0
        %2178 = vmatpush1.msra.mxu0 %v2117
        %2179 = vmatprep.subr.mxu0 0.0
        %2180 = vmatpush1.msra.mxu0 %v2118
        %2181 = vmatprep.subr.mxu0 0.0
        %2182 = vmatpush1.msra.mxu0 %v2119
        %2183 = vmatprep.subr.mxu0 0.0
        %2184 = vmatpush1.msra.mxu0 %v2120
        %2185 = vmatprep.subr.mxu0 0.0
        %2186 = vmatpush1.msra.mxu0 %v2121
        %2187 = vmatprep.subr.mxu0 0.0
        %2188 = vmatpush1.msra.mxu0 %v2122
        %2189 = vmatprep.subr.mxu0 0.0
        %2190 = vmatpush1.msra.mxu0 %v2123
        %2191 = vmatprep.subr.mxu0 0.0
        %2192 = vmatpush1.msra.mxu0 %v2124
        %2193 = vmatprep.subr.mxu0 0.0
        %2194 = vmatpush1.msra.mxu0 %v2125
        %2195 = vmatprep.subr.mxu0 0.0
        %2196 = vmatpush1.msra.mxu0 %v2126
        %2197 = vmatprep.subr.mxu0 0.0
        %2198 = vmatpush1.msra.mxu0 0.0
        %2199 = vmatprep.subr.mxu0 0.0
        %2200 = vmatpush1.msra.mxu0 0.0
        %2201 = vmatprep.subr.mxu0 0.0
        %2202 = vmatpush1.msra.mxu0 0.0
        %2203 = vmatprep.subr.mxu0 0.0
        %2204 = vmatpush1.msra.mxu0 0.0
        %2205 = vmatprep.subr.mxu0 0.0
        %2206 = vmatpush1.msra.mxu0 0.0
        %2207 = vmatprep.subr.mxu0 0.0
        %2208 = vmatpush1.msra.mxu0 0.0
        %2209 = vmatprep.subr.mxu0 0.0
        %2210 = vmatpush1.msra.mxu0 0.0
        %2211 = vmatprep.subr.mxu0 0.0
        %2212 = vmatpush1.msra.mxu0 0.0
        %2213 = vmatprep.subr.mxu0 0.0
        %2214 = vmatpush1.msra.mxu0 0.0
        %2215 = vmatprep.subr.mxu0 0.0
        %2216 = vmatpush1.msra.mxu0 0.0
        %2217 = vmatprep.subr.mxu0 0.0
        %2218 = vmatpush1.msra.mxu0 0.0
        %2219 = vmatprep.subr.mxu0 0.0
        %2220 = vmatpush1.msra.mxu0 0.0
        %2221 = vmatprep.subr.mxu0 0.0
        %2222 = vmatpush1.msra.mxu0 0.0
        %2223 = vmatprep.subr.mxu0 0.0
        %2224 = vmatpush1.msra.mxu0 0.0
        %2225 = vmatprep.subr.mxu0 0.0
        %2226 = vmatpush1.msra.mxu0 0.0
        %2227 = vmatprep.subr.mxu0 0.0
        %2228 = vmatpush1.msra.mxu0 0.0
        %2229 = vmatprep.mubr.f32.mxu0 0.0
        %2230 = vmatmul.mubr.f32.gmra.mrb[0].mxu0 %v2164
        %v2231 = vpop.f32.mrb[0].mxu0
        %v2232 = vadd.f32 0.0, %v2231
        %v2233 = vpop.f32.mrb[0].mxu0
        %2234 = vdwg.mxu0
        %v2237 = vrot.slane %v2162, 7
        %v2238 = vrot.slane %v2163, 7
        %v2239 = vsel %vm1157, %v2237, %v2238
        %2241 = vmatprep.subr.mxu0 0.0
        %2242 = vmatpush1.msra.mxu0 %v2094
        %2243 = vmatprep.subr.mxu0 0.0
        %2244 = vmatpush1.msra.mxu0 %v2095
        %2245 = vmatprep.subr.mxu0 0.0
        %2246 = vmatpush1.msra.mxu0 %v2096
        %2247 = vmatprep.subr.mxu0 0.0
        %2248 = vmatpush1.msra.mxu0 %v2097
        %2249 = vmatprep.subr.mxu0 0.0
        %2250 = vmatpush1.msra.mxu0 %v2098
        %2251 = vmatprep.subr.mxu0 0.0
        %2252 = vmatpush1.msra.mxu0 %v2099
        %2253 = vmatprep.subr.mxu0 0.0
        %2254 = vmatpush1.msra.mxu0 %v2100
        %2255 = vmatprep.subr.mxu0 0.0
        %2256 = vmatpush1.msra.mxu0 %v2101
        %2257 = vmatprep.subr.mxu0 0.0
        %2258 = vmatpush1.msra.mxu0 %v2102
        %2259 = vmatprep.subr.mxu0 0.0
        %2260 = vmatpush1.msra.mxu0 %v2103
        %2261 = vmatprep.subr.mxu0 0.0
        %2262 = vmatpush1.msra.mxu0 %v2104
        %2263 = vmatprep.subr.mxu0 0.0
        %2264 = vmatpush1.msra.mxu0 %v2105
        %2265 = vmatprep.subr.mxu0 0.0
        %2266 = vmatpush1.msra.mxu0 %v2106
        %2267 = vmatprep.subr.mxu0 0.0
        %2268 = vmatpush1.msra.mxu0 %v2107
        %2269 = vmatprep.subr.mxu0 0.0
        %2270 = vmatpush1.msra.mxu0 %v2108
        %2271 = vmatprep.subr.mxu0 0.0
        %2272 = vmatpush1.msra.mxu0 %v2109
        %2273 = vmatprep.subr.mxu0 0.0
        %2274 = vmatpush1.msra.mxu0 0.0
        %2275 = vmatprep.subr.mxu0 0.0
        %2276 = vmatpush1.msra.mxu0 0.0
        %2277 = vmatprep.subr.mxu0 0.0
        %2278 = vmatpush1.msra.mxu0 0.0
        %2279 = vmatprep.subr.mxu0 0.0
        %2280 = vmatpush1.msra.mxu0 0.0
        %2281 = vmatprep.subr.mxu0 0.0
        %2282 = vmatpush1.msra.mxu0 0.0
        %2283 = vmatprep.subr.mxu0 0.0
        %2284 = vmatpush1.msra.mxu0 0.0
        %2285 = vmatprep.subr.mxu0 0.0
        %2286 = vmatpush1.msra.mxu0 0.0
        %2287 = vmatprep.subr.mxu0 0.0
        %2288 = vmatpush1.msra.mxu0 0.0
        %2289 = vmatprep.subr.mxu0 0.0
        %2290 = vmatpush1.msra.mxu0 0.0
        %2291 = vmatprep.subr.mxu0 0.0
        %2292 = vmatpush1.msra.mxu0 0.0
        %2293 = vmatprep.subr.mxu0 0.0
        %2294 = vmatpush1.msra.mxu0 0.0
        %2295 = vmatprep.subr.mxu0 0.0
        %2296 = vmatpush1.msra.mxu0 0.0
        %2297 = vmatprep.subr.mxu0 0.0
        %2298 = vmatpush1.msra.mxu0 0.0
        %2299 = vmatprep.subr.mxu0 0.0
        %2300 = vmatpush1.msra.mxu0 0.0
        %2301 = vmatprep.subr.mxu0 0.0
        %2302 = vmatpush1.msra.mxu0 0.0
        %2303 = vmatprep.subr.mxu0 0.0
        %2304 = vmatpush1.msra.mxu0 0.0
        %2305 = vmatprep.mubr.f32.mxu0 0.0
        %2306 = vmatmul.mubr.f32.gmra.mrb[0].mxu0 %v2239
        %v2307 = vpop.f32.mrb[0].mxu0
        %v2308 = vadd.f32 %v2232, %v2307
        %v2309 = vpop.f32.mrb[0].mxu0
        %2310 = vdwg.mxu0
        %v2312 = vlaneseq
        %v2313 = vshrl.u32 %v2312, 7
        %v2314 = vsub.s32 0, %v2313
        %v2315 = vrot.slane %v2161, %v2314
        %v2317 = vadd.f32 %v2308, %v2315
        %v2318 = vld [vmem:[#allocation2 + $0x20] sm:$0xfe]
        %v2319 = vld [vmem:[#allocation2 + $0x40] sm:$0x1]
        %v2322 = vrot.slane %v2318, 1
        %v2323 = vrot.slane %v2319, 1
        %v2324 = vsel %vm1236, %v2322, %v2323
        %2326 = vmatprep.subr.mxu0 0.0
        %2327 = vmatpush1.msra.mxu0 %v2145
        %2328 = vmatprep.subr.mxu0 0.0
        %2329 = vmatpush1.msra.mxu0 %v2146
        %2330 = vmatprep.subr.mxu0 0.0
        %2331 = vmatpush1.msra.mxu0 %v2147
        %2332 = vmatprep.subr.mxu0 0.0
        %2333 = vmatpush1.msra.mxu0 %v2148
        %2334 = vmatprep.subr.mxu0 0.0
        %2335 = vmatpush1.msra.mxu0 %v2149
        %2336 = vmatprep.subr.mxu0 0.0
        %2337 = vmatpush1.msra.mxu0 %v2150
        %2338 = vmatprep.subr.mxu0 0.0
        %2339 = vmatpush1.msra.mxu0 %v2151
        %2340 = vmatprep.subr.mxu0 0.0
        %2341 = vmatpush1.msra.mxu0 %v2152
        %2342 = vmatprep.subr.mxu0 0.0
        %2343 = vmatpush1.msra.mxu0 %v2153
        %2344 = vmatprep.subr.mxu0 0.0
        %2345 = vmatpush1.msra.mxu0 %v2154
        %2346 = vmatprep.subr.mxu0 0.0
        %2347 = vmatpush1.msra.mxu0 %v2155
        %2348 = vmatprep.subr.mxu0 0.0
        %2349 = vmatpush1.msra.mxu0 %v2156
        %2350 = vmatprep.subr.mxu0 0.0
        %2351 = vmatpush1.msra.mxu0 %v2157
        %2352 = vmatprep.subr.mxu0 0.0
        %2353 = vmatpush1.msra.mxu0 %v2158
        %2354 = vmatprep.subr.mxu0 0.0
        %2355 = vmatpush1.msra.mxu0 %v2159
        %2356 = vmatprep.subr.mxu0 0.0
        %2357 = vmatpush1.msra.mxu0 %v2160
        %2358 = vmatprep.subr.mxu0 0.0
        %2359 = vmatpush1.msra.mxu0 0.0
        %2360 = vmatprep.subr.mxu0 0.0
        %2361 = vmatpush1.msra.mxu0 0.0
        %2362 = vmatprep.subr.mxu0 0.0
        %2363 = vmatpush1.msra.mxu0 0.0
        %2364 = vmatprep.subr.mxu0 0.0
        %2365 = vmatpush1.msra.mxu0 0.0
        %2366 = vmatprep.subr.mxu0 0.0
        %2367 = vmatpush1.msra.mxu0 0.0
        %2368 = vmatprep.subr.mxu0 0.0
        %2369 = vmatpush1.msra.mxu0 0.0
        %2370 = vmatprep.subr.mxu0 0.0
        %2371 = vmatpush1.msra.mxu0 0.0
        %2372 = vmatprep.subr.mxu0 0.0
        %2373 = vmatpush1.msra.mxu0 0.0
        %2374 = vmatprep.subr.mxu0 0.0
        %2375 = vmatpush1.msra.mxu0 0.0
        %2376 = vmatprep.subr.mxu0 0.0
        %2377 = vmatpush1.msra.mxu0 0.0
        %2378 = vmatprep.subr.mxu0 0.0
        %2379 = vmatpush1.msra.mxu0 0.0
        %2380 = vmatprep.subr.mxu0 0.0
        %2381 = vmatpush1.msra.mxu0 0.0
        %2382 = vmatprep.subr.mxu0 0.0
        %2383 = vmatpush1.msra.mxu0 0.0
        %2384 = vmatprep.subr.mxu0 0.0
        %2385 = vmatpush1.msra.mxu0 0.0
        %2386 = vmatprep.subr.mxu0 0.0
        %2387 = vmatpush1.msra.mxu0 0.0
        %2388 = vmatprep.subr.mxu0 0.0
        %2389 = vmatpush1.msra.mxu0 0.0
        %2390 = vmatprep.mubr.f32.mxu0 0.0
        %2391 = vmatmul.mubr.f32.gmra.mrb[0].mxu0 %v2324
        %v2392 = vpop.f32.mrb[0].mxu0
        %v2393 = vadd.f32 0.0, %v2392
        %v2394 = vpop.f32.mrb[0].mxu0
        %2395 = vdwg.mxu0
        %2396 = vmatprep.subr.mxu0 0.0
        %2397 = vmatpush1.msra.mxu0 %v2128
        %2398 = vmatprep.subr.mxu0 0.0
        %2399 = vmatpush1.msra.mxu0 %v2129
        %2400 = vmatprep.subr.mxu0 0.0
        %2401 = vmatpush1.msra.mxu0 %v2130
        %2402 = vmatprep.subr.mxu0 0.0
        %2403 = vmatpush1.msra.mxu0 %v2131
        %2404 = vmatprep.subr.mxu0 0.0
        %2405 = vmatpush1.msra.mxu0 %v2132
        %2406 = vmatprep.subr.mxu0 0.0
        %2407 = vmatpush1.msra.mxu0 %v2133
        %2408 = vmatprep.subr.mxu0 0.0
        %2409 = vmatpush1.msra.mxu0 %v2134
        %2410 = vmatprep.subr.mxu0 0.0
        %2411 = vmatpush1.msra.mxu0 %v2135
        %2412 = vmatprep.subr.mxu0 0.0
        %2413 = vmatpush1.msra.mxu0 %v2136
        %2414 = vmatprep.subr.mxu0 0.0
        %2415 = vmatpush1.msra.mxu0 %v2137
        %2416 = vmatprep.subr.mxu0 0.0
        %2417 = vmatpush1.msra.mxu0 %v2138
        %2418 = vmatprep.subr.mxu0 0.0
        %2419 = vmatpush1.msra.mxu0 %v2139
        %2420 = vmatprep.subr.mxu0 0.0
        %2421 = vmatpush1.msra.mxu0 %v2140
        %2422 = vmatprep.subr.mxu0 0.0
        %2423 = vmatpush1.msra.mxu0 %v2141
        %2424 = vmatprep.subr.mxu0 0.0
        %2425 = vmatpush1.msra.mxu0 %v2142
        %2426 = vmatprep.subr.mxu0 0.0
        %2427 = vmatpush1.msra.mxu0 %v2143
        %2428 = vmatprep.subr.mxu0 0.0
        %2429 = vmatpush1.msra.mxu0 0.0
        %2430 = vmatprep.subr.mxu0 0.0
        %2431 = vmatpush1.msra.mxu0 0.0
        %2432 = vmatprep.subr.mxu0 0.0
        %2433 = vmatpush1.msra.mxu0 0.0
        %2434 = vmatprep.subr.mxu0 0.0
        %2435 = vmatpush1.msra.mxu0 0.0
        %2436 = vmatprep.subr.mxu0 0.0
        %2437 = vmatpush1.msra.mxu0 0.0
        %2438 = vmatprep.subr.mxu0 0.0
        %2439 = vmatpush1.msra.mxu0 0.0
        %2440 = vmatprep.subr.mxu0 0.0
        %2441 = vmatpush1.msra.mxu0 0.0
        %2442 = vmatprep.subr.mxu0 0.0
        %2443 = vmatpush1.msra.mxu0 0.0
        %2444 = vmatprep.subr.mxu0 0.0
        %2445 = vmatpush1.msra.mxu0 0.0
        %2446 = vmatprep.subr.mxu0 0.0
        %2447 = vmatpush1.msra.mxu0 0.0
        %2448 = vmatprep.subr.mxu0 0.0
        %2449 = vmatpush1.msra.mxu0 0.0
        %2450 = vmatprep.subr.mxu0 0.0
        %2451 = vmatpush1.msra.mxu0 0.0
        %2452 = vmatprep.subr.mxu0 0.0
        %2453 = vmatpush1.msra.mxu0 0.0
        %2454 = vmatprep.subr.mxu0 0.0
        %2455 = vmatpush1.msra.mxu0 0.0
        %2456 = vmatprep.subr.mxu0 0.0
        %2457 = vmatpush1.msra.mxu0 0.0
        %2458 = vmatprep.subr.mxu0 0.0
        %2459 = vmatpush1.msra.mxu0 0.0
        %2460 = vmatprep.mubr.f32.mxu0 0.0
        %2461 = vmatmul.mubr.f32.gmra.mrb[0].mxu0 %v2164
        %v2462 = vpop.f32.mrb[0].mxu0
        %v2463 = vadd.f32 %v2393, %v2462
        %v2464 = vpop.f32.mrb[0].mxu0
        %2465 = vdwg.mxu0
        %v2466 = vadd.f32 %v2463, %v2315
        %2467 = vst [vmem:[#allocation2 + $0x20] sm:$0xff] %v2317
        %v2468 = vmax.f32 %v2317, 0.0
        %2469 = vst [vmem:[#allocation3 + $0x20] sm:$0xff] %v2468
        %2470 = vst [vmem:[#allocation2 + $0x28] sm:$0xff] %v2466
        %v2471 = vmax.f32 %v2466, 0.0
        %2472 = vst [vmem:[#allocation3 + $0x28] sm:$0xff] %v2471
        %v2473 = vld [vmem:[#allocation14] sm:$0xff]
        %v2474 = vld [vmem:[#allocation14 + $0x8] sm:$0xff]
        %v2475 = vld [vmem:[#allocation14 + $0x10] sm:$0xff]
        %v2476 = vld [vmem:[#allocation14 + $0x18] sm:$0xff]
        %v2477 = vld [vmem:[#allocation14 + $0x20] sm:$0xff]
        %v2478 = vld [vmem:[#allocation14 + $0x28] sm:$0xff]
        %v2479 = vld [vmem:[#allocation14 + $0x30] sm:$0xff]
        %v2480 = vld [vmem:[#allocation14 + $0x38] sm:$0xff]
        %v2481 = vld [vmem:[#allocation14 + $0x40] sm:$0xff]
        %v2482 = vld [vmem:[#allocation14 + $0x48] sm:$0xff]
        %v2483 = vld [vmem:[#allocation14 + $0x50] sm:$0xff]
        %v2484 = vld [vmem:[#allocation14 + $0x58] sm:$0xff]
        %v2485 = vld [vmem:[#allocation14 + $0x60] sm:$0xff]
        %v2486 = vld [vmem:[#allocation14 + $0x68] sm:$0xff]
        %v2487 = vld [vmem:[#allocation14 + $0x70] sm:$0xff]
        %v2488 = vld [vmem:[#allocation14 + $0x78] sm:$0xff]
        %s2489 = scalar_lea.vmem [#allocation14], 128
        %v2490 = vld [vmem:[%s2489] sm:$0xff]
        %v2491 = vld [vmem:[%s2489 + $0x8] sm:$0xff]
        %v2492 = vld [vmem:[%s2489 + $0x10] sm:$0xff]
        %v2493 = vld [vmem:[%s2489 + $0x18] sm:$0xff]
        %v2494 = vld [vmem:[%s2489 + $0x20] sm:$0xff]
        %v2495 = vld [vmem:[%s2489 + $0x28] sm:$0xff]
        %v2496 = vld [vmem:[%s2489 + $0x30] sm:$0xff]
        %v2497 = vld [vmem:[%s2489 + $0x38] sm:$0xff]
        %v2498 = vld [vmem:[%s2489 + $0x40] sm:$0xff]
        %v2499 = vld [vmem:[%s2489 + $0x48] sm:$0xff]
        %v2500 = vld [vmem:[%s2489 + $0x50] sm:$0xff]
        %v2501 = vld [vmem:[%s2489 + $0x58] sm:$0xff]
        %v2502 = vld [vmem:[%s2489 + $0x60] sm:$0xff]
        %v2503 = vld [vmem:[%s2489 + $0x68] sm:$0xff]
        %v2504 = vld [vmem:[%s2489 + $0x70] sm:$0xff]
        %v2505 = vld [vmem:[%s2489 + $0x78] sm:$0xff]
        %s2506 = scalar_lea.vmem [#allocation14], 256
        %v2507 = vld [vmem:[%s2506] sm:$0xff]
        %v2508 = vld [vmem:[%s2506 + $0x8] sm:$0xff]
        %v2509 = vld [vmem:[%s2506 + $0x10] sm:$0xff]
        %v2510 = vld [vmem:[%s2506 + $0x18] sm:$0xff]
        %v2511 = vld [vmem:[%s2506 + $0x20] sm:$0xff]
        %v2512 = vld [vmem:[%s2506 + $0x28] sm:$0xff]
        %v2513 = vld [vmem:[%s2506 + $0x30] sm:$0xff]
        %v2514 = vld [vmem:[%s2506 + $0x38] sm:$0xff]
        %v2515 = vld [vmem:[%s2506 + $0x40] sm:$0xff]
        %v2516 = vld [vmem:[%s2506 + $0x48] sm:$0xff]
        %v2517 = vld [vmem:[%s2506 + $0x50] sm:$0xff]
        %v2518 = vld [vmem:[%s2506 + $0x58] sm:$0xff]
        %v2519 = vld [vmem:[%s2506 + $0x60] sm:$0xff]
        %v2520 = vld [vmem:[%s2506 + $0x68] sm:$0xff]
        %v2521 = vld [vmem:[%s2506 + $0x70] sm:$0xff]
        %v2522 = vld [vmem:[%s2506 + $0x78] sm:$0xff]
        %v2523 = vld [vmem:[%s14] sm:$0x1]
        %v2524 = vld [vmem:[#allocation15] sm:$0xff]
        %v2525 = vld [vmem:[#allocation15 + $0x8] sm:$0xff]
        %v2526 = vld [vmem:[#allocation15 + $0x10] sm:$0xff]
        %v2527 = vld [vmem:[#allocation15 + $0x18] sm:$0xff]
        %v2528 = vld [vmem:[#allocation15 + $0x20] sm:$0xff]
        %v2529 = vld [vmem:[#allocation15 + $0x28] sm:$0xff]
        %v2530 = vld [vmem:[#allocation15 + $0x30] sm:$0xff]
        %v2531 = vld [vmem:[#allocation15 + $0x38] sm:$0xff]
        %v2532 = vld [vmem:[#allocation15 + $0x40] sm:$0xff]
        %v2533 = vld [vmem:[#allocation15 + $0x48] sm:$0xff]
        %v2534 = vld [vmem:[#allocation15 + $0x50] sm:$0xff]
        %v2535 = vld [vmem:[#allocation15 + $0x58] sm:$0xff]
        %v2536 = vld [vmem:[#allocation15 + $0x60] sm:$0xff]
        %v2537 = vld [vmem:[#allocation15 + $0x68] sm:$0xff]
        %v2538 = vld [vmem:[#allocation15 + $0x70] sm:$0xff]
        %v2539 = vld [vmem:[#allocation15 + $0x78] sm:$0xff]
        %v2540 = vld [vmem:[%s16] sm:$0x1]
        %v2541 = vld [vmem:[#allocation3 + $0x8] sm:$0xc0]
        %v2542 = vld [vmem:[#allocation3 + $0x28] sm:$0x3f]
        %v2543 = vld [vmem:[#allocation3 + $0x20] sm:$0xff]
        %2544 = vmatprep.subr.mxu0 0.0
        %2545 = vmatpush1.msra.mxu0 %v2490
        %2546 = vmatprep.subr.mxu0 0.0
        %2547 = vmatpush1.msra.mxu0 %v2491
        %2548 = vmatprep.subr.mxu0 0.0
        %2549 = vmatpush1.msra.mxu0 %v2492
        %2550 = vmatprep.subr.mxu0 0.0
        %2551 = vmatpush1.msra.mxu0 %v2493
        %2552 = vmatprep.subr.mxu0 0.0
        %2553 = vmatpush1.msra.mxu0 %v2494
        %2554 = vmatprep.subr.mxu0 0.0
        %2555 = vmatpush1.msra.mxu0 %v2495
        %2556 = vmatprep.subr.mxu0 0.0
        %2557 = vmatpush1.msra.mxu0 %v2496
        %2558 = vmatprep.subr.mxu0 0.0
        %2559 = vmatpush1.msra.mxu0 %v2497
        %2560 = vmatprep.subr.mxu0 0.0
        %2561 = vmatpush1.msra.mxu0 %v2498
        %2562 = vmatprep.subr.mxu0 0.0
        %2563 = vmatpush1.msra.mxu0 %v2499
        %2564 = vmatprep.subr.mxu0 0.0
        %2565 = vmatpush1.msra.mxu0 %v2500
        %2566 = vmatprep.subr.mxu0 0.0
        %2567 = vmatpush1.msra.mxu0 %v2501
        %2568 = vmatprep.subr.mxu0 0.0
        %2569 = vmatpush1.msra.mxu0 %v2502
        %2570 = vmatprep.subr.mxu0 0.0
        %2571 = vmatpush1.msra.mxu0 %v2503
        %2572 = vmatprep.subr.mxu0 0.0
        %2573 = vmatpush1.msra.mxu0 %v2504
        %2574 = vmatprep.subr.mxu0 0.0
        %2575 = vmatpush1.msra.mxu0 %v2505
        %2576 = vmatprep.subr.mxu0 0.0
        %2577 = vmatpush1.msra.mxu0 0.0
        %2578 = vmatprep.subr.mxu0 0.0
        %2579 = vmatpush1.msra.mxu0 0.0
        %2580 = vmatprep.subr.mxu0 0.0
        %2581 = vmatpush1.msra.mxu0 0.0
        %2582 = vmatprep.subr.mxu0 0.0
        %2583 = vmatpush1.msra.mxu0 0.0
        %2584 = vmatprep.subr.mxu0 0.0
        %2585 = vmatpush1.msra.mxu0 0.0
        %2586 = vmatprep.subr.mxu0 0.0
        %2587 = vmatpush1.msra.mxu0 0.0
        %2588 = vmatprep.subr.mxu0 0.0
        %2589 = vmatpush1.msra.mxu0 0.0
        %2590 = vmatprep.subr.mxu0 0.0
        %2591 = vmatpush1.msra.mxu0 0.0
        %2592 = vmatprep.subr.mxu0 0.0
        %2593 = vmatpush1.msra.mxu0 0.0
        %2594 = vmatprep.subr.mxu0 0.0
        %2595 = vmatpush1.msra.mxu0 0.0
        %2596 = vmatprep.subr.mxu0 0.0
        %2597 = vmatpush1.msra.mxu0 0.0
        %2598 = vmatprep.subr.mxu0 0.0
        %2599 = vmatpush1.msra.mxu0 0.0
        %2600 = vmatprep.subr.mxu0 0.0
        %2601 = vmatpush1.msra.mxu0 0.0
        %2602 = vmatprep.subr.mxu0 0.0
        %2603 = vmatpush1.msra.mxu0 0.0
        %2604 = vmatprep.subr.mxu0 0.0
        %2605 = vmatpush1.msra.mxu0 0.0
        %2606 = vmatprep.subr.mxu0 0.0
        %2607 = vmatpush1.msra.mxu0 0.0
        %2608 = vmatprep.mubr.f32.mxu0 0.0
        %2609 = vmatmul.mubr.f32.gmra.mrb[0].mxu0 %v2543
        %v2610 = vpop.f32.mrb[0].mxu0
        %v2611 = vadd.f32 0.0, %v2610
        %v2612 = vpop.f32.mrb[0].mxu0
        %2613 = vdwg.mxu0
        %vm2616 = vcmask 1041408
        %v2617 = vrot.slane %v2541, 6
        %v2618 = vrot.slane %v2542, 6
        %v2619 = vsel %vm2616, %v2617, %v2618
        %2621 = vmatprep.subr.mxu0 0.0
        %2622 = vmatpush1.msra.mxu0 %v2473
        %2623 = vmatprep.subr.mxu0 0.0
        %2624 = vmatpush1.msra.mxu0 %v2474
        %2625 = vmatprep.subr.mxu0 0.0
        %2626 = vmatpush1.msra.mxu0 %v2475
        %2627 = vmatprep.subr.mxu0 0.0
        %2628 = vmatpush1.msra.mxu0 %v2476
        %2629 = vmatprep.subr.mxu0 0.0
        %2630 = vmatpush1.msra.mxu0 %v2477
        %2631 = vmatprep.subr.mxu0 0.0
        %2632 = vmatpush1.msra.mxu0 %v2478
        %2633 = vmatprep.subr.mxu0 0.0
        %2634 = vmatpush1.msra.mxu0 %v2479
        %2635 = vmatprep.subr.mxu0 0.0
        %2636 = vmatpush1.msra.mxu0 %v2480
        %2637 = vmatprep.subr.mxu0 0.0
        %2638 = vmatpush1.msra.mxu0 %v2481
        %2639 = vmatprep.subr.mxu0 0.0
        %2640 = vmatpush1.msra.mxu0 %v2482
        %2641 = vmatprep.subr.mxu0 0.0
        %2642 = vmatpush1.msra.mxu0 %v2483
        %2643 = vmatprep.subr.mxu0 0.0
        %2644 = vmatpush1.msra.mxu0 %v2484
        %2645 = vmatprep.subr.mxu0 0.0
        %2646 = vmatpush1.msra.mxu0 %v2485
        %2647 = vmatprep.subr.mxu0 0.0
        %2648 = vmatpush1.msra.mxu0 %v2486
        %2649 = vmatprep.subr.mxu0 0.0
        %2650 = vmatpush1.msra.mxu0 %v2487
        %2651 = vmatprep.subr.mxu0 0.0
        %2652 = vmatpush1.msra.mxu0 %v2488
        %2653 = vmatprep.subr.mxu0 0.0
        %2654 = vmatpush1.msra.mxu0 0.0
        %2655 = vmatprep.subr.mxu0 0.0
        %2656 = vmatpush1.msra.mxu0 0.0
        %2657 = vmatprep.subr.mxu0 0.0
        %2658 = vmatpush1.msra.mxu0 0.0
        %2659 = vmatprep.subr.mxu0 0.0
        %2660 = vmatpush1.msra.mxu0 0.0
        %2661 = vmatprep.subr.mxu0 0.0
        %2662 = vmatpush1.msra.mxu0 0.0
        %2663 = vmatprep.subr.mxu0 0.0
        %2664 = vmatpush1.msra.mxu0 0.0
        %2665 = vmatprep.subr.mxu0 0.0
        %2666 = vmatpush1.msra.mxu0 0.0
        %2667 = vmatprep.subr.mxu0 0.0
        %2668 = vmatpush1.msra.mxu0 0.0
        %2669 = vmatprep.subr.mxu0 0.0
        %2670 = vmatpush1.msra.mxu0 0.0
        %2671 = vmatprep.subr.mxu0 0.0
        %2672 = vmatpush1.msra.mxu0 0.0
        %2673 = vmatprep.subr.mxu0 0.0
        %2674 = vmatpush1.msra.mxu0 0.0
        %2675 = vmatprep.subr.mxu0 0.0
        %2676 = vmatpush1.msra.mxu0 0.0
        %2677 = vmatprep.subr.mxu0 0.0
        %2678 = vmatpush1.msra.mxu0 0.0
        %2679 = vmatprep.subr.mxu0 0.0
        %2680 = vmatpush1.msra.mxu0 0.0
        %2681 = vmatprep.subr.mxu0 0.0
        %2682 = vmatpush1.msra.mxu0 0.0
        %2683 = vmatprep.subr.mxu0 0.0
        %2684 = vmatpush1.msra.mxu0 0.0
        %2685 = vmatprep.mubr.f32.mxu0 0.0
        %2686 = vmatmul.mubr.f32.gmra.mrb[0].mxu0 %v2619
        %v2687 = vpop.f32.mrb[0].mxu0
        %v2688 = vadd.f32 %v2611, %v2687
        %v2689 = vpop.f32.mrb[0].mxu0
        %2690 = vdwg.mxu0
        %v2691 = vld [vmem:[#allocation3 + $0x28] sm:$0xfe]
        %v2692 = vld [vmem:[#allocation3 + $0x48] sm:$0x1]
        %v2695 = vrot.slane %v2691, 1
        %v2696 = vrot.slane %v2692, 1
        %v2697 = vsel %vm1236, %v2695, %v2696
        %2699 = vmatprep.subr.mxu0 0.0
        %2700 = vmatpush1.msra.mxu0 %v2507
        %2701 = vmatprep.subr.mxu0 0.0
        %2702 = vmatpush1.msra.mxu0 %v2508
        %2703 = vmatprep.subr.mxu0 0.0
        %2704 = vmatpush1.msra.mxu0 %v2509
        %2705 = vmatprep.subr.mxu0 0.0
        %2706 = vmatpush1.msra.mxu0 %v2510
        %2707 = vmatprep.subr.mxu0 0.0
        %2708 = vmatpush1.msra.mxu0 %v2511
        %2709 = vmatprep.subr.mxu0 0.0
        %2710 = vmatpush1.msra.mxu0 %v2512
        %2711 = vmatprep.subr.mxu0 0.0
        %2712 = vmatpush1.msra.mxu0 %v2513
        %2713 = vmatprep.subr.mxu0 0.0
        %2714 = vmatpush1.msra.mxu0 %v2514
        %2715 = vmatprep.subr.mxu0 0.0
        %2716 = vmatpush1.msra.mxu0 %v2515
        %2717 = vmatprep.subr.mxu0 0.0
        %2718 = vmatpush1.msra.mxu0 %v2516
        %2719 = vmatprep.subr.mxu0 0.0
        %2720 = vmatpush1.msra.mxu0 %v2517
        %2721 = vmatprep.subr.mxu0 0.0
        %2722 = vmatpush1.msra.mxu0 %v2518
        %2723 = vmatprep.subr.mxu0 0.0
        %2724 = vmatpush1.msra.mxu0 %v2519
        %2725 = vmatprep.subr.mxu0 0.0
        %2726 = vmatpush1.msra.mxu0 %v2520
        %2727 = vmatprep.subr.mxu0 0.0
        %2728 = vmatpush1.msra.mxu0 %v2521
        %2729 = vmatprep.subr.mxu0 0.0
        %2730 = vmatpush1.msra.mxu0 %v2522
        %2731 = vmatprep.subr.mxu0 0.0
        %2732 = vmatpush1.msra.mxu0 0.0
        %2733 = vmatprep.subr.mxu0 0.0
        %2734 = vmatpush1.msra.mxu0 0.0
        %2735 = vmatprep.subr.mxu0 0.0
        %2736 = vmatpush1.msra.mxu0 0.0
        %2737 = vmatprep.subr.mxu0 0.0
        %2738 = vmatpush1.msra.mxu0 0.0
        %2739 = vmatprep.subr.mxu0 0.0
        %2740 = vmatpush1.msra.mxu0 0.0
        %2741 = vmatprep.subr.mxu0 0.0
        %2742 = vmatpush1.msra.mxu0 0.0
        %2743 = vmatprep.subr.mxu0 0.0
        %2744 = vmatpush1.msra.mxu0 0.0
        %2745 = vmatprep.subr.mxu0 0.0
        %2746 = vmatpush1.msra.mxu0 0.0
        %2747 = vmatprep.subr.mxu0 0.0
        %2748 = vmatpush1.msra.mxu0 0.0
        %2749 = vmatprep.subr.mxu0 0.0
        %2750 = vmatpush1.msra.mxu0 0.0
        %2751 = vmatprep.subr.mxu0 0.0
        %2752 = vmatpush1.msra.mxu0 0.0
        %2753 = vmatprep.subr.mxu0 0.0
        %2754 = vmatpush1.msra.mxu0 0.0
        %2755 = vmatprep.subr.mxu0 0.0
        %2756 = vmatpush1.msra.mxu0 0.0
        %2757 = vmatprep.subr.mxu0 0.0
        %2758 = vmatpush1.msra.mxu0 0.0
        %2759 = vmatprep.subr.mxu0 0.0
        %2760 = vmatpush1.msra.mxu0 0.0
        %2761 = vmatprep.subr.mxu0 0.0
        %2762 = vmatpush1.msra.mxu0 0.0
        %2763 = vmatprep.mubr.f32.mxu0 0.0
        %2764 = vmatmul.mubr.f32.gmra.mrb[0].mxu0 %v2697
        %v2765 = vpop.f32.mrb[0].mxu0
        %v2766 = vadd.f32 0.0, %v2765
        %v2767 = vpop.f32.mrb[0].mxu0
        %2768 = vdwg.mxu0
        %v2769 = vadd.f32 %v2688, %v2766
        %v2771 = vlaneseq
        %v2772 = vshrl.u32 %v2771, 7
        %v2773 = vsub.s32 0, %v2772
        %v2774 = vrot.slane %v2523, %v2773
        %v2776 = vadd.f32 %v2769, %v2774
        %v2777 = vld [vmem:[#allocation3] sm:$0x80]
        %v2778 = vld [vmem:[#allocation3 + $0x20] sm:$0x7f]
        %v2779 = vld [vmem:[#allocation3 + $0x28] sm:$0xff]
        %2780 = vmatprep.subr.mxu0 0.0
        %2781 = vmatpush1.msra.mxu0 %v2490
        %2782 = vmatprep.subr.mxu0 0.0
        %2783 = vmatpush1.msra.mxu0 %v2491
        %2784 = vmatprep.subr.mxu0 0.0
        %2785 = vmatpush1.msra.mxu0 %v2492
        %2786 = vmatprep.subr.mxu0 0.0
        %2787 = vmatpush1.msra.mxu0 %v2493
        %2788 = vmatprep.subr.mxu0 0.0
        %2789 = vmatpush1.msra.mxu0 %v2494
        %2790 = vmatprep.subr.mxu0 0.0
        %2791 = vmatpush1.msra.mxu0 %v2495
        %2792 = vmatprep.subr.mxu0 0.0
        %2793 = vmatpush1.msra.mxu0 %v2496
        %2794 = vmatprep.subr.mxu0 0.0
        %2795 = vmatpush1.msra.mxu0 %v2497
        %2796 = vmatprep.subr.mxu0 0.0
        %2797 = vmatpush1.msra.mxu0 %v2498
        %2798 = vmatprep.subr.mxu0 0.0
        %2799 = vmatpush1.msra.mxu0 %v2499
        %2800 = vmatprep.subr.mxu0 0.0
        %2801 = vmatpush1.msra.mxu0 %v2500
        %2802 = vmatprep.subr.mxu0 0.0
        %2803 = vmatpush1.msra.mxu0 %v2501
        %2804 = vmatprep.subr.mxu0 0.0
        %2805 = vmatpush1.msra.mxu0 %v2502
        %2806 = vmatprep.subr.mxu0 0.0
        %2807 = vmatpush1.msra.mxu0 %v2503
        %2808 = vmatprep.subr.mxu0 0.0
        %2809 = vmatpush1.msra.mxu0 %v2504
        %2810 = vmatprep.subr.mxu0 0.0
        %2811 = vmatpush1.msra.mxu0 %v2505
        %2812 = vmatprep.subr.mxu0 0.0
        %2813 = vmatpush1.msra.mxu0 0.0
        %2814 = vmatprep.subr.mxu0 0.0
        %2815 = vmatpush1.msra.mxu0 0.0
        %2816 = vmatprep.subr.mxu0 0.0
        %2817 = vmatpush1.msra.mxu0 0.0
        %2818 = vmatprep.subr.mxu0 0.0
        %2819 = vmatpush1.msra.mxu0 0.0
        %2820 = vmatprep.subr.mxu0 0.0
        %2821 = vmatpush1.msra.mxu0 0.0
        %2822 = vmatprep.subr.mxu0 0.0
        %2823 = vmatpush1.msra.mxu0 0.0
        %2824 = vmatprep.subr.mxu0 0.0
        %2825 = vmatpush1.msra.mxu0 0.0
        %2826 = vmatprep.subr.mxu0 0.0
        %2827 = vmatpush1.msra.mxu0 0.0
        %2828 = vmatprep.subr.mxu0 0.0
        %2829 = vmatpush1.msra.mxu0 0.0
        %2830 = vmatprep.subr.mxu0 0.0
        %2831 = vmatpush1.msra.mxu0 0.0
        %2832 = vmatprep.subr.mxu0 0.0
        %2833 = vmatpush1.msra.mxu0 0.0
        %2834 = vmatprep.subr.mxu0 0.0
        %2835 = vmatpush1.msra.mxu0 0.0
        %2836 = vmatprep.subr.mxu0 0.0
        %2837 = vmatpush1.msra.mxu0 0.0
        %2838 = vmatprep.subr.mxu0 0.0
        %2839 = vmatpush1.msra.mxu0 0.0
        %2840 = vmatprep.subr.mxu0 0.0
        %2841 = vmatpush1.msra.mxu0 0.0
        %2842 = vmatprep.subr.mxu0 0.0
        %2843 = vmatpush1.msra.mxu0 0.0
        %2844 = vmatprep.mubr.f32.mxu0 0.0
        %2845 = vmatmul.mubr.f32.gmra.mrb[0].mxu0 %v2779
        %v2846 = vpop.f32.mrb[0].mxu0
        %v2847 = vadd.f32 0.0, %v2846
        %v2848 = vpop.f32.mrb[0].mxu0
        %2849 = vdwg.mxu0
        %v2852 = vrot.slane %v2777, 7
        %v2853 = vrot.slane %v2778, 7
        %v2854 = vsel %vm1157, %v2852, %v2853
        %2856 = vmatprep.subr.mxu0 0.0
        %2857 = vmatpush1.msra.mxu0 %v2473
        %2858 = vmatprep.subr.mxu0 0.0
        %2859 = vmatpush1.msra.mxu0 %v2474
        %2860 = vmatprep.subr.mxu0 0.0
        %2861 = vmatpush1.msra.mxu0 %v2475
        %2862 = vmatprep.subr.mxu0 0.0
        %2863 = vmatpush1.msra.mxu0 %v2476
        %2864 = vmatprep.subr.mxu0 0.0
        %2865 = vmatpush1.msra.mxu0 %v2477
        %2866 = vmatprep.subr.mxu0 0.0
        %2867 = vmatpush1.msra.mxu0 %v2478
        %2868 = vmatprep.subr.mxu0 0.0
        %2869 = vmatpush1.msra.mxu0 %v2479
        %2870 = vmatprep.subr.mxu0 0.0
        %2871 = vmatpush1.msra.mxu0 %v2480
        %2872 = vmatprep.subr.mxu0 0.0
        %2873 = vmatpush1.msra.mxu0 %v2481
        %2874 = vmatprep.subr.mxu0 0.0
        %2875 = vmatpush1.msra.mxu0 %v2482
        %2876 = vmatprep.subr.mxu0 0.0
        %2877 = vmatpush1.msra.mxu0 %v2483
        %2878 = vmatprep.subr.mxu0 0.0
        %2879 = vmatpush1.msra.mxu0 %v2484
        %2880 = vmatprep.subr.mxu0 0.0
        %2881 = vmatpush1.msra.mxu0 %v2485
        %2882 = vmatprep.subr.mxu0 0.0
        %2883 = vmatpush1.msra.mxu0 %v2486
        %2884 = vmatprep.subr.mxu0 0.0
        %2885 = vmatpush1.msra.mxu0 %v2487
        %2886 = vmatprep.subr.mxu0 0.0
        %2887 = vmatpush1.msra.mxu0 %v2488
        %2888 = vmatprep.subr.mxu0 0.0
        %2889 = vmatpush1.msra.mxu0 0.0
        %2890 = vmatprep.subr.mxu0 0.0
        %2891 = vmatpush1.msra.mxu0 0.0
        %2892 = vmatprep.subr.mxu0 0.0
        %2893 = vmatpush1.msra.mxu0 0.0
        %2894 = vmatprep.subr.mxu0 0.0
        %2895 = vmatpush1.msra.mxu0 0.0
        %2896 = vmatprep.subr.mxu0 0.0
        %2897 = vmatpush1.msra.mxu0 0.0
        %2898 = vmatprep.subr.mxu0 0.0
        %2899 = vmatpush1.msra.mxu0 0.0
        %2900 = vmatprep.subr.mxu0 0.0
        %2901 = vmatpush1.msra.mxu0 0.0
        %2902 = vmatprep.subr.mxu0 0.0
        %2903 = vmatpush1.msra.mxu0 0.0
        %2904 = vmatprep.subr.mxu0 0.0
        %2905 = vmatpush1.msra.mxu0 0.0
        %2906 = vmatprep.subr.mxu0 0.0
        %2907 = vmatpush1.msra.mxu0 0.0
        %2908 = vmatprep.subr.mxu0 0.0
        %2909 = vmatpush1.msra.mxu0 0.0
        %2910 = vmatprep.subr.mxu0 0.0
        %2911 = vmatpush1.msra.mxu0 0.0
        %2912 = vmatprep.subr.mxu0 0.0
        %2913 = vmatpush1.msra.mxu0 0.0
        %2914 = vmatprep.subr.mxu0 0.0
        %2915 = vmatpush1.msra.mxu0 0.0
        %2916 = vmatprep.subr.mxu0 0.0
        %2917 = vmatpush1.msra.mxu0 0.0
        %2918 = vmatprep.subr.mxu0 0.0
        %2919 = vmatpush1.msra.mxu0 0.0
        %2920 = vmatprep.mubr.f32.mxu0 0.0
        %2921 = vmatmul.mubr.f32.gmra.mrb[0].mxu0 %v2854
        %v2922 = vpop.f32.mrb[0].mxu0
        %v2923 = vadd.f32 %v2847, %v2922
        %v2924 = vpop.f32.mrb[0].mxu0
        %2925 = vdwg.mxu0
        %v2926 = vld [vmem:[#allocation3 + $0x20] sm:$0xfc]
        %v2927 = vld [vmem:[#allocation3 + $0x40] sm:$0x3]
        %vm2930 = vcmask 1045504
        %v2931 = vrot.slane %v2926, 2
        %v2932 = vrot.slane %v2927, 2
        %v2933 = vsel %vm2930, %v2931, %v2932
        %2935 = vmatprep.subr.mxu0 0.0
        %2936 = vmatpush1.msra.mxu0 %v2507
        %2937 = vmatprep.subr.mxu0 0.0
        %2938 = vmatpush1.msra.mxu0 %v2508
        %2939 = vmatprep.subr.mxu0 0.0
        %2940 = vmatpush1.msra.mxu0 %v2509
        %2941 = vmatprep.subr.mxu0 0.0
        %2942 = vmatpush1.msra.mxu0 %v2510
        %2943 = vmatprep.subr.mxu0 0.0
        %2944 = vmatpush1.msra.mxu0 %v2511
        %2945 = vmatprep.subr.mxu0 0.0
        %2946 = vmatpush1.msra.mxu0 %v2512
        %2947 = vmatprep.subr.mxu0 0.0
        %2948 = vmatpush1.msra.mxu0 %v2513
        %2949 = vmatprep.subr.mxu0 0.0
        %2950 = vmatpush1.msra.mxu0 %v2514
        %2951 = vmatprep.subr.mxu0 0.0
        %2952 = vmatpush1.msra.mxu0 %v2515
        %2953 = vmatprep.subr.mxu0 0.0
        %2954 = vmatpush1.msra.mxu0 %v2516
        %2955 = vmatprep.subr.mxu0 0.0
        %2956 = vmatpush1.msra.mxu0 %v2517
        %2957 = vmatprep.subr.mxu0 0.0
        %2958 = vmatpush1.msra.mxu0 %v2518
        %2959 = vmatprep.subr.mxu0 0.0
        %2960 = vmatpush1.msra.mxu0 %v2519
        %2961 = vmatprep.subr.mxu0 0.0
        %2962 = vmatpush1.msra.mxu0 %v2520
        %2963 = vmatprep.subr.mxu0 0.0
        %2964 = vmatpush1.msra.mxu0 %v2521
        %2965 = vmatprep.subr.mxu0 0.0
        %2966 = vmatpush1.msra.mxu0 %v2522
        %2967 = vmatprep.subr.mxu0 0.0
        %2968 = vmatpush1.msra.mxu0 0.0
        %2969 = vmatprep.subr.mxu0 0.0
        %2970 = vmatpush1.msra.mxu0 0.0
        %2971 = vmatprep.subr.mxu0 0.0
        %2972 = vmatpush1.msra.mxu0 0.0
        %2973 = vmatprep.subr.mxu0 0.0
        %2974 = vmatpush1.msra.mxu0 0.0
        %2975 = vmatprep.subr.mxu0 0.0
        %2976 = vmatpush1.msra.mxu0 0.0
        %2977 = vmatprep.subr.mxu0 0.0
        %2978 = vmatpush1.msra.mxu0 0.0
        %2979 = vmatprep.subr.mxu0 0.0
        %2980 = vmatpush1.msra.mxu0 0.0
        %2981 = vmatprep.subr.mxu0 0.0
        %2982 = vmatpush1.msra.mxu0 0.0
        %2983 = vmatprep.subr.mxu0 0.0
        %2984 = vmatpush1.msra.mxu0 0.0
        %2985 = vmatprep.subr.mxu0 0.0
        %2986 = vmatpush1.msra.mxu0 0.0
        %2987 = vmatprep.subr.mxu0 0.0
        %2988 = vmatpush1.msra.mxu0 0.0
        %2989 = vmatprep.subr.mxu0 0.0
        %2990 = vmatpush1.msra.mxu0 0.0
        %2991 = vmatprep.subr.mxu0 0.0
        %2992 = vmatpush1.msra.mxu0 0.0
        %2993 = vmatprep.subr.mxu0 0.0
        %2994 = vmatpush1.msra.mxu0 0.0
        %2995 = vmatprep.subr.mxu0 0.0
        %2996 = vmatpush1.msra.mxu0 0.0
        %2997 = vmatprep.subr.mxu0 0.0
        %2998 = vmatpush1.msra.mxu0 0.0
        %2999 = vmatprep.mubr.f32.mxu0 0.0
        %3000 = vmatmul.mubr.f32.gmra.mrb[0].mxu0 %v2933
        %v3001 = vpop.f32.mrb[0].mxu0
        %v3002 = vadd.f32 0.0, %v3001
        %v3003 = vpop.f32.mrb[0].mxu0
        %3004 = vdwg.mxu0
        %v3005 = vadd.f32 %v2923, %v3002
        %v3006 = vadd.f32 %v3005, %v2774
        %v3007 = vmax.f32 %v2776, 0.0
        %v3009 = vlaneseq
        %v3010 = vshrl.u32 %v3009, 7
        %v3011 = vsub.s32 0, %v3010
        %v3012 = vrot.slane %v2540, %v3011
        %3014 = vmatprep.subr.mxu0 0.0
        %3015 = vmatpush1.msra.mxu0 %v2524
        %3016 = vmatprep.subr.mxu0 0.0
        %3017 = vmatpush1.msra.mxu0 %v2525
        %3018 = vmatprep.subr.mxu0 0.0
        %3019 = vmatpush1.msra.mxu0 %v2526
        %3020 = vmatprep.subr.mxu0 0.0
        %3021 = vmatpush1.msra.mxu0 %v2527
        %3022 = vmatprep.subr.mxu0 0.0
        %3023 = vmatpush1.msra.mxu0 %v2528
        %3024 = vmatprep.subr.mxu0 0.0
        %3025 = vmatpush1.msra.mxu0 %v2529
        %3026 = vmatprep.subr.mxu0 0.0
        %3027 = vmatpush1.msra.mxu0 %v2530
        %3028 = vmatprep.subr.mxu0 0.0
        %3029 = vmatpush1.msra.mxu0 %v2531
        %3030 = vmatprep.subr.mxu0 0.0
        %3031 = vmatpush1.msra.mxu0 %v2532
        %3032 = vmatprep.subr.mxu0 0.0
        %3033 = vmatpush1.msra.mxu0 %v2533
        %3034 = vmatprep.subr.mxu0 0.0
        %3035 = vmatpush1.msra.mxu0 %v2534
        %3036 = vmatprep.subr.mxu0 0.0
        %3037 = vmatpush1.msra.mxu0 %v2535
        %3038 = vmatprep.subr.mxu0 0.0
        %3039 = vmatpush1.msra.mxu0 %v2536
        %3040 = vmatprep.subr.mxu0 0.0
        %3041 = vmatpush1.msra.mxu0 %v2537
        %3042 = vmatprep.subr.mxu0 0.0
        %3043 = vmatpush1.msra.mxu0 %v2538
        %3044 = vmatprep.subr.mxu0 0.0
        %3045 = vmatpush1.msra.mxu0 %v2539
        %3046 = vmatprep.subr.mxu0 0.0
        %3047 = vmatpush1.msra.mxu0 0.0
        %3048 = vmatprep.subr.mxu0 0.0
        %3049 = vmatpush1.msra.mxu0 0.0
        %3050 = vmatprep.subr.mxu0 0.0
        %3051 = vmatpush1.msra.mxu0 0.0
        %3052 = vmatprep.subr.mxu0 0.0
        %3053 = vmatpush1.msra.mxu0 0.0
        %3054 = vmatprep.subr.mxu0 0.0
        %3055 = vmatpush1.msra.mxu0 0.0
        %3056 = vmatprep.subr.mxu0 0.0
        %3057 = vmatpush1.msra.mxu0 0.0
        %3058 = vmatprep.subr.mxu0 0.0
        %3059 = vmatpush1.msra.mxu0 0.0
        %3060 = vmatprep.subr.mxu0 0.0
        %3061 = vmatpush1.msra.mxu0 0.0
        %3062 = vmatprep.subr.mxu0 0.0
        %3063 = vmatpush1.msra.mxu0 0.0
        %3064 = vmatprep.subr.mxu0 0.0
        %3065 = vmatpush1.msra.mxu0 0.0
        %3066 = vmatprep.subr.mxu0 0.0
        %3067 = vmatpush1.msra.mxu0 0.0
        %3068 = vmatprep.subr.mxu0 0.0
        %3069 = vmatpush1.msra.mxu0 0.0
        %3070 = vmatprep.subr.mxu0 0.0
        %3071 = vmatpush1.msra.mxu0 0.0
        %3072 = vmatprep.subr.mxu0 0.0
        %3073 = vmatpush1.msra.mxu0 0.0
        %3074 = vmatprep.subr.mxu0 0.0
        %3075 = vmatpush1.msra.mxu0 0.0
        %3076 = vmatprep.subr.mxu0 0.0
        %3077 = vmatpush1.msra.mxu0 0.0
        %3078 = vmatprep.mubr.f32.mxu0 0.0
        %3079 = vmatmul.mubr.f32.gmra.mrb[0].mxu0 %v3007
        %v3080 = vpop.f32.mrb[0].mxu0
        %v3081 = vadd.f32 %v3012, %v3080
        %v3082 = vpop.f32.mrb[0].mxu0
        %3083 = vdwg.mxu0
        %v3084 = vld [vmem:[#allocation2 + $0x20] sm:$0xff]
        %v3085 = vadd.f32 %v3081, %v3084
        %v3086 = vmax.f32 %v3006, 0.0
        %3087 = vmatprep.subr.mxu0 0.0
        %3088 = vmatpush1.msra.mxu0 %v2524
        %3089 = vmatprep.subr.mxu0 0.0
        %3090 = vmatpush1.msra.mxu0 %v2525
        %3091 = vmatprep.subr.mxu0 0.0
        %3092 = vmatpush1.msra.mxu0 %v2526
        %3093 = vmatprep.subr.mxu0 0.0
        %3094 = vmatpush1.msra.mxu0 %v2527
        %3095 = vmatprep.subr.mxu0 0.0
        %3096 = vmatpush1.msra.mxu0 %v2528
        %3097 = vmatprep.subr.mxu0 0.0
        %3098 = vmatpush1.msra.mxu0 %v2529
        %3099 = vmatprep.subr.mxu0 0.0
        %3100 = vmatpush1.msra.mxu0 %v2530
        %3101 = vmatprep.subr.mxu0 0.0
        %3102 = vmatpush1.msra.mxu0 %v2531
        %3103 = vmatprep.subr.mxu0 0.0
        %3104 = vmatpush1.msra.mxu0 %v2532
        %3105 = vmatprep.subr.mxu0 0.0
        %3106 = vmatpush1.msra.mxu0 %v2533
        %3107 = vmatprep.subr.mxu0 0.0
        %3108 = vmatpush1.msra.mxu0 %v2534
        %3109 = vmatprep.subr.mxu0 0.0
        %3110 = vmatpush1.msra.mxu0 %v2535
        %3111 = vmatprep.subr.mxu0 0.0
        %3112 = vmatpush1.msra.mxu0 %v2536
        %3113 = vmatprep.subr.mxu0 0.0
        %3114 = vmatpush1.msra.mxu0 %v2537
        %3115 = vmatprep.subr.mxu0 0.0
        %3116 = vmatpush1.msra.mxu0 %v2538
        %3117 = vmatprep.subr.mxu0 0.0
        %3118 = vmatpush1.msra.mxu0 %v2539
        %3119 = vmatprep.subr.mxu0 0.0
        %3120 = vmatpush1.msra.mxu0 0.0
        %3121 = vmatprep.subr.mxu0 0.0
        %3122 = vmatpush1.msra.mxu0 0.0
        %3123 = vmatprep.subr.mxu0 0.0
        %3124 = vmatpush1.msra.mxu0 0.0
        %3125 = vmatprep.subr.mxu0 0.0
        %3126 = vmatpush1.msra.mxu0 0.0
        %3127 = vmatprep.subr.mxu0 0.0
        %3128 = vmatpush1.msra.mxu0 0.0
        %3129 = vmatprep.subr.mxu0 0.0
        %3130 = vmatpush1.msra.mxu0 0.0
        %3131 = vmatprep.subr.mxu0 0.0
        %3132 = vmatpush1.msra.mxu0 0.0
        %3133 = vmatprep.subr.mxu0 0.0
        %3134 = vmatpush1.msra.mxu0 0.0
        %3135 = vmatprep.subr.mxu0 0.0
        %3136 = vmatpush1.msra.mxu0 0.0
        %3137 = vmatprep.subr.mxu0 0.0
        %3138 = vmatpush1.msra.mxu0 0.0
        %3139 = vmatprep.subr.mxu0 0.0
        %3140 = vmatpush1.msra.mxu0 0.0
        %3141 = vmatprep.subr.mxu0 0.0
        %3142 = vmatpush1.msra.mxu0 0.0
        %3143 = vmatprep.subr.mxu0 0.0
        %3144 = vmatpush1.msra.mxu0 0.0
        %3145 = vmatprep.subr.mxu0 0.0
        %3146 = vmatpush1.msra.mxu0 0.0
        %3147 = vmatprep.subr.mxu0 0.0
        %3148 = vmatpush1.msra.mxu0 0.0
        %3149 = vmatprep.subr.mxu0 0.0
        %3150 = vmatpush1.msra.mxu0 0.0
        %3151 = vmatprep.mubr.f32.mxu0 0.0
        %3152 = vmatmul.mubr.f32.gmra.mrb[0].mxu0 %v3086
        %v3153 = vpop.f32.mrb[0].mxu0
        %v3154 = vadd.f32 %v3012, %v3153
        %v3155 = vpop.f32.mrb[0].mxu0
        %3156 = vdwg.mxu0
        %v3157 = vld [vmem:[#allocation2 + $0x28] sm:$0xff]
        %v3158 = vadd.f32 %v3154, %v3157
        %3159 = vst [vmem:[#allocation2 + $0x20] sm:$0xff] %v3085
        %v3160 = vmax.f32 %v3085, 0.0
        %3161 = vst [vmem:[#allocation3 + $0x20] sm:$0xff] %v3160
        %3162 = vst [vmem:[#allocation2 + $0x28] sm:$0xff] %v3158
        %v3163 = vmax.f32 %v3158, 0.0
        %3164 = vst [vmem:[#allocation3 + $0x28] sm:$0xff] %v3163
        %v3165 = vld [vmem:[#allocation17] sm:$0xff]
        %v3166 = vld [vmem:[#allocation17 + $0x8] sm:$0xff]
        %v3167 = vld [vmem:[#allocation17 + $0x10] sm:$0xff]
        %v3168 = vld [vmem:[#allocation17 + $0x18] sm:$0xff]
        %v3169 = vld [vmem:[#allocation17 + $0x20] sm:$0xff]
        %v3170 = vld [vmem:[#allocation17 + $0x28] sm:$0xff]
        %v3171 = vld [vmem:[#allocation17 + $0x30] sm:$0xff]
        %v3172 = vld [vmem:[#allocation17 + $0x38] sm:$0xff]
        %v3173 = vld [vmem:[#allocation17 + $0x40] sm:$0xff]
        %v3174 = vld [vmem:[#allocation17 + $0x48] sm:$0xff]
        %v3175 = vld [vmem:[#allocation17 + $0x50] sm:$0xff]
        %v3176 = vld [vmem:[#allocation17 + $0x58] sm:$0xff]
        %v3177 = vld [vmem:[#allocation17 + $0x60] sm:$0xff]
        %v3178 = vld [vmem:[#allocation17 + $0x68] sm:$0xff]
        %v3179 = vld [vmem:[#allocation17 + $0x70] sm:$0xff]
        %v3180 = vld [vmem:[#allocation17 + $0x78] sm:$0xff]
        %s3181 = scalar_lea.vmem [#allocation17], 128
        %v3182 = vld [vmem:[%s3181] sm:$0xff]
        %v3183 = vld [vmem:[%s3181 + $0x8] sm:$0xff]
        %v3184 = vld [vmem:[%s3181 + $0x10] sm:$0xff]
        %v3185 = vld [vmem:[%s3181 + $0x18] sm:$0xff]
        %v3186 = vld [vmem:[%s3181 + $0x20] sm:$0xff]
        %v3187 = vld [vmem:[%s3181 + $0x28] sm:$0xff]
        %v3188 = vld [vmem:[%s3181 + $0x30] sm:$0xff]
        %v3189 = vld [vmem:[%s3181 + $0x38] sm:$0xff]
        %v3190 = vld [vmem:[%s3181 + $0x40] sm:$0xff]
        %v3191 = vld [vmem:[%s3181 + $0x48] sm:$0xff]
        %v3192 = vld [vmem:[%s3181 + $0x50] sm:$0xff]
        %v3193 = vld [vmem:[%s3181 + $0x58] sm:$0xff]
        %v3194 = vld [vmem:[%s3181 + $0x60] sm:$0xff]
        %v3195 = vld [vmem:[%s3181 + $0x68] sm:$0xff]
        %v3196 = vld [vmem:[%s3181 + $0x70] sm:$0xff]
        %v3197 = vld [vmem:[%s3181 + $0x78] sm:$0xff]
        %s3198 = scalar_lea.vmem [#allocation17], 256
        %v3199 = vld [vmem:[%s3198] sm:$0xff]
        %v3200 = vld [vmem:[%s3198 + $0x8] sm:$0xff]
        %v3201 = vld [vmem:[%s3198 + $0x10] sm:$0xff]
        %v3202 = vld [vmem:[%s3198 + $0x18] sm:$0xff]
        %v3203 = vld [vmem:[%s3198 + $0x20] sm:$0xff]
        %v3204 = vld [vmem:[%s3198 + $0x28] sm:$0xff]
        %v3205 = vld [vmem:[%s3198 + $0x30] sm:$0xff]
        %v3206 = vld [vmem:[%s3198 + $0x38] sm:$0xff]
        %v3207 = vld [vmem:[%s3198 + $0x40] sm:$0xff]
        %v3208 = vld [vmem:[%s3198 + $0x48] sm:$0xff]
        %v3209 = vld [vmem:[%s3198 + $0x50] sm:$0xff]
        %v3210 = vld [vmem:[%s3198 + $0x58] sm:$0xff]
        %v3211 = vld [vmem:[%s3198 + $0x60] sm:$0xff]
        %v3212 = vld [vmem:[%s3198 + $0x68] sm:$0xff]
        %v3213 = vld [vmem:[%s3198 + $0x70] sm:$0xff]
        %v3214 = vld [vmem:[%s3198 + $0x78] sm:$0xff]
        %v3215 = vld [vmem:[%s18] sm:$0x1]
        %v3216 = vld [vmem:[#allocation18] sm:$0xff]
        %v3217 = vld [vmem:[#allocation18 + $0x8] sm:$0xff]
        %v3218 = vld [vmem:[#allocation18 + $0x10] sm:$0xff]
        %v3219 = vld [vmem:[#allocation18 + $0x18] sm:$0xff]
        %v3220 = vld [vmem:[#allocation18 + $0x20] sm:$0xff]
        %v3221 = vld [vmem:[#allocation18 + $0x28] sm:$0xff]
        %v3222 = vld [vmem:[#allocation18 + $0x30] sm:$0xff]
        %v3223 = vld [vmem:[#allocation18 + $0x38] sm:$0xff]
        %v3224 = vld [vmem:[#allocation18 + $0x40] sm:$0xff]
        %v3225 = vld [vmem:[#allocation18 + $0x48] sm:$0xff]
        %v3226 = vld [vmem:[#allocation18 + $0x50] sm:$0xff]
        %v3227 = vld [vmem:[#allocation18 + $0x58] sm:$0xff]
        %v3228 = vld [vmem:[#allocation18 + $0x60] sm:$0xff]
        %v3229 = vld [vmem:[#allocation18 + $0x68] sm:$0xff]
        %v3230 = vld [vmem:[#allocation18 + $0x70] sm:$0xff]
        %v3231 = vld [vmem:[#allocation18 + $0x78] sm:$0xff]
        %v3232 = vld [vmem:[%s20] sm:$0x1]
        %v3233 = vld [vmem:[#allocation3 + $0x8] sm:$0x80]
        %v3234 = vld [vmem:[#allocation3 + $0x28] sm:$0x7f]
        %v3235 = vld [vmem:[#allocation3 + $0x20] sm:$0xff]
        %3236 = vmatprep.subr.mxu0 0.0
        %3237 = vmatpush1.msra.mxu0 %v3182
        %3238 = vmatprep.subr.mxu0 0.0
        %3239 = vmatpush1.msra.mxu0 %v3183
        %3240 = vmatprep.subr.mxu0 0.0
        %3241 = vmatpush1.msra.mxu0 %v3184
        %3242 = vmatprep.subr.mxu0 0.0
        %3243 = vmatpush1.msra.mxu0 %v3185
        %3244 = vmatprep.subr.mxu0 0.0
        %3245 = vmatpush1.msra.mxu0 %v3186
        %3246 = vmatprep.subr.mxu0 0.0
        %3247 = vmatpush1.msra.mxu0 %v3187
        %3248 = vmatprep.subr.mxu0 0.0
        %3249 = vmatpush1.msra.mxu0 %v3188
        %3250 = vmatprep.subr.mxu0 0.0
        %3251 = vmatpush1.msra.mxu0 %v3189
        %3252 = vmatprep.subr.mxu0 0.0
        %3253 = vmatpush1.msra.mxu0 %v3190
        %3254 = vmatprep.subr.mxu0 0.0
        %3255 = vmatpush1.msra.mxu0 %v3191
        %3256 = vmatprep.subr.mxu0 0.0
        %3257 = vmatpush1.msra.mxu0 %v3192
        %3258 = vmatprep.subr.mxu0 0.0
        %3259 = vmatpush1.msra.mxu0 %v3193
        %3260 = vmatprep.subr.mxu0 0.0
        %3261 = vmatpush1.msra.mxu0 %v3194
        %3262 = vmatprep.subr.mxu0 0.0
        %3263 = vmatpush1.msra.mxu0 %v3195
        %3264 = vmatprep.subr.mxu0 0.0
        %3265 = vmatpush1.msra.mxu0 %v3196
        %3266 = vmatprep.subr.mxu0 0.0
        %3267 = vmatpush1.msra.mxu0 %v3197
        %3268 = vmatprep.subr.mxu0 0.0
        %3269 = vmatpush1.msra.mxu0 0.0
        %3270 = vmatprep.subr.mxu0 0.0
        %3271 = vmatpush1.msra.mxu0 0.0
        %3272 = vmatprep.subr.mxu0 0.0
        %3273 = vmatpush1.msra.mxu0 0.0
        %3274 = vmatprep.subr.mxu0 0.0
        %3275 = vmatpush1.msra.mxu0 0.0
        %3276 = vmatprep.subr.mxu0 0.0
        %3277 = vmatpush1.msra.mxu0 0.0
        %3278 = vmatprep.subr.mxu0 0.0
        %3279 = vmatpush1.msra.mxu0 0.0
        %3280 = vmatprep.subr.mxu0 0.0
        %3281 = vmatpush1.msra.mxu0 0.0
        %3282 = vmatprep.subr.mxu0 0.0
        %3283 = vmatpush1.msra.mxu0 0.0
        %3284 = vmatprep.subr.mxu0 0.0
        %3285 = vmatpush1.msra.mxu0 0.0
        %3286 = vmatprep.subr.mxu0 0.0
        %3287 = vmatpush1.msra.mxu0 0.0
        %3288 = vmatprep.subr.mxu0 0.0
        %3289 = vmatpush1.msra.mxu0 0.0
        %3290 = vmatprep.subr.mxu0 0.0
        %3291 = vmatpush1.msra.mxu0 0.0
        %3292 = vmatprep.subr.mxu0 0.0
        %3293 = vmatpush1.msra.mxu0 0.0
        %3294 = vmatprep.subr.mxu0 0.0
        %3295 = vmatpush1.msra.mxu0 0.0
        %3296 = vmatprep.subr.mxu0 0.0
        %3297 = vmatpush1.msra.mxu0 0.0
        %3298 = vmatprep.subr.mxu0 0.0
        %3299 = vmatpush1.msra.mxu0 0.0
        %3300 = vmatprep.mubr.f32.mxu0 0.0
        %3301 = vmatmul.mubr.f32.gmra.mrb[0].mxu0 %v3235
        %v3302 = vpop.f32.mrb[0].mxu0
        %v3303 = vadd.f32 0.0, %v3302
        %v3304 = vpop.f32.mrb[0].mxu0
        %3305 = vdwg.mxu0
        %v3308 = vrot.slane %v3233, 7
        %v3309 = vrot.slane %v3234, 7
        %v3310 = vsel %vm1157, %v3308, %v3309
        %3312 = vmatprep.subr.mxu0 0.0
        %3313 = vmatpush1.msra.mxu0 %v3165
        %3314 = vmatprep.subr.mxu0 0.0
        %3315 = vmatpush1.msra.mxu0 %v3166
        %3316 = vmatprep.subr.mxu0 0.0
        %3317 = vmatpush1.msra.mxu0 %v3167
        %3318 = vmatprep.subr.mxu0 0.0
        %3319 = vmatpush1.msra.mxu0 %v3168
        %3320 = vmatprep.subr.mxu0 0.0
        %3321 = vmatpush1.msra.mxu0 %v3169
        %3322 = vmatprep.subr.mxu0 0.0
        %3323 = vmatpush1.msra.mxu0 %v3170
        %3324 = vmatprep.subr.mxu0 0.0
        %3325 = vmatpush1.msra.mxu0 %v3171
        %3326 = vmatprep.subr.mxu0 0.0
        %3327 = vmatpush1.msra.mxu0 %v3172
        %3328 = vmatprep.subr.mxu0 0.0
        %3329 = vmatpush1.msra.mxu0 %v3173
        %3330 = vmatprep.subr.mxu0 0.0
        %3331 = vmatpush1.msra.mxu0 %v3174
        %3332 = vmatprep.subr.mxu0 0.0
        %3333 = vmatpush1.msra.mxu0 %v3175
        %3334 = vmatprep.subr.mxu0 0.0
        %3335 = vmatpush1.msra.mxu0 %v3176
        %3336 = vmatprep.subr.mxu0 0.0
        %3337 = vmatpush1.msra.mxu0 %v3177
        %3338 = vmatprep.subr.mxu0 0.0
        %3339 = vmatpush1.msra.mxu0 %v3178
        %3340 = vmatprep.subr.mxu0 0.0
        %3341 = vmatpush1.msra.mxu0 %v3179
        %3342 = vmatprep.subr.mxu0 0.0
        %3343 = vmatpush1.msra.mxu0 %v3180
        %3344 = vmatprep.subr.mxu0 0.0
        %3345 = vmatpush1.msra.mxu0 0.0
        %3346 = vmatprep.subr.mxu0 0.0
        %3347 = vmatpush1.msra.mxu0 0.0
        %3348 = vmatprep.subr.mxu0 0.0
        %3349 = vmatpush1.msra.mxu0 0.0
        %3350 = vmatprep.subr.mxu0 0.0
        %3351 = vmatpush1.msra.mxu0 0.0
        %3352 = vmatprep.subr.mxu0 0.0
        %3353 = vmatpush1.msra.mxu0 0.0
        %3354 = vmatprep.subr.mxu0 0.0
        %3355 = vmatpush1.msra.mxu0 0.0
        %3356 = vmatprep.subr.mxu0 0.0
        %3357 = vmatpush1.msra.mxu0 0.0
        %3358 = vmatprep.subr.mxu0 0.0
        %3359 = vmatpush1.msra.mxu0 0.0
        %3360 = vmatprep.subr.mxu0 0.0
        %3361 = vmatpush1.msra.mxu0 0.0
        %3362 = vmatprep.subr.mxu0 0.0
        %3363 = vmatpush1.msra.mxu0 0.0
        %3364 = vmatprep.subr.mxu0 0.0
        %3365 = vmatpush1.msra.mxu0 0.0
        %3366 = vmatprep.subr.mxu0 0.0
        %3367 = vmatpush1.msra.mxu0 0.0
        %3368 = vmatprep.subr.mxu0 0.0
        %3369 = vmatpush1.msra.mxu0 0.0
        %3370 = vmatprep.subr.mxu0 0.0
        %3371 = vmatpush1.msra.mxu0 0.0
        %3372 = vmatprep.subr.mxu0 0.0
        %3373 = vmatpush1.msra.mxu0 0.0
        %3374 = vmatprep.subr.mxu0 0.0
        %3375 = vmatpush1.msra.mxu0 0.0
        %3376 = vmatprep.mubr.f32.mxu0 0.0
        %3377 = vmatmul.mubr.f32.gmra.mrb[0].mxu0 %v3310
        %v3378 = vpop.f32.mrb[0].mxu0
        %v3379 = vadd.f32 %v3303, %v3378
        %v3380 = vpop.f32.mrb[0].mxu0
        %3381 = vdwg.mxu0
        %v3382 = vld [vmem:[#allocation3 + $0x28] sm:$0xff]
        %3383 = vmatprep.subr.mxu0 0.0
        %3384 = vmatpush1.msra.mxu0 %v3199
        %3385 = vmatprep.subr.mxu0 0.0
        %3386 = vmatpush1.msra.mxu0 %v3200
        %3387 = vmatprep.subr.mxu0 0.0
        %3388 = vmatpush1.msra.mxu0 %v3201
        %3389 = vmatprep.subr.mxu0 0.0
        %3390 = vmatpush1.msra.mxu0 %v3202
        %3391 = vmatprep.subr.mxu0 0.0
        %3392 = vmatpush1.msra.mxu0 %v3203
        %3393 = vmatprep.subr.mxu0 0.0
        %3394 = vmatpush1.msra.mxu0 %v3204
        %3395 = vmatprep.subr.mxu0 0.0
        %3396 = vmatpush1.msra.mxu0 %v3205
        %3397 = vmatprep.subr.mxu0 0.0
        %3398 = vmatpush1.msra.mxu0 %v3206
        %3399 = vmatprep.subr.mxu0 0.0
        %3400 = vmatpush1.msra.mxu0 %v3207
        %3401 = vmatprep.subr.mxu0 0.0
        %3402 = vmatpush1.msra.mxu0 %v3208
        %3403 = vmatprep.subr.mxu0 0.0
        %3404 = vmatpush1.msra.mxu0 %v3209
        %3405 = vmatprep.subr.mxu0 0.0
        %3406 = vmatpush1.msra.mxu0 %v3210
        %3407 = vmatprep.subr.mxu0 0.0
        %3408 = vmatpush1.msra.mxu0 %v3211
        %3409 = vmatprep.subr.mxu0 0.0
        %3410 = vmatpush1.msra.mxu0 %v3212
        %3411 = vmatprep.subr.mxu0 0.0
        %3412 = vmatpush1.msra.mxu0 %v3213
        %3413 = vmatprep.subr.mxu0 0.0
        %3414 = vmatpush1.msra.mxu0 %v3214
        %3415 = vmatprep.subr.mxu0 0.0
        %3416 = vmatpush1.msra.mxu0 0.0
        %3417 = vmatprep.subr.mxu0 0.0
        %3418 = vmatpush1.msra.mxu0 0.0
        %3419 = vmatprep.subr.mxu0 0.0
        %3420 = vmatpush1.msra.mxu0 0.0
        %3421 = vmatprep.subr.mxu0 0.0
        %3422 = vmatpush1.msra.mxu0 0.0
        %3423 = vmatprep.subr.mxu0 0.0
        %3424 = vmatpush1.msra.mxu0 0.0
        %3425 = vmatprep.subr.mxu0 0.0
        %3426 = vmatpush1.msra.mxu0 0.0
        %3427 = vmatprep.subr.mxu0 0.0
        %3428 = vmatpush1.msra.mxu0 0.0
        %3429 = vmatprep.subr.mxu0 0.0
        %3430 = vmatpush1.msra.mxu0 0.0
        %3431 = vmatprep.subr.mxu0 0.0
        %3432 = vmatpush1.msra.mxu0 0.0
        %3433 = vmatprep.subr.mxu0 0.0
        %3434 = vmatpush1.msra.mxu0 0.0
        %3435 = vmatprep.subr.mxu0 0.0
        %3436 = vmatpush1.msra.mxu0 0.0
        %3437 = vmatprep.subr.mxu0 0.0
        %3438 = vmatpush1.msra.mxu0 0.0
        %3439 = vmatprep.subr.mxu0 0.0
        %3440 = vmatpush1.msra.mxu0 0.0
        %3441 = vmatprep.subr.mxu0 0.0
        %3442 = vmatpush1.msra.mxu0 0.0
        %3443 = vmatprep.subr.mxu0 0.0
        %3444 = vmatpush1.msra.mxu0 0.0
        %3445 = vmatprep.subr.mxu0 0.0
        %3446 = vmatpush1.msra.mxu0 0.0
        %3447 = vmatprep.mubr.f32.mxu0 0.0
        %3448 = vmatmul.mubr.f32.gmra.mrb[0].mxu0 %v3382
        %v3449 = vpop.f32.mrb[0].mxu0
        %v3450 = vadd.f32 0.0, %v3449
        %v3451 = vpop.f32.mrb[0].mxu0
        %3452 = vdwg.mxu0
        %v3453 = vadd.f32 %v3379, %v3450
        %v3455 = vlaneseq
        %v3456 = vshrl.u32 %v3455, 7
        %v3457 = vsub.s32 0, %v3456
        %v3458 = vrot.slane %v3215, %v3457
        %v3460 = vadd.f32 %v3453, %v3458
        %3461 = vmatprep.subr.mxu0 0.0
        %3462 = vmatpush1.msra.mxu0 %v3182
        %3463 = vmatprep.subr.mxu0 0.0
        %3464 = vmatpush1.msra.mxu0 %v3183
        %3465 = vmatprep.subr.mxu0 0.0
        %3466 = vmatpush1.msra.mxu0 %v3184
        %3467 = vmatprep.subr.mxu0 0.0
        %3468 = vmatpush1.msra.mxu0 %v3185
        %3469 = vmatprep.subr.mxu0 0.0
        %3470 = vmatpush1.msra.mxu0 %v3186
        %3471 = vmatprep.subr.mxu0 0.0
        %3472 = vmatpush1.msra.mxu0 %v3187
        %3473 = vmatprep.subr.mxu0 0.0
        %3474 = vmatpush1.msra.mxu0 %v3188
        %3475 = vmatprep.subr.mxu0 0.0
        %3476 = vmatpush1.msra.mxu0 %v3189
        %3477 = vmatprep.subr.mxu0 0.0
        %3478 = vmatpush1.msra.mxu0 %v3190
        %3479 = vmatprep.subr.mxu0 0.0
        %3480 = vmatpush1.msra.mxu0 %v3191
        %3481 = vmatprep.subr.mxu0 0.0
        %3482 = vmatpush1.msra.mxu0 %v3192
        %3483 = vmatprep.subr.mxu0 0.0
        %3484 = vmatpush1.msra.mxu0 %v3193
        %3485 = vmatprep.subr.mxu0 0.0
        %3486 = vmatpush1.msra.mxu0 %v3194
        %3487 = vmatprep.subr.mxu0 0.0
        %3488 = vmatpush1.msra.mxu0 %v3195
        %3489 = vmatprep.subr.mxu0 0.0
        %3490 = vmatpush1.msra.mxu0 %v3196
        %3491 = vmatprep.subr.mxu0 0.0
        %3492 = vmatpush1.msra.mxu0 %v3197
        %3493 = vmatprep.subr.mxu0 0.0
        %3494 = vmatpush1.msra.mxu0 0.0
        %3495 = vmatprep.subr.mxu0 0.0
        %3496 = vmatpush1.msra.mxu0 0.0
        %3497 = vmatprep.subr.mxu0 0.0
        %3498 = vmatpush1.msra.mxu0 0.0
        %3499 = vmatprep.subr.mxu0 0.0
        %3500 = vmatpush1.msra.mxu0 0.0
        %3501 = vmatprep.subr.mxu0 0.0
        %3502 = vmatpush1.msra.mxu0 0.0
        %3503 = vmatprep.subr.mxu0 0.0
        %3504 = vmatpush1.msra.mxu0 0.0
        %3505 = vmatprep.subr.mxu0 0.0
        %3506 = vmatpush1.msra.mxu0 0.0
        %3507 = vmatprep.subr.mxu0 0.0
        %3508 = vmatpush1.msra.mxu0 0.0
        %3509 = vmatprep.subr.mxu0 0.0
        %3510 = vmatpush1.msra.mxu0 0.0
        %3511 = vmatprep.subr.mxu0 0.0
        %3512 = vmatpush1.msra.mxu0 0.0
        %3513 = vmatprep.subr.mxu0 0.0
        %3514 = vmatpush1.msra.mxu0 0.0
        %3515 = vmatprep.subr.mxu0 0.0
        %3516 = vmatpush1.msra.mxu0 0.0
        %3517 = vmatprep.subr.mxu0 0.0
        %3518 = vmatpush1.msra.mxu0 0.0
        %3519 = vmatprep.subr.mxu0 0.0
        %3520 = vmatpush1.msra.mxu0 0.0
        %3521 = vmatprep.subr.mxu0 0.0
        %3522 = vmatpush1.msra.mxu0 0.0
        %3523 = vmatprep.subr.mxu0 0.0
        %3524 = vmatpush1.msra.mxu0 0.0
        %3525 = vmatprep.mubr.f32.mxu0 0.0
        %3526 = vmatmul.mubr.f32.gmra.mrb[0].mxu0 %v3382
        %v3527 = vpop.f32.mrb[0].mxu0
        %v3528 = vadd.f32 0.0, %v3527
        %v3529 = vpop.f32.mrb[0].mxu0
        %3530 = vdwg.mxu0
        %3531 = vmatprep.subr.mxu0 0.0
        %3532 = vmatpush1.msra.mxu0 %v3165
        %3533 = vmatprep.subr.mxu0 0.0
        %3534 = vmatpush1.msra.mxu0 %v3166
        %3535 = vmatprep.subr.mxu0 0.0
        %3536 = vmatpush1.msra.mxu0 %v3167
        %3537 = vmatprep.subr.mxu0 0.0
        %3538 = vmatpush1.msra.mxu0 %v3168
        %3539 = vmatprep.subr.mxu0 0.0
        %3540 = vmatpush1.msra.mxu0 %v3169
        %3541 = vmatprep.subr.mxu0 0.0
        %3542 = vmatpush1.msra.mxu0 %v3170
        %3543 = vmatprep.subr.mxu0 0.0
        %3544 = vmatpush1.msra.mxu0 %v3171
        %3545 = vmatprep.subr.mxu0 0.0
        %3546 = vmatpush1.msra.mxu0 %v3172
        %3547 = vmatprep.subr.mxu0 0.0
        %3548 = vmatpush1.msra.mxu0 %v3173
        %3549 = vmatprep.subr.mxu0 0.0
        %3550 = vmatpush1.msra.mxu0 %v3174
        %3551 = vmatprep.subr.mxu0 0.0
        %3552 = vmatpush1.msra.mxu0 %v3175
        %3553 = vmatprep.subr.mxu0 0.0
        %3554 = vmatpush1.msra.mxu0 %v3176
        %3555 = vmatprep.subr.mxu0 0.0
        %3556 = vmatpush1.msra.mxu0 %v3177
        %3557 = vmatprep.subr.mxu0 0.0
        %3558 = vmatpush1.msra.mxu0 %v3178
        %3559 = vmatprep.subr.mxu0 0.0
        %3560 = vmatpush1.msra.mxu0 %v3179
        %3561 = vmatprep.subr.mxu0 0.0
        %3562 = vmatpush1.msra.mxu0 %v3180
        %3563 = vmatprep.subr.mxu0 0.0
        %3564 = vmatpush1.msra.mxu0 0.0
        %3565 = vmatprep.subr.mxu0 0.0
        %3566 = vmatpush1.msra.mxu0 0.0
        %3567 = vmatprep.subr.mxu0 0.0
        %3568 = vmatpush1.msra.mxu0 0.0
        %3569 = vmatprep.subr.mxu0 0.0
        %3570 = vmatpush1.msra.mxu0 0.0
        %3571 = vmatprep.subr.mxu0 0.0
        %3572 = vmatpush1.msra.mxu0 0.0
        %3573 = vmatprep.subr.mxu0 0.0
        %3574 = vmatpush1.msra.mxu0 0.0
        %3575 = vmatprep.subr.mxu0 0.0
        %3576 = vmatpush1.msra.mxu0 0.0
        %3577 = vmatprep.subr.mxu0 0.0
        %3578 = vmatpush1.msra.mxu0 0.0
        %3579 = vmatprep.subr.mxu0 0.0
        %3580 = vmatpush1.msra.mxu0 0.0
        %3581 = vmatprep.subr.mxu0 0.0
        %3582 = vmatpush1.msra.mxu0 0.0
        %3583 = vmatprep.subr.mxu0 0.0
        %3584 = vmatpush1.msra.mxu0 0.0
        %3585 = vmatprep.subr.mxu0 0.0
        %3586 = vmatpush1.msra.mxu0 0.0
        %3587 = vmatprep.subr.mxu0 0.0
        %3588 = vmatpush1.msra.mxu0 0.0
        %3589 = vmatprep.subr.mxu0 0.0
        %3590 = vmatpush1.msra.mxu0 0.0
        %3591 = vmatprep.subr.mxu0 0.0
        %3592 = vmatpush1.msra.mxu0 0.0
        %3593 = vmatprep.subr.mxu0 0.0
        %3594 = vmatpush1.msra.mxu0 0.0
        %3595 = vmatprep.mubr.f32.mxu0 0.0
        %3596 = vmatmul.mubr.f32.gmra.mrb[0].mxu0 %v3235
        %v3597 = vpop.f32.mrb[0].mxu0
        %v3598 = vadd.f32 %v3528, %v3597
        %v3599 = vpop.f32.mrb[0].mxu0
        %3600 = vdwg.mxu0
        %v3601 = vld [vmem:[#allocation3 + $0x20] sm:$0xfe]
        %v3602 = vld [vmem:[#allocation3 + $0x40] sm:$0x1]
        %v3605 = vrot.slane %v3601, 1
        %v3606 = vrot.slane %v3602, 1
        %v3607 = vsel %vm1236, %v3605, %v3606
        %3609 = vmatprep.subr.mxu0 0.0
        %3610 = vmatpush1.msra.mxu0 %v3199
        %3611 = vmatprep.subr.mxu0 0.0
        %3612 = vmatpush1.msra.mxu0 %v3200
        %3613 = vmatprep.subr.mxu0 0.0
        %3614 = vmatpush1.msra.mxu0 %v3201
        %3615 = vmatprep.subr.mxu0 0.0
        %3616 = vmatpush1.msra.mxu0 %v3202
        %3617 = vmatprep.subr.mxu0 0.0
        %3618 = vmatpush1.msra.mxu0 %v3203
        %3619 = vmatprep.subr.mxu0 0.0
        %3620 = vmatpush1.msra.mxu0 %v3204
        %3621 = vmatprep.subr.mxu0 0.0
        %3622 = vmatpush1.msra.mxu0 %v3205
        %3623 = vmatprep.subr.mxu0 0.0
        %3624 = vmatpush1.msra.mxu0 %v3206
        %3625 = vmatprep.subr.mxu0 0.0
        %3626 = vmatpush1.msra.mxu0 %v3207
        %3627 = vmatprep.subr.mxu0 0.0
        %3628 = vmatpush1.msra.mxu0 %v3208
        %3629 = vmatprep.subr.mxu0 0.0
        %3630 = vmatpush1.msra.mxu0 %v3209
        %3631 = vmatprep.subr.mxu0 0.0
        %3632 = vmatpush1.msra.mxu0 %v3210
        %3633 = vmatprep.subr.mxu0 0.0
        %3634 = vmatpush1.msra.mxu0 %v3211
        %3635 = vmatprep.subr.mxu0 0.0
        %3636 = vmatpush1.msra.mxu0 %v3212
        %3637 = vmatprep.subr.mxu0 0.0
        %3638 = vmatpush1.msra.mxu0 %v3213
        %3639 = vmatprep.subr.mxu0 0.0
        %3640 = vmatpush1.msra.mxu0 %v3214
        %3641 = vmatprep.subr.mxu0 0.0
        %3642 = vmatpush1.msra.mxu0 0.0
        %3643 = vmatprep.subr.mxu0 0.0
        %3644 = vmatpush1.msra.mxu0 0.0
        %3645 = vmatprep.subr.mxu0 0.0
        %3646 = vmatpush1.msra.mxu0 0.0
        %3647 = vmatprep.subr.mxu0 0.0
        %3648 = vmatpush1.msra.mxu0 0.0
        %3649 = vmatprep.subr.mxu0 0.0
        %3650 = vmatpush1.msra.mxu0 0.0
        %3651 = vmatprep.subr.mxu0 0.0
        %3652 = vmatpush1.msra.mxu0 0.0
        %3653 = vmatprep.subr.mxu0 0.0
        %3654 = vmatpush1.msra.mxu0 0.0
        %3655 = vmatprep.subr.mxu0 0.0
        %3656 = vmatpush1.msra.mxu0 0.0
        %3657 = vmatprep.subr.mxu0 0.0
        %3658 = vmatpush1.msra.mxu0 0.0
        %3659 = vmatprep.subr.mxu0 0.0
        %3660 = vmatpush1.msra.mxu0 0.0
        %3661 = vmatprep.subr.mxu0 0.0
        %3662 = vmatpush1.msra.mxu0 0.0
        %3663 = vmatprep.subr.mxu0 0.0
        %3664 = vmatpush1.msra.mxu0 0.0
        %3665 = vmatprep.subr.mxu0 0.0
        %3666 = vmatpush1.msra.mxu0 0.0
        %3667 = vmatprep.subr.mxu0 0.0
        %3668 = vmatpush1.msra.mxu0 0.0
        %3669 = vmatprep.subr.mxu0 0.0
        %3670 = vmatpush1.msra.mxu0 0.0
        %3671 = vmatprep.subr.mxu0 0.0
        %3672 = vmatpush1.msra.mxu0 0.0
        %3673 = vmatprep.mubr.f32.mxu0 0.0
        %3674 = vmatmul.mubr.f32.gmra.mrb[0].mxu0 %v3607
        %v3675 = vpop.f32.mrb[0].mxu0
        %v3676 = vadd.f32 0.0, %v3675
        %v3677 = vpop.f32.mrb[0].mxu0
        %3678 = vdwg.mxu0
        %v3679 = vadd.f32 %v3598, %v3676
        %v3680 = vadd.f32 %v3679, %v3458
        %v3681 = vmax.f32 %v3460, 0.0
        %v3683 = vlaneseq
        %v3684 = vshrl.u32 %v3683, 7
        %v3685 = vsub.s32 0, %v3684
        %v3686 = vrot.slane %v3232, %v3685
        %3688 = vmatprep.subr.mxu0 0.0
        %3689 = vmatpush1.msra.mxu0 %v3216
        %3690 = vmatprep.subr.mxu0 0.0
        %3691 = vmatpush1.msra.mxu0 %v3217
        %3692 = vmatprep.subr.mxu0 0.0
        %3693 = vmatpush1.msra.mxu0 %v3218
        %3694 = vmatprep.subr.mxu0 0.0
        %3695 = vmatpush1.msra.mxu0 %v3219
        %3696 = vmatprep.subr.mxu0 0.0
        %3697 = vmatpush1.msra.mxu0 %v3220
        %3698 = vmatprep.subr.mxu0 0.0
        %3699 = vmatpush1.msra.mxu0 %v3221
        %3700 = vmatprep.subr.mxu0 0.0
        %3701 = vmatpush1.msra.mxu0 %v3222
        %3702 = vmatprep.subr.mxu0 0.0
        %3703 = vmatpush1.msra.mxu0 %v3223
        %3704 = vmatprep.subr.mxu0 0.0
        %3705 = vmatpush1.msra.mxu0 %v3224
        %3706 = vmatprep.subr.mxu0 0.0
        %3707 = vmatpush1.msra.mxu0 %v3225
        %3708 = vmatprep.subr.mxu0 0.0
        %3709 = vmatpush1.msra.mxu0 %v3226
        %3710 = vmatprep.subr.mxu0 0.0
        %3711 = vmatpush1.msra.mxu0 %v3227
        %3712 = vmatprep.subr.mxu0 0.0
        %3713 = vmatpush1.msra.mxu0 %v3228
        %3714 = vmatprep.subr.mxu0 0.0
        %3715 = vmatpush1.msra.mxu0 %v3229
        %3716 = vmatprep.subr.mxu0 0.0
        %3717 = vmatpush1.msra.mxu0 %v3230
        %3718 = vmatprep.subr.mxu0 0.0
        %3719 = vmatpush1.msra.mxu0 %v3231
        %3720 = vmatprep.subr.mxu0 0.0
        %3721 = vmatpush1.msra.mxu0 0.0
        %3722 = vmatprep.subr.mxu0 0.0
        %3723 = vmatpush1.msra.mxu0 0.0
        %3724 = vmatprep.subr.mxu0 0.0
        %3725 = vmatpush1.msra.mxu0 0.0
        %3726 = vmatprep.subr.mxu0 0.0
        %3727 = vmatpush1.msra.mxu0 0.0
        %3728 = vmatprep.subr.mxu0 0.0
        %3729 = vmatpush1.msra.mxu0 0.0
        %3730 = vmatprep.subr.mxu0 0.0
        %3731 = vmatpush1.msra.mxu0 0.0
        %3732 = vmatprep.subr.mxu0 0.0
        %3733 = vmatpush1.msra.mxu0 0.0
        %3734 = vmatprep.subr.mxu0 0.0
        %3735 = vmatpush1.msra.mxu0 0.0
        %3736 = vmatprep.subr.mxu0 0.0
        %3737 = vmatpush1.msra.mxu0 0.0
        %3738 = vmatprep.subr.mxu0 0.0
        %3739 = vmatpush1.msra.mxu0 0.0
        %3740 = vmatprep.subr.mxu0 0.0
        %3741 = vmatpush1.msra.mxu0 0.0
        %3742 = vmatprep.subr.mxu0 0.0
        %3743 = vmatpush1.msra.mxu0 0.0
        %3744 = vmatprep.subr.mxu0 0.0
        %3745 = vmatpush1.msra.mxu0 0.0
        %3746 = vmatprep.subr.mxu0 0.0
        %3747 = vmatpush1.msra.mxu0 0.0
        %3748 = vmatprep.subr.mxu0 0.0
        %3749 = vmatpush1.msra.mxu0 0.0
        %3750 = vmatprep.subr.mxu0 0.0
        %3751 = vmatpush1.msra.mxu0 0.0
        %3752 = vmatprep.mubr.f32.mxu0 0.0
        %3753 = vmatmul.mubr.f32.gmra.mrb[0].mxu0 %v3681
        %v3754 = vpop.f32.mrb[0].mxu0
        %v3755 = vadd.f32 %v3686, %v3754
        %v3756 = vpop.f32.mrb[0].mxu0
        %3757 = vdwg.mxu0
        %v3758 = vld [vmem:[#allocation2 + $0x20] sm:$0xff]
        %v3759 = vadd.f32 %v3755, %v3758
        %v3760 = vmax.f32 %v3680, 0.0
        %3761 = vmatprep.subr.mxu0 0.0
        %3762 = vmatpush1.msra.mxu0 %v3216
        %3763 = vmatprep.subr.mxu0 0.0
        %3764 = vmatpush1.msra.mxu0 %v3217
        %3765 = vmatprep.subr.mxu0 0.0
        %3766 = vmatpush1.msra.mxu0 %v3218
        %3767 = vmatprep.subr.mxu0 0.0
        %3768 = vmatpush1.msra.mxu0 %v3219
        %3769 = vmatprep.subr.mxu0 0.0
        %3770 = vmatpush1.msra.mxu0 %v3220
        %3771 = vmatprep.subr.mxu0 0.0
        %3772 = vmatpush1.msra.mxu0 %v3221
        %3773 = vmatprep.subr.mxu0 0.0
        %3774 = vmatpush1.msra.mxu0 %v3222
        %3775 = vmatprep.subr.mxu0 0.0
        %3776 = vmatpush1.msra.mxu0 %v3223
        %3777 = vmatprep.subr.mxu0 0.0
        %3778 = vmatpush1.msra.mxu0 %v3224
        %3779 = vmatprep.subr.mxu0 0.0
        %3780 = vmatpush1.msra.mxu0 %v3225
        %3781 = vmatprep.subr.mxu0 0.0
        %3782 = vmatpush1.msra.mxu0 %v3226
        %3783 = vmatprep.subr.mxu0 0.0
        %3784 = vmatpush1.msra.mxu0 %v3227
        %3785 = vmatprep.subr.mxu0 0.0
        %3786 = vmatpush1.msra.mxu0 %v3228
        %3787 = vmatprep.subr.mxu0 0.0
        %3788 = vmatpush1.msra.mxu0 %v3229
        %3789 = vmatprep.subr.mxu0 0.0
        %3790 = vmatpush1.msra.mxu0 %v3230
        %3791 = vmatprep.subr.mxu0 0.0
        %3792 = vmatpush1.msra.mxu0 %v3231
        %3793 = vmatprep.subr.mxu0 0.0
        %3794 = vmatpush1.msra.mxu0 0.0
        %3795 = vmatprep.subr.mxu0 0.0
        %3796 = vmatpush1.msra.mxu0 0.0
        %3797 = vmatprep.subr.mxu0 0.0
        %3798 = vmatpush1.msra.mxu0 0.0
        %3799 = vmatprep.subr.mxu0 0.0
        %3800 = vmatpush1.msra.mxu0 0.0
        %3801 = vmatprep.subr.mxu0 0.0
        %3802 = vmatpush1.msra.mxu0 0.0
        %3803 = vmatprep.subr.mxu0 0.0
        %3804 = vmatpush1.msra.mxu0 0.0
        %3805 = vmatprep.subr.mxu0 0.0
        %3806 = vmatpush1.msra.mxu0 0.0
        %3807 = vmatprep.subr.mxu0 0.0
        %3808 = vmatpush1.msra.mxu0 0.0
        %3809 = vmatprep.subr.mxu0 0.0
        %3810 = vmatpush1.msra.mxu0 0.0
        %3811 = vmatprep.subr.mxu0 0.0
        %3812 = vmatpush1.msra.mxu0 0.0
        %3813 = vmatprep.subr.mxu0 0.0
        %3814 = vmatpush1.msra.mxu0 0.0
        %3815 = vmatprep.subr.mxu0 0.0
        %3816 = vmatpush1.msra.mxu0 0.0
        %3817 = vmatprep.subr.mxu0 0.0
        %3818 = vmatpush1.msra.mxu0 0.0
        %3819 = vmatprep.subr.mxu0 0.0
        %3820 = vmatpush1.msra.mxu0 0.0
        %3821 = vmatprep.subr.mxu0 0.0
        %3822 = vmatpush1.msra.mxu0 0.0
        %3823 = vmatprep.subr.mxu0 0.0
        %3824 = vmatpush1.msra.mxu0 0.0
        %3825 = vmatprep.mubr.f32.mxu0 0.0
        %3826 = vmatmul.mubr.f32.gmra.mrb[0].mxu0 %v3760
        %v3827 = vpop.f32.mrb[0].mxu0
        %v3828 = vadd.f32 %v3686, %v3827
        %v3829 = vpop.f32.mrb[0].mxu0
        %3830 = vdwg.mxu0
        %v3831 = vld [vmem:[#allocation2 + $0x28] sm:$0xff]
        %v3832 = vadd.f32 %v3828, %v3831
        %3833 = vst [vmem:[#allocation2 + $0x20] sm:$0xff] %v3759
        %v3834 = vmax.f32 %v3759, 0.0
        %3835 = vst [vmem:[#allocation3 + $0x20] sm:$0xff] %v3834
        %3836 = vst [vmem:[#allocation2 + $0x28] sm:$0xff] %v3832
        %v3837 = vmax.f32 %v3832, 0.0
        %3838 = vst [vmem:[#allocation3 + $0x28] sm:$0xff] %v3837
        %v3839 = vld [vmem:[#allocation20] sm:$0xff]
        %v3840 = vld [vmem:[#allocation20 + $0x8] sm:$0xff]
        %v3841 = vld [vmem:[#allocation20 + $0x10] sm:$0xff]
        %v3842 = vld [vmem:[#allocation20 + $0x18] sm:$0xff]
        %v3843 = vld [vmem:[#allocation20 + $0x20] sm:$0xff]
        %v3844 = vld [vmem:[#allocation20 + $0x28] sm:$0xff]
        %v3845 = vld [vmem:[#allocation20 + $0x30] sm:$0xff]
        %v3846 = vld [vmem:[#allocation20 + $0x38] sm:$0xff]
        %v3847 = vld [vmem:[#allocation20 + $0x40] sm:$0xff]
        %v3848 = vld [vmem:[#allocation20 + $0x48] sm:$0xff]
        %v3849 = vld [vmem:[#allocation20 + $0x50] sm:$0xff]
        %v3850 = vld [vmem:[#allocation20 + $0x58] sm:$0xff]
        %v3851 = vld [vmem:[#allocation20 + $0x60] sm:$0xff]
        %v3852 = vld [vmem:[#allocation20 + $0x68] sm:$0xff]
        %v3853 = vld [vmem:[#allocation20 + $0x70] sm:$0xff]
        %v3854 = vld [vmem:[#allocation20 + $0x78] sm:$0xff]
        %s3855 = scalar_lea.vmem [#allocation20], 128
        %v3856 = vld [vmem:[%s3855] sm:$0xff]
        %v3857 = vld [vmem:[%s3855 + $0x8] sm:$0xff]
        %v3858 = vld [vmem:[%s3855 + $0x10] sm:$0xff]
        %v3859 = vld [vmem:[%s3855 + $0x18] sm:$0xff]
        %v3860 = vld [vmem:[%s3855 + $0x20] sm:$0xff]
        %v3861 = vld [vmem:[%s3855 + $0x28] sm:$0xff]
        %v3862 = vld [vmem:[%s3855 + $0x30] sm:$0xff]
        %v3863 = vld [vmem:[%s3855 + $0x38] sm:$0xff]
        %v3864 = vld [vmem:[%s3855 + $0x40] sm:$0xff]
        %v3865 = vld [vmem:[%s3855 + $0x48] sm:$0xff]
        %v3866 = vld [vmem:[%s3855 + $0x50] sm:$0xff]
        %v3867 = vld [vmem:[%s3855 + $0x58] sm:$0xff]
        %v3868 = vld [vmem:[%s3855 + $0x60] sm:$0xff]
        %v3869 = vld [vmem:[%s3855 + $0x68] sm:$0xff]
        %v3870 = vld [vmem:[%s3855 + $0x70] sm:$0xff]
        %v3871 = vld [vmem:[%s3855 + $0x78] sm:$0xff]
        %s3872 = scalar_lea.vmem [#allocation20], 256
        %v3873 = vld [vmem:[%s3872] sm:$0xff]
        %v3874 = vld [vmem:[%s3872 + $0x8] sm:$0xff]
        %v3875 = vld [vmem:[%s3872 + $0x10] sm:$0xff]
        %v3876 = vld [vmem:[%s3872 + $0x18] sm:$0xff]
        %v3877 = vld [vmem:[%s3872 + $0x20] sm:$0xff]
        %v3878 = vld [vmem:[%s3872 + $0x28] sm:$0xff]
        %v3879 = vld [vmem:[%s3872 + $0x30] sm:$0xff]
        %v3880 = vld [vmem:[%s3872 + $0x38] sm:$0xff]
        %v3881 = vld [vmem:[%s3872 + $0x40] sm:$0xff]
        %v3882 = vld [vmem:[%s3872 + $0x48] sm:$0xff]
        %v3883 = vld [vmem:[%s3872 + $0x50] sm:$0xff]
        %v3884 = vld [vmem:[%s3872 + $0x58] sm:$0xff]
        %v3885 = vld [vmem:[%s3872 + $0x60] sm:$0xff]
        %v3886 = vld [vmem:[%s3872 + $0x68] sm:$0xff]
        %v3887 = vld [vmem:[%s3872 + $0x70] sm:$0xff]
        %v3888 = vld [vmem:[%s3872 + $0x78] sm:$0xff]
        %s3889 = scalar_lea.vmem [#allocation20], 384
        %v3890 = vld [vmem:[%s3889] sm:$0xff]
        %v3891 = vld [vmem:[%s3889 + $0x8] sm:$0xff]
        %v3892 = vld [vmem:[%s3889 + $0x10] sm:$0xff]
        %v3893 = vld [vmem:[%s3889 + $0x18] sm:$0xff]
        %v3894 = vld [vmem:[%s3889 + $0x20] sm:$0xff]
        %v3895 = vld [vmem:[%s3889 + $0x28] sm:$0xff]
        %v3896 = vld [vmem:[%s3889 + $0x30] sm:$0xff]
        %v3897 = vld [vmem:[%s3889 + $0x38] sm:$0xff]
        %v3898 = vld [vmem:[%s3889 + $0x40] sm:$0xff]
        %v3899 = vld [vmem:[%s3889 + $0x48] sm:$0xff]
        %v3900 = vld [vmem:[%s3889 + $0x50] sm:$0xff]
        %v3901 = vld [vmem:[%s3889 + $0x58] sm:$0xff]
        %v3902 = vld [vmem:[%s3889 + $0x60] sm:$0xff]
        %v3903 = vld [vmem:[%s3889 + $0x68] sm:$0xff]
        %v3904 = vld [vmem:[%s3889 + $0x70] sm:$0xff]
        %v3905 = vld [vmem:[%s3889 + $0x78] sm:$0xff]
        %v3906 = vld [vmem:[%s22] sm:$0x1]
        %v3907 = vld [vmem:[#allocation2 + $0x8] sm:$0x80]
        %v3908 = vld [vmem:[#allocation2 + $0x28] sm:$0x7f]
        %v3909 = vld [vmem:[#allocation2 + $0x20] sm:$0xff]
        %3910 = vmatprep.subr.mxu0 0.0
        %3911 = vmatpush1.msra.mxu0 %v3856
        %3912 = vmatprep.subr.mxu0 0.0
        %3913 = vmatpush1.msra.mxu0 %v3857
        %3914 = vmatprep.subr.mxu0 0.0
        %3915 = vmatpush1.msra.mxu0 %v3858
        %3916 = vmatprep.subr.mxu0 0.0
        %3917 = vmatpush1.msra.mxu0 %v3859
        %3918 = vmatprep.subr.mxu0 0.0
        %3919 = vmatpush1.msra.mxu0 %v3860
        %3920 = vmatprep.subr.mxu0 0.0
        %3921 = vmatpush1.msra.mxu0 %v3861
        %3922 = vmatprep.subr.mxu0 0.0
        %3923 = vmatpush1.msra.mxu0 %v3862
        %3924 = vmatprep.subr.mxu0 0.0
        %3925 = vmatpush1.msra.mxu0 %v3863
        %3926 = vmatprep.subr.mxu0 0.0
        %3927 = vmatpush1.msra.mxu0 %v3864
        %3928 = vmatprep.subr.mxu0 0.0
        %3929 = vmatpush1.msra.mxu0 %v3865
        %3930 = vmatprep.subr.mxu0 0.0
        %3931 = vmatpush1.msra.mxu0 %v3866
        %3932 = vmatprep.subr.mxu0 0.0
        %3933 = vmatpush1.msra.mxu0 %v3867
        %3934 = vmatprep.subr.mxu0 0.0
        %3935 = vmatpush1.msra.mxu0 %v3868
        %3936 = vmatprep.subr.mxu0 0.0
        %3937 = vmatpush1.msra.mxu0 %v3869
        %3938 = vmatprep.subr.mxu0 0.0
        %3939 = vmatpush1.msra.mxu0 %v3870
        %3940 = vmatprep.subr.mxu0 0.0
        %3941 = vmatpush1.msra.mxu0 %v3871
        %3942 = vmatprep.subr.mxu0 0.0
        %3943 = vmatpush1.msra.mxu0 0.0
        %3944 = vmatprep.subr.mxu0 0.0
        %3945 = vmatpush1.msra.mxu0 0.0
        %3946 = vmatprep.subr.mxu0 0.0
        %3947 = vmatpush1.msra.mxu0 0.0
        %3948 = vmatprep.subr.mxu0 0.0
        %3949 = vmatpush1.msra.mxu0 0.0
        %3950 = vmatprep.subr.mxu0 0.0
        %3951 = vmatpush1.msra.mxu0 0.0
        %3952 = vmatprep.subr.mxu0 0.0
        %3953 = vmatpush1.msra.mxu0 0.0
        %3954 = vmatprep.subr.mxu0 0.0
        %3955 = vmatpush1.msra.mxu0 0.0
        %3956 = vmatprep.subr.mxu0 0.0
        %3957 = vmatpush1.msra.mxu0 0.0
        %3958 = vmatprep.subr.mxu0 0.0
        %3959 = vmatpush1.msra.mxu0 0.0
        %3960 = vmatprep.subr.mxu0 0.0
        %3961 = vmatpush1.msra.mxu0 0.0
        %3962 = vmatprep.subr.mxu0 0.0
        %3963 = vmatpush1.msra.mxu0 0.0
        %3964 = vmatprep.subr.mxu0 0.0
        %3965 = vmatpush1.msra.mxu0 0.0
        %3966 = vmatprep.subr.mxu0 0.0
        %3967 = vmatpush1.msra.mxu0 0.0
        %3968 = vmatprep.subr.mxu0 0.0
        %3969 = vmatpush1.msra.mxu0 0.0
        %3970 = vmatprep.subr.mxu0 0.0
        %3971 = vmatpush1.msra.mxu0 0.0
        %3972 = vmatprep.subr.mxu0 0.0
        %3973 = vmatpush1.msra.mxu0 0.0
        %3974 = vmatprep.mubr.f32.mxu0 0.0
        %3975 = vmatmul.mubr.f32.gmra.mrb[0].mxu0 %v3909
        %v3976 = vpop.f32.mrb[0].mxu0
        %v3977 = vadd.f32 0.0, %v3976
        %v3978 = vpop.f32.mrb[0].mxu0
        %3979 = vdwg.mxu0
        %v3982 = vrot.slane %v3907, 7
        %v3983 = vrot.slane %v3908, 7
        %v3984 = vsel %vm1157, %v3982, %v3983
        %3986 = vmatprep.subr.mxu0 0.0
        %3987 = vmatpush1.msra.mxu0 %v3839
        %3988 = vmatprep.subr.mxu0 0.0
        %3989 = vmatpush1.msra.mxu0 %v3840
        %3990 = vmatprep.subr.mxu0 0.0
        %3991 = vmatpush1.msra.mxu0 %v3841
        %3992 = vmatprep.subr.mxu0 0.0
        %3993 = vmatpush1.msra.mxu0 %v3842
        %3994 = vmatprep.subr.mxu0 0.0
        %3995 = vmatpush1.msra.mxu0 %v3843
        %3996 = vmatprep.subr.mxu0 0.0
        %3997 = vmatpush1.msra.mxu0 %v3844
        %3998 = vmatprep.subr.mxu0 0.0
        %3999 = vmatpush1.msra.mxu0 %v3845
        %4000 = vmatprep.subr.mxu0 0.0
        %4001 = vmatpush1.msra.mxu0 %v3846
        %4002 = vmatprep.subr.mxu0 0.0
        %4003 = vmatpush1.msra.mxu0 %v3847
        %4004 = vmatprep.subr.mxu0 0.0
        %4005 = vmatpush1.msra.mxu0 %v3848
        %4006 = vmatprep.subr.mxu0 0.0
        %4007 = vmatpush1.msra.mxu0 %v3849
        %4008 = vmatprep.subr.mxu0 0.0
        %4009 = vmatpush1.msra.mxu0 %v3850
        %4010 = vmatprep.subr.mxu0 0.0
        %4011 = vmatpush1.msra.mxu0 %v3851
        %4012 = vmatprep.subr.mxu0 0.0
        %4013 = vmatpush1.msra.mxu0 %v3852
        %4014 = vmatprep.subr.mxu0 0.0
        %4015 = vmatpush1.msra.mxu0 %v3853
        %4016 = vmatprep.subr.mxu0 0.0
        %4017 = vmatpush1.msra.mxu0 %v3854
        %4018 = vmatprep.subr.mxu0 0.0
        %4019 = vmatpush1.msra.mxu0 0.0
        %4020 = vmatprep.subr.mxu0 0.0
        %4021 = vmatpush1.msra.mxu0 0.0
        %4022 = vmatprep.subr.mxu0 0.0
        %4023 = vmatpush1.msra.mxu0 0.0
        %4024 = vmatprep.subr.mxu0 0.0
        %4025 = vmatpush1.msra.mxu0 0.0
        %4026 = vmatprep.subr.mxu0 0.0
        %4027 = vmatpush1.msra.mxu0 0.0
        %4028 = vmatprep.subr.mxu0 0.0
        %4029 = vmatpush1.msra.mxu0 0.0
        %4030 = vmatprep.subr.mxu0 0.0
        %4031 = vmatpush1.msra.mxu0 0.0
        %4032 = vmatprep.subr.mxu0 0.0
        %4033 = vmatpush1.msra.mxu0 0.0
        %4034 = vmatprep.subr.mxu0 0.0
        %4035 = vmatpush1.msra.mxu0 0.0
        %4036 = vmatprep.subr.mxu0 0.0
        %4037 = vmatpush1.msra.mxu0 0.0
        %4038 = vmatprep.subr.mxu0 0.0
        %4039 = vmatpush1.msra.mxu0 0.0
        %4040 = vmatprep.subr.mxu0 0.0
        %4041 = vmatpush1.msra.mxu0 0.0
        %4042 = vmatprep.subr.mxu0 0.0
        %4043 = vmatpush1.msra.mxu0 0.0
        %4044 = vmatprep.subr.mxu0 0.0
        %4045 = vmatpush1.msra.mxu0 0.0
        %4046 = vmatprep.subr.mxu0 0.0
        %4047 = vmatpush1.msra.mxu0 0.0
        %4048 = vmatprep.subr.mxu0 0.0
        %4049 = vmatpush1.msra.mxu0 0.0
        %4050 = vmatprep.mubr.f32.mxu0 0.0
        %4051 = vmatmul.mubr.f32.gmra.mrb[0].mxu0 %v3984
        %v4052 = vpop.f32.mrb[0].mxu0
        %v4053 = vadd.f32 %v3977, %v4052
        %v4054 = vpop.f32.mrb[0].mxu0
        %4055 = vdwg.mxu0
        %v4057 = vlaneseq
        %v4058 = vshrl.u32 %v4057, 7
        %v4059 = vsub.s32 0, %v4058
        %v4060 = vrot.slane %v3906, %v4059
        %v4062 = vadd.f32 %v4053, %v4060
        %v4063 = vld [vmem:[#allocation2 + $0x28] sm:$0xff]
        %4064 = vmatprep.subr.mxu0 0.0
        %4065 = vmatpush1.msra.mxu0 %v3890
        %4066 = vmatprep.subr.mxu0 0.0
        %4067 = vmatpush1.msra.mxu0 %v3891
        %4068 = vmatprep.subr.mxu0 0.0
        %4069 = vmatpush1.msra.mxu0 %v3892
        %4070 = vmatprep.subr.mxu0 0.0
        %4071 = vmatpush1.msra.mxu0 %v3893
        %4072 = vmatprep.subr.mxu0 0.0
        %4073 = vmatpush1.msra.mxu0 %v3894
        %4074 = vmatprep.subr.mxu0 0.0
        %4075 = vmatpush1.msra.mxu0 %v3895
        %4076 = vmatprep.subr.mxu0 0.0
        %4077 = vmatpush1.msra.mxu0 %v3896
        %4078 = vmatprep.subr.mxu0 0.0
        %4079 = vmatpush1.msra.mxu0 %v3897
        %4080 = vmatprep.subr.mxu0 0.0
        %4081 = vmatpush1.msra.mxu0 %v3898
        %4082 = vmatprep.subr.mxu0 0.0
        %4083 = vmatpush1.msra.mxu0 %v3899
        %4084 = vmatprep.subr.mxu0 0.0
        %4085 = vmatpush1.msra.mxu0 %v3900
        %4086 = vmatprep.subr.mxu0 0.0
        %4087 = vmatpush1.msra.mxu0 %v3901
        %4088 = vmatprep.subr.mxu0 0.0
        %4089 = vmatpush1.msra.mxu0 %v3902
        %4090 = vmatprep.subr.mxu0 0.0
        %4091 = vmatpush1.msra.mxu0 %v3903
        %4092 = vmatprep.subr.mxu0 0.0
        %4093 = vmatpush1.msra.mxu0 %v3904
        %4094 = vmatprep.subr.mxu0 0.0
        %4095 = vmatpush1.msra.mxu0 %v3905
        %4096 = vmatprep.subr.mxu0 0.0
        %4097 = vmatpush1.msra.mxu0 0.0
        %4098 = vmatprep.subr.mxu0 0.0
        %4099 = vmatpush1.msra.mxu0 0.0
        %4100 = vmatprep.subr.mxu0 0.0
        %4101 = vmatpush1.msra.mxu0 0.0
        %4102 = vmatprep.subr.mxu0 0.0
        %4103 = vmatpush1.msra.mxu0 0.0
        %4104 = vmatprep.subr.mxu0 0.0
        %4105 = vmatpush1.msra.mxu0 0.0
        %4106 = vmatprep.subr.mxu0 0.0
        %4107 = vmatpush1.msra.mxu0 0.0
        %4108 = vmatprep.subr.mxu0 0.0
        %4109 = vmatpush1.msra.mxu0 0.0
        %4110 = vmatprep.subr.mxu0 0.0
        %4111 = vmatpush1.msra.mxu0 0.0
        %4112 = vmatprep.subr.mxu0 0.0
        %4113 = vmatpush1.msra.mxu0 0.0
        %4114 = vmatprep.subr.mxu0 0.0
        %4115 = vmatpush1.msra.mxu0 0.0
        %4116 = vmatprep.subr.mxu0 0.0
        %4117 = vmatpush1.msra.mxu0 0.0
        %4118 = vmatprep.subr.mxu0 0.0
        %4119 = vmatpush1.msra.mxu0 0.0
        %4120 = vmatprep.subr.mxu0 0.0
        %4121 = vmatpush1.msra.mxu0 0.0
        %4122 = vmatprep.subr.mxu0 0.0
        %4123 = vmatpush1.msra.mxu0 0.0
        %4124 = vmatprep.subr.mxu0 0.0
        %4125 = vmatpush1.msra.mxu0 0.0
        %4126 = vmatprep.subr.mxu0 0.0
        %4127 = vmatpush1.msra.mxu0 0.0
        %4128 = vmatprep.mubr.f32.mxu0 0.0
        %4129 = vmatmul.mubr.f32.gmra.mrb[0].mxu0 %v4063
        %v4130 = vpop.f32.mrb[0].mxu0
        %v4131 = vadd.f32 0.0, %v4130
        %v4132 = vpop.f32.mrb[0].mxu0
        %4133 = vdwg.mxu0
        %4134 = vmatprep.subr.mxu0 0.0
        %4135 = vmatpush1.msra.mxu0 %v3873
        %4136 = vmatprep.subr.mxu0 0.0
        %4137 = vmatpush1.msra.mxu0 %v3874
        %4138 = vmatprep.subr.mxu0 0.0
        %4139 = vmatpush1.msra.mxu0 %v3875
        %4140 = vmatprep.subr.mxu0 0.0
        %4141 = vmatpush1.msra.mxu0 %v3876
        %4142 = vmatprep.subr.mxu0 0.0
        %4143 = vmatpush1.msra.mxu0 %v3877
        %4144 = vmatprep.subr.mxu0 0.0
        %4145 = vmatpush1.msra.mxu0 %v3878
        %4146 = vmatprep.subr.mxu0 0.0
        %4147 = vmatpush1.msra.mxu0 %v3879
        %4148 = vmatprep.subr.mxu0 0.0
        %4149 = vmatpush1.msra.mxu0 %v3880
        %4150 = vmatprep.subr.mxu0 0.0
        %4151 = vmatpush1.msra.mxu0 %v3881
        %4152 = vmatprep.subr.mxu0 0.0
        %4153 = vmatpush1.msra.mxu0 %v3882
        %4154 = vmatprep.subr.mxu0 0.0
        %4155 = vmatpush1.msra.mxu0 %v3883
        %4156 = vmatprep.subr.mxu0 0.0
        %4157 = vmatpush1.msra.mxu0 %v3884
        %4158 = vmatprep.subr.mxu0 0.0
        %4159 = vmatpush1.msra.mxu0 %v3885
        %4160 = vmatprep.subr.mxu0 0.0
        %4161 = vmatpush1.msra.mxu0 %v3886
        %4162 = vmatprep.subr.mxu0 0.0
        %4163 = vmatpush1.msra.mxu0 %v3887
        %4164 = vmatprep.subr.mxu0 0.0
        %4165 = vmatpush1.msra.mxu0 %v3888
        %4166 = vmatprep.subr.mxu0 0.0
        %4167 = vmatpush1.msra.mxu0 0.0
        %4168 = vmatprep.subr.mxu0 0.0
        %4169 = vmatpush1.msra.mxu0 0.0
        %4170 = vmatprep.subr.mxu0 0.0
        %4171 = vmatpush1.msra.mxu0 0.0
        %4172 = vmatprep.subr.mxu0 0.0
        %4173 = vmatpush1.msra.mxu0 0.0
        %4174 = vmatprep.subr.mxu0 0.0
        %4175 = vmatpush1.msra.mxu0 0.0
        %4176 = vmatprep.subr.mxu0 0.0
        %4177 = vmatpush1.msra.mxu0 0.0
        %4178 = vmatprep.subr.mxu0 0.0
        %4179 = vmatpush1.msra.mxu0 0.0
        %4180 = vmatprep.subr.mxu0 0.0
        %4181 = vmatpush1.msra.mxu0 0.0
        %4182 = vmatprep.subr.mxu0 0.0
        %4183 = vmatpush1.msra.mxu0 0.0
        %4184 = vmatprep.subr.mxu0 0.0
        %4185 = vmatpush1.msra.mxu0 0.0
        %4186 = vmatprep.subr.mxu0 0.0
        %4187 = vmatpush1.msra.mxu0 0.0
        %4188 = vmatprep.subr.mxu0 0.0
        %4189 = vmatpush1.msra.mxu0 0.0
        %4190 = vmatprep.subr.mxu0 0.0
        %4191 = vmatpush1.msra.mxu0 0.0
        %4192 = vmatprep.subr.mxu0 0.0
        %4193 = vmatpush1.msra.mxu0 0.0
        %4194 = vmatprep.subr.mxu0 0.0
        %4195 = vmatpush1.msra.mxu0 0.0
        %4196 = vmatprep.subr.mxu0 0.0
        %4197 = vmatpush1.msra.mxu0 0.0
        %4198 = vmatprep.mubr.f32.mxu0 0.0
        %4199 = vmatmul.mubr.f32.gmra.mrb[0].mxu0 %v3909
        %v4200 = vpop.f32.mrb[0].mxu0
        %v4201 = vadd.f32 %v4131, %v4200
        %v4202 = vpop.f32.mrb[0].mxu0
        %4203 = vdwg.mxu0
        %v4204 = vadd.f32 %v4201, %v4060
        %4205 = vmatprep.subr.mxu0 0.0
        %4206 = vmatpush1.msra.mxu0 %v3856
        %4207 = vmatprep.subr.mxu0 0.0
        %4208 = vmatpush1.msra.mxu0 %v3857
        %4209 = vmatprep.subr.mxu0 0.0
        %4210 = vmatpush1.msra.mxu0 %v3858
        %4211 = vmatprep.subr.mxu0 0.0
        %4212 = vmatpush1.msra.mxu0 %v3859
        %4213 = vmatprep.subr.mxu0 0.0
        %4214 = vmatpush1.msra.mxu0 %v3860
        %4215 = vmatprep.subr.mxu0 0.0
        %4216 = vmatpush1.msra.mxu0 %v3861
        %4217 = vmatprep.subr.mxu0 0.0
        %4218 = vmatpush1.msra.mxu0 %v3862
        %4219 = vmatprep.subr.mxu0 0.0
        %4220 = vmatpush1.msra.mxu0 %v3863
        %4221 = vmatprep.subr.mxu0 0.0
        %4222 = vmatpush1.msra.mxu0 %v3864
        %4223 = vmatprep.subr.mxu0 0.0
        %4224 = vmatpush1.msra.mxu0 %v3865
        %4225 = vmatprep.subr.mxu0 0.0
        %4226 = vmatpush1.msra.mxu0 %v3866
        %4227 = vmatprep.subr.mxu0 0.0
        %4228 = vmatpush1.msra.mxu0 %v3867
        %4229 = vmatprep.subr.mxu0 0.0
        %4230 = vmatpush1.msra.mxu0 %v3868
        %4231 = vmatprep.subr.mxu0 0.0
        %4232 = vmatpush1.msra.mxu0 %v3869
        %4233 = vmatprep.subr.mxu0 0.0
        %4234 = vmatpush1.msra.mxu0 %v3870
        %4235 = vmatprep.subr.mxu0 0.0
        %4236 = vmatpush1.msra.mxu0 %v3871
        %4237 = vmatprep.subr.mxu0 0.0
        %4238 = vmatpush1.msra.mxu0 0.0
        %4239 = vmatprep.subr.mxu0 0.0
        %4240 = vmatpush1.msra.mxu0 0.0
        %4241 = vmatprep.subr.mxu0 0.0
        %4242 = vmatpush1.msra.mxu0 0.0
        %4243 = vmatprep.subr.mxu0 0.0
        %4244 = vmatpush1.msra.mxu0 0.0
        %4245 = vmatprep.subr.mxu0 0.0
        %4246 = vmatpush1.msra.mxu0 0.0
        %4247 = vmatprep.subr.mxu0 0.0
        %4248 = vmatpush1.msra.mxu0 0.0
        %4249 = vmatprep.subr.mxu0 0.0
        %4250 = vmatpush1.msra.mxu0 0.0
        %4251 = vmatprep.subr.mxu0 0.0
        %4252 = vmatpush1.msra.mxu0 0.0
        %4253 = vmatprep.subr.mxu0 0.0
        %4254 = vmatpush1.msra.mxu0 0.0
        %4255 = vmatprep.subr.mxu0 0.0
        %4256 = vmatpush1.msra.mxu0 0.0
        %4257 = vmatprep.subr.mxu0 0.0
        %4258 = vmatpush1.msra.mxu0 0.0
        %4259 = vmatprep.subr.mxu0 0.0
        %4260 = vmatpush1.msra.mxu0 0.0
        %4261 = vmatprep.subr.mxu0 0.0
        %4262 = vmatpush1.msra.mxu0 0.0
        %4263 = vmatprep.subr.mxu0 0.0
        %4264 = vmatpush1.msra.mxu0 0.0
        %4265 = vmatprep.subr.mxu0 0.0
        %4266 = vmatpush1.msra.mxu0 0.0
        %4267 = vmatprep.subr.mxu0 0.0
        %4268 = vmatpush1.msra.mxu0 0.0
        %4269 = vmatprep.mubr.f32.mxu0 0.0
        %4270 = vmatmul.mubr.f32.gmra.mrb[0].mxu0 %v4063
        %v4271 = vpop.f32.mrb[0].mxu0
        %v4272 = vadd.f32 0.0, %v4271
        %v4273 = vpop.f32.mrb[0].mxu0
        %4274 = vdwg.mxu0
        %4275 = vmatprep.subr.mxu0 0.0
        %4276 = vmatpush1.msra.mxu0 %v3839
        %4277 = vmatprep.subr.mxu0 0.0
        %4278 = vmatpush1.msra.mxu0 %v3840
        %4279 = vmatprep.subr.mxu0 0.0
        %4280 = vmatpush1.msra.mxu0 %v3841
        %4281 = vmatprep.subr.mxu0 0.0
        %4282 = vmatpush1.msra.mxu0 %v3842
        %4283 = vmatprep.subr.mxu0 0.0
        %4284 = vmatpush1.msra.mxu0 %v3843
        %4285 = vmatprep.subr.mxu0 0.0
        %4286 = vmatpush1.msra.mxu0 %v3844
        %4287 = vmatprep.subr.mxu0 0.0
        %4288 = vmatpush1.msra.mxu0 %v3845
        %4289 = vmatprep.subr.mxu0 0.0
        %4290 = vmatpush1.msra.mxu0 %v3846
        %4291 = vmatprep.subr.mxu0 0.0
        %4292 = vmatpush1.msra.mxu0 %v3847
        %4293 = vmatprep.subr.mxu0 0.0
        %4294 = vmatpush1.msra.mxu0 %v3848
        %4295 = vmatprep.subr.mxu0 0.0
        %4296 = vmatpush1.msra.mxu0 %v3849
        %4297 = vmatprep.subr.mxu0 0.0
        %4298 = vmatpush1.msra.mxu0 %v3850
        %4299 = vmatprep.subr.mxu0 0.0
        %4300 = vmatpush1.msra.mxu0 %v3851
        %4301 = vmatprep.subr.mxu0 0.0
        %4302 = vmatpush1.msra.mxu0 %v3852
        %4303 = vmatprep.subr.mxu0 0.0
        %4304 = vmatpush1.msra.mxu0 %v3853
        %4305 = vmatprep.subr.mxu0 0.0
        %4306 = vmatpush1.msra.mxu0 %v3854
        %4307 = vmatprep.subr.mxu0 0.0
        %4308 = vmatpush1.msra.mxu0 0.0
        %4309 = vmatprep.subr.mxu0 0.0
        %4310 = vmatpush1.msra.mxu0 0.0
        %4311 = vmatprep.subr.mxu0 0.0
        %4312 = vmatpush1.msra.mxu0 0.0
        %4313 = vmatprep.subr.mxu0 0.0
        %4314 = vmatpush1.msra.mxu0 0.0
        %4315 = vmatprep.subr.mxu0 0.0
        %4316 = vmatpush1.msra.mxu0 0.0
        %4317 = vmatprep.subr.mxu0 0.0
        %4318 = vmatpush1.msra.mxu0 0.0
        %4319 = vmatprep.subr.mxu0 0.0
        %4320 = vmatpush1.msra.mxu0 0.0
        %4321 = vmatprep.subr.mxu0 0.0
        %4322 = vmatpush1.msra.mxu0 0.0
        %4323 = vmatprep.subr.mxu0 0.0
        %4324 = vmatpush1.msra.mxu0 0.0
        %4325 = vmatprep.subr.mxu0 0.0
        %4326 = vmatpush1.msra.mxu0 0.0
        %4327 = vmatprep.subr.mxu0 0.0
        %4328 = vmatpush1.msra.mxu0 0.0
        %4329 = vmatprep.subr.mxu0 0.0
        %4330 = vmatpush1.msra.mxu0 0.0
        %4331 = vmatprep.subr.mxu0 0.0
        %4332 = vmatpush1.msra.mxu0 0.0
        %4333 = vmatprep.subr.mxu0 0.0
        %4334 = vmatpush1.msra.mxu0 0.0
        %4335 = vmatprep.subr.mxu0 0.0
        %4336 = vmatpush1.msra.mxu0 0.0
        %4337 = vmatprep.subr.mxu0 0.0
        %4338 = vmatpush1.msra.mxu0 0.0
        %4339 = vmatprep.mubr.f32.mxu0 0.0
        %4340 = vmatmul.mubr.f32.gmra.mrb[0].mxu0 %v3909
        %v4341 = vpop.f32.mrb[0].mxu0
        %v4342 = vadd.f32 %v4272, %v4341
        %v4343 = vpop.f32.mrb[0].mxu0
        %4344 = vdwg.mxu0
        %v4345 = vadd.f32 %v4342, %v4060
        %v4346 = vld [vmem:[#allocation2 + $0x20] sm:$0xfe]
        %v4347 = vld [vmem:[#allocation2 + $0x40] sm:$0x1]
        %v4350 = vrot.slane %v4346, 1
        %v4351 = vrot.slane %v4347, 1
        %v4352 = vsel %vm1236, %v4350, %v4351
        %4354 = vmatprep.subr.mxu0 0.0
        %4355 = vmatpush1.msra.mxu0 %v3890
        %4356 = vmatprep.subr.mxu0 0.0
        %4357 = vmatpush1.msra.mxu0 %v3891
        %4358 = vmatprep.subr.mxu0 0.0
        %4359 = vmatpush1.msra.mxu0 %v3892
        %4360 = vmatprep.subr.mxu0 0.0
        %4361 = vmatpush1.msra.mxu0 %v3893
        %4362 = vmatprep.subr.mxu0 0.0
        %4363 = vmatpush1.msra.mxu0 %v3894
        %4364 = vmatprep.subr.mxu0 0.0
        %4365 = vmatpush1.msra.mxu0 %v3895
        %4366 = vmatprep.subr.mxu0 0.0
        %4367 = vmatpush1.msra.mxu0 %v3896
        %4368 = vmatprep.subr.mxu0 0.0
        %4369 = vmatpush1.msra.mxu0 %v3897
        %4370 = vmatprep.subr.mxu0 0.0
        %4371 = vmatpush1.msra.mxu0 %v3898
        %4372 = vmatprep.subr.mxu0 0.0
        %4373 = vmatpush1.msra.mxu0 %v3899
        %4374 = vmatprep.subr.mxu0 0.0
        %4375 = vmatpush1.msra.mxu0 %v3900
        %4376 = vmatprep.subr.mxu0 0.0
        %4377 = vmatpush1.msra.mxu0 %v3901
        %4378 = vmatprep.subr.mxu0 0.0
        %4379 = vmatpush1.msra.mxu0 %v3902
        %4380 = vmatprep.subr.mxu0 0.0
        %4381 = vmatpush1.msra.mxu0 %v3903
        %4382 = vmatprep.subr.mxu0 0.0
        %4383 = vmatpush1.msra.mxu0 %v3904
        %4384 = vmatprep.subr.mxu0 0.0
        %4385 = vmatpush1.msra.mxu0 %v3905
        %4386 = vmatprep.subr.mxu0 0.0
        %4387 = vmatpush1.msra.mxu0 0.0
        %4388 = vmatprep.subr.mxu0 0.0
        %4389 = vmatpush1.msra.mxu0 0.0
        %4390 = vmatprep.subr.mxu0 0.0
        %4391 = vmatpush1.msra.mxu0 0.0
        %4392 = vmatprep.subr.mxu0 0.0
        %4393 = vmatpush1.msra.mxu0 0.0
        %4394 = vmatprep.subr.mxu0 0.0
        %4395 = vmatpush1.msra.mxu0 0.0
        %4396 = vmatprep.subr.mxu0 0.0
        %4397 = vmatpush1.msra.mxu0 0.0
        %4398 = vmatprep.subr.mxu0 0.0
        %4399 = vmatpush1.msra.mxu0 0.0
        %4400 = vmatprep.subr.mxu0 0.0
        %4401 = vmatpush1.msra.mxu0 0.0
        %4402 = vmatprep.subr.mxu0 0.0
        %4403 = vmatpush1.msra.mxu0 0.0
        %4404 = vmatprep.subr.mxu0 0.0
        %4405 = vmatpush1.msra.mxu0 0.0
        %4406 = vmatprep.subr.mxu0 0.0
        %4407 = vmatpush1.msra.mxu0 0.0
        %4408 = vmatprep.subr.mxu0 0.0
        %4409 = vmatpush1.msra.mxu0 0.0
        %4410 = vmatprep.subr.mxu0 0.0
        %4411 = vmatpush1.msra.mxu0 0.0
        %4412 = vmatprep.subr.mxu0 0.0
        %4413 = vmatpush1.msra.mxu0 0.0
        %4414 = vmatprep.subr.mxu0 0.0
        %4415 = vmatpush1.msra.mxu0 0.0
        %4416 = vmatprep.subr.mxu0 0.0
        %4417 = vmatpush1.msra.mxu0 0.0
        %4418 = vmatprep.mubr.f32.mxu0 0.0
        %4419 = vmatmul.mubr.f32.gmra.mrb[0].mxu0 %v4352
        %v4420 = vpop.f32.mrb[0].mxu0
        %v4421 = vadd.f32 0.0, %v4420
        %v4422 = vpop.f32.mrb[0].mxu0
        %4423 = vdwg.mxu0
        %4424 = vmatprep.subr.mxu0 0.0
        %4425 = vmatpush1.msra.mxu0 %v3873
        %4426 = vmatprep.subr.mxu0 0.0
        %4427 = vmatpush1.msra.mxu0 %v3874
        %4428 = vmatprep.subr.mxu0 0.0
        %4429 = vmatpush1.msra.mxu0 %v3875
        %4430 = vmatprep.subr.mxu0 0.0
        %4431 = vmatpush1.msra.mxu0 %v3876
        %4432 = vmatprep.subr.mxu0 0.0
        %4433 = vmatpush1.msra.mxu0 %v3877
        %4434 = vmatprep.subr.mxu0 0.0
        %4435 = vmatpush1.msra.mxu0 %v3878
        %4436 = vmatprep.subr.mxu0 0.0
        %4437 = vmatpush1.msra.mxu0 %v3879
        %4438 = vmatprep.subr.mxu0 0.0
        %4439 = vmatpush1.msra.mxu0 %v3880
        %4440 = vmatprep.subr.mxu0 0.0
        %4441 = vmatpush1.msra.mxu0 %v3881
        %4442 = vmatprep.subr.mxu0 0.0
        %4443 = vmatpush1.msra.mxu0 %v3882
        %4444 = vmatprep.subr.mxu0 0.0
        %4445 = vmatpush1.msra.mxu0 %v3883
        %4446 = vmatprep.subr.mxu0 0.0
        %4447 = vmatpush1.msra.mxu0 %v3884
        %4448 = vmatprep.subr.mxu0 0.0
        %4449 = vmatpush1.msra.mxu0 %v3885
        %4450 = vmatprep.subr.mxu0 0.0
        %4451 = vmatpush1.msra.mxu0 %v3886
        %4452 = vmatprep.subr.mxu0 0.0
        %4453 = vmatpush1.msra.mxu0 %v3887
        %4454 = vmatprep.subr.mxu0 0.0
        %4455 = vmatpush1.msra.mxu0 %v3888
        %4456 = vmatprep.subr.mxu0 0.0
        %4457 = vmatpush1.msra.mxu0 0.0
        %4458 = vmatprep.subr.mxu0 0.0
        %4459 = vmatpush1.msra.mxu0 0.0
        %4460 = vmatprep.subr.mxu0 0.0
        %4461 = vmatpush1.msra.mxu0 0.0
        %4462 = vmatprep.subr.mxu0 0.0
        %4463 = vmatpush1.msra.mxu0 0.0
        %4464 = vmatprep.subr.mxu0 0.0
        %4465 = vmatpush1.msra.mxu0 0.0
        %4466 = vmatprep.subr.mxu0 0.0
        %4467 = vmatpush1.msra.mxu0 0.0
        %4468 = vmatprep.subr.mxu0 0.0
        %4469 = vmatpush1.msra.mxu0 0.0
        %4470 = vmatprep.subr.mxu0 0.0
        %4471 = vmatpush1.msra.mxu0 0.0
        %4472 = vmatprep.subr.mxu0 0.0
        %4473 = vmatpush1.msra.mxu0 0.0
        %4474 = vmatprep.subr.mxu0 0.0
        %4475 = vmatpush1.msra.mxu0 0.0
        %4476 = vmatprep.subr.mxu0 0.0
        %4477 = vmatpush1.msra.mxu0 0.0
        %4478 = vmatprep.subr.mxu0 0.0
        %4479 = vmatpush1.msra.mxu0 0.0
        %4480 = vmatprep.subr.mxu0 0.0
        %4481 = vmatpush1.msra.mxu0 0.0
        %4482 = vmatprep.subr.mxu0 0.0
        %4483 = vmatpush1.msra.mxu0 0.0
        %4484 = vmatprep.subr.mxu0 0.0
        %4485 = vmatpush1.msra.mxu0 0.0
        %4486 = vmatprep.subr.mxu0 0.0
        %4487 = vmatpush1.msra.mxu0 0.0
        %4488 = vmatprep.mubr.f32.mxu0 0.0
        %4489 = vmatmul.mubr.f32.gmra.mrb[0].mxu0 %v4063
        %v4490 = vpop.f32.mrb[0].mxu0
        %v4491 = vadd.f32 %v4421, %v4490
        %v4492 = vpop.f32.mrb[0].mxu0
        %4493 = vdwg.mxu0
        %v4494 = vadd.f32 %v4491, %v4060
        %4495 = vst [vmem:[#allocation2 + $0x20] sm:$0xff] %v4062
        %4496 = vst [vmem:[#allocation2 + $0x28] sm:$0xff] %v4204
        %4497 = vst [vmem:[#allocation2 + $0x30] sm:$0xff] %v4345
        %4498 = vst [vmem:[#allocation2 + $0x38] sm:$0xff] %v4494
        %v4499 = vld [vmem:[#allocation21] sm:$0xff]
        %v4500 = vld [vmem:[#allocation21 + $0x8] sm:$0xff]
        %v4501 = vld [vmem:[#allocation21 + $0x10] sm:$0xff]
        %v4502 = vld [vmem:[#allocation21 + $0x18] sm:$0xff]
        %v4503 = vld [vmem:[#allocation21 + $0x20] sm:$0xff]
        %v4504 = vld [vmem:[#allocation21 + $0x28] sm:$0xff]
        %v4505 = vld [vmem:[#allocation21 + $0x30] sm:$0xff]
        %v4506 = vld [vmem:[#allocation21 + $0x38] sm:$0xff]
        %v4507 = vld [vmem:[#allocation21 + $0x40] sm:$0xff]
        %v4508 = vld [vmem:[#allocation21 + $0x48] sm:$0xff]
        %v4509 = vld [vmem:[#allocation21 + $0x50] sm:$0xff]
        %v4510 = vld [vmem:[#allocation21 + $0x58] sm:$0xff]
        %v4511 = vld [vmem:[#allocation21 + $0x60] sm:$0xff]
        %v4512 = vld [vmem:[#allocation21 + $0x68] sm:$0xff]
        %v4513 = vld [vmem:[#allocation21 + $0x70] sm:$0xff]
        %v4514 = vld [vmem:[#allocation21 + $0x78] sm:$0xff]
        %s4515 = scalar_lea.vmem [#allocation21], 128
        %v4516 = vld [vmem:[%s4515] sm:$0xff]
        %v4517 = vld [vmem:[%s4515 + $0x8] sm:$0xff]
        %v4518 = vld [vmem:[%s4515 + $0x10] sm:$0xff]
        %v4519 = vld [vmem:[%s4515 + $0x18] sm:$0xff]
        %v4520 = vld [vmem:[%s4515 + $0x20] sm:$0xff]
        %v4521 = vld [vmem:[%s4515 + $0x28] sm:$0xff]
        %v4522 = vld [vmem:[%s4515 + $0x30] sm:$0xff]
        %v4523 = vld [vmem:[%s4515 + $0x38] sm:$0xff]
        %v4524 = vld [vmem:[%s4515 + $0x40] sm:$0xff]
        %v4525 = vld [vmem:[%s4515 + $0x48] sm:$0xff]
        %v4526 = vld [vmem:[%s4515 + $0x50] sm:$0xff]
        %v4527 = vld [vmem:[%s4515 + $0x58] sm:$0xff]
        %v4528 = vld [vmem:[%s4515 + $0x60] sm:$0xff]
        %v4529 = vld [vmem:[%s4515 + $0x68] sm:$0xff]
        %v4530 = vld [vmem:[%s4515 + $0x70] sm:$0xff]
        %v4531 = vld [vmem:[%s4515 + $0x78] sm:$0xff]
        %s4532 = scalar_lea.vmem [#allocation21], 256
        %v4533 = vld [vmem:[%s4532] sm:$0xff]
        %v4534 = vld [vmem:[%s4532 + $0x8] sm:$0xff]
        %v4535 = vld [vmem:[%s4532 + $0x10] sm:$0xff]
        %v4536 = vld [vmem:[%s4532 + $0x18] sm:$0xff]
        %v4537 = vld [vmem:[%s4532 + $0x20] sm:$0xff]
        %v4538 = vld [vmem:[%s4532 + $0x28] sm:$0xff]
        %v4539 = vld [vmem:[%s4532 + $0x30] sm:$0xff]
        %v4540 = vld [vmem:[%s4532 + $0x38] sm:$0xff]
        %v4541 = vld [vmem:[%s4532 + $0x40] sm:$0xff]
        %v4542 = vld [vmem:[%s4532 + $0x48] sm:$0xff]
        %v4543 = vld [vmem:[%s4532 + $0x50] sm:$0xff]
        %v4544 = vld [vmem:[%s4532 + $0x58] sm:$0xff]
        %v4545 = vld [vmem:[%s4532 + $0x60] sm:$0xff]
        %v4546 = vld [vmem:[%s4532 + $0x68] sm:$0xff]
        %v4547 = vld [vmem:[%s4532 + $0x70] sm:$0xff]
        %v4548 = vld [vmem:[%s4532 + $0x78] sm:$0xff]
        %v4549 = vld [vmem:[%s24] sm:$0x1]
        %v4550 = vld [vmem:[#allocation2 + $0x18] sm:$0x80]
        %v4551 = vld [vmem:[#allocation2 + $0x38] sm:$0x7f]
        %v4552 = vld [vmem:[#allocation2 + $0x20] sm:$0xff]
        %4553 = vmatprep.subr.mxu0 0.0
        %4554 = vmatpush1.msra.mxu0 %v4516
        %4555 = vmatprep.subr.mxu0 0.0
        %4556 = vmatpush1.msra.mxu0 %v4517
        %4557 = vmatprep.subr.mxu0 0.0
        %4558 = vmatpush1.msra.mxu0 %v4518
        %4559 = vmatprep.subr.mxu0 0.0
        %4560 = vmatpush1.msra.mxu0 %v4519
        %4561 = vmatprep.subr.mxu0 0.0
        %4562 = vmatpush1.msra.mxu0 %v4520
        %4563 = vmatprep.subr.mxu0 0.0
        %4564 = vmatpush1.msra.mxu0 %v4521
        %4565 = vmatprep.subr.mxu0 0.0
        %4566 = vmatpush1.msra.mxu0 %v4522
        %4567 = vmatprep.subr.mxu0 0.0
        %4568 = vmatpush1.msra.mxu0 %v4523
        %4569 = vmatprep.subr.mxu0 0.0
        %4570 = vmatpush1.msra.mxu0 %v4524
        %4571 = vmatprep.subr.mxu0 0.0
        %4572 = vmatpush1.msra.mxu0 %v4525
        %4573 = vmatprep.subr.mxu0 0.0
        %4574 = vmatpush1.msra.mxu0 %v4526
        %4575 = vmatprep.subr.mxu0 0.0
        %4576 = vmatpush1.msra.mxu0 %v4527
        %4577 = vmatprep.subr.mxu0 0.0
        %4578 = vmatpush1.msra.mxu0 %v4528
        %4579 = vmatprep.subr.mxu0 0.0
        %4580 = vmatpush1.msra.mxu0 %v4529
        %4581 = vmatprep.subr.mxu0 0.0
        %4582 = vmatpush1.msra.mxu0 %v4530
        %4583 = vmatprep.subr.mxu0 0.0
        %4584 = vmatpush1.msra.mxu0 %v4531
        %4585 = vmatprep.subr.mxu0 0.0
        %4586 = vmatpush1.msra.mxu0 0.0
        %4587 = vmatprep.subr.mxu0 0.0
        %4588 = vmatpush1.msra.mxu0 0.0
        %4589 = vmatprep.subr.mxu0 0.0
        %4590 = vmatpush1.msra.mxu0 0.0
        %4591 = vmatprep.subr.mxu0 0.0
        %4592 = vmatpush1.msra.mxu0 0.0
        %4593 = vmatprep.subr.mxu0 0.0
        %4594 = vmatpush1.msra.mxu0 0.0
        %4595 = vmatprep.subr.mxu0 0.0
        %4596 = vmatpush1.msra.mxu0 0.0
        %4597 = vmatprep.subr.mxu0 0.0
        %4598 = vmatpush1.msra.mxu0 0.0
        %4599 = vmatprep.subr.mxu0 0.0
        %4600 = vmatpush1.msra.mxu0 0.0
        %4601 = vmatprep.subr.mxu0 0.0
        %4602 = vmatpush1.msra.mxu0 0.0
        %4603 = vmatprep.subr.mxu0 0.0
        %4604 = vmatpush1.msra.mxu0 0.0
        %4605 = vmatprep.subr.mxu0 0.0
        %4606 = vmatpush1.msra.mxu0 0.0
        %4607 = vmatprep.subr.mxu0 0.0
        %4608 = vmatpush1.msra.mxu0 0.0
        %4609 = vmatprep.subr.mxu0 0.0
        %4610 = vmatpush1.msra.mxu0 0.0
        %4611 = vmatprep.subr.mxu0 0.0
        %4612 = vmatpush1.msra.mxu0 0.0
        %4613 = vmatprep.subr.mxu0 0.0
        %4614 = vmatpush1.msra.mxu0 0.0
        %4615 = vmatprep.subr.mxu0 0.0
        %4616 = vmatpush1.msra.mxu0 0.0
        %4617 = vmatprep.mubr.f32.mxu0 0.0
        %4618 = vmatmul.mubr.f32.gmra.mrb[0].mxu0 %v4552
        %v4619 = vpop.f32.mrb[0].mxu0
        %v4620 = vadd.f32 0.0, %v4619
        %v4621 = vpop.f32.mrb[0].mxu0
        %4622 = vdwg.mxu0
        %v4625 = vrot.slane %v4550, 7
        %v4626 = vrot.slane %v4551, 7
        %v4627 = vsel %vm1157, %v4625, %v4626
        %4629 = vmatprep.subr.mxu0 0.0
        %4630 = vmatpush1.msra.mxu0 %v4499
        %4631 = vmatprep.subr.mxu0 0.0
        %4632 = vmatpush1.msra.mxu0 %v4500
        %4633 = vmatprep.subr.mxu0 0.0
        %4634 = vmatpush1.msra.mxu0 %v4501
        %4635 = vmatprep.subr.mxu0 0.0
        %4636 = vmatpush1.msra.mxu0 %v4502
        %4637 = vmatprep.subr.mxu0 0.0
        %4638 = vmatpush1.msra.mxu0 %v4503
        %4639 = vmatprep.subr.mxu0 0.0
        %4640 = vmatpush1.msra.mxu0 %v4504
        %4641 = vmatprep.subr.mxu0 0.0
        %4642 = vmatpush1.msra.mxu0 %v4505
        %4643 = vmatprep.subr.mxu0 0.0
        %4644 = vmatpush1.msra.mxu0 %v4506
        %4645 = vmatprep.subr.mxu0 0.0
        %4646 = vmatpush1.msra.mxu0 %v4507
        %4647 = vmatprep.subr.mxu0 0.0
        %4648 = vmatpush1.msra.mxu0 %v4508
        %4649 = vmatprep.subr.mxu0 0.0
        %4650 = vmatpush1.msra.mxu0 %v4509
        %4651 = vmatprep.subr.mxu0 0.0
        %4652 = vmatpush1.msra.mxu0 %v4510
        %4653 = vmatprep.subr.mxu0 0.0
        %4654 = vmatpush1.msra.mxu0 %v4511
        %4655 = vmatprep.subr.mxu0 0.0
        %4656 = vmatpush1.msra.mxu0 %v4512
        %4657 = vmatprep.subr.mxu0 0.0
        %4658 = vmatpush1.msra.mxu0 %v4513
        %4659 = vmatprep.subr.mxu0 0.0
        %4660 = vmatpush1.msra.mxu0 %v4514
        %4661 = vmatprep.subr.mxu0 0.0
        %4662 = vmatpush1.msra.mxu0 0.0
        %4663 = vmatprep.subr.mxu0 0.0
        %4664 = vmatpush1.msra.mxu0 0.0
        %4665 = vmatprep.subr.mxu0 0.0
        %4666 = vmatpush1.msra.mxu0 0.0
        %4667 = vmatprep.subr.mxu0 0.0
        %4668 = vmatpush1.msra.mxu0 0.0
        %4669 = vmatprep.subr.mxu0 0.0
        %4670 = vmatpush1.msra.mxu0 0.0
        %4671 = vmatprep.subr.mxu0 0.0
        %4672 = vmatpush1.msra.mxu0 0.0
        %4673 = vmatprep.subr.mxu0 0.0
        %4674 = vmatpush1.msra.mxu0 0.0
        %4675 = vmatprep.subr.mxu0 0.0
        %4676 = vmatpush1.msra.mxu0 0.0
        %4677 = vmatprep.subr.mxu0 0.0
        %4678 = vmatpush1.msra.mxu0 0.0
        %4679 = vmatprep.subr.mxu0 0.0
        %4680 = vmatpush1.msra.mxu0 0.0
        %4681 = vmatprep.subr.mxu0 0.0
        %4682 = vmatpush1.msra.mxu0 0.0
        %4683 = vmatprep.subr.mxu0 0.0
        %4684 = vmatpush1.msra.mxu0 0.0
        %4685 = vmatprep.subr.mxu0 0.0
        %4686 = vmatpush1.msra.mxu0 0.0
        %4687 = vmatprep.subr.mxu0 0.0
        %4688 = vmatpush1.msra.mxu0 0.0
        %4689 = vmatprep.subr.mxu0 0.0
        %4690 = vmatpush1.msra.mxu0 0.0
        %4691 = vmatprep.subr.mxu0 0.0
        %4692 = vmatpush1.msra.mxu0 0.0
        %4693 = vmatprep.mubr.f32.mxu0 0.0
        %4694 = vmatmul.mubr.f32.gmra.mrb[0].mxu0 %v4627
        %v4695 = vpop.f32.mrb[0].mxu0
        %v4696 = vadd.f32 %v4620, %v4695
        %v4697 = vpop.f32.mrb[0].mxu0
        %4698 = vdwg.mxu0
        %v4699 = vld [vmem:[#allocation2 + $0x28] sm:$0xff]
        %4700 = vmatprep.subr.mxu0 0.0
        %4701 = vmatpush1.msra.mxu0 %v4533
        %4702 = vmatprep.subr.mxu0 0.0
        %4703 = vmatpush1.msra.mxu0 %v4534
        %4704 = vmatprep.subr.mxu0 0.0
        %4705 = vmatpush1.msra.mxu0 %v4535
        %4706 = vmatprep.subr.mxu0 0.0
        %4707 = vmatpush1.msra.mxu0 %v4536
        %4708 = vmatprep.subr.mxu0 0.0
        %4709 = vmatpush1.msra.mxu0 %v4537
        %4710 = vmatprep.subr.mxu0 0.0
        %4711 = vmatpush1.msra.mxu0 %v4538
        %4712 = vmatprep.subr.mxu0 0.0
        %4713 = vmatpush1.msra.mxu0 %v4539
        %4714 = vmatprep.subr.mxu0 0.0
        %4715 = vmatpush1.msra.mxu0 %v4540
        %4716 = vmatprep.subr.mxu0 0.0
        %4717 = vmatpush1.msra.mxu0 %v4541
        %4718 = vmatprep.subr.mxu0 0.0
        %4719 = vmatpush1.msra.mxu0 %v4542
        %4720 = vmatprep.subr.mxu0 0.0
        %4721 = vmatpush1.msra.mxu0 %v4543
        %4722 = vmatprep.subr.mxu0 0.0
        %4723 = vmatpush1.msra.mxu0 %v4544
        %4724 = vmatprep.subr.mxu0 0.0
        %4725 = vmatpush1.msra.mxu0 %v4545
        %4726 = vmatprep.subr.mxu0 0.0
        %4727 = vmatpush1.msra.mxu0 %v4546
        %4728 = vmatprep.subr.mxu0 0.0
        %4729 = vmatpush1.msra.mxu0 %v4547
        %4730 = vmatprep.subr.mxu0 0.0
        %4731 = vmatpush1.msra.mxu0 %v4548
        %4732 = vmatprep.subr.mxu0 0.0
        %4733 = vmatpush1.msra.mxu0 0.0
        %4734 = vmatprep.subr.mxu0 0.0
        %4735 = vmatpush1.msra.mxu0 0.0
        %4736 = vmatprep.subr.mxu0 0.0
        %4737 = vmatpush1.msra.mxu0 0.0
        %4738 = vmatprep.subr.mxu0 0.0
        %4739 = vmatpush1.msra.mxu0 0.0
        %4740 = vmatprep.subr.mxu0 0.0
        %4741 = vmatpush1.msra.mxu0 0.0
        %4742 = vmatprep.subr.mxu0 0.0
        %4743 = vmatpush1.msra.mxu0 0.0
        %4744 = vmatprep.subr.mxu0 0.0
        %4745 = vmatpush1.msra.mxu0 0.0
        %4746 = vmatprep.subr.mxu0 0.0
        %4747 = vmatpush1.msra.mxu0 0.0
        %4748 = vmatprep.subr.mxu0 0.0
        %4749 = vmatpush1.msra.mxu0 0.0
        %4750 = vmatprep.subr.mxu0 0.0
        %4751 = vmatpush1.msra.mxu0 0.0
        %4752 = vmatprep.subr.mxu0 0.0
        %4753 = vmatpush1.msra.mxu0 0.0
        %4754 = vmatprep.subr.mxu0 0.0
        %4755 = vmatpush1.msra.mxu0 0.0
        %4756 = vmatprep.subr.mxu0 0.0
        %4757 = vmatpush1.msra.mxu0 0.0
        %4758 = vmatprep.subr.mxu0 0.0
        %4759 = vmatpush1.msra.mxu0 0.0
        %4760 = vmatprep.subr.mxu0 0.0
        %4761 = vmatpush1.msra.mxu0 0.0
        %4762 = vmatprep.subr.mxu0 0.0
        %4763 = vmatpush1.msra.mxu0 0.0
        %4764 = vmatprep.mubr.f32.mxu0 0.0
        %4765 = vmatmul.mubr.f32.gmra.mrb[0].mxu0 %v4699
        %v4766 = vpop.f32.mrb[0].mxu0
        %v4767 = vadd.f32 0.0, %v4766
        %v4768 = vpop.f32.mrb[0].mxu0
        %4769 = vdwg.mxu0
        %v4770 = vadd.f32 %v4696, %v4767
        %v4772 = vlaneseq
        %v4773 = vshrl.u32 %v4772, 7
        %v4774 = vsub.s32 0, %v4773
        %v4775 = vrot.slane %v4549, %v4774
        %v4777 = vadd.f32 %v4770, %v4775
        %4778 = vmatprep.subr.mxu0 0.0
        %4779 = vmatpush1.msra.mxu0 %v4516
        %4780 = vmatprep.subr.mxu0 0.0
        %4781 = vmatpush1.msra.mxu0 %v4517
        %4782 = vmatprep.subr.mxu0 0.0
        %4783 = vmatpush1.msra.mxu0 %v4518
        %4784 = vmatprep.subr.mxu0 0.0
        %4785 = vmatpush1.msra.mxu0 %v4519
        %4786 = vmatprep.subr.mxu0 0.0
        %4787 = vmatpush1.msra.mxu0 %v4520
        %4788 = vmatprep.subr.mxu0 0.0
        %4789 = vmatpush1.msra.mxu0 %v4521
        %4790 = vmatprep.subr.mxu0 0.0
        %4791 = vmatpush1.msra.mxu0 %v4522
        %4792 = vmatprep.subr.mxu0 0.0
        %4793 = vmatpush1.msra.mxu0 %v4523
        %4794 = vmatprep.subr.mxu0 0.0
        %4795 = vmatpush1.msra.mxu0 %v4524
        %4796 = vmatprep.subr.mxu0 0.0
        %4797 = vmatpush1.msra.mxu0 %v4525
        %4798 = vmatprep.subr.mxu0 0.0
        %4799 = vmatpush1.msra.mxu0 %v4526
        %4800 = vmatprep.subr.mxu0 0.0
        %4801 = vmatpush1.msra.mxu0 %v4527
        %4802 = vmatprep.subr.mxu0 0.0
        %4803 = vmatpush1.msra.mxu0 %v4528
        %4804 = vmatprep.subr.mxu0 0.0
        %4805 = vmatpush1.msra.mxu0 %v4529
        %4806 = vmatprep.subr.mxu0 0.0
        %4807 = vmatpush1.msra.mxu0 %v4530
        %4808 = vmatprep.subr.mxu0 0.0
        %4809 = vmatpush1.msra.mxu0 %v4531
        %4810 = vmatprep.subr.mxu0 0.0
        %4811 = vmatpush1.msra.mxu0 0.0
        %4812 = vmatprep.subr.mxu0 0.0
        %4813 = vmatpush1.msra.mxu0 0.0
        %4814 = vmatprep.subr.mxu0 0.0
        %4815 = vmatpush1.msra.mxu0 0.0
        %4816 = vmatprep.subr.mxu0 0.0
        %4817 = vmatpush1.msra.mxu0 0.0
        %4818 = vmatprep.subr.mxu0 0.0
        %4819 = vmatpush1.msra.mxu0 0.0
        %4820 = vmatprep.subr.mxu0 0.0
        %4821 = vmatpush1.msra.mxu0 0.0
        %4822 = vmatprep.subr.mxu0 0.0
        %4823 = vmatpush1.msra.mxu0 0.0
        %4824 = vmatprep.subr.mxu0 0.0
        %4825 = vmatpush1.msra.mxu0 0.0
        %4826 = vmatprep.subr.mxu0 0.0
        %4827 = vmatpush1.msra.mxu0 0.0
        %4828 = vmatprep.subr.mxu0 0.0
        %4829 = vmatpush1.msra.mxu0 0.0
        %4830 = vmatprep.subr.mxu0 0.0
        %4831 = vmatpush1.msra.mxu0 0.0
        %4832 = vmatprep.subr.mxu0 0.0
        %4833 = vmatpush1.msra.mxu0 0.0
        %4834 = vmatprep.subr.mxu0 0.0
        %4835 = vmatpush1.msra.mxu0 0.0
        %4836 = vmatprep.subr.mxu0 0.0
        %4837 = vmatpush1.msra.mxu0 0.0
        %4838 = vmatprep.subr.mxu0 0.0
        %4839 = vmatpush1.msra.mxu0 0.0
        %4840 = vmatprep.subr.mxu0 0.0
        %4841 = vmatpush1.msra.mxu0 0.0
        %4842 = vmatprep.mubr.f32.mxu0 0.0
        %4843 = vmatmul.mubr.f32.gmra.mrb[0].mxu0 %v4699
        %v4844 = vpop.f32.mrb[0].mxu0
        %v4845 = vadd.f32 0.0, %v4844
        %v4846 = vpop.f32.mrb[0].mxu0
        %4847 = vdwg.mxu0
        %4848 = vmatprep.subr.mxu0 0.0
        %4849 = vmatpush1.msra.mxu0 %v4499
        %4850 = vmatprep.subr.mxu0 0.0
        %4851 = vmatpush1.msra.mxu0 %v4500
        %4852 = vmatprep.subr.mxu0 0.0
        %4853 = vmatpush1.msra.mxu0 %v4501
        %4854 = vmatprep.subr.mxu0 0.0
        %4855 = vmatpush1.msra.mxu0 %v4502
        %4856 = vmatprep.subr.mxu0 0.0
        %4857 = vmatpush1.msra.mxu0 %v4503
        %4858 = vmatprep.subr.mxu0 0.0
        %4859 = vmatpush1.msra.mxu0 %v4504
        %4860 = vmatprep.subr.mxu0 0.0
        %4861 = vmatpush1.msra.mxu0 %v4505
        %4862 = vmatprep.subr.mxu0 0.0
        %4863 = vmatpush1.msra.mxu0 %v4506
        %4864 = vmatprep.subr.mxu0 0.0
        %4865 = vmatpush1.msra.mxu0 %v4507
        %4866 = vmatprep.subr.mxu0 0.0
        %4867 = vmatpush1.msra.mxu0 %v4508
        %4868 = vmatprep.subr.mxu0 0.0
        %4869 = vmatpush1.msra.mxu0 %v4509
        %4870 = vmatprep.subr.mxu0 0.0
        %4871 = vmatpush1.msra.mxu0 %v4510
        %4872 = vmatprep.subr.mxu0 0.0
        %4873 = vmatpush1.msra.mxu0 %v4511
        %4874 = vmatprep.subr.mxu0 0.0
        %4875 = vmatpush1.msra.mxu0 %v4512
        %4876 = vmatprep.subr.mxu0 0.0
        %4877 = vmatpush1.msra.mxu0 %v4513
        %4878 = vmatprep.subr.mxu0 0.0
        %4879 = vmatpush1.msra.mxu0 %v4514
        %4880 = vmatprep.subr.mxu0 0.0
        %4881 = vmatpush1.msra.mxu0 0.0
        %4882 = vmatprep.subr.mxu0 0.0
        %4883 = vmatpush1.msra.mxu0 0.0
        %4884 = vmatprep.subr.mxu0 0.0
        %4885 = vmatpush1.msra.mxu0 0.0
        %4886 = vmatprep.subr.mxu0 0.0
        %4887 = vmatpush1.msra.mxu0 0.0
        %4888 = vmatprep.subr.mxu0 0.0
        %4889 = vmatpush1.msra.mxu0 0.0
        %4890 = vmatprep.subr.mxu0 0.0
        %4891 = vmatpush1.msra.mxu0 0.0
        %4892 = vmatprep.subr.mxu0 0.0
        %4893 = vmatpush1.msra.mxu0 0.0
        %4894 = vmatprep.subr.mxu0 0.0
        %4895 = vmatpush1.msra.mxu0 0.0
        %4896 = vmatprep.subr.mxu0 0.0
        %4897 = vmatpush1.msra.mxu0 0.0
        %4898 = vmatprep.subr.mxu0 0.0
        %4899 = vmatpush1.msra.mxu0 0.0
        %4900 = vmatprep.subr.mxu0 0.0
        %4901 = vmatpush1.msra.mxu0 0.0
        %4902 = vmatprep.subr.mxu0 0.0
        %4903 = vmatpush1.msra.mxu0 0.0
        %4904 = vmatprep.subr.mxu0 0.0
        %4905 = vmatpush1.msra.mxu0 0.0
        %4906 = vmatprep.subr.mxu0 0.0
        %4907 = vmatpush1.msra.mxu0 0.0
        %4908 = vmatprep.subr.mxu0 0.0
        %4909 = vmatpush1.msra.mxu0 0.0
        %4910 = vmatprep.subr.mxu0 0.0
        %4911 = vmatpush1.msra.mxu0 0.0
        %4912 = vmatprep.mubr.f32.mxu0 0.0
        %4913 = vmatmul.mubr.f32.gmra.mrb[0].mxu0 %v4552
        %v4914 = vpop.f32.mrb[0].mxu0
        %v4915 = vadd.f32 %v4845, %v4914
        %v4916 = vpop.f32.mrb[0].mxu0
        %4917 = vdwg.mxu0
        %v4918 = vld [vmem:[#allocation2 + $0x30] sm:$0xff]
        %4919 = vmatprep.subr.mxu0 0.0
        %4920 = vmatpush1.msra.mxu0 %v4533
        %4921 = vmatprep.subr.mxu0 0.0
        %4922 = vmatpush1.msra.mxu0 %v4534
        %4923 = vmatprep.subr.mxu0 0.0
        %4924 = vmatpush1.msra.mxu0 %v4535
        %4925 = vmatprep.subr.mxu0 0.0
        %4926 = vmatpush1.msra.mxu0 %v4536
        %4927 = vmatprep.subr.mxu0 0.0
        %4928 = vmatpush1.msra.mxu0 %v4537
        %4929 = vmatprep.subr.mxu0 0.0
        %4930 = vmatpush1.msra.mxu0 %v4538
        %4931 = vmatprep.subr.mxu0 0.0
        %4932 = vmatpush1.msra.mxu0 %v4539
        %4933 = vmatprep.subr.mxu0 0.0
        %4934 = vmatpush1.msra.mxu0 %v4540
        %4935 = vmatprep.subr.mxu0 0.0
        %4936 = vmatpush1.msra.mxu0 %v4541
        %4937 = vmatprep.subr.mxu0 0.0
        %4938 = vmatpush1.msra.mxu0 %v4542
        %4939 = vmatprep.subr.mxu0 0.0
        %4940 = vmatpush1.msra.mxu0 %v4543
        %4941 = vmatprep.subr.mxu0 0.0
        %4942 = vmatpush1.msra.mxu0 %v4544
        %4943 = vmatprep.subr.mxu0 0.0
        %4944 = vmatpush1.msra.mxu0 %v4545
        %4945 = vmatprep.subr.mxu0 0.0
        %4946 = vmatpush1.msra.mxu0 %v4546
        %4947 = vmatprep.subr.mxu0 0.0
        %4948 = vmatpush1.msra.mxu0 %v4547
        %4949 = vmatprep.subr.mxu0 0.0
        %4950 = vmatpush1.msra.mxu0 %v4548
        %4951 = vmatprep.subr.mxu0 0.0
        %4952 = vmatpush1.msra.mxu0 0.0
        %4953 = vmatprep.subr.mxu0 0.0
        %4954 = vmatpush1.msra.mxu0 0.0
        %4955 = vmatprep.subr.mxu0 0.0
        %4956 = vmatpush1.msra.mxu0 0.0
        %4957 = vmatprep.subr.mxu0 0.0
        %4958 = vmatpush1.msra.mxu0 0.0
        %4959 = vmatprep.subr.mxu0 0.0
        %4960 = vmatpush1.msra.mxu0 0.0
        %4961 = vmatprep.subr.mxu0 0.0
        %4962 = vmatpush1.msra.mxu0 0.0
        %4963 = vmatprep.subr.mxu0 0.0
        %4964 = vmatpush1.msra.mxu0 0.0
        %4965 = vmatprep.subr.mxu0 0.0
        %4966 = vmatpush1.msra.mxu0 0.0
        %4967 = vmatprep.subr.mxu0 0.0
        %4968 = vmatpush1.msra.mxu0 0.0
        %4969 = vmatprep.subr.mxu0 0.0
        %4970 = vmatpush1.msra.mxu0 0.0
        %4971 = vmatprep.subr.mxu0 0.0
        %4972 = vmatpush1.msra.mxu0 0.0
        %4973 = vmatprep.subr.mxu0 0.0
        %4974 = vmatpush1.msra.mxu0 0.0
        %4975 = vmatprep.subr.mxu0 0.0
        %4976 = vmatpush1.msra.mxu0 0.0
        %4977 = vmatprep.subr.mxu0 0.0
        %4978 = vmatpush1.msra.mxu0 0.0
        %4979 = vmatprep.subr.mxu0 0.0
        %4980 = vmatpush1.msra.mxu0 0.0
        %4981 = vmatprep.subr.mxu0 0.0
        %4982 = vmatpush1.msra.mxu0 0.0
        %4983 = vmatprep.mubr.f32.mxu0 0.0
        %4984 = vmatmul.mubr.f32.gmra.mrb[0].mxu0 %v4918
        %v4985 = vpop.f32.mrb[0].mxu0
        %v4986 = vadd.f32 0.0, %v4985
        %v4987 = vpop.f32.mrb[0].mxu0
        %4988 = vdwg.mxu0
        %v4989 = vadd.f32 %v4915, %v4986
        %v4990 = vadd.f32 %v4989, %v4775
        %4991 = vmatprep.subr.mxu0 0.0
        %4992 = vmatpush1.msra.mxu0 %v4516
        %4993 = vmatprep.subr.mxu0 0.0
        %4994 = vmatpush1.msra.mxu0 %v4517
        %4995 = vmatprep.subr.mxu0 0.0
        %4996 = vmatpush1.msra.mxu0 %v4518
        %4997 = vmatprep.subr.mxu0 0.0
        %4998 = vmatpush1.msra.mxu0 %v4519
        %4999 = vmatprep.subr.mxu0 0.0
        %5000 = vmatpush1.msra.mxu0 %v4520
        %5001 = vmatprep.subr.mxu0 0.0
        %5002 = vmatpush1.msra.mxu0 %v4521
        %5003 = vmatprep.subr.mxu0 0.0
        %5004 = vmatpush1.msra.mxu0 %v4522
        %5005 = vmatprep.subr.mxu0 0.0
        %5006 = vmatpush1.msra.mxu0 %v4523
        %5007 = vmatprep.subr.mxu0 0.0
        %5008 = vmatpush1.msra.mxu0 %v4524
        %5009 = vmatprep.subr.mxu0 0.0
        %5010 = vmatpush1.msra.mxu0 %v4525
        %5011 = vmatprep.subr.mxu0 0.0
        %5012 = vmatpush1.msra.mxu0 %v4526
        %5013 = vmatprep.subr.mxu0 0.0
        %5014 = vmatpush1.msra.mxu0 %v4527
        %5015 = vmatprep.subr.mxu0 0.0
        %5016 = vmatpush1.msra.mxu0 %v4528
        %5017 = vmatprep.subr.mxu0 0.0
        %5018 = vmatpush1.msra.mxu0 %v4529
        %5019 = vmatprep.subr.mxu0 0.0
        %5020 = vmatpush1.msra.mxu0 %v4530
        %5021 = vmatprep.subr.mxu0 0.0
        %5022 = vmatpush1.msra.mxu0 %v4531
        %5023 = vmatprep.subr.mxu0 0.0
        %5024 = vmatpush1.msra.mxu0 0.0
        %5025 = vmatprep.subr.mxu0 0.0
        %5026 = vmatpush1.msra.mxu0 0.0
        %5027 = vmatprep.subr.mxu0 0.0
        %5028 = vmatpush1.msra.mxu0 0.0
        %5029 = vmatprep.subr.mxu0 0.0
        %5030 = vmatpush1.msra.mxu0 0.0
        %5031 = vmatprep.subr.mxu0 0.0
        %5032 = vmatpush1.msra.mxu0 0.0
        %5033 = vmatprep.subr.mxu0 0.0
        %5034 = vmatpush1.msra.mxu0 0.0
        %5035 = vmatprep.subr.mxu0 0.0
        %5036 = vmatpush1.msra.mxu0 0.0
        %5037 = vmatprep.subr.mxu0 0.0
        %5038 = vmatpush1.msra.mxu0 0.0
        %5039 = vmatprep.subr.mxu0 0.0
        %5040 = vmatpush1.msra.mxu0 0.0
        %5041 = vmatprep.subr.mxu0 0.0
        %5042 = vmatpush1.msra.mxu0 0.0
        %5043 = vmatprep.subr.mxu0 0.0
        %5044 = vmatpush1.msra.mxu0 0.0
        %5045 = vmatprep.subr.mxu0 0.0
        %5046 = vmatpush1.msra.mxu0 0.0
        %5047 = vmatprep.subr.mxu0 0.0
        %5048 = vmatpush1.msra.mxu0 0.0
        %5049 = vmatprep.subr.mxu0 0.0
        %5050 = vmatpush1.msra.mxu0 0.0
        %5051 = vmatprep.subr.mxu0 0.0
        %5052 = vmatpush1.msra.mxu0 0.0
        %5053 = vmatprep.subr.mxu0 0.0
        %5054 = vmatpush1.msra.mxu0 0.0
        %5055 = vmatprep.mubr.f32.mxu0 0.0
        %5056 = vmatmul.mubr.f32.gmra.mrb[0].mxu0 %v4918
        %v5057 = vpop.f32.mrb[0].mxu0
        %v5058 = vadd.f32 0.0, %v5057
        %v5059 = vpop.f32.mrb[0].mxu0
        %5060 = vdwg.mxu0
        %5061 = vmatprep.subr.mxu0 0.0
        %5062 = vmatpush1.msra.mxu0 %v4499
        %5063 = vmatprep.subr.mxu0 0.0
        %5064 = vmatpush1.msra.mxu0 %v4500
        %5065 = vmatprep.subr.mxu0 0.0
        %5066 = vmatpush1.msra.mxu0 %v4501
        %5067 = vmatprep.subr.mxu0 0.0
        %5068 = vmatpush1.msra.mxu0 %v4502
        %5069 = vmatprep.subr.mxu0 0.0
        %5070 = vmatpush1.msra.mxu0 %v4503
        %5071 = vmatprep.subr.mxu0 0.0
        %5072 = vmatpush1.msra.mxu0 %v4504
        %5073 = vmatprep.subr.mxu0 0.0
        %5074 = vmatpush1.msra.mxu0 %v4505
        %5075 = vmatprep.subr.mxu0 0.0
        %5076 = vmatpush1.msra.mxu0 %v4506
        %5077 = vmatprep.subr.mxu0 0.0
        %5078 = vmatpush1.msra.mxu0 %v4507
        %5079 = vmatprep.subr.mxu0 0.0
        %5080 = vmatpush1.msra.mxu0 %v4508
        %5081 = vmatprep.subr.mxu0 0.0
        %5082 = vmatpush1.msra.mxu0 %v4509
        %5083 = vmatprep.subr.mxu0 0.0
        %5084 = vmatpush1.msra.mxu0 %v4510
        %5085 = vmatprep.subr.mxu0 0.0
        %5086 = vmatpush1.msra.mxu0 %v4511
        %5087 = vmatprep.subr.mxu0 0.0
        %5088 = vmatpush1.msra.mxu0 %v4512
        %5089 = vmatprep.subr.mxu0 0.0
        %5090 = vmatpush1.msra.mxu0 %v4513
        %5091 = vmatprep.subr.mxu0 0.0
        %5092 = vmatpush1.msra.mxu0 %v4514
        %5093 = vmatprep.subr.mxu0 0.0
        %5094 = vmatpush1.msra.mxu0 0.0
        %5095 = vmatprep.subr.mxu0 0.0
        %5096 = vmatpush1.msra.mxu0 0.0
        %5097 = vmatprep.subr.mxu0 0.0
        %5098 = vmatpush1.msra.mxu0 0.0
        %5099 = vmatprep.subr.mxu0 0.0
        %5100 = vmatpush1.msra.mxu0 0.0
        %5101 = vmatprep.subr.mxu0 0.0
        %5102 = vmatpush1.msra.mxu0 0.0
        %5103 = vmatprep.subr.mxu0 0.0
        %5104 = vmatpush1.msra.mxu0 0.0
        %5105 = vmatprep.subr.mxu0 0.0
        %5106 = vmatpush1.msra.mxu0 0.0
        %5107 = vmatprep.subr.mxu0 0.0
        %5108 = vmatpush1.msra.mxu0 0.0
        %5109 = vmatprep.subr.mxu0 0.0
        %5110 = vmatpush1.msra.mxu0 0.0
        %5111 = vmatprep.subr.mxu0 0.0
        %5112 = vmatpush1.msra.mxu0 0.0
        %5113 = vmatprep.subr.mxu0 0.0
        %5114 = vmatpush1.msra.mxu0 0.0
        %5115 = vmatprep.subr.mxu0 0.0
        %5116 = vmatpush1.msra.mxu0 0.0
        %5117 = vmatprep.subr.mxu0 0.0
        %5118 = vmatpush1.msra.mxu0 0.0
        %5119 = vmatprep.subr.mxu0 0.0
        %5120 = vmatpush1.msra.mxu0 0.0
        %5121 = vmatprep.subr.mxu0 0.0
        %5122 = vmatpush1.msra.mxu0 0.0
        %5123 = vmatprep.subr.mxu0 0.0
        %5124 = vmatpush1.msra.mxu0 0.0
        %5125 = vmatprep.mubr.f32.mxu0 0.0
        %5126 = vmatmul.mubr.f32.gmra.mrb[0].mxu0 %v4699
        %v5127 = vpop.f32.mrb[0].mxu0
        %v5128 = vadd.f32 %v5058, %v5127
        %v5129 = vpop.f32.mrb[0].mxu0
        %5130 = vdwg.mxu0
        %v5131 = vld [vmem:[#allocation2 + $0x38] sm:$0xff]
        %5132 = vmatprep.subr.mxu0 0.0
        %5133 = vmatpush1.msra.mxu0 %v4533
        %5134 = vmatprep.subr.mxu0 0.0
        %5135 = vmatpush1.msra.mxu0 %v4534
        %5136 = vmatprep.subr.mxu0 0.0
        %5137 = vmatpush1.msra.mxu0 %v4535
        %5138 = vmatprep.subr.mxu0 0.0
        %5139 = vmatpush1.msra.mxu0 %v4536
        %5140 = vmatprep.subr.mxu0 0.0
        %5141 = vmatpush1.msra.mxu0 %v4537
        %5142 = vmatprep.subr.mxu0 0.0
        %5143 = vmatpush1.msra.mxu0 %v4538
        %5144 = vmatprep.subr.mxu0 0.0
        %5145 = vmatpush1.msra.mxu0 %v4539
        %5146 = vmatprep.subr.mxu0 0.0
        %5147 = vmatpush1.msra.mxu0 %v4540
        %5148 = vmatprep.subr.mxu0 0.0
        %5149 = vmatpush1.msra.mxu0 %v4541
        %5150 = vmatprep.subr.mxu0 0.0
        %5151 = vmatpush1.msra.mxu0 %v4542
        %5152 = vmatprep.subr.mxu0 0.0
        %5153 = vmatpush1.msra.mxu0 %v4543
        %5154 = vmatprep.subr.mxu0 0.0
        %5155 = vmatpush1.msra.mxu0 %v4544
        %5156 = vmatprep.subr.mxu0 0.0
        %5157 = vmatpush1.msra.mxu0 %v4545
        %5158 = vmatprep.subr.mxu0 0.0
        %5159 = vmatpush1.msra.mxu0 %v4546
        %5160 = vmatprep.subr.mxu0 0.0
        %5161 = vmatpush1.msra.mxu0 %v4547
        %5162 = vmatprep.subr.mxu0 0.0
        %5163 = vmatpush1.msra.mxu0 %v4548
        %5164 = vmatprep.subr.mxu0 0.0
        %5165 = vmatpush1.msra.mxu0 0.0
        %5166 = vmatprep.subr.mxu0 0.0
        %5167 = vmatpush1.msra.mxu0 0.0
        %5168 = vmatprep.subr.mxu0 0.0
        %5169 = vmatpush1.msra.mxu0 0.0
        %5170 = vmatprep.subr.mxu0 0.0
        %5171 = vmatpush1.msra.mxu0 0.0
        %5172 = vmatprep.subr.mxu0 0.0
        %5173 = vmatpush1.msra.mxu0 0.0
        %5174 = vmatprep.subr.mxu0 0.0
        %5175 = vmatpush1.msra.mxu0 0.0
        %5176 = vmatprep.subr.mxu0 0.0
        %5177 = vmatpush1.msra.mxu0 0.0
        %5178 = vmatprep.subr.mxu0 0.0
        %5179 = vmatpush1.msra.mxu0 0.0
        %5180 = vmatprep.subr.mxu0 0.0
        %5181 = vmatpush1.msra.mxu0 0.0
        %5182 = vmatprep.subr.mxu0 0.0
        %5183 = vmatpush1.msra.mxu0 0.0
        %5184 = vmatprep.subr.mxu0 0.0
        %5185 = vmatpush1.msra.mxu0 0.0
        %5186 = vmatprep.subr.mxu0 0.0
        %5187 = vmatpush1.msra.mxu0 0.0
        %5188 = vmatprep.subr.mxu0 0.0
        %5189 = vmatpush1.msra.mxu0 0.0
        %5190 = vmatprep.subr.mxu0 0.0
        %5191 = vmatpush1.msra.mxu0 0.0
        %5192 = vmatprep.subr.mxu0 0.0
        %5193 = vmatpush1.msra.mxu0 0.0
        %5194 = vmatprep.subr.mxu0 0.0
        %5195 = vmatpush1.msra.mxu0 0.0
        %5196 = vmatprep.mubr.f32.mxu0 0.0
        %5197 = vmatmul.mubr.f32.gmra.mrb[0].mxu0 %v5131
        %v5198 = vpop.f32.mrb[0].mxu0
        %v5199 = vadd.f32 0.0, %v5198
        %v5200 = vpop.f32.mrb[0].mxu0
        %5201 = vdwg.mxu0
        %v5202 = vadd.f32 %v5128, %v5199
        %v5203 = vadd.f32 %v5202, %v4775
        %5204 = vmatprep.subr.mxu0 0.0
        %5205 = vmatpush1.msra.mxu0 %v4516
        %5206 = vmatprep.subr.mxu0 0.0
        %5207 = vmatpush1.msra.mxu0 %v4517
        %5208 = vmatprep.subr.mxu0 0.0
        %5209 = vmatpush1.msra.mxu0 %v4518
        %5210 = vmatprep.subr.mxu0 0.0
        %5211 = vmatpush1.msra.mxu0 %v4519
        %5212 = vmatprep.subr.mxu0 0.0
        %5213 = vmatpush1.msra.mxu0 %v4520
        %5214 = vmatprep.subr.mxu0 0.0
        %5215 = vmatpush1.msra.mxu0 %v4521
        %5216 = vmatprep.subr.mxu0 0.0
        %5217 = vmatpush1.msra.mxu0 %v4522
        %5218 = vmatprep.subr.mxu0 0.0
        %5219 = vmatpush1.msra.mxu0 %v4523
        %5220 = vmatprep.subr.mxu0 0.0
        %5221 = vmatpush1.msra.mxu0 %v4524
        %5222 = vmatprep.subr.mxu0 0.0
        %5223 = vmatpush1.msra.mxu0 %v4525
        %5224 = vmatprep.subr.mxu0 0.0
        %5225 = vmatpush1.msra.mxu0 %v4526
        %5226 = vmatprep.subr.mxu0 0.0
        %5227 = vmatpush1.msra.mxu0 %v4527
        %5228 = vmatprep.subr.mxu0 0.0
        %5229 = vmatpush1.msra.mxu0 %v4528
        %5230 = vmatprep.subr.mxu0 0.0
        %5231 = vmatpush1.msra.mxu0 %v4529
        %5232 = vmatprep.subr.mxu0 0.0
        %5233 = vmatpush1.msra.mxu0 %v4530
        %5234 = vmatprep.subr.mxu0 0.0
        %5235 = vmatpush1.msra.mxu0 %v4531
        %5236 = vmatprep.subr.mxu0 0.0
        %5237 = vmatpush1.msra.mxu0 0.0
        %5238 = vmatprep.subr.mxu0 0.0
        %5239 = vmatpush1.msra.mxu0 0.0
        %5240 = vmatprep.subr.mxu0 0.0
        %5241 = vmatpush1.msra.mxu0 0.0
        %5242 = vmatprep.subr.mxu0 0.0
        %5243 = vmatpush1.msra.mxu0 0.0
        %5244 = vmatprep.subr.mxu0 0.0
        %5245 = vmatpush1.msra.mxu0 0.0
        %5246 = vmatprep.subr.mxu0 0.0
        %5247 = vmatpush1.msra.mxu0 0.0
        %5248 = vmatprep.subr.mxu0 0.0
        %5249 = vmatpush1.msra.mxu0 0.0
        %5250 = vmatprep.subr.mxu0 0.0
        %5251 = vmatpush1.msra.mxu0 0.0
        %5252 = vmatprep.subr.mxu0 0.0
        %5253 = vmatpush1.msra.mxu0 0.0
        %5254 = vmatprep.subr.mxu0 0.0
        %5255 = vmatpush1.msra.mxu0 0.0
        %5256 = vmatprep.subr.mxu0 0.0
        %5257 = vmatpush1.msra.mxu0 0.0
        %5258 = vmatprep.subr.mxu0 0.0
        %5259 = vmatpush1.msra.mxu0 0.0
        %5260 = vmatprep.subr.mxu0 0.0
        %5261 = vmatpush1.msra.mxu0 0.0
        %5262 = vmatprep.subr.mxu0 0.0
        %5263 = vmatpush1.msra.mxu0 0.0
        %5264 = vmatprep.subr.mxu0 0.0
        %5265 = vmatpush1.msra.mxu0 0.0
        %5266 = vmatprep.subr.mxu0 0.0
        %5267 = vmatpush1.msra.mxu0 0.0
        %5268 = vmatprep.mubr.f32.mxu0 0.0
        %5269 = vmatmul.mubr.f32.gmra.mrb[0].mxu0 %v5131
        %v5270 = vpop.f32.mrb[0].mxu0
        %v5271 = vadd.f32 0.0, %v5270
        %v5272 = vpop.f32.mrb[0].mxu0
        %5273 = vdwg.mxu0
        %5274 = vmatprep.subr.mxu0 0.0
        %5275 = vmatpush1.msra.mxu0 %v4499
        %5276 = vmatprep.subr.mxu0 0.0
        %5277 = vmatpush1.msra.mxu0 %v4500
        %5278 = vmatprep.subr.mxu0 0.0
        %5279 = vmatpush1.msra.mxu0 %v4501
        %5280 = vmatprep.subr.mxu0 0.0
        %5281 = vmatpush1.msra.mxu0 %v4502
        %5282 = vmatprep.subr.mxu0 0.0
        %5283 = vmatpush1.msra.mxu0 %v4503
        %5284 = vmatprep.subr.mxu0 0.0
        %5285 = vmatpush1.msra.mxu0 %v4504
        %5286 = vmatprep.subr.mxu0 0.0
        %5287 = vmatpush1.msra.mxu0 %v4505
        %5288 = vmatprep.subr.mxu0 0.0
        %5289 = vmatpush1.msra.mxu0 %v4506
        %5290 = vmatprep.subr.mxu0 0.0
        %5291 = vmatpush1.msra.mxu0 %v4507
        %5292 = vmatprep.subr.mxu0 0.0
        %5293 = vmatpush1.msra.mxu0 %v4508
        %5294 = vmatprep.subr.mxu0 0.0
        %5295 = vmatpush1.msra.mxu0 %v4509
        %5296 = vmatprep.subr.mxu0 0.0
        %5297 = vmatpush1.msra.mxu0 %v4510
        %5298 = vmatprep.subr.mxu0 0.0
        %5299 = vmatpush1.msra.mxu0 %v4511
        %5300 = vmatprep.subr.mxu0 0.0
        %5301 = vmatpush1.msra.mxu0 %v4512
        %5302 = vmatprep.subr.mxu0 0.0
        %5303 = vmatpush1.msra.mxu0 %v4513
        %5304 = vmatprep.subr.mxu0 0.0
        %5305 = vmatpush1.msra.mxu0 %v4514
        %5306 = vmatprep.subr.mxu0 0.0
        %5307 = vmatpush1.msra.mxu0 0.0
        %5308 = vmatprep.subr.mxu0 0.0
        %5309 = vmatpush1.msra.mxu0 0.0
        %5310 = vmatprep.subr.mxu0 0.0
        %5311 = vmatpush1.msra.mxu0 0.0
        %5312 = vmatprep.subr.mxu0 0.0
        %5313 = vmatpush1.msra.mxu0 0.0
        %5314 = vmatprep.subr.mxu0 0.0
        %5315 = vmatpush1.msra.mxu0 0.0
        %5316 = vmatprep.subr.mxu0 0.0
        %5317 = vmatpush1.msra.mxu0 0.0
        %5318 = vmatprep.subr.mxu0 0.0
        %5319 = vmatpush1.msra.mxu0 0.0
        %5320 = vmatprep.subr.mxu0 0.0
        %5321 = vmatpush1.msra.mxu0 0.0
        %5322 = vmatprep.subr.mxu0 0.0
        %5323 = vmatpush1.msra.mxu0 0.0
        %5324 = vmatprep.subr.mxu0 0.0
        %5325 = vmatpush1.msra.mxu0 0.0
        %5326 = vmatprep.subr.mxu0 0.0
        %5327 = vmatpush1.msra.mxu0 0.0
        %5328 = vmatprep.subr.mxu0 0.0
        %5329 = vmatpush1.msra.mxu0 0.0
        %5330 = vmatprep.subr.mxu0 0.0
        %5331 = vmatpush1.msra.mxu0 0.0
        %5332 = vmatprep.subr.mxu0 0.0
        %5333 = vmatpush1.msra.mxu0 0.0
        %5334 = vmatprep.subr.mxu0 0.0
        %5335 = vmatpush1.msra.mxu0 0.0
        %5336 = vmatprep.subr.mxu0 0.0
        %5337 = vmatpush1.msra.mxu0 0.0
        %5338 = vmatprep.mubr.f32.mxu0 0.0
        %5339 = vmatmul.mubr.f32.gmra.mrb[0].mxu0 %v4918
        %v5340 = vpop.f32.mrb[0].mxu0
        %v5341 = vadd.f32 %v5271, %v5340
        %v5342 = vpop.f32.mrb[0].mxu0
        %5343 = vdwg.mxu0
        %v5344 = vld [vmem:[#allocation2 + $0x20] sm:$0xfe]
        %v5345 = vld [vmem:[#allocation2 + $0x40] sm:$0x1]
        %v5348 = vrot.slane %v5344, 1
        %v5349 = vrot.slane %v5345, 1
        %v5350 = vsel %vm1236, %v5348, %v5349
        %5352 = vmatprep.subr.mxu0 0.0
        %5353 = vmatpush1.msra.mxu0 %v4533
        %5354 = vmatprep.subr.mxu0 0.0
        %5355 = vmatpush1.msra.mxu0 %v4534
        %5356 = vmatprep.subr.mxu0 0.0
        %5357 = vmatpush1.msra.mxu0 %v4535
        %5358 = vmatprep.subr.mxu0 0.0
        %5359 = vmatpush1.msra.mxu0 %v4536
        %5360 = vmatprep.subr.mxu0 0.0
        %5361 = vmatpush1.msra.mxu0 %v4537
        %5362 = vmatprep.subr.mxu0 0.0
        %5363 = vmatpush1.msra.mxu0 %v4538
        %5364 = vmatprep.subr.mxu0 0.0
        %5365 = vmatpush1.msra.mxu0 %v4539
        %5366 = vmatprep.subr.mxu0 0.0
        %5367 = vmatpush1.msra.mxu0 %v4540
        %5368 = vmatprep.subr.mxu0 0.0
        %5369 = vmatpush1.msra.mxu0 %v4541
        %5370 = vmatprep.subr.mxu0 0.0
        %5371 = vmatpush1.msra.mxu0 %v4542
        %5372 = vmatprep.subr.mxu0 0.0
        %5373 = vmatpush1.msra.mxu0 %v4543
        %5374 = vmatprep.subr.mxu0 0.0
        %5375 = vmatpush1.msra.mxu0 %v4544
        %5376 = vmatprep.subr.mxu0 0.0
        %5377 = vmatpush1.msra.mxu0 %v4545
        %5378 = vmatprep.subr.mxu0 0.0
        %5379 = vmatpush1.msra.mxu0 %v4546
        %5380 = vmatprep.subr.mxu0 0.0
        %5381 = vmatpush1.msra.mxu0 %v4547
        %5382 = vmatprep.subr.mxu0 0.0
        %5383 = vmatpush1.msra.mxu0 %v4548
        %5384 = vmatprep.subr.mxu0 0.0
        %5385 = vmatpush1.msra.mxu0 0.0
        %5386 = vmatprep.subr.mxu0 0.0
        %5387 = vmatpush1.msra.mxu0 0.0
        %5388 = vmatprep.subr.mxu0 0.0
        %5389 = vmatpush1.msra.mxu0 0.0
        %5390 = vmatprep.subr.mxu0 0.0
        %5391 = vmatpush1.msra.mxu0 0.0
        %5392 = vmatprep.subr.mxu0 0.0
        %5393 = vmatpush1.msra.mxu0 0.0
        %5394 = vmatprep.subr.mxu0 0.0
        %5395 = vmatpush1.msra.mxu0 0.0
        %5396 = vmatprep.subr.mxu0 0.0
        %5397 = vmatpush1.msra.mxu0 0.0
        %5398 = vmatprep.subr.mxu0 0.0
        %5399 = vmatpush1.msra.mxu0 0.0
        %5400 = vmatprep.subr.mxu0 0.0
        %5401 = vmatpush1.msra.mxu0 0.0
        %5402 = vmatprep.subr.mxu0 0.0
        %5403 = vmatpush1.msra.mxu0 0.0
        %5404 = vmatprep.subr.mxu0 0.0
        %5405 = vmatpush1.msra.mxu0 0.0
        %5406 = vmatprep.subr.mxu0 0.0
        %5407 = vmatpush1.msra.mxu0 0.0
        %5408 = vmatprep.subr.mxu0 0.0
        %5409 = vmatpush1.msra.mxu0 0.0
        %5410 = vmatprep.subr.mxu0 0.0
        %5411 = vmatpush1.msra.mxu0 0.0
        %5412 = vmatprep.subr.mxu0 0.0
        %5413 = vmatpush1.msra.mxu0 0.0
        %5414 = vmatprep.subr.mxu0 0.0
        %5415 = vmatpush1.msra.mxu0 0.0
        %5416 = vmatprep.mubr.f32.mxu0 0.0
        %5417 = vmatmul.mubr.f32.gmra.mrb[0].mxu0 %v5350
        %v5418 = vpop.f32.mrb[0].mxu0
        %v5419 = vadd.f32 0.0, %v5418
        %v5420 = vpop.f32.mrb[0].mxu0
        %5421 = vdwg.mxu0
        %v5422 = vadd.f32 %v5341, %v5419
        %v5423 = vadd.f32 %v5422, %v4775
        %v5424 = vmax.f32 %v4777, 0.0
        %5425 = vst [vmem:[#allocation3 + $0x20] sm:$0xff] %v5424
        %v5426 = vmax.f32 %v4990, 0.0
        %5427 = vst [vmem:[#allocation3 + $0x28] sm:$0xff] %v5426
        %v5428 = vmax.f32 %v5203, 0.0
        %5429 = vst [vmem:[#allocation3 + $0x30] sm:$0xff] %v5428
        %v5430 = vmax.f32 %v5423, 0.0
        %5431 = vst [vmem:[#allocation3 + $0x38] sm:$0xff] %v5430
        %v5432 = vld [vmem:[#allocation23] sm:$0xff]
        %v5433 = vld [vmem:[#allocation23 + $0x8] sm:$0xff]
        %v5434 = vld [vmem:[#allocation23 + $0x10] sm:$0xff]
        %v5435 = vld [vmem:[#allocation23 + $0x18] sm:$0xff]
        %v5436 = vld [vmem:[#allocation23 + $0x20] sm:$0xff]
        %v5437 = vld [vmem:[#allocation23 + $0x28] sm:$0xff]
        %v5438 = vld [vmem:[#allocation23 + $0x30] sm:$0xff]
        %v5439 = vld [vmem:[#allocation23 + $0x38] sm:$0xff]
        %v5440 = vld [vmem:[#allocation23 + $0x40] sm:$0xff]
        %v5441 = vld [vmem:[#allocation23 + $0x48] sm:$0xff]
        %v5442 = vld [vmem:[#allocation23 + $0x50] sm:$0xff]
        %v5443 = vld [vmem:[#allocation23 + $0x58] sm:$0xff]
        %v5444 = vld [vmem:[#allocation23 + $0x60] sm:$0xff]
        %v5445 = vld [vmem:[#allocation23 + $0x68] sm:$0xff]
        %v5446 = vld [vmem:[#allocation23 + $0x70] sm:$0xff]
        %v5447 = vld [vmem:[#allocation23 + $0x78] sm:$0xff]
        %s5448 = scalar_lea.vmem [#allocation23], 128
        %v5449 = vld [vmem:[%s5448] sm:$0xff]
        %v5450 = vld [vmem:[%s5448 + $0x8] sm:$0xff]
        %v5451 = vld [vmem:[%s5448 + $0x10] sm:$0xff]
        %v5452 = vld [vmem:[%s5448 + $0x18] sm:$0xff]
        %v5453 = vld [vmem:[%s5448 + $0x20] sm:$0xff]
        %v5454 = vld [vmem:[%s5448 + $0x28] sm:$0xff]
        %v5455 = vld [vmem:[%s5448 + $0x30] sm:$0xff]
        %v5456 = vld [vmem:[%s5448 + $0x38] sm:$0xff]
        %v5457 = vld [vmem:[%s5448 + $0x40] sm:$0xff]
        %v5458 = vld [vmem:[%s5448 + $0x48] sm:$0xff]
        %v5459 = vld [vmem:[%s5448 + $0x50] sm:$0xff]
        %v5460 = vld [vmem:[%s5448 + $0x58] sm:$0xff]
        %v5461 = vld [vmem:[%s5448 + $0x60] sm:$0xff]
        %v5462 = vld [vmem:[%s5448 + $0x68] sm:$0xff]
        %v5463 = vld [vmem:[%s5448 + $0x70] sm:$0xff]
        %v5464 = vld [vmem:[%s5448 + $0x78] sm:$0xff]
        %s5465 = scalar_lea.vmem [#allocation23], 256
        %v5466 = vld [vmem:[%s5465] sm:$0xff]
        %v5467 = vld [vmem:[%s5465 + $0x8] sm:$0xff]
        %v5468 = vld [vmem:[%s5465 + $0x10] sm:$0xff]
        %v5469 = vld [vmem:[%s5465 + $0x18] sm:$0xff]
        %v5470 = vld [vmem:[%s5465 + $0x20] sm:$0xff]
        %v5471 = vld [vmem:[%s5465 + $0x28] sm:$0xff]
        %v5472 = vld [vmem:[%s5465 + $0x30] sm:$0xff]
        %v5473 = vld [vmem:[%s5465 + $0x38] sm:$0xff]
        %v5474 = vld [vmem:[%s5465 + $0x40] sm:$0xff]
        %v5475 = vld [vmem:[%s5465 + $0x48] sm:$0xff]
        %v5476 = vld [vmem:[%s5465 + $0x50] sm:$0xff]
        %v5477 = vld [vmem:[%s5465 + $0x58] sm:$0xff]
        %v5478 = vld [vmem:[%s5465 + $0x60] sm:$0xff]
        %v5479 = vld [vmem:[%s5465 + $0x68] sm:$0xff]
        %v5480 = vld [vmem:[%s5465 + $0x70] sm:$0xff]
        %v5481 = vld [vmem:[%s5465 + $0x78] sm:$0xff]
        %v5482 = vld [vmem:[%s26] sm:$0x1]
        %v5483 = vld [vmem:[#allocation3 + $0x18] sm:$0x80]
        %v5484 = vld [vmem:[#allocation3 + $0x38] sm:$0x7f]
        %v5485 = vld [vmem:[#allocation3 + $0x20] sm:$0xff]
        %5486 = vmatprep.subr.mxu0 0.0
        %5487 = vmatpush1.msra.mxu0 %v5449
        %5488 = vmatprep.subr.mxu0 0.0
        %5489 = vmatpush1.msra.mxu0 %v5450
        %5490 = vmatprep.subr.mxu0 0.0
        %5491 = vmatpush1.msra.mxu0 %v5451
        %5492 = vmatprep.subr.mxu0 0.0
        %5493 = vmatpush1.msra.mxu0 %v5452
        %5494 = vmatprep.subr.mxu0 0.0
        %5495 = vmatpush1.msra.mxu0 %v5453
        %5496 = vmatprep.subr.mxu0 0.0
        %5497 = vmatpush1.msra.mxu0 %v5454
        %5498 = vmatprep.subr.mxu0 0.0
        %5499 = vmatpush1.msra.mxu0 %v5455
        %5500 = vmatprep.subr.mxu0 0.0
        %5501 = vmatpush1.msra.mxu0 %v5456
        %5502 = vmatprep.subr.mxu0 0.0
        %5503 = vmatpush1.msra.mxu0 %v5457
        %5504 = vmatprep.subr.mxu0 0.0
        %5505 = vmatpush1.msra.mxu0 %v5458
        %5506 = vmatprep.subr.mxu0 0.0
        %5507 = vmatpush1.msra.mxu0 %v5459
        %5508 = vmatprep.subr.mxu0 0.0
        %5509 = vmatpush1.msra.mxu0 %v5460
        %5510 = vmatprep.subr.mxu0 0.0
        %5511 = vmatpush1.msra.mxu0 %v5461
        %5512 = vmatprep.subr.mxu0 0.0
        %5513 = vmatpush1.msra.mxu0 %v5462
        %5514 = vmatprep.subr.mxu0 0.0
        %5515 = vmatpush1.msra.mxu0 %v5463
        %5516 = vmatprep.subr.mxu0 0.0
        %5517 = vmatpush1.msra.mxu0 %v5464
        %5518 = vmatprep.subr.mxu0 0.0
        %5519 = vmatpush1.msra.mxu0 0.0
        %5520 = vmatprep.subr.mxu0 0.0
        %5521 = vmatpush1.msra.mxu0 0.0
        %5522 = vmatprep.subr.mxu0 0.0
        %5523 = vmatpush1.msra.mxu0 0.0
        %5524 = vmatprep.subr.mxu0 0.0
        %5525 = vmatpush1.msra.mxu0 0.0
        %5526 = vmatprep.subr.mxu0 0.0
        %5527 = vmatpush1.msra.mxu0 0.0
        %5528 = vmatprep.subr.mxu0 0.0
        %5529 = vmatpush1.msra.mxu0 0.0
        %5530 = vmatprep.subr.mxu0 0.0
        %5531 = vmatpush1.msra.mxu0 0.0
        %5532 = vmatprep.subr.mxu0 0.0
        %5533 = vmatpush1.msra.mxu0 0.0
        %5534 = vmatprep.subr.mxu0 0.0
        %5535 = vmatpush1.msra.mxu0 0.0
        %5536 = vmatprep.subr.mxu0 0.0
        %5537 = vmatpush1.msra.mxu0 0.0
        %5538 = vmatprep.subr.mxu0 0.0
        %5539 = vmatpush1.msra.mxu0 0.0
        %5540 = vmatprep.subr.mxu0 0.0
        %5541 = vmatpush1.msra.mxu0 0.0
        %5542 = vmatprep.subr.mxu0 0.0
        %5543 = vmatpush1.msra.mxu0 0.0
        %5544 = vmatprep.subr.mxu0 0.0
        %5545 = vmatpush1.msra.mxu0 0.0
        %5546 = vmatprep.subr.mxu0 0.0
        %5547 = vmatpush1.msra.mxu0 0.0
        %5548 = vmatprep.subr.mxu0 0.0
        %5549 = vmatpush1.msra.mxu0 0.0
        %5550 = vmatprep.mubr.f32.mxu0 0.0
        %5551 = vmatmul.mubr.f32.gmra.mrb[0].mxu0 %v5485
        %v5552 = vpop.f32.mrb[0].mxu0
        %v5553 = vadd.f32 0.0, %v5552
        %v5554 = vpop.f32.mrb[0].mxu0
        %5555 = vdwg.mxu0
        %v5558 = vrot.slane %v5483, 7
        %v5559 = vrot.slane %v5484, 7
        %v5560 = vsel %vm1157, %v5558, %v5559
        %5562 = vmatprep.subr.mxu0 0.0
        %5563 = vmatpush1.msra.mxu0 %v5432
        %5564 = vmatprep.subr.mxu0 0.0
        %5565 = vmatpush1.msra.mxu0 %v5433
        %5566 = vmatprep.subr.mxu0 0.0
        %5567 = vmatpush1.msra.mxu0 %v5434
        %5568 = vmatprep.subr.mxu0 0.0
        %5569 = vmatpush1.msra.mxu0 %v5435
        %5570 = vmatprep.subr.mxu0 0.0
        %5571 = vmatpush1.msra.mxu0 %v5436
        %5572 = vmatprep.subr.mxu0 0.0
        %5573 = vmatpush1.msra.mxu0 %v5437
        %5574 = vmatprep.subr.mxu0 0.0
        %5575 = vmatpush1.msra.mxu0 %v5438
        %5576 = vmatprep.subr.mxu0 0.0
        %5577 = vmatpush1.msra.mxu0 %v5439
        %5578 = vmatprep.subr.mxu0 0.0
        %5579 = vmatpush1.msra.mxu0 %v5440
        %5580 = vmatprep.subr.mxu0 0.0
        %5581 = vmatpush1.msra.mxu0 %v5441
        %5582 = vmatprep.subr.mxu0 0.0
        %5583 = vmatpush1.msra.mxu0 %v5442
        %5584 = vmatprep.subr.mxu0 0.0
        %5585 = vmatpush1.msra.mxu0 %v5443
        %5586 = vmatprep.subr.mxu0 0.0
        %5587 = vmatpush1.msra.mxu0 %v5444
        %5588 = vmatprep.subr.mxu0 0.0
        %5589 = vmatpush1.msra.mxu0 %v5445
        %5590 = vmatprep.subr.mxu0 0.0
        %5591 = vmatpush1.msra.mxu0 %v5446
        %5592 = vmatprep.subr.mxu0 0.0
        %5593 = vmatpush1.msra.mxu0 %v5447
        %5594 = vmatprep.subr.mxu0 0.0
        %5595 = vmatpush1.msra.mxu0 0.0
        %5596 = vmatprep.subr.mxu0 0.0
        %5597 = vmatpush1.msra.mxu0 0.0
        %5598 = vmatprep.subr.mxu0 0.0
        %5599 = vmatpush1.msra.mxu0 0.0
        %5600 = vmatprep.subr.mxu0 0.0
        %5601 = vmatpush1.msra.mxu0 0.0
        %5602 = vmatprep.subr.mxu0 0.0
        %5603 = vmatpush1.msra.mxu0 0.0
        %5604 = vmatprep.subr.mxu0 0.0
        %5605 = vmatpush1.msra.mxu0 0.0
        %5606 = vmatprep.subr.mxu0 0.0
        %5607 = vmatpush1.msra.mxu0 0.0
        %5608 = vmatprep.subr.mxu0 0.0
        %5609 = vmatpush1.msra.mxu0 0.0
        %5610 = vmatprep.subr.mxu0 0.0
        %5611 = vmatpush1.msra.mxu0 0.0
        %5612 = vmatprep.subr.mxu0 0.0
        %5613 = vmatpush1.msra.mxu0 0.0
        %5614 = vmatprep.subr.mxu0 0.0
        %5615 = vmatpush1.msra.mxu0 0.0
        %5616 = vmatprep.subr.mxu0 0.0
        %5617 = vmatpush1.msra.mxu0 0.0
        %5618 = vmatprep.subr.mxu0 0.0
        %5619 = vmatpush1.msra.mxu0 0.0
        %5620 = vmatprep.subr.mxu0 0.0
        %5621 = vmatpush1.msra.mxu0 0.0
        %5622 = vmatprep.subr.mxu0 0.0
        %5623 = vmatpush1.msra.mxu0 0.0
        %5624 = vmatprep.subr.mxu0 0.0
        %5625 = vmatpush1.msra.mxu0 0.0
        %5626 = vmatprep.mubr.f32.mxu0 0.0
        %5627 = vmatmul.mubr.f32.gmra.mrb[0].mxu0 %v5560
        %v5628 = vpop.f32.mrb[0].mxu0
        %v5629 = vadd.f32 %v5553, %v5628
        %v5630 = vpop.f32.mrb[0].mxu0
        %5631 = vdwg.mxu0
        %v5632 = vld [vmem:[#allocation3 + $0x28] sm:$0xff]
        %5633 = vmatprep.subr.mxu0 0.0
        %5634 = vmatpush1.msra.mxu0 %v5466
        %5635 = vmatprep.subr.mxu0 0.0
        %5636 = vmatpush1.msra.mxu0 %v5467
        %5637 = vmatprep.subr.mxu0 0.0
        %5638 = vmatpush1.msra.mxu0 %v5468
        %5639 = vmatprep.subr.mxu0 0.0
        %5640 = vmatpush1.msra.mxu0 %v5469
        %5641 = vmatprep.subr.mxu0 0.0
        %5642 = vmatpush1.msra.mxu0 %v5470
        %5643 = vmatprep.subr.mxu0 0.0
        %5644 = vmatpush1.msra.mxu0 %v5471
        %5645 = vmatprep.subr.mxu0 0.0
        %5646 = vmatpush1.msra.mxu0 %v5472
        %5647 = vmatprep.subr.mxu0 0.0
        %5648 = vmatpush1.msra.mxu0 %v5473
        %5649 = vmatprep.subr.mxu0 0.0
        %5650 = vmatpush1.msra.mxu0 %v5474
        %5651 = vmatprep.subr.mxu0 0.0
        %5652 = vmatpush1.msra.mxu0 %v5475
        %5653 = vmatprep.subr.mxu0 0.0
        %5654 = vmatpush1.msra.mxu0 %v5476
        %5655 = vmatprep.subr.mxu0 0.0
        %5656 = vmatpush1.msra.mxu0 %v5477
        %5657 = vmatprep.subr.mxu0 0.0
        %5658 = vmatpush1.msra.mxu0 %v5478
        %5659 = vmatprep.subr.mxu0 0.0
        %5660 = vmatpush1.msra.mxu0 %v5479
        %5661 = vmatprep.subr.mxu0 0.0
        %5662 = vmatpush1.msra.mxu0 %v5480
        %5663 = vmatprep.subr.mxu0 0.0
        %5664 = vmatpush1.msra.mxu0 %v5481
        %5665 = vmatprep.subr.mxu0 0.0
        %5666 = vmatpush1.msra.mxu0 0.0
        %5667 = vmatprep.subr.mxu0 0.0
        %5668 = vmatpush1.msra.mxu0 0.0
        %5669 = vmatprep.subr.mxu0 0.0
        %5670 = vmatpush1.msra.mxu0 0.0
        %5671 = vmatprep.subr.mxu0 0.0
        %5672 = vmatpush1.msra.mxu0 0.0
        %5673 = vmatprep.subr.mxu0 0.0
        %5674 = vmatpush1.msra.mxu0 0.0
        %5675 = vmatprep.subr.mxu0 0.0
        %5676 = vmatpush1.msra.mxu0 0.0
        %5677 = vmatprep.subr.mxu0 0.0
        %5678 = vmatpush1.msra.mxu0 0.0
        %5679 = vmatprep.subr.mxu0 0.0
        %5680 = vmatpush1.msra.mxu0 0.0
        %5681 = vmatprep.subr.mxu0 0.0
        %5682 = vmatpush1.msra.mxu0 0.0
        %5683 = vmatprep.subr.mxu0 0.0
        %5684 = vmatpush1.msra.mxu0 0.0
        %5685 = vmatprep.subr.mxu0 0.0
        %5686 = vmatpush1.msra.mxu0 0.0
        %5687 = vmatprep.subr.mxu0 0.0
        %5688 = vmatpush1.msra.mxu0 0.0
        %5689 = vmatprep.subr.mxu0 0.0
        %5690 = vmatpush1.msra.mxu0 0.0
        %5691 = vmatprep.subr.mxu0 0.0
        %5692 = vmatpush1.msra.mxu0 0.0
        %5693 = vmatprep.subr.mxu0 0.0
        %5694 = vmatpush1.msra.mxu0 0.0
        %5695 = vmatprep.subr.mxu0 0.0
        %5696 = vmatpush1.msra.mxu0 0.0
        %5697 = vmatprep.mubr.f32.mxu0 0.0
        %5698 = vmatmul.mubr.f32.gmra.mrb[0].mxu0 %v5632
        %v5699 = vpop.f32.mrb[0].mxu0
        %v5700 = vadd.f32 0.0, %v5699
        %v5701 = vpop.f32.mrb[0].mxu0
        %5702 = vdwg.mxu0
        %v5703 = vadd.f32 %v5629, %v5700
        %v5705 = vlaneseq
        %v5706 = vshrl.u32 %v5705, 7
        %v5707 = vsub.s32 0, %v5706
        %v5708 = vrot.slane %v5482, %v5707
        %v5710 = vadd.f32 %v5703, %v5708
        %5711 = vmatprep.subr.mxu0 0.0
        %5712 = vmatpush1.msra.mxu0 %v5449
        %5713 = vmatprep.subr.mxu0 0.0
        %5714 = vmatpush1.msra.mxu0 %v5450
        %5715 = vmatprep.subr.mxu0 0.0
        %5716 = vmatpush1.msra.mxu0 %v5451
        %5717 = vmatprep.subr.mxu0 0.0
        %5718 = vmatpush1.msra.mxu0 %v5452
        %5719 = vmatprep.subr.mxu0 0.0
        %5720 = vmatpush1.msra.mxu0 %v5453
        %5721 = vmatprep.subr.mxu0 0.0
        %5722 = vmatpush1.msra.mxu0 %v5454
        %5723 = vmatprep.subr.mxu0 0.0
        %5724 = vmatpush1.msra.mxu0 %v5455
        %5725 = vmatprep.subr.mxu0 0.0
        %5726 = vmatpush1.msra.mxu0 %v5456
        %5727 = vmatprep.subr.mxu0 0.0
        %5728 = vmatpush1.msra.mxu0 %v5457
        %5729 = vmatprep.subr.mxu0 0.0
        %5730 = vmatpush1.msra.mxu0 %v5458
        %5731 = vmatprep.subr.mxu0 0.0
        %5732 = vmatpush1.msra.mxu0 %v5459
        %5733 = vmatprep.subr.mxu0 0.0
        %5734 = vmatpush1.msra.mxu0 %v5460
        %5735 = vmatprep.subr.mxu0 0.0
        %5736 = vmatpush1.msra.mxu0 %v5461
        %5737 = vmatprep.subr.mxu0 0.0
        %5738 = vmatpush1.msra.mxu0 %v5462
        %5739 = vmatprep.subr.mxu0 0.0
        %5740 = vmatpush1.msra.mxu0 %v5463
        %5741 = vmatprep.subr.mxu0 0.0
        %5742 = vmatpush1.msra.mxu0 %v5464
        %5743 = vmatprep.subr.mxu0 0.0
        %5744 = vmatpush1.msra.mxu0 0.0
        %5745 = vmatprep.subr.mxu0 0.0
        %5746 = vmatpush1.msra.mxu0 0.0
        %5747 = vmatprep.subr.mxu0 0.0
        %5748 = vmatpush1.msra.mxu0 0.0
        %5749 = vmatprep.subr.mxu0 0.0
        %5750 = vmatpush1.msra.mxu0 0.0
        %5751 = vmatprep.subr.mxu0 0.0
        %5752 = vmatpush1.msra.mxu0 0.0
        %5753 = vmatprep.subr.mxu0 0.0
        %5754 = vmatpush1.msra.mxu0 0.0
        %5755 = vmatprep.subr.mxu0 0.0
        %5756 = vmatpush1.msra.mxu0 0.0
        %5757 = vmatprep.subr.mxu0 0.0
        %5758 = vmatpush1.msra.mxu0 0.0
        %5759 = vmatprep.subr.mxu0 0.0
        %5760 = vmatpush1.msra.mxu0 0.0
        %5761 = vmatprep.subr.mxu0 0.0
        %5762 = vmatpush1.msra.mxu0 0.0
        %5763 = vmatprep.subr.mxu0 0.0
        %5764 = vmatpush1.msra.mxu0 0.0
        %5765 = vmatprep.subr.mxu0 0.0
        %5766 = vmatpush1.msra.mxu0 0.0
        %5767 = vmatprep.subr.mxu0 0.0
        %5768 = vmatpush1.msra.mxu0 0.0
        %5769 = vmatprep.subr.mxu0 0.0
        %5770 = vmatpush1.msra.mxu0 0.0
        %5771 = vmatprep.subr.mxu0 0.0
        %5772 = vmatpush1.msra.mxu0 0.0
        %5773 = vmatprep.subr.mxu0 0.0
        %5774 = vmatpush1.msra.mxu0 0.0
        %5775 = vmatprep.mubr.f32.mxu0 0.0
        %5776 = vmatmul.mubr.f32.gmra.mrb[0].mxu0 %v5632
        %v5777 = vpop.f32.mrb[0].mxu0
        %v5778 = vadd.f32 0.0, %v5777
        %v5779 = vpop.f32.mrb[0].mxu0
        %5780 = vdwg.mxu0
        %5781 = vmatprep.subr.mxu0 0.0
        %5782 = vmatpush1.msra.mxu0 %v5432
        %5783 = vmatprep.subr.mxu0 0.0
        %5784 = vmatpush1.msra.mxu0 %v5433
        %5785 = vmatprep.subr.mxu0 0.0
        %5786 = vmatpush1.msra.mxu0 %v5434
        %5787 = vmatprep.subr.mxu0 0.0
        %5788 = vmatpush1.msra.mxu0 %v5435
        %5789 = vmatprep.subr.mxu0 0.0
        %5790 = vmatpush1.msra.mxu0 %v5436
        %5791 = vmatprep.subr.mxu0 0.0
        %5792 = vmatpush1.msra.mxu0 %v5437
        %5793 = vmatprep.subr.mxu0 0.0
        %5794 = vmatpush1.msra.mxu0 %v5438
        %5795 = vmatprep.subr.mxu0 0.0
        %5796 = vmatpush1.msra.mxu0 %v5439
        %5797 = vmatprep.subr.mxu0 0.0
        %5798 = vmatpush1.msra.mxu0 %v5440
        %5799 = vmatprep.subr.mxu0 0.0
        %5800 = vmatpush1.msra.mxu0 %v5441
        %5801 = vmatprep.subr.mxu0 0.0
        %5802 = vmatpush1.msra.mxu0 %v5442
        %5803 = vmatprep.subr.mxu0 0.0
        %5804 = vmatpush1.msra.mxu0 %v5443
        %5805 = vmatprep.subr.mxu0 0.0
        %5806 = vmatpush1.msra.mxu0 %v5444
        %5807 = vmatprep.subr.mxu0 0.0
        %5808 = vmatpush1.msra.mxu0 %v5445
        %5809 = vmatprep.subr.mxu0 0.0
        %5810 = vmatpush1.msra.mxu0 %v5446
        %5811 = vmatprep.subr.mxu0 0.0
        %5812 = vmatpush1.msra.mxu0 %v5447
        %5813 = vmatprep.subr.mxu0 0.0
        %5814 = vmatpush1.msra.mxu0 0.0
        %5815 = vmatprep.subr.mxu0 0.0
        %5816 = vmatpush1.msra.mxu0 0.0
        %5817 = vmatprep.subr.mxu0 0.0
        %5818 = vmatpush1.msra.mxu0 0.0
        %5819 = vmatprep.subr.mxu0 0.0
        %5820 = vmatpush1.msra.mxu0 0.0
        %5821 = vmatprep.subr.mxu0 0.0
        %5822 = vmatpush1.msra.mxu0 0.0
        %5823 = vmatprep.subr.mxu0 0.0
        %5824 = vmatpush1.msra.mxu0 0.0
        %5825 = vmatprep.subr.mxu0 0.0
        %5826 = vmatpush1.msra.mxu0 0.0
        %5827 = vmatprep.subr.mxu0 0.0
        %5828 = vmatpush1.msra.mxu0 0.0
        %5829 = vmatprep.subr.mxu0 0.0
        %5830 = vmatpush1.msra.mxu0 0.0
        %5831 = vmatprep.subr.mxu0 0.0
        %5832 = vmatpush1.msra.mxu0 0.0
        %5833 = vmatprep.subr.mxu0 0.0
        %5834 = vmatpush1.msra.mxu0 0.0
        %5835 = vmatprep.subr.mxu0 0.0
        %5836 = vmatpush1.msra.mxu0 0.0
        %5837 = vmatprep.subr.mxu0 0.0
        %5838 = vmatpush1.msra.mxu0 0.0
        %5839 = vmatprep.subr.mxu0 0.0
        %5840 = vmatpush1.msra.mxu0 0.0
        %5841 = vmatprep.subr.mxu0 0.0
        %5842 = vmatpush1.msra.mxu0 0.0
        %5843 = vmatprep.subr.mxu0 0.0
        %5844 = vmatpush1.msra.mxu0 0.0
        %5845 = vmatprep.mubr.f32.mxu0 0.0
        %5846 = vmatmul.mubr.f32.gmra.mrb[0].mxu0 %v5485
        %v5847 = vpop.f32.mrb[0].mxu0
        %v5848 = vadd.f32 %v5778, %v5847
        %v5849 = vpop.f32.mrb[0].mxu0
        %5850 = vdwg.mxu0
        %v5851 = vld [vmem:[#allocation3 + $0x30] sm:$0xff]
        %5852 = vmatprep.subr.mxu0 0.0
        %5853 = vmatpush1.msra.mxu0 %v5466
        %5854 = vmatprep.subr.mxu0 0.0
        %5855 = vmatpush1.msra.mxu0 %v5467
        %5856 = vmatprep.subr.mxu0 0.0
        %5857 = vmatpush1.msra.mxu0 %v5468
        %5858 = vmatprep.subr.mxu0 0.0
        %5859 = vmatpush1.msra.mxu0 %v5469
        %5860 = vmatprep.subr.mxu0 0.0
        %5861 = vmatpush1.msra.mxu0 %v5470
        %5862 = vmatprep.subr.mxu0 0.0
        %5863 = vmatpush1.msra.mxu0 %v5471
        %5864 = vmatprep.subr.mxu0 0.0
        %5865 = vmatpush1.msra.mxu0 %v5472
        %5866 = vmatprep.subr.mxu0 0.0
        %5867 = vmatpush1.msra.mxu0 %v5473
        %5868 = vmatprep.subr.mxu0 0.0
        %5869 = vmatpush1.msra.mxu0 %v5474
        %5870 = vmatprep.subr.mxu0 0.0
        %5871 = vmatpush1.msra.mxu0 %v5475
        %5872 = vmatprep.subr.mxu0 0.0
        %5873 = vmatpush1.msra.mxu0 %v5476
        %5874 = vmatprep.subr.mxu0 0.0
        %5875 = vmatpush1.msra.mxu0 %v5477
        %5876 = vmatprep.subr.mxu0 0.0
        %5877 = vmatpush1.msra.mxu0 %v5478
        %5878 = vmatprep.subr.mxu0 0.0
        %5879 = vmatpush1.msra.mxu0 %v5479
        %5880 = vmatprep.subr.mxu0 0.0
        %5881 = vmatpush1.msra.mxu0 %v5480
        %5882 = vmatprep.subr.mxu0 0.0
        %5883 = vmatpush1.msra.mxu0 %v5481
        %5884 = vmatprep.subr.mxu0 0.0
        %5885 = vmatpush1.msra.mxu0 0.0
        %5886 = vmatprep.subr.mxu0 0.0
        %5887 = vmatpush1.msra.mxu0 0.0
        %5888 = vmatprep.subr.mxu0 0.0
        %5889 = vmatpush1.msra.mxu0 0.0
        %5890 = vmatprep.subr.mxu0 0.0
        %5891 = vmatpush1.msra.mxu0 0.0
        %5892 = vmatprep.subr.mxu0 0.0
        %5893 = vmatpush1.msra.mxu0 0.0
        %5894 = vmatprep.subr.mxu0 0.0
        %5895 = vmatpush1.msra.mxu0 0.0
        %5896 = vmatprep.subr.mxu0 0.0
        %5897 = vmatpush1.msra.mxu0 0.0
        %5898 = vmatprep.subr.mxu0 0.0
        %5899 = vmatpush1.msra.mxu0 0.0
        %5900 = vmatprep.subr.mxu0 0.0
        %5901 = vmatpush1.msra.mxu0 0.0
        %5902 = vmatprep.subr.mxu0 0.0
        %5903 = vmatpush1.msra.mxu0 0.0
        %5904 = vmatprep.subr.mxu0 0.0
        %5905 = vmatpush1.msra.mxu0 0.0
        %5906 = vmatprep.subr.mxu0 0.0
        %5907 = vmatpush1.msra.mxu0 0.0
        %5908 = vmatprep.subr.mxu0 0.0
        %5909 = vmatpush1.msra.mxu0 0.0
        %5910 = vmatprep.subr.mxu0 0.0
        %5911 = vmatpush1.msra.mxu0 0.0
        %5912 = vmatprep.subr.mxu0 0.0
        %5913 = vmatpush1.msra.mxu0 0.0
        %5914 = vmatprep.subr.mxu0 0.0
        %5915 = vmatpush1.msra.mxu0 0.0
        %5916 = vmatprep.mubr.f32.mxu0 0.0
        %5917 = vmatmul.mubr.f32.gmra.mrb[0].mxu0 %v5851
        %v5918 = vpop.f32.mrb[0].mxu0
        %v5919 = vadd.f32 0.0, %v5918
        %v5920 = vpop.f32.mrb[0].mxu0
        %5921 = vdwg.mxu0
        %v5922 = vadd.f32 %v5848, %v5919
        %v5923 = vadd.f32 %v5922, %v5708
        %5924 = vmatprep.subr.mxu0 0.0
        %5925 = vmatpush1.msra.mxu0 %v5449
        %5926 = vmatprep.subr.mxu0 0.0
        %5927 = vmatpush1.msra.mxu0 %v5450
        %5928 = vmatprep.subr.mxu0 0.0
        %5929 = vmatpush1.msra.mxu0 %v5451
        %5930 = vmatprep.subr.mxu0 0.0
        %5931 = vmatpush1.msra.mxu0 %v5452
        %5932 = vmatprep.subr.mxu0 0.0
        %5933 = vmatpush1.msra.mxu0 %v5453
        %5934 = vmatprep.subr.mxu0 0.0
        %5935 = vmatpush1.msra.mxu0 %v5454
        %5936 = vmatprep.subr.mxu0 0.0
        %5937 = vmatpush1.msra.mxu0 %v5455
        %5938 = vmatprep.subr.mxu0 0.0
        %5939 = vmatpush1.msra.mxu0 %v5456
        %5940 = vmatprep.subr.mxu0 0.0
        %5941 = vmatpush1.msra.mxu0 %v5457
        %5942 = vmatprep.subr.mxu0 0.0
        %5943 = vmatpush1.msra.mxu0 %v5458
        %5944 = vmatprep.subr.mxu0 0.0
        %5945 = vmatpush1.msra.mxu0 %v5459
        %5946 = vmatprep.subr.mxu0 0.0
        %5947 = vmatpush1.msra.mxu0 %v5460
        %5948 = vmatprep.subr.mxu0 0.0
        %5949 = vmatpush1.msra.mxu0 %v5461
        %5950 = vmatprep.subr.mxu0 0.0
        %5951 = vmatpush1.msra.mxu0 %v5462
        %5952 = vmatprep.subr.mxu0 0.0
        %5953 = vmatpush1.msra.mxu0 %v5463
        %5954 = vmatprep.subr.mxu0 0.0
        %5955 = vmatpush1.msra.mxu0 %v5464
        %5956 = vmatprep.subr.mxu0 0.0
        %5957 = vmatpush1.msra.mxu0 0.0
        %5958 = vmatprep.subr.mxu0 0.0
        %5959 = vmatpush1.msra.mxu0 0.0
        %5960 = vmatprep.subr.mxu0 0.0
        %5961 = vmatpush1.msra.mxu0 0.0
        %5962 = vmatprep.subr.mxu0 0.0
        %5963 = vmatpush1.msra.mxu0 0.0
        %5964 = vmatprep.subr.mxu0 0.0
        %5965 = vmatpush1.msra.mxu0 0.0
        %5966 = vmatprep.subr.mxu0 0.0
        %5967 = vmatpush1.msra.mxu0 0.0
        %5968 = vmatprep.subr.mxu0 0.0
        %5969 = vmatpush1.msra.mxu0 0.0
        %5970 = vmatprep.subr.mxu0 0.0
        %5971 = vmatpush1.msra.mxu0 0.0
        %5972 = vmatprep.subr.mxu0 0.0
        %5973 = vmatpush1.msra.mxu0 0.0
        %5974 = vmatprep.subr.mxu0 0.0
        %5975 = vmatpush1.msra.mxu0 0.0
        %5976 = vmatprep.subr.mxu0 0.0
        %5977 = vmatpush1.msra.mxu0 0.0
        %5978 = vmatprep.subr.mxu0 0.0
        %5979 = vmatpush1.msra.mxu0 0.0
        %5980 = vmatprep.subr.mxu0 0.0
        %5981 = vmatpush1.msra.mxu0 0.0
        %5982 = vmatprep.subr.mxu0 0.0
        %5983 = vmatpush1.msra.mxu0 0.0
        %5984 = vmatprep.subr.mxu0 0.0
        %5985 = vmatpush1.msra.mxu0 0.0
        %5986 = vmatprep.subr.mxu0 0.0
        %5987 = vmatpush1.msra.mxu0 0.0
        %5988 = vmatprep.mubr.f32.mxu0 0.0
        %5989 = vmatmul.mubr.f32.gmra.mrb[0].mxu0 %v5851
        %v5990 = vpop.f32.mrb[0].mxu0
        %v5991 = vadd.f32 0.0, %v5990
        %v5992 = vpop.f32.mrb[0].mxu0
        %5993 = vdwg.mxu0
        %5994 = vmatprep.subr.mxu0 0.0
        %5995 = vmatpush1.msra.mxu0 %v5432
        %5996 = vmatprep.subr.mxu0 0.0
        %5997 = vmatpush1.msra.mxu0 %v5433
        %5998 = vmatprep.subr.mxu0 0.0
        %5999 = vmatpush1.msra.mxu0 %v5434
        %6000 = vmatprep.subr.mxu0 0.0
        %6001 = vmatpush1.msra.mxu0 %v5435
        %6002 = vmatprep.subr.mxu0 0.0
        %6003 = vmatpush1.msra.mxu0 %v5436
        %6004 = vmatprep.subr.mxu0 0.0
        %6005 = vmatpush1.msra.mxu0 %v5437
        %6006 = vmatprep.subr.mxu0 0.0
        %6007 = vmatpush1.msra.mxu0 %v5438
        %6008 = vmatprep.subr.mxu0 0.0
        %6009 = vmatpush1.msra.mxu0 %v5439
        %6010 = vmatprep.subr.mxu0 0.0
        %6011 = vmatpush1.msra.mxu0 %v5440
        %6012 = vmatprep.subr.mxu0 0.0
        %6013 = vmatpush1.msra.mxu0 %v5441
        %6014 = vmatprep.subr.mxu0 0.0
        %6015 = vmatpush1.msra.mxu0 %v5442
        %6016 = vmatprep.subr.mxu0 0.0
        %6017 = vmatpush1.msra.mxu0 %v5443
        %6018 = vmatprep.subr.mxu0 0.0
        %6019 = vmatpush1.msra.mxu0 %v5444
        %6020 = vmatprep.subr.mxu0 0.0
        %6021 = vmatpush1.msra.mxu0 %v5445
        %6022 = vmatprep.subr.mxu0 0.0
        %6023 = vmatpush1.msra.mxu0 %v5446
        %6024 = vmatprep.subr.mxu0 0.0
        %6025 = vmatpush1.msra.mxu0 %v5447
        %6026 = vmatprep.subr.mxu0 0.0
        %6027 = vmatpush1.msra.mxu0 0.0
        %6028 = vmatprep.subr.mxu0 0.0
        %6029 = vmatpush1.msra.mxu0 0.0
        %6030 = vmatprep.subr.mxu0 0.0
        %6031 = vmatpush1.msra.mxu0 0.0
        %6032 = vmatprep.subr.mxu0 0.0
        %6033 = vmatpush1.msra.mxu0 0.0
        %6034 = vmatprep.subr.mxu0 0.0
        %6035 = vmatpush1.msra.mxu0 0.0
        %6036 = vmatprep.subr.mxu0 0.0
        %6037 = vmatpush1.msra.mxu0 0.0
        %6038 = vmatprep.subr.mxu0 0.0
        %6039 = vmatpush1.msra.mxu0 0.0
        %6040 = vmatprep.subr.mxu0 0.0
        %6041 = vmatpush1.msra.mxu0 0.0
        %6042 = vmatprep.subr.mxu0 0.0
        %6043 = vmatpush1.msra.mxu0 0.0
        %6044 = vmatprep.subr.mxu0 0.0
        %6045 = vmatpush1.msra.mxu0 0.0
        %6046 = vmatprep.subr.mxu0 0.0
        %6047 = vmatpush1.msra.mxu0 0.0
        %6048 = vmatprep.subr.mxu0 0.0
        %6049 = vmatpush1.msra.mxu0 0.0
        %6050 = vmatprep.subr.mxu0 0.0
        %6051 = vmatpush1.msra.mxu0 0.0
        %6052 = vmatprep.subr.mxu0 0.0
        %6053 = vmatpush1.msra.mxu0 0.0
        %6054 = vmatprep.subr.mxu0 0.0
        %6055 = vmatpush1.msra.mxu0 0.0
        %6056 = vmatprep.subr.mxu0 0.0
        %6057 = vmatpush1.msra.mxu0 0.0
        %6058 = vmatprep.mubr.f32.mxu0 0.0
        %6059 = vmatmul.mubr.f32.gmra.mrb[0].mxu0 %v5632
        %v6060 = vpop.f32.mrb[0].mxu0
        %v6061 = vadd.f32 %v5991, %v6060
        %v6062 = vpop.f32.mrb[0].mxu0
        %6063 = vdwg.mxu0
        %v6064 = vld [vmem:[#allocation3 + $0x38] sm:$0xff]
        %6065 = vmatprep.subr.mxu0 0.0
        %6066 = vmatpush1.msra.mxu0 %v5466
        %6067 = vmatprep.subr.mxu0 0.0
        %6068 = vmatpush1.msra.mxu0 %v5467
        %6069 = vmatprep.subr.mxu0 0.0
        %6070 = vmatpush1.msra.mxu0 %v5468
        %6071 = vmatprep.subr.mxu0 0.0
        %6072 = vmatpush1.msra.mxu0 %v5469
        %6073 = vmatprep.subr.mxu0 0.0
        %6074 = vmatpush1.msra.mxu0 %v5470
        %6075 = vmatprep.subr.mxu0 0.0
        %6076 = vmatpush1.msra.mxu0 %v5471
        %6077 = vmatprep.subr.mxu0 0.0
        %6078 = vmatpush1.msra.mxu0 %v5472
        %6079 = vmatprep.subr.mxu0 0.0
        %6080 = vmatpush1.msra.mxu0 %v5473
        %6081 = vmatprep.subr.mxu0 0.0
        %6082 = vmatpush1.msra.mxu0 %v5474
        %6083 = vmatprep.subr.mxu0 0.0
        %6084 = vmatpush1.msra.mxu0 %v5475
        %6085 = vmatprep.subr.mxu0 0.0
        %6086 = vmatpush1.msra.mxu0 %v5476
        %6087 = vmatprep.subr.mxu0 0.0
        %6088 = vmatpush1.msra.mxu0 %v5477
        %6089 = vmatprep.subr.mxu0 0.0
        %6090 = vmatpush1.msra.mxu0 %v5478
        %6091 = vmatprep.subr.mxu0 0.0
        %6092 = vmatpush1.msra.mxu0 %v5479
        %6093 = vmatprep.subr.mxu0 0.0
        %6094 = vmatpush1.msra.mxu0 %v5480
        %6095 = vmatprep.subr.mxu0 0.0
        %6096 = vmatpush1.msra.mxu0 %v5481
        %6097 = vmatprep.subr.mxu0 0.0
        %6098 = vmatpush1.msra.mxu0 0.0
        %6099 = vmatprep.subr.mxu0 0.0
        %6100 = vmatpush1.msra.mxu0 0.0
        %6101 = vmatprep.subr.mxu0 0.0
        %6102 = vmatpush1.msra.mxu0 0.0
        %6103 = vmatprep.subr.mxu0 0.0
        %6104 = vmatpush1.msra.mxu0 0.0
        %6105 = vmatprep.subr.mxu0 0.0
        %6106 = vmatpush1.msra.mxu0 0.0
        %6107 = vmatprep.subr.mxu0 0.0
        %6108 = vmatpush1.msra.mxu0 0.0
        %6109 = vmatprep.subr.mxu0 0.0
        %6110 = vmatpush1.msra.mxu0 0.0
        %6111 = vmatprep.subr.mxu0 0.0
        %6112 = vmatpush1.msra.mxu0 0.0
        %6113 = vmatprep.subr.mxu0 0.0
        %6114 = vmatpush1.msra.mxu0 0.0
        %6115 = vmatprep.subr.mxu0 0.0
        %6116 = vmatpush1.msra.mxu0 0.0
        %6117 = vmatprep.subr.mxu0 0.0
        %6118 = vmatpush1.msra.mxu0 0.0
        %6119 = vmatprep.subr.mxu0 0.0
        %6120 = vmatpush1.msra.mxu0 0.0
        %6121 = vmatprep.subr.mxu0 0.0
        %6122 = vmatpush1.msra.mxu0 0.0
        %6123 = vmatprep.subr.mxu0 0.0
        %6124 = vmatpush1.msra.mxu0 0.0
        %6125 = vmatprep.subr.mxu0 0.0
        %6126 = vmatpush1.msra.mxu0 0.0
        %6127 = vmatprep.subr.mxu0 0.0
        %6128 = vmatpush1.msra.mxu0 0.0
        %6129 = vmatprep.mubr.f32.mxu0 0.0
        %6130 = vmatmul.mubr.f32.gmra.mrb[0].mxu0 %v6064
        %v6131 = vpop.f32.mrb[0].mxu0
        %v6132 = vadd.f32 0.0, %v6131
        %v6133 = vpop.f32.mrb[0].mxu0
        %6134 = vdwg.mxu0
        %v6135 = vadd.f32 %v6061, %v6132
        %v6136 = vadd.f32 %v6135, %v5708
        %6137 = vmatprep.subr.mxu0 0.0
        %6138 = vmatpush1.msra.mxu0 %v5449
        %6139 = vmatprep.subr.mxu0 0.0
        %6140 = vmatpush1.msra.mxu0 %v5450
        %6141 = vmatprep.subr.mxu0 0.0
        %6142 = vmatpush1.msra.mxu0 %v5451
        %6143 = vmatprep.subr.mxu0 0.0
        %6144 = vmatpush1.msra.mxu0 %v5452
        %6145 = vmatprep.subr.mxu0 0.0
        %6146 = vmatpush1.msra.mxu0 %v5453
        %6147 = vmatprep.subr.mxu0 0.0
        %6148 = vmatpush1.msra.mxu0 %v5454
        %6149 = vmatprep.subr.mxu0 0.0
        %6150 = vmatpush1.msra.mxu0 %v5455
        %6151 = vmatprep.subr.mxu0 0.0
        %6152 = vmatpush1.msra.mxu0 %v5456
        %6153 = vmatprep.subr.mxu0 0.0
        %6154 = vmatpush1.msra.mxu0 %v5457
        %6155 = vmatprep.subr.mxu0 0.0
        %6156 = vmatpush1.msra.mxu0 %v5458
        %6157 = vmatprep.subr.mxu0 0.0
        %6158 = vmatpush1.msra.mxu0 %v5459
        %6159 = vmatprep.subr.mxu0 0.0
        %6160 = vmatpush1.msra.mxu0 %v5460
        %6161 = vmatprep.subr.mxu0 0.0
        %6162 = vmatpush1.msra.mxu0 %v5461
        %6163 = vmatprep.subr.mxu0 0.0
        %6164 = vmatpush1.msra.mxu0 %v5462
        %6165 = vmatprep.subr.mxu0 0.0
        %6166 = vmatpush1.msra.mxu0 %v5463
        %6167 = vmatprep.subr.mxu0 0.0
        %6168 = vmatpush1.msra.mxu0 %v5464
        %6169 = vmatprep.subr.mxu0 0.0
        %6170 = vmatpush1.msra.mxu0 0.0
        %6171 = vmatprep.subr.mxu0 0.0
        %6172 = vmatpush1.msra.mxu0 0.0
        %6173 = vmatprep.subr.mxu0 0.0
        %6174 = vmatpush1.msra.mxu0 0.0
        %6175 = vmatprep.subr.mxu0 0.0
        %6176 = vmatpush1.msra.mxu0 0.0
        %6177 = vmatprep.subr.mxu0 0.0
        %6178 = vmatpush1.msra.mxu0 0.0
        %6179 = vmatprep.subr.mxu0 0.0
        %6180 = vmatpush1.msra.mxu0 0.0
        %6181 = vmatprep.subr.mxu0 0.0
        %6182 = vmatpush1.msra.mxu0 0.0
        %6183 = vmatprep.subr.mxu0 0.0
        %6184 = vmatpush1.msra.mxu0 0.0
        %6185 = vmatprep.subr.mxu0 0.0
        %6186 = vmatpush1.msra.mxu0 0.0
        %6187 = vmatprep.subr.mxu0 0.0
        %6188 = vmatpush1.msra.mxu0 0.0
        %6189 = vmatprep.subr.mxu0 0.0
        %6190 = vmatpush1.msra.mxu0 0.0
        %6191 = vmatprep.subr.mxu0 0.0
        %6192 = vmatpush1.msra.mxu0 0.0
        %6193 = vmatprep.subr.mxu0 0.0
        %6194 = vmatpush1.msra.mxu0 0.0
        %6195 = vmatprep.subr.mxu0 0.0
        %6196 = vmatpush1.msra.mxu0 0.0
        %6197 = vmatprep.subr.mxu0 0.0
        %6198 = vmatpush1.msra.mxu0 0.0
        %6199 = vmatprep.subr.mxu0 0.0
        %6200 = vmatpush1.msra.mxu0 0.0
        %6201 = vmatprep.mubr.f32.mxu0 0.0
        %6202 = vmatmul.mubr.f32.gmra.mrb[0].mxu0 %v6064
        %v6203 = vpop.f32.mrb[0].mxu0
        %v6204 = vadd.f32 0.0, %v6203
        %v6205 = vpop.f32.mrb[0].mxu0
        %6206 = vdwg.mxu0
        %6207 = vmatprep.subr.mxu0 0.0
        %6208 = vmatpush1.msra.mxu0 %v5432
        %6209 = vmatprep.subr.mxu0 0.0
        %6210 = vmatpush1.msra.mxu0 %v5433
        %6211 = vmatprep.subr.mxu0 0.0
        %6212 = vmatpush1.msra.mxu0 %v5434
        %6213 = vmatprep.subr.mxu0 0.0
        %6214 = vmatpush1.msra.mxu0 %v5435
        %6215 = vmatprep.subr.mxu0 0.0
        %6216 = vmatpush1.msra.mxu0 %v5436
        %6217 = vmatprep.subr.mxu0 0.0
        %6218 = vmatpush1.msra.mxu0 %v5437
        %6219 = vmatprep.subr.mxu0 0.0
        %6220 = vmatpush1.msra.mxu0 %v5438
        %6221 = vmatprep.subr.mxu0 0.0
        %6222 = vmatpush1.msra.mxu0 %v5439
        %6223 = vmatprep.subr.mxu0 0.0
        %6224 = vmatpush1.msra.mxu0 %v5440
        %6225 = vmatprep.subr.mxu0 0.0
        %6226 = vmatpush1.msra.mxu0 %v5441
        %6227 = vmatprep.subr.mxu0 0.0
        %6228 = vmatpush1.msra.mxu0 %v5442
        %6229 = vmatprep.subr.mxu0 0.0
        %6230 = vmatpush1.msra.mxu0 %v5443
        %6231 = vmatprep.subr.mxu0 0.0
        %6232 = vmatpush1.msra.mxu0 %v5444
        %6233 = vmatprep.subr.mxu0 0.0
        %6234 = vmatpush1.msra.mxu0 %v5445
        %6235 = vmatprep.subr.mxu0 0.0
        %6236 = vmatpush1.msra.mxu0 %v5446
        %6237 = vmatprep.subr.mxu0 0.0
        %6238 = vmatpush1.msra.mxu0 %v5447
        %6239 = vmatprep.subr.mxu0 0.0
        %6240 = vmatpush1.msra.mxu0 0.0
        %6241 = vmatprep.subr.mxu0 0.0
        %6242 = vmatpush1.msra.mxu0 0.0
        %6243 = vmatprep.subr.mxu0 0.0
        %6244 = vmatpush1.msra.mxu0 0.0
        %6245 = vmatprep.subr.mxu0 0.0
        %6246 = vmatpush1.msra.mxu0 0.0
        %6247 = vmatprep.subr.mxu0 0.0
        %6248 = vmatpush1.msra.mxu0 0.0
        %6249 = vmatprep.subr.mxu0 0.0
        %6250 = vmatpush1.msra.mxu0 0.0
        %6251 = vmatprep.subr.mxu0 0.0
        %6252 = vmatpush1.msra.mxu0 0.0
        %6253 = vmatprep.subr.mxu0 0.0
        %6254 = vmatpush1.msra.mxu0 0.0
        %6255 = vmatprep.subr.mxu0 0.0
        %6256 = vmatpush1.msra.mxu0 0.0
        %6257 = vmatprep.subr.mxu0 0.0
        %6258 = vmatpush1.msra.mxu0 0.0
        %6259 = vmatprep.subr.mxu0 0.0
        %6260 = vmatpush1.msra.mxu0 0.0
        %6261 = vmatprep.subr.mxu0 0.0
        %6262 = vmatpush1.msra.mxu0 0.0
        %6263 = vmatprep.subr.mxu0 0.0
        %6264 = vmatpush1.msra.mxu0 0.0
        %6265 = vmatprep.subr.mxu0 0.0
        %6266 = vmatpush1.msra.mxu0 0.0
        %6267 = vmatprep.subr.mxu0 0.0
        %6268 = vmatpush1.msra.mxu0 0.0
        %6269 = vmatprep.subr.mxu0 0.0
        %6270 = vmatpush1.msra.mxu0 0.0
        %6271 = vmatprep.mubr.f32.mxu0 0.0
        %6272 = vmatmul.mubr.f32.gmra.mrb[0].mxu0 %v5851
        %v6273 = vpop.f32.mrb[0].mxu0
        %v6274 = vadd.f32 %v6204, %v6273
        %v6275 = vpop.f32.mrb[0].mxu0
        %6276 = vdwg.mxu0
        %v6277 = vld [vmem:[#allocation3 + $0x20] sm:$0xfe]
        %v6278 = vld [vmem:[#allocation3 + $0x40] sm:$0x1]
        %v6281 = vrot.slane %v6277, 1
        %v6282 = vrot.slane %v6278, 1
        %v6283 = vsel %vm1236, %v6281, %v6282
        %6285 = vmatprep.subr.mxu0 0.0
        %6286 = vmatpush1.msra.mxu0 %v5466
        %6287 = vmatprep.subr.mxu0 0.0
        %6288 = vmatpush1.msra.mxu0 %v5467
        %6289 = vmatprep.subr.mxu0 0.0
        %6290 = vmatpush1.msra.mxu0 %v5468
        %6291 = vmatprep.subr.mxu0 0.0
        %6292 = vmatpush1.msra.mxu0 %v5469
        %6293 = vmatprep.subr.mxu0 0.0
        %6294 = vmatpush1.msra.mxu0 %v5470
        %6295 = vmatprep.subr.mxu0 0.0
        %6296 = vmatpush1.msra.mxu0 %v5471
        %6297 = vmatprep.subr.mxu0 0.0
        %6298 = vmatpush1.msra.mxu0 %v5472
        %6299 = vmatprep.subr.mxu0 0.0
        %6300 = vmatpush1.msra.mxu0 %v5473
        %6301 = vmatprep.subr.mxu0 0.0
        %6302 = vmatpush1.msra.mxu0 %v5474
        %6303 = vmatprep.subr.mxu0 0.0
        %6304 = vmatpush1.msra.mxu0 %v5475
        %6305 = vmatprep.subr.mxu0 0.0
        %6306 = vmatpush1.msra.mxu0 %v5476
        %6307 = vmatprep.subr.mxu0 0.0
        %6308 = vmatpush1.msra.mxu0 %v5477
        %6309 = vmatprep.subr.mxu0 0.0
        %6310 = vmatpush1.msra.mxu0 %v5478
        %6311 = vmatprep.subr.mxu0 0.0
        %6312 = vmatpush1.msra.mxu0 %v5479
        %6313 = vmatprep.subr.mxu0 0.0
        %6314 = vmatpush1.msra.mxu0 %v5480
        %6315 = vmatprep.subr.mxu0 0.0
        %6316 = vmatpush1.msra.mxu0 %v5481
        %6317 = vmatprep.subr.mxu0 0.0
        %6318 = vmatpush1.msra.mxu0 0.0
        %6319 = vmatprep.subr.mxu0 0.0
        %6320 = vmatpush1.msra.mxu0 0.0
        %6321 = vmatprep.subr.mxu0 0.0
        %6322 = vmatpush1.msra.mxu0 0.0
        %6323 = vmatprep.subr.mxu0 0.0
        %6324 = vmatpush1.msra.mxu0 0.0
        %6325 = vmatprep.subr.mxu0 0.0
        %6326 = vmatpush1.msra.mxu0 0.0
        %6327 = vmatprep.subr.mxu0 0.0
        %6328 = vmatpush1.msra.mxu0 0.0
        %6329 = vmatprep.subr.mxu0 0.0
        %6330 = vmatpush1.msra.mxu0 0.0
        %6331 = vmatprep.subr.mxu0 0.0
        %6332 = vmatpush1.msra.mxu0 0.0
        %6333 = vmatprep.subr.mxu0 0.0
        %6334 = vmatpush1.msra.mxu0 0.0
        %6335 = vmatprep.subr.mxu0 0.0
        %6336 = vmatpush1.msra.mxu0 0.0
        %6337 = vmatprep.subr.mxu0 0.0
        %6338 = vmatpush1.msra.mxu0 0.0
        %6339 = vmatprep.subr.mxu0 0.0
        %6340 = vmatpush1.msra.mxu0 0.0
        %6341 = vmatprep.subr.mxu0 0.0
        %6342 = vmatpush1.msra.mxu0 0.0
        %6343 = vmatprep.subr.mxu0 0.0
        %6344 = vmatpush1.msra.mxu0 0.0
        %6345 = vmatprep.subr.mxu0 0.0
        %6346 = vmatpush1.msra.mxu0 0.0
        %6347 = vmatprep.subr.mxu0 0.0
        %6348 = vmatpush1.msra.mxu0 0.0
        %6349 = vmatprep.mubr.f32.mxu0 0.0
        %6350 = vmatmul.mubr.f32.gmra.mrb[0].mxu0 %v6283
        %v6351 = vpop.f32.mrb[0].mxu0
        %v6352 = vadd.f32 0.0, %v6351
        %v6353 = vpop.f32.mrb[0].mxu0
        %6354 = vdwg.mxu0
        %v6355 = vadd.f32 %v6274, %v6352
        %v6356 = vadd.f32 %v6355, %v5708
        %6357 = vst [vmem:[%s1004] sm:$0xff] %v5710
        %s6358 = scalar_lea.vmem %s1004, 8
        %6359 = vst [vmem:[%s6358] sm:$0xff] %v5923
        %s6360 = scalar_lea.vmem %s1004, 16
        %6361 = vst [vmem:[%s6360] sm:$0xff] %v6136
        %s6362 = scalar_lea.vmem %s1004, 24
        %6363 = vst [vmem:[%s6362] sm:$0xff] %v6356
        %p6364 = scmp.lt.s32.totalorder %s45, 1
        %s6365 = scalar_select %p6364, %s45, 1
        %s6366 = smul.addr %s6365, 4
        %s6367 = smul.addr %s6366, 8
        %s6368 = scalar_lea.vmem %s27, %s6367
        // Predicated region
        $region181: #{spatial_mlp_decoder_forward.1} parent=127 // pred_check
          %p6369 = pneg %p635
        $region182: #{spatial_mlp_decoder_forward.1} parent=127 // pred_check_branch
          %6371 = sbr.rel (%p6369) target = $region184
        $region183: #{spatial_mlp_decoder_forward.1} parent=127 // pred_region
          _
        $region184: #{spatial_mlp_decoder_forward.1} parent=127 // pred_fallthru
          _
      $region128: #{spatial_mlp_decoder_forward.1} parent=5 // pred_fallthru
        _
      %p6372 = scmp.le.s32.totalorder 2, %s40
      // Predicated region
      $region185: #{spatial_mlp_decoder_forward.1} parent=5 // pred_check
        %p6373 = pneg %p6372
      $region186: #{spatial_mlp_decoder_forward.1} parent=5 // pred_check_branch
        %6375 = sbr.rel (%p6373) target = $region188
      $region187: #{spatial_mlp_decoder_forward.1} parent=5 // pred_region
        %s6376 = ssub.s32 %s40, 2
        // Predicated region
        $region189: #{spatial_mlp_decoder_forward.1} parent=187 // pred_check
          %p6377 = pneg %p641
        $region190: #{spatial_mlp_decoder_forward.1} parent=187 // pred_check_branch
          %6379 = sbr.rel (%p6377) target = $region192
        $region191: #{spatial_mlp_decoder_forward.1} parent=187 // pred_region
          %p6380 = scmp.lt.s32.totalorder %s46, 1
          %s6381 = scalar_select %p6380, %s46, 1
          %s6382 = smul.addr %s6381, 4
          %s6383 = smul.addr %s6382, 8
          %s6384 = scalar_lea.vmem %s27, %s6383
        $region192: #{spatial_mlp_decoder_forward.1} parent=187 // pred_fallthru
          _
      $region188: #{spatial_mlp_decoder_forward.1} parent=5 // pred_fallthru
        _
    $region6: #{spatial_mlp_decoder_forward.1} parent=1 // loop_footer
      %s44 = sadd.s32 1, %s40
    $region7: #{spatial_mlp_decoder_forward.1} parent=1 // loop_footer_branch
      %39 = sbr.rel target = $region3
    $region8: #{spatial_mlp_decoder_forward.1} parent=1 // loop_exit
      _
    %6385 = vsyncpa [#allocation5], 1
    %s6386 = scalar_lea.sflag [#allocation5], 1
    %6387 = vsyncpa %s6386, 1
    %6388 = vsyncpa [#allocation7], 1
    %6389 = vsyncpa [#allocation10], 1
    %6390 = vsyncpa [#allocation13], 1
    %6391 = vsyncpa [#allocation16], 1
    %6392 = vsyncpa [#allocation19], 1
    %6393 = vsyncpa [#allocation22], 1

</llo_original>
